<compile_context>
chip_gen: v7x
topology: tpu7x:2x2x1
jax: 0.10.0
libtpu: 0.0.40
codegen_flags: <defaults>
</compile_context>

<pallas_src>
import functools

import jax
import jax.numpy as jnp
from jax import lax
from jax.experimental import pallas as pl
from jax.experimental.pallas import tpu as pltpu

EPS = 1e-5
K_GROWTH = 32          # k in the PyTorch script
C_MID = 4 * K_GROWTH   # 128
LANES = 128

# bf16 MXU operands for the packed 3x3 tap matmul (v6e/v7x suggestion). Kept
# off by default: the MXU is nowhere near the binding slot here and f32 keeps
# the forward bit-faithful to the PyTorch module within the 2e-3 check below.
USE_BF16_TAP_MATMUL = False


def _round_up(x, m):
    return (x + m - 1) // m * m


def dense_layer_kernel(x_ref, g1_ref, b1_ref, w1_ref, g2_ref, b2_ref,
                       w2p_ref, mask_ref, o_ref, t_ref, *, width, c_slab):
    """Fused BN1+ReLU -> 1x1 conv -> BN2+ReLU -> 3x3 conv (pad=1) -> concat.

    x_ref   : (NHW, C_SLAB)    flattened NHWC input, x in lanes [0, Cin)
    g1/b1   : (1, C_SLAB)      BN1 gamma / beta (zero-padded)
    w1      : (C_SLAB, Cmid)   1x1 conv weight (zero rows past Cin)
    g2/b2   : (1, Cmid)        BN2 gamma / beta
    w2p     : (Cmid, 9*C_SLAB) 3x3 weights; tap kidx=3*ky+kx occupies lanes
                               [kidx*C_SLAB + Cin, kidx*C_SLAB + Cin + Cout)
    mask    : (NHW, 9*C_SLAB)  1.0 where the source pixel's tap-kidx
                               contribution lands inside the image
    o_ref   : (NHW, C_SLAB)    [x | conv2 out | zeros]  (channel concat fused)
    t_ref   : (NHW, 9*C_SLAB)  VMEM scratch: masked packed-tap matmul output
    """
    nhw = x_ref.shape[0]
    inv_n = 1.0 / nhw

    # ---- BN1 (training-mode batch stats, two-pass variance) + ReLU ---------
    x = x_ref[...]
    mean1 = jnp.sum(x, axis=0, keepdims=True) * inv_n
    xc = x - mean1
    var1 = jnp.sum(xc * xc, axis=0, keepdims=True) * inv_n
    h = jnp.maximum(xc * lax.rsqrt(var1 + EPS) * g1_ref[...] + b1_ref[...], 0.0)

    # ---- 1x1 conv == channel matmul (padded rows of w1 are zero) -----------
    y1 = jnp.dot(h, w1_ref[...], preferred_element_type=jnp.float32)

    # ---- BN2 (two-pass batch stats) + ReLU ----------------------------------
    mean2 = jnp.sum(y1, axis=0, keepdims=True) * inv_n
    yc = y1 - mean2
    var2 = jnp.sum(yc * yc, axis=0, keepdims=True) * inv_n
    y1n = jnp.maximum(yc * lax.rsqrt(var2 + EPS) * g2_ref[...] + b2_ref[...], 0.0)

    # ---- 3x3 conv: ONE wide MXU matmul covering all 9 taps, masked once ----
    # Source-indexed validity: rows whose tap contribution would land outside
    # the image (incl. cross-image wrap) are zeroed BEFORE the rolls; jnp.where
    # keeps this NaN-safe.
    t_ref[...] = jnp.where(
        mask_ref[...] > 0.5,
        jnp.dot(y1n.astype(w2p_ref.dtype), w2p_ref[...],
                preferred_element_type=jnp.float32),
        0.0)

    # ---- spatial shift-and-add over lane-aligned 128-wide slabs -------------
    # Flat row p = (n*H + y)*W + x, so tap (ky,kx) is a sublane roll by
    # -((ky-1)*W + (kx-1)); wrap-around garbage was already zeroed above.
    # Centre tap needs no roll; accumulate locally, store o_ref exactly once.
    acc = t_ref[:, 4 * c_slab:5 * c_slab]
    for ky in range(3):
        for kx in range(3):
            kidx = 3 * ky + kx
            if kidx == 4:
                continue
            shift = (-((ky - 1) * width + (kx - 1))) % nhw
            acc = acc + pltpu.roll(
                t_ref[:, kidx * c_slab:(kidx + 1) * c_slab], shift, 0)

    # ---- fused channel concat + single lane-dense store ---------------------
    # acc: conv2 output in lanes [Cin, Cin+Cout); x_ref: input in lanes [0, Cin).
    o_ref[...] = acc + x_ref[...]


@jax.jit
def dense_layer_forward(x_nchw, g1, b1, w1, g2, b2, w2):
    """Full DenseLayer forward.  x_nchw: (N, Cin, H, W) -> (N, Cin + k, H, W)."""
    N, Cin, H, W = x_nchw.shape
    Cmid = w1.shape[1]
    Cout = w2.shape[3]
    NHW = N * H * W
    c_slab = _round_up(Cin + Cout, LANES)   # lane-aligned slab / output width

    # NCHW -> flattened NHWC, zero-padded to the slab width so every vector op
    # and store in the kernel is lane-dense.
    # TODO(synk): at production shapes accept/emit NHWC at the model boundary
    # (these two XLA transposes are pure HBM relayout passes).
    x_flat = jnp.transpose(x_nchw, (0, 2, 3, 1)).reshape(NHW, Cin)
    x_pad = jnp.pad(x_flat.astype(jnp.float32), ((0, 0), (0, c_slab - Cin)))

    g1p = jnp.pad(g1.reshape(1, Cin).astype(jnp.float32),
                  ((0, 0), (0, c_slab - Cin)))
    b1p = jnp.pad(b1.reshape(1, Cin).astype(jnp.float32),
                  ((0, 0), (0, c_slab - Cin)))
    w1p = jnp.pad(w1.astype(jnp.float32), ((0, c_slab - Cin), (0, 0)))
    g2r = g2.reshape(1, Cmid).astype(jnp.float32)
    b2r = b2.reshape(1, Cmid).astype(jnp.float32)

    # Pack the 9 taps along the matmul output dim: one lane-aligned, 128-wide
    # slab per tap, real columns at lane offset Cin so the conv output lands
    # directly in its concat position.
    w2_taps = jnp.transpose(w2.astype(jnp.float32), (2, 0, 1, 3))  # (Cmid,3,3,Cout)
    w2_taps = w2_taps.reshape(Cmid, 9, Cout)
    w2p = jnp.zeros((Cmid, 9, c_slab), jnp.float32)
    w2p = w2p.at[:, :, Cin:Cin + Cout].set(w2_taps).reshape(Cmid, 9 * c_slab)
    if USE_BF16_TAP_MATMUL:
        w2p = w2p.astype(jnp.bfloat16)   # re-validate tolerance before enabling

    # Source-indexed border-validity mask, pre-broadcast to full slab width so
    # the kernel applies it with ONE dense select (no per-tap lane broadcasts).
    p = jnp.arange(NHW)
    xs = p % W
    ys = (p // W) % H
    cols = []
    for ky in range(3):
        for kx in range(3):
            dy, dx = ky - 1, kx - 1
            ok = ((ys - dy >= 0) & (ys - dy < H) &
                  (xs - dx >= 0) & (xs - dx < W))
            cols.append(ok)
    mask9 = jnp.stack(cols, axis=1).astype(jnp.float32)            # (NHW, 9)
    maskp = jnp.broadcast_to(mask9[:, :, None], (NHW, 9, c_slab))
    maskp = maskp.reshape(NHW, 9 * c_slab)

    # VMEM budget derived from the actual footprint; capped at 48 MiB so the
    # same configuration stays safe on v7x (64 MiB physical VMEM).
    footprint = (4 * (x_pad.size + w1p.size + g1p.size + b1p.size + g2r.size
                      + b2r.size + maskp.size + NHW * c_slab)
                 + w2p.dtype.itemsize * w2p.size
                 + 4 * NHW * 9 * c_slab)                           # t scratch
    vmem_limit = min(max(int(footprint * 3 // 2), 16 * 1024 * 1024),
                     48 * 1024 * 1024)

    vmem = pl.BlockSpec(memory_space=pltpu.MemorySpace.VMEM)
    out_pad = pl.pallas_call(
        functools.partial(dense_layer_kernel, width=W, c_slab=c_slab),
        out_shape=jax.ShapeDtypeStruct((NHW, c_slab), jnp.float32),
        in_specs=[vmem] * 8,
        out_specs=vmem,
        scratch_shapes=[pltpu.VMEM((NHW, 9 * c_slab), jnp.float32)],
        compiler_params=pltpu.CompilerParams(vmem_limit_bytes=vmem_limit),
    )(x_pad, g1p, b1p, w1p, g2r, b2r, w2p, maskp)

    # torch.cat([xin, conv2], 1) is already fused into the kernel output; just
    # drop the pad lanes and go back to NCHW.
    out = out_pad[:, :Cin + Cout].reshape(N, H, W, Cin + Cout)
    return jnp.transpose(out, (0, 3, 1, 2)).astype(x_nchw.dtype)


def dense_layer_reference(x_nchw, g1, b1, w1, g2, b2, w2):
    """Pure-JAX reference (NCHW, lax convs) mirroring the PyTorch forward."""
    def bn_train(x, gamma, beta):
        mean = jnp.mean(x, axis=(0, 2, 3), keepdims=True)
        var = jnp.mean((x - mean) ** 2, axis=(0, 2, 3), keepdims=True)
        g = gamma.reshape(1, -1, 1, 1)
        b = beta.reshape(1, -1, 1, 1)
        return (x - mean) * lax.rsqrt(var + EPS) * g + b

    h = jnp.maximum(bn_train(x_nchw, g1, b1), 0.0)
    w1_oihw = jnp.transpose(w1, (1, 0)).reshape(w1.shape[1], w1.shape[0], 1, 1)
    y1 = lax.conv_general_dilated(h, w1_oihw, (1, 1), 'VALID',
                                  dimension_numbers=('NCHW', 'OIHW', 'NCHW'),
                                  precision=lax.Precision.HIGHEST)
    y1 = jnp.maximum(bn_train(y1, g2, b2), 0.0)
    w2_oihw = jnp.transpose(w2, (3, 2, 0, 1))
    y2 = lax.conv_general_dilated(y1, w2_oihw, (1, 1), ((1, 1), (1, 1)),
                                  dimension_numbers=('NCHW', 'OIHW', 'NCHW'),
                                  precision=lax.Precision.HIGHEST)
    return jnp.concatenate([x_nchw, y2], axis=1)


if __name__ == "__main__":
    # Small shapes consistent with the module: batch=2, in_channels=4, 16x16.
    N, Cin, H, W = 2, 4, 16, 16
    Cout = K_GROWTH

    key = jax.random.PRNGKey(0)
    kx, k1, k2, k3, k4, k5, k6 = jax.random.split(key, 7)

    x = jax.random.normal(kx, (N, Cin, H, W), dtype=jnp.float32)

    # Deterministic synthetic parameters (shapes implied by __init__).
    g1 = 1.0 + 0.1 * jax.random.normal(k1, (1, Cin), dtype=jnp.float32)       # BN1 weight
    b1 = 0.1 * jax.random.normal(k2, (1, Cin), dtype=jnp.float32)             # BN1 bias
    w1 = 0.1 * jax.random.normal(k3, (Cin, C_MID), dtype=jnp.float32)         # conv1 (1x1)
    g2 = 1.0 + 0.1 * jax.random.normal(k4, (1, C_MID), dtype=jnp.float32)     # BN2 weight
    b2 = 0.1 * jax.random.normal(k5, (1, C_MID), dtype=jnp.float32)           # BN2 bias
    w2 = 0.05 * jax.random.normal(k6, (3, 3, C_MID, Cout), dtype=jnp.float32)  # conv2 (3x3)

    out = dense_layer_forward(x, g1, b1, w1, g2, b2, w2)
    out = jax.block_until_ready(out)
    assert out.shape == (N, Cin + Cout, H, W), out.shape

    ref = dense_layer_reference(x, g1, b1, w1, g2, b2, w2)
    assert jnp.allclose(out, ref, atol=2e-3, rtol=2e-3), float(
        jnp.max(jnp.abs(out - ref)))

    print("KERNEL_OK")
</pallas_src>

<mosaic_0001>
module attributes {stable_mosaic.version = 11 : i64} {
  func.func @dense_layer_kernel(%arg0: memref<512x128xf32, #tpu.memory_space<vmem>>, %arg1: memref<1x128xf32, #tpu.memory_space<vmem>>, %arg2: memref<1x128xf32, #tpu.memory_space<vmem>>, %arg3: memref<128x128xf32, #tpu.memory_space<vmem>>, %arg4: memref<1x128xf32, #tpu.memory_space<vmem>>, %arg5: memref<1x128xf32, #tpu.memory_space<vmem>>, %arg6: memref<128x1152xf32, #tpu.memory_space<vmem>>, %arg7: memref<512x1152xf32, #tpu.memory_space<vmem>>, %arg8: memref<512x128xf32, #tpu.memory_space<vmem>>, %arg9: memref<512x1152xf32, #tpu.memory_space<vmem>>) attributes {dimension_semantics = [], scalar_prefetch = 0 : i64, scratch_operands = 1 : i64, tpu.core_type = #tpu.core_type<tc>} {
    %c0 = arith.constant 0 : index
    %c0_0 = arith.constant 0 : index
    %0 = vector.load %arg0[%c0, %c0_0] : memref<512x128xf32, #tpu.memory_space<vmem>>, vector<512x128xf32>
    %cst = arith.constant dense<0.000000e+00> : vector<128xf32>
    %1 = vector.multi_reduction <add>, %0, %cst [0] : vector<512x128xf32> to vector<128xf32>
    %2 = vector.shape_cast %1 : vector<128xf32> to vector<1x128xf32>
    %cst_1 = arith.constant 0.001953125 : f32
    %3 = vector.broadcast %cst_1 : f32 to vector<1x128xf32>
    %4 = arith.mulf %2, %3 : vector<1x128xf32>
    %5 = vector.broadcast %4 : vector<1x128xf32> to vector<512x128xf32>
    %6 = arith.subf %0, %5 : vector<512x128xf32>
    %7 = arith.mulf %6, %6 : vector<512x128xf32>
    %cst_2 = arith.constant dense<0.000000e+00> : vector<128xf32>
    %8 = vector.multi_reduction <add>, %7, %cst_2 [0] : vector<512x128xf32> to vector<128xf32>
    %9 = vector.shape_cast %8 : vector<128xf32> to vector<1x128xf32>
    %cst_3 = arith.constant 0.001953125 : f32
    %10 = vector.broadcast %cst_3 : f32 to vector<1x128xf32>
    %11 = arith.mulf %9, %10 : vector<1x128xf32>
    %cst_4 = arith.constant 9.99999974E-6 : f32
    %12 = vector.broadcast %cst_4 : f32 to vector<1x128xf32>
    %13 = arith.addf %11, %12 : vector<1x128xf32>
    %14 = math.rsqrt %13 : vector<1x128xf32>
    %15 = vector.broadcast %14 : vector<1x128xf32> to vector<512x128xf32>
    %16 = arith.mulf %6, %15 : vector<512x128xf32>
    %c0_5 = arith.constant 0 : index
    %c0_6 = arith.constant 0 : index
    %17 = vector.load %arg1[%c0_5, %c0_6] : memref<1x128xf32, #tpu.memory_space<vmem>>, vector<1x128xf32>
    %18 = vector.broadcast %17 : vector<1x128xf32> to vector<512x128xf32>
    %19 = arith.mulf %16, %18 : vector<512x128xf32>
    %c0_7 = arith.constant 0 : index
    %c0_8 = arith.constant 0 : index
    %20 = vector.load %arg2[%c0_7, %c0_8] : memref<1x128xf32, #tpu.memory_space<vmem>>, vector<1x128xf32>
    %21 = vector.broadcast %20 : vector<1x128xf32> to vector<512x128xf32>
    %22 = arith.addf %19, %21 : vector<512x128xf32>
    %cst_9 = arith.constant 0.000000e+00 : f32
    %23 = vector.broadcast %cst_9 : f32 to vector<512x128xf32>
    %24 = arith.maximumf %22, %23 : vector<512x128xf32>
    %c0_10 = arith.constant 0 : index
    %c0_11 = arith.constant 0 : index
    %25 = vector.load %arg3[%c0_10, %c0_11] : memref<128x128xf32, #tpu.memory_space<vmem>>, vector<128x128xf32>
    %cst_12 = arith.constant dense<0.000000e+00> : vector<512x128xf32>
    %26 = tpu.matmul %24, %25, %cst_12 {dimension_numbers = #tpu.dot_dimension_numbers<[1], [0], [0], [1], [0, 0, 1, 1], [], []>} : vector<512x128xf32>, vector<128x128xf32>, vector<512x128xf32> -> vector<512x128xf32>
    %cst_13 = arith.constant dense<0.000000e+00> : vector<128xf32>
    %27 = vector.multi_reduction <add>, %26, %cst_13 [0] : vector<512x128xf32> to vector<128xf32>
    %28 = vector.shape_cast %27 : vector<128xf32> to vector<1x128xf32>
    %cst_14 = arith.constant 0.001953125 : f32
    %29 = vector.broadcast %cst_14 : f32 to vector<1x128xf32>
    %30 = arith.mulf %28, %29 : vector<1x128xf32>
    %31 = vector.broadcast %30 : vector<1x128xf32> to vector<512x128xf32>
    %32 = arith.subf %26, %31 : vector<512x128xf32>
    %33 = arith.mulf %32, %32 : vector<512x128xf32>
    %cst_15 = arith.constant dense<0.000000e+00> : vector<128xf32>
    %34 = vector.multi_reduction <add>, %33, %cst_15 [0] : vector<512x128xf32> to vector<128xf32>
    %35 = vector.shape_cast %34 : vector<128xf32> to vector<1x128xf32>
    %cst_16 = arith.constant 0.001953125 : f32
    %36 = vector.broadcast %cst_16 : f32 to vector<1x128xf32>
    %37 = arith.mulf %35, %36 : vector<1x128xf32>
    %cst_17 = arith.constant 9.99999974E-6 : f32
    %38 = vector.broadcast %cst_17 : f32 to vector<1x128xf32>
    %39 = arith.addf %37, %38 : vector<1x128xf32>
    %40 = math.rsqrt %39 : vector<1x128xf32>
    %41 = vector.broadcast %40 : vector<1x128xf32> to vector<512x128xf32>
    %42 = arith.mulf %32, %41 : vector<512x128xf32>
    %c0_18 = arith.constant 0 : index
    %c0_19 = arith.constant 0 : index
    %43 = vector.load %arg4[%c0_18, %c0_19] : memref<1x128xf32, #tpu.memory_space<vmem>>, vector<1x128xf32>
    %44 = vector.broadcast %43 : vector<1x128xf32> to vector<512x128xf32>
    %45 = arith.mulf %42, %44 : vector<512x128xf32>
    %c0_20 = arith.constant 0 : index
    %c0_21 = arith.constant 0 : index
    %46 = vector.load %arg5[%c0_20, %c0_21] : memref<1x128xf32, #tpu.memory_space<vmem>>, vector<1x128xf32>
    %47 = vector.broadcast %46 : vector<1x128xf32> to vector<512x128xf32>
    %48 = arith.addf %45, %47 : vector<512x128xf32>
    %cst_22 = arith.constant 0.000000e+00 : f32
    %49 = vector.broadcast %cst_22 : f32 to vector<512x128xf32>
    %50 = arith.maximumf %48, %49 : vector<512x128xf32>
    %c0_23 = arith.constant 0 : index
    %c0_24 = arith.constant 0 : index
    %51 = vector.load %arg7[%c0_23, %c0_24] : memref<512x1152xf32, #tpu.memory_space<vmem>>, vector<512x1152xf32>
    %cst_25 = arith.constant 5.000000e-01 : f32
    %52 = vector.broadcast %cst_25 : f32 to vector<512x1152xf32>
    %53 = arith.cmpf ogt, %51, %52 : vector<512x1152xf32>
    %c0_26 = arith.constant 0 : index
    %c0_27 = arith.constant 0 : index
    %54 = vector.load %arg6[%c0_26, %c0_27] : memref<128x1152xf32, #tpu.memory_space<vmem>>, vector<128x1152xf32>
    %cst_28 = arith.constant dense<0.000000e+00> : vector<512x1152xf32>
    %55 = tpu.matmul %50, %54, %cst_28 {dimension_numbers = #tpu.dot_dimension_numbers<[1], [0], [0], [1], [0, 0, 1, 1], [], []>} : vector<512x128xf32>, vector<128x1152xf32>, vector<512x1152xf32> -> vector<512x1152xf32>
    %cst_29 = arith.constant 0.000000e+00 : f32
    %56 = vector.broadcast %cst_29 : f32 to vector<512x1152xf32>
    %57 = arith.select %53, %55, %56 : vector<512x1152xi1>, vector<512x1152xf32>
    %c0_30 = arith.constant 0 : index
    %c0_31 = arith.constant 0 : index
    %58 = vector.load %arg9[%c0_30, %c0_31] : memref<512x1152xf32, #tpu.memory_space<vmem>>, vector<512x1152xf32>
    tpu.vector_store %arg9[%c0_30, %c0_31], %57 {strides = array<i32>} : memref<512x1152xf32, #tpu.memory_space<vmem>>, vector<512x1152xf32>,
    %c0_32 = arith.constant 0 : index
    %c512 = arith.constant 512 : index
    %59 = vector.load %arg9[%c0_32, %c512] : memref<512x1152xf32, #tpu.memory_space<vmem>>, vector<512x128xf32>
    %c0_33 = arith.constant 0 : index
    %c0_34 = arith.constant 0 : index
    %60 = vector.load %arg9[%c0_33, %c0_34] : memref<512x1152xf32, #tpu.memory_space<vmem>>, vector<512x128xf32>
    %c17_i32 = arith.constant 17 : i32
    %61 = tpu.dynamic_rotate %60 by %c17_i32 dim 0 : vector<512x128xf32>, i32 -> vector<512x128xf32>
    %62 = arith.addf %59, %61 : vector<512x128xf32>
    %c0_35 = arith.constant 0 : index
    %c128 = arith.constant 128 : index
    %63 = vector.load %arg9[%c0_35, %c128] : memref<512x1152xf32, #tpu.memory_space<vmem>>, vector<512x128xf32>
    %c16_i32 = arith.constant 16 : i32
    %64 = tpu.dynamic_rotate %63 by %c16_i32 dim 0 : vector<512x128xf32>, i32 -> vector<512x128xf32>
    %65 = arith.addf %62, %64 : vector<512x128xf32>
    %c0_36 = arith.constant 0 : index
    %c256 = arith.constant 256 : index
    %66 = vector.load %arg9[%c0_36, %c256] : memref<512x1152xf32, #tpu.memory_space<vmem>>, vector<512x128xf32>
    %c15_i32 = arith.constant 15 : i32
    %67 = tpu.dynamic_rotate %66 by %c15_i32 dim 0 : vector<512x128xf32>, i32 -> vector<512x128xf32>
    %68 = arith.addf %65, %67 : vector<512x128xf32>
    %c0_37 = arith.constant 0 : index
    %c384 = arith.constant 384 : index
    %69 = vector.load %arg9[%c0_37, %c384] : memref<512x1152xf32, #tpu.memory_space<vmem>>, vector<512x128xf32>
    %c1_i32 = arith.constant 1 : i32
    %70 = tpu.dynamic_rotate %69 by %c1_i32 dim 0 : vector<512x128xf32>, i32 -> vector<512x128xf32>
    %71 = arith.addf %68, %70 : vector<512x128xf32>
    %c0_38 = arith.constant 0 : index
    %c640 = arith.constant 640 : index
    %72 = vector.load %arg9[%c0_38, %c640] : memref<512x1152xf32, #tpu.memory_space<vmem>>, vector<512x128xf32>
    %c511_i32 = arith.constant 511 : i32
    %73 = tpu.dynamic_rotate %72 by %c511_i32 dim 0 : vector<512x128xf32>, i32 -> vector<512x128xf32>
    %74 = arith.addf %71, %73 : vector<512x128xf32>
    %c0_39 = arith.constant 0 : index
    %c768 = arith.constant 768 : index
    %75 = vector.load %arg9[%c0_39, %c768] : memref<512x1152xf32, #tpu.memory_space<vmem>>, vector<512x128xf32>
    %c497_i32 = arith.constant 497 : i32
    %76 = tpu.dynamic_rotate %75 by %c497_i32 dim 0 : vector<512x128xf32>, i32 -> vector<512x128xf32>
    %77 = arith.addf %74, %76 : vector<512x128xf32>
    %c0_40 = arith.constant 0 : index
    %c896 = arith.constant 896 : index
    %78 = vector.load %arg9[%c0_40, %c896] : memref<512x1152xf32, #tpu.memory_space<vmem>>, vector<512x128xf32>
    %c496_i32 = arith.constant 496 : i32
    %79 = tpu.dynamic_rotate %78 by %c496_i32 dim 0 : vector<512x128xf32>, i32 -> vector<512x128xf32>
    %80 = arith.addf %77, %79 : vector<512x128xf32>
    %c0_41 = arith.constant 0 : index
    %c1024 = arith.constant 1024 : index
    %81 = vector.load %arg9[%c0_41, %c1024] : memref<512x1152xf32, #tpu.memory_space<vmem>>, vector<512x128xf32>
    %c495_i32 = arith.constant 495 : i32
    %82 = tpu.dynamic_rotate %81 by %c495_i32 dim 0 : vector<512x128xf32>, i32 -> vector<512x128xf32>
    %83 = arith.addf %80, %82 : vector<512x128xf32>
    %c0_42 = arith.constant 0 : index
    %c0_43 = arith.constant 0 : index
    %84 = vector.load %arg0[%c0_42, %c0_43] : memref<512x128xf32, #tpu.memory_space<vmem>>, vector<512x128xf32>
    %85 = arith.addf %83, %84 : vector<512x128xf32>
    %c0_44 = arith.constant 0 : index
    %c0_45 = arith.constant 0 : index
    %86 = vector.load %arg8[%c0_44, %c0_45] : memref<512x128xf32, #tpu.memory_space<vmem>>, vector<512x128xf32>
    tpu.vector_store %arg8[%c0_44, %c0_45], %85 {strides = array<i32>} : memref<512x128xf32, #tpu.memory_space<vmem>>, vector<512x128xf32>,
    return
  }
}

</mosaic_0001>

<llo_original>
// kernel: dense_layer_forward.1
$region0: #{dense_layer_forward.1}
  #allocation0 [shape = 'u32[]', space=smem, size = 0x4, offset = 0x4, fixed_abs, tag = 'smem constant byte address 0x4 - core index']
  #allocation1 [shape = 'u32[144,128]{1,0:T(1,128)}', space=vmem, size = 0x12000, scoped, tag = 'internal scratch']
  #allocation2 [shape = 'f32[512,1152]{1,0:T(8,128)}', space=vmem, size = 0x240000, scoped, tag = 'scratch operand']
  %s0 = inlined_call_operand.vmem [shape: f32[512,128], index: 0, kind: input, shape index: {}]
  %s1 = inlined_call_operand.vmem [shape: f32[1,128], index: 1, kind: input, shape index: {}]
  %s2 = inlined_call_operand.vmem [shape: f32[1,128], index: 2, kind: input, shape index: {}]
  %s3 = inlined_call_operand.vmem [shape: f32[128,128], index: 3, kind: input, shape index: {}]
  %s4 = inlined_call_operand.vmem [shape: f32[1,128], index: 4, kind: input, shape index: {}]
  %s5 = inlined_call_operand.vmem [shape: f32[1,128], index: 5, kind: input, shape index: {}]
  %s6 = inlined_call_operand.vmem [shape: f32[128,1152], index: 6, kind: input, shape index: {}]
  %s7 = inlined_call_operand.vmem [shape: f32[512,1152], index: 7, kind: input, shape index: {}]
  %s8 = inlined_call_operand.hbm [shape: f32[512,128], index: 8, kind: output, shape index: {}]
  %s9 = sld [smem:[#allocation0]]
  $region42: #{dense_layer_forward.1} parent=0
    _
  %s11 = ssub.s32 1, %s9
  %s12 = scalar_select 0, %s11, %s9
  $region1: #{dense_layer_forward.1} parent=0
    #allocation3 [shape = 'u8[262144]{0}', space=vmem, size = 0x40000, scoped, tag = 'output window, operand 0, single buffered']
    #allocation4 [shape = 's32[1]{0}', space=sflag, size = 0x4, scoped, tag = 'scoped memory for dense_layer_forward.1']
    %13 = vsyncpa [#allocation4], 0
    // Predicated region
    $region2: #{dense_layer_forward.1} parent=1 // pred_check
      _
    $region3: #{dense_layer_forward.1} parent=1 // pred_check_branch
      %15 = sbr.rel (0) target = $region5
    $region4: #{dense_layer_forward.1} parent=1 // pred_region
      _
    $region5: #{dense_layer_forward.1} parent=1 // pred_fallthru
      _
    // Predicated region
    $region6: #{dense_layer_forward.1} parent=1 // pred_check
      _
    $region7: #{dense_layer_forward.1} parent=1 // pred_check_branch
      %17 = sbr.rel (0) target = $region9
    $region8: #{dense_layer_forward.1} parent=1 // pred_region
      _
    $region9: #{dense_layer_forward.1} parent=1 // pred_fallthru
      _
    // Predicated region
    $region10: #{dense_layer_forward.1} parent=1 // pred_check
      _
    $region11: #{dense_layer_forward.1} parent=1 // pred_check_branch
      %19 = sbr.rel (0) target = $region13
    $region12: #{dense_layer_forward.1} parent=1 // pred_region
      _
    $region13: #{dense_layer_forward.1} parent=1 // pred_fallthru
      _
    // Predicated region
    $region14: #{dense_layer_forward.1} parent=1 // pred_check
      _
    $region15: #{dense_layer_forward.1} parent=1 // pred_check_branch
      %21 = sbr.rel (0) target = $region17
    $region16: #{dense_layer_forward.1} parent=1 // pred_region
      _
    $region17: #{dense_layer_forward.1} parent=1 // pred_fallthru
      _
    // Predicated region
    $region18: #{dense_layer_forward.1} parent=1 // pred_check
      _
    $region19: #{dense_layer_forward.1} parent=1 // pred_check_branch
      %23 = sbr.rel (0) target = $region21
    $region20: #{dense_layer_forward.1} parent=1 // pred_region
      _
    $region21: #{dense_layer_forward.1} parent=1 // pred_fallthru
      _
    // Predicated region
    $region22: #{dense_layer_forward.1} parent=1 // pred_check
      _
    $region23: #{dense_layer_forward.1} parent=1 // pred_check_branch
      %25 = sbr.rel (0) target = $region25
    $region24: #{dense_layer_forward.1} parent=1 // pred_region
      _
    $region25: #{dense_layer_forward.1} parent=1 // pred_fallthru
      _
    // Predicated region
    $region26: #{dense_layer_forward.1} parent=1 // pred_check
      _
    $region27: #{dense_layer_forward.1} parent=1 // pred_check_branch
      %27 = sbr.rel (0) target = $region29
    $region28: #{dense_layer_forward.1} parent=1 // pred_region
      _
    $region29: #{dense_layer_forward.1} parent=1 // pred_fallthru
      _
    // Predicated region
    $region30: #{dense_layer_forward.1} parent=1 // pred_check
      _
    $region31: #{dense_layer_forward.1} parent=1 // pred_check_branch
      %29 = sbr.rel (0) target = $region33
    $region32: #{dense_layer_forward.1} parent=1 // pred_region
      _
    $region33: #{dense_layer_forward.1} parent=1 // pred_fallthru
      _
    %v30 = vld [vmem:[%s0] sm:$0xff]
    %v31 = vld [vmem:[%s0 + $0x8] sm:$0xff]
    %v32 = vld [vmem:[%s0 + $0x10] sm:$0xff]
    %v33 = vld [vmem:[%s0 + $0x18] sm:$0xff]
    %v34 = vld [vmem:[%s0 + $0x20] sm:$0xff]
    %v35 = vld [vmem:[%s0 + $0x28] sm:$0xff]
    %v36 = vld [vmem:[%s0 + $0x30] sm:$0xff]
    %v37 = vld [vmem:[%s0 + $0x38] sm:$0xff]
    %v38 = vld [vmem:[%s0 + $0x40] sm:$0xff]
    %v39 = vld [vmem:[%s0 + $0x48] sm:$0xff]
    %v40 = vld [vmem:[%s0 + $0x50] sm:$0xff]
    %v41 = vld [vmem:[%s0 + $0x58] sm:$0xff]
    %v42 = vld [vmem:[%s0 + $0x60] sm:$0xff]
    %v43 = vld [vmem:[%s0 + $0x68] sm:$0xff]
    %v44 = vld [vmem:[%s0 + $0x70] sm:$0xff]
    %v45 = vld [vmem:[%s0 + $0x78] sm:$0xff]
    %v46 = vld [vmem:[%s0 + $0x80] sm:$0xff]
    %v47 = vld [vmem:[%s0 + $0x88] sm:$0xff]
    %v48 = vld [vmem:[%s0 + $0x90] sm:$0xff]
    %v49 = vld [vmem:[%s0 + $0x98] sm:$0xff]
    %v50 = vld [vmem:[%s0 + $0xa0] sm:$0xff]
    %v51 = vld [vmem:[%s0 + $0xa8] sm:$0xff]
    %v52 = vld [vmem:[%s0 + $0xb0] sm:$0xff]
    %v53 = vld [vmem:[%s0 + $0xb8] sm:$0xff]
    %v54 = vld [vmem:[%s0 + $0xc0] sm:$0xff]
    %v55 = vld [vmem:[%s0 + $0xc8] sm:$0xff]
    %v56 = vld [vmem:[%s0 + $0xd0] sm:$0xff]
    %v57 = vld [vmem:[%s0 + $0xd8] sm:$0xff]
    %v58 = vld [vmem:[%s0 + $0xe0] sm:$0xff]
    %v59 = vld [vmem:[%s0 + $0xe8] sm:$0xff]
    %v60 = vld [vmem:[%s0 + $0xf0] sm:$0xff]
    %v61 = vld [vmem:[%s0 + $0xf8] sm:$0xff]
    %v62 = vld [vmem:[%s0 + $0x100] sm:$0xff]
    %v63 = vld [vmem:[%s0 + $0x108] sm:$0xff]
    %v64 = vld [vmem:[%s0 + $0x110] sm:$0xff]
    %v65 = vld [vmem:[%s0 + $0x118] sm:$0xff]
    %v66 = vld [vmem:[%s0 + $0x120] sm:$0xff]
    %v67 = vld [vmem:[%s0 + $0x128] sm:$0xff]
    %v68 = vld [vmem:[%s0 + $0x130] sm:$0xff]
    %v69 = vld [vmem:[%s0 + $0x138] sm:$0xff]
    %v70 = vld [vmem:[%s0 + $0x140] sm:$0xff]
    %v71 = vld [vmem:[%s0 + $0x148] sm:$0xff]
    %v72 = vld [vmem:[%s0 + $0x150] sm:$0xff]
    %v73 = vld [vmem:[%s0 + $0x158] sm:$0xff]
    %v74 = vld [vmem:[%s0 + $0x160] sm:$0xff]
    %v75 = vld [vmem:[%s0 + $0x168] sm:$0xff]
    %v76 = vld [vmem:[%s0 + $0x170] sm:$0xff]
    %v77 = vld [vmem:[%s0 + $0x178] sm:$0xff]
    %v78 = vld [vmem:[%s0 + $0x180] sm:$0xff]
    %v79 = vld [vmem:[%s0 + $0x188] sm:$0xff]
    %v80 = vld [vmem:[%s0 + $0x190] sm:$0xff]
    %v81 = vld [vmem:[%s0 + $0x198] sm:$0xff]
    %v82 = vld [vmem:[%s0 + $0x1a0] sm:$0xff]
    %v83 = vld [vmem:[%s0 + $0x1a8] sm:$0xff]
    %v84 = vld [vmem:[%s0 + $0x1b0] sm:$0xff]
    %v85 = vld [vmem:[%s0 + $0x1b8] sm:$0xff]
    %v86 = vld [vmem:[%s0 + $0x1c0] sm:$0xff]
    %v87 = vld [vmem:[%s0 + $0x1c8] sm:$0xff]
    %v88 = vld [vmem:[%s0 + $0x1d0] sm:$0xff]
    %v89 = vld [vmem:[%s0 + $0x1d8] sm:$0xff]
    %v90 = vld [vmem:[%s0 + $0x1e0] sm:$0xff]
    %v91 = vld [vmem:[%s0 + $0x1e8] sm:$0xff]
    %v92 = vld [vmem:[%s0 + $0x1f0] sm:$0xff]
    %v93 = vld [vmem:[%s0 + $0x1f8] sm:$0xff]
    %v94 = vadd.f32 %v30, %v31
    %v95 = vadd.f32 %v94, %v32
    %v96 = vadd.f32 %v95, %v33
    %v97 = vadd.f32 %v96, %v34
    %v98 = vadd.f32 %v97, %v35
    %v99 = vadd.f32 %v98, %v36
    %v100 = vadd.f32 %v99, %v37
    %v101 = vadd.f32 %v100, %v38
    %v102 = vadd.f32 %v101, %v39
    %v103 = vadd.f32 %v102, %v40
    %v104 = vadd.f32 %v103, %v41
    %v105 = vadd.f32 %v104, %v42
    %v106 = vadd.f32 %v105, %v43
    %v107 = vadd.f32 %v106, %v44
    %v108 = vadd.f32 %v107, %v45
    %v109 = vadd.f32 %v108, %v46
    %v110 = vadd.f32 %v109, %v47
    %v111 = vadd.f32 %v110, %v48
    %v112 = vadd.f32 %v111, %v49
    %v113 = vadd.f32 %v112, %v50
    %v114 = vadd.f32 %v113, %v51
    %v115 = vadd.f32 %v114, %v52
    %v116 = vadd.f32 %v115, %v53
    %v117 = vadd.f32 %v116, %v54
    %v118 = vadd.f32 %v117, %v55
    %v119 = vadd.f32 %v118, %v56
    %v120 = vadd.f32 %v119, %v57
    %v121 = vadd.f32 %v120, %v58
    %v122 = vadd.f32 %v121, %v59
    %v123 = vadd.f32 %v122, %v60
    %v124 = vadd.f32 %v123, %v61
    %v125 = vadd.f32 %v124, %v62
    %v126 = vadd.f32 %v125, %v63
    %v127 = vadd.f32 %v126, %v64
    %v128 = vadd.f32 %v127, %v65
    %v129 = vadd.f32 %v128, %v66
    %v130 = vadd.f32 %v129, %v67
    %v131 = vadd.f32 %v130, %v68
    %v132 = vadd.f32 %v131, %v69
    %v133 = vadd.f32 %v132, %v70
    %v134 = vadd.f32 %v133, %v71
    %v135 = vadd.f32 %v134, %v72
    %v136 = vadd.f32 %v135, %v73
    %v137 = vadd.f32 %v136, %v74
    %v138 = vadd.f32 %v137, %v75
    %v139 = vadd.f32 %v138, %v76
    %v140 = vadd.f32 %v139, %v77
    %v141 = vadd.f32 %v140, %v78
    %v142 = vadd.f32 %v141, %v79
    %v143 = vadd.f32 %v142, %v80
    %v144 = vadd.f32 %v143, %v81
    %v145 = vadd.f32 %v144, %v82
    %v146 = vadd.f32 %v145, %v83
    %v147 = vadd.f32 %v146, %v84
    %v148 = vadd.f32 %v147, %v85
    %v149 = vadd.f32 %v148, %v86
    %v150 = vadd.f32 %v149, %v87
    %v151 = vadd.f32 %v150, %v88
    %v152 = vadd.f32 %v151, %v89
    %v153 = vadd.f32 %v152, %v90
    %v154 = vadd.f32 %v153, %v91
    %v155 = vadd.f32 %v154, %v92
    %v156 = vadd.f32 %v155, %v93
    %v157 = vrot.slane %v156, 4
    %v158 = vadd.f32 %v156, %v157
    %v159 = vrot.slane %v158, 2
    %v160 = vadd.f32 %v158, %v159
    %v161 = vrot.slane %v160, 1
    %v162 = vadd.f32 %v160, %v161
    %v163 = vmul.f32 %v162, 0.001953125
    %v164 = vsub.f32 %v30, %v163
    %v165 = vsub.f32 %v31, %v163
    %v166 = vsub.f32 %v32, %v163
    %v167 = vsub.f32 %v33, %v163
    %v168 = vsub.f32 %v34, %v163
    %v169 = vsub.f32 %v35, %v163
    %v170 = vsub.f32 %v36, %v163
    %v171 = vsub.f32 %v37, %v163
    %v172 = vsub.f32 %v38, %v163
    %v173 = vsub.f32 %v39, %v163
    %v174 = vsub.f32 %v40, %v163
    %v175 = vsub.f32 %v41, %v163
    %v176 = vsub.f32 %v42, %v163
    %v177 = vsub.f32 %v43, %v163
    %v178 = vsub.f32 %v44, %v163
    %v179 = vsub.f32 %v45, %v163
    %v180 = vsub.f32 %v46, %v163
    %v181 = vsub.f32 %v47, %v163
    %v182 = vsub.f32 %v48, %v163
    %v183 = vsub.f32 %v49, %v163
    %v184 = vsub.f32 %v50, %v163
    %v185 = vsub.f32 %v51, %v163
    %v186 = vsub.f32 %v52, %v163
    %v187 = vsub.f32 %v53, %v163
    %v188 = vsub.f32 %v54, %v163
    %v189 = vsub.f32 %v55, %v163
    %v190 = vsub.f32 %v56, %v163
    %v191 = vsub.f32 %v57, %v163
    %v192 = vsub.f32 %v58, %v163
    %v193 = vsub.f32 %v59, %v163
    %v194 = vsub.f32 %v60, %v163
    %v195 = vsub.f32 %v61, %v163
    %v196 = vsub.f32 %v62, %v163
    %v197 = vsub.f32 %v63, %v163
    %v198 = vsub.f32 %v64, %v163
    %v199 = vsub.f32 %v65, %v163
    %v200 = vsub.f32 %v66, %v163
    %v201 = vsub.f32 %v67, %v163
    %v202 = vsub.f32 %v68, %v163
    %v203 = vsub.f32 %v69, %v163
    %v204 = vsub.f32 %v70, %v163
    %v205 = vsub.f32 %v71, %v163
    %v206 = vsub.f32 %v72, %v163
    %v207 = vsub.f32 %v73, %v163
    %v208 = vsub.f32 %v74, %v163
    %v209 = vsub.f32 %v75, %v163
    %v210 = vsub.f32 %v76, %v163
    %v211 = vsub.f32 %v77, %v163
    %v212 = vsub.f32 %v78, %v163
    %v213 = vsub.f32 %v79, %v163
    %v214 = vsub.f32 %v80, %v163
    %v215 = vsub.f32 %v81, %v163
    %v216 = vsub.f32 %v82, %v163
    %v217 = vsub.f32 %v83, %v163
    %v218 = vsub.f32 %v84, %v163
    %v219 = vsub.f32 %v85, %v163
    %v220 = vsub.f32 %v86, %v163
    %v221 = vsub.f32 %v87, %v163
    %v222 = vsub.f32 %v88, %v163
    %v223 = vsub.f32 %v89, %v163
    %v224 = vsub.f32 %v90, %v163
    %v225 = vsub.f32 %v91, %v163
    %v226 = vsub.f32 %v92, %v163
    %v227 = vsub.f32 %v93, %v163
    %v228 = vmul.f32 %v164, %v164
    %v229 = vmul.f32 %v165, %v165
    %v230 = vmul.f32 %v166, %v166
    %v231 = vmul.f32 %v167, %v167
    %v232 = vmul.f32 %v168, %v168
    %v233 = vmul.f32 %v169, %v169
    %v234 = vmul.f32 %v170, %v170
    %v235 = vmul.f32 %v171, %v171
    %v236 = vmul.f32 %v172, %v172
    %v237 = vmul.f32 %v173, %v173
    %v238 = vmul.f32 %v174, %v174
    %v239 = vmul.f32 %v175, %v175
    %v240 = vmul.f32 %v176, %v176
    %v241 = vmul.f32 %v177, %v177
    %v242 = vmul.f32 %v178, %v178
    %v243 = vmul.f32 %v179, %v179
    %v244 = vmul.f32 %v180, %v180
    %v245 = vmul.f32 %v181, %v181
    %v246 = vmul.f32 %v182, %v182
    %v247 = vmul.f32 %v183, %v183
    %v248 = vmul.f32 %v184, %v184
    %v249 = vmul.f32 %v185, %v185
    %v250 = vmul.f32 %v186, %v186
    %v251 = vmul.f32 %v187, %v187
    %v252 = vmul.f32 %v188, %v188
    %v253 = vmul.f32 %v189, %v189
    %v254 = vmul.f32 %v190, %v190
    %v255 = vmul.f32 %v191, %v191
    %v256 = vmul.f32 %v192, %v192
    %v257 = vmul.f32 %v193, %v193
    %v258 = vmul.f32 %v194, %v194
    %v259 = vmul.f32 %v195, %v195
    %v260 = vmul.f32 %v196, %v196
    %v261 = vmul.f32 %v197, %v197
    %v262 = vmul.f32 %v198, %v198
    %v263 = vmul.f32 %v199, %v199
    %v264 = vmul.f32 %v200, %v200
    %v265 = vmul.f32 %v201, %v201
    %v266 = vmul.f32 %v202, %v202
    %v267 = vmul.f32 %v203, %v203
    %v268 = vmul.f32 %v204, %v204
    %v269 = vmul.f32 %v205, %v205
    %v270 = vmul.f32 %v206, %v206
    %v271 = vmul.f32 %v207, %v207
    %v272 = vmul.f32 %v208, %v208
    %v273 = vmul.f32 %v209, %v209
    %v274 = vmul.f32 %v210, %v210
    %v275 = vmul.f32 %v211, %v211
    %v276 = vmul.f32 %v212, %v212
    %v277 = vmul.f32 %v213, %v213
    %v278 = vmul.f32 %v214, %v214
    %v279 = vmul.f32 %v215, %v215
    %v280 = vmul.f32 %v216, %v216
    %v281 = vmul.f32 %v217, %v217
    %v282 = vmul.f32 %v218, %v218
    %v283 = vmul.f32 %v219, %v219
    %v284 = vmul.f32 %v220, %v220
    %v285 = vmul.f32 %v221, %v221
    %v286 = vmul.f32 %v222, %v222
    %v287 = vmul.f32 %v223, %v223
    %v288 = vmul.f32 %v224, %v224
    %v289 = vmul.f32 %v225, %v225
    %v290 = vmul.f32 %v226, %v226
    %v291 = vmul.f32 %v227, %v227
    %v292 = vadd.f32 %v228, %v229
    %v293 = vadd.f32 %v292, %v230
    %v294 = vadd.f32 %v293, %v231
    %v295 = vadd.f32 %v294, %v232
    %v296 = vadd.f32 %v295, %v233
    %v297 = vadd.f32 %v296, %v234
    %v298 = vadd.f32 %v297, %v235
    %v299 = vadd.f32 %v298, %v236
    %v300 = vadd.f32 %v299, %v237
    %v301 = vadd.f32 %v300, %v238
    %v302 = vadd.f32 %v301, %v239
    %v303 = vadd.f32 %v302, %v240
    %v304 = vadd.f32 %v303, %v241
    %v305 = vadd.f32 %v304, %v242
    %v306 = vadd.f32 %v305, %v243
    %v307 = vadd.f32 %v306, %v244
    %v308 = vadd.f32 %v307, %v245
    %v309 = vadd.f32 %v308, %v246
    %v310 = vadd.f32 %v309, %v247
    %v311 = vadd.f32 %v310, %v248
    %v312 = vadd.f32 %v311, %v249
    %v313 = vadd.f32 %v312, %v250
    %v314 = vadd.f32 %v313, %v251
    %v315 = vadd.f32 %v314, %v252
    %v316 = vadd.f32 %v315, %v253
    %v317 = vadd.f32 %v316, %v254
    %v318 = vadd.f32 %v317, %v255
    %v319 = vadd.f32 %v318, %v256
    %v320 = vadd.f32 %v319, %v257
    %v321 = vadd.f32 %v320, %v258
    %v322 = vadd.f32 %v321, %v259
    %v323 = vadd.f32 %v322, %v260
    %v324 = vadd.f32 %v323, %v261
    %v325 = vadd.f32 %v324, %v262
    %v326 = vadd.f32 %v325, %v263
    %v327 = vadd.f32 %v326, %v264
    %v328 = vadd.f32 %v327, %v265
    %v329 = vadd.f32 %v328, %v266
    %v330 = vadd.f32 %v329, %v267
    %v331 = vadd.f32 %v330, %v268
    %v332 = vadd.f32 %v331, %v269
    %v333 = vadd.f32 %v332, %v270
    %v334 = vadd.f32 %v333, %v271
    %v335 = vadd.f32 %v334, %v272
    %v336 = vadd.f32 %v335, %v273
    %v337 = vadd.f32 %v336, %v274
    %v338 = vadd.f32 %v337, %v275
    %v339 = vadd.f32 %v338, %v276
    %v340 = vadd.f32 %v339, %v277
    %v341 = vadd.f32 %v340, %v278
    %v342 = vadd.f32 %v341, %v279
    %v343 = vadd.f32 %v342, %v280
    %v344 = vadd.f32 %v343, %v281
    %v345 = vadd.f32 %v344, %v282
    %v346 = vadd.f32 %v345, %v283
    %v347 = vadd.f32 %v346, %v284
    %v348 = vadd.f32 %v347, %v285
    %v349 = vadd.f32 %v348, %v286
    %v350 = vadd.f32 %v349, %v287
    %v351 = vadd.f32 %v350, %v288
    %v352 = vadd.f32 %v351, %v289
    %v353 = vadd.f32 %v352, %v290
    %v354 = vadd.f32 %v353, %v291
    %v355 = vrot.slane %v354, 4
    %v356 = vadd.f32 %v354, %v355
    %v357 = vrot.slane %v356, 2
    %v358 = vadd.f32 %v356, %v357
    %v359 = vrot.slane %v358, 1
    %v360 = vadd.f32 %v358, %v359
    %v361 = vmul.f32 %v360, 0.001953125
    %v362 = vadd.f32 %v361, 1e-05
    %v363 = vrsqrt.pop %v362
    %v364 = vmul.f32 %v164, %v363
    %v365 = vmul.f32 %v165, %v363
    %v366 = vmul.f32 %v166, %v363
    %v367 = vmul.f32 %v167, %v363
    %v368 = vmul.f32 %v168, %v363
    %v369 = vmul.f32 %v169, %v363
    %v370 = vmul.f32 %v170, %v363
    %v371 = vmul.f32 %v171, %v363
    %v372 = vmul.f32 %v172, %v363
    %v373 = vmul.f32 %v173, %v363
    %v374 = vmul.f32 %v174, %v363
    %v375 = vmul.f32 %v175, %v363
    %v376 = vmul.f32 %v176, %v363
    %v377 = vmul.f32 %v177, %v363
    %v378 = vmul.f32 %v178, %v363
    %v379 = vmul.f32 %v179, %v363
    %v380 = vmul.f32 %v180, %v363
    %v381 = vmul.f32 %v181, %v363
    %v382 = vmul.f32 %v182, %v363
    %v383 = vmul.f32 %v183, %v363
    %v384 = vmul.f32 %v184, %v363
    %v385 = vmul.f32 %v185, %v363
    %v386 = vmul.f32 %v186, %v363
    %v387 = vmul.f32 %v187, %v363
    %v388 = vmul.f32 %v188, %v363
    %v389 = vmul.f32 %v189, %v363
    %v390 = vmul.f32 %v190, %v363
    %v391 = vmul.f32 %v191, %v363
    %v392 = vmul.f32 %v192, %v363
    %v393 = vmul.f32 %v193, %v363
    %v394 = vmul.f32 %v194, %v363
    %v395 = vmul.f32 %v195, %v363
    %v396 = vmul.f32 %v196, %v363
    %v397 = vmul.f32 %v197, %v363
    %v398 = vmul.f32 %v198, %v363
    %v399 = vmul.f32 %v199, %v363
    %v400 = vmul.f32 %v200, %v363
    %v401 = vmul.f32 %v201, %v363
    %v402 = vmul.f32 %v202, %v363
    %v403 = vmul.f32 %v203, %v363
    %v404 = vmul.f32 %v204, %v363
    %v405 = vmul.f32 %v205, %v363
    %v406 = vmul.f32 %v206, %v363
    %v407 = vmul.f32 %v207, %v363
    %v408 = vmul.f32 %v208, %v363
    %v409 = vmul.f32 %v209, %v363
    %v410 = vmul.f32 %v210, %v363
    %v411 = vmul.f32 %v211, %v363
    %v412 = vmul.f32 %v212, %v363
    %v413 = vmul.f32 %v213, %v363
    %v414 = vmul.f32 %v214, %v363
    %v415 = vmul.f32 %v215, %v363
    %v416 = vmul.f32 %v216, %v363
    %v417 = vmul.f32 %v217, %v363
    %v418 = vmul.f32 %v218, %v363
    %v419 = vmul.f32 %v219, %v363
    %v420 = vmul.f32 %v220, %v363
    %v421 = vmul.f32 %v221, %v363
    %v422 = vmul.f32 %v222, %v363
    %v423 = vmul.f32 %v223, %v363
    %v424 = vmul.f32 %v224, %v363
    %v425 = vmul.f32 %v225, %v363
    %v426 = vmul.f32 %v226, %v363
    %v427 = vmul.f32 %v227, %v363
    %v428 = vld [vmem:[%s1] sm:$0x1]
    %v430 = vlaneseq
    %v431 = vshrl.u32 %v430, 7
    %v432 = vsub.s32 0, %v431
    %v433 = vrot.slane %v428, %v432
    %v435 = vmul.f32 %v364, %v433
    %v436 = vmul.f32 %v365, %v433
    %v437 = vmul.f32 %v366, %v433
    %v438 = vmul.f32 %v367, %v433
    %v439 = vmul.f32 %v368, %v433
    %v440 = vmul.f32 %v369, %v433
    %v441 = vmul.f32 %v370, %v433
    %v442 = vmul.f32 %v371, %v433
    %v443 = vmul.f32 %v372, %v433
    %v444 = vmul.f32 %v373, %v433
    %v445 = vmul.f32 %v374, %v433
    %v446 = vmul.f32 %v375, %v433
    %v447 = vmul.f32 %v376, %v433
    %v448 = vmul.f32 %v377, %v433
    %v449 = vmul.f32 %v378, %v433
    %v450 = vmul.f32 %v379, %v433
    %v451 = vmul.f32 %v380, %v433
    %v452 = vmul.f32 %v381, %v433
    %v453 = vmul.f32 %v382, %v433
    %v454 = vmul.f32 %v383, %v433
    %v455 = vmul.f32 %v384, %v433
    %v456 = vmul.f32 %v385, %v433
    %v457 = vmul.f32 %v386, %v433
    %v458 = vmul.f32 %v387, %v433
    %v459 = vmul.f32 %v388, %v433
    %v460 = vmul.f32 %v389, %v433
    %v461 = vmul.f32 %v390, %v433
    %v462 = vmul.f32 %v391, %v433
    %v463 = vmul.f32 %v392, %v433
    %v464 = vmul.f32 %v393, %v433
    %v465 = vmul.f32 %v394, %v433
    %v466 = vmul.f32 %v395, %v433
    %v467 = vmul.f32 %v396, %v433
    %v468 = vmul.f32 %v397, %v433
    %v469 = vmul.f32 %v398, %v433
    %v470 = vmul.f32 %v399, %v433
    %v471 = vmul.f32 %v400, %v433
    %v472 = vmul.f32 %v401, %v433
    %v473 = vmul.f32 %v402, %v433
    %v474 = vmul.f32 %v403, %v433
    %v475 = vmul.f32 %v404, %v433
    %v476 = vmul.f32 %v405, %v433
    %v477 = vmul.f32 %v406, %v433
    %v478 = vmul.f32 %v407, %v433
    %v479 = vmul.f32 %v408, %v433
    %v480 = vmul.f32 %v409, %v433
    %v481 = vmul.f32 %v410, %v433
    %v482 = vmul.f32 %v411, %v433
    %v483 = vmul.f32 %v412, %v433
    %v484 = vmul.f32 %v413, %v433
    %v485 = vmul.f32 %v414, %v433
    %v486 = vmul.f32 %v415, %v433
    %v487 = vmul.f32 %v416, %v433
    %v488 = vmul.f32 %v417, %v433
    %v489 = vmul.f32 %v418, %v433
    %v490 = vmul.f32 %v419, %v433
    %v491 = vmul.f32 %v420, %v433
    %v492 = vmul.f32 %v421, %v433
    %v493 = vmul.f32 %v422, %v433
    %v494 = vmul.f32 %v423, %v433
    %v495 = vmul.f32 %v424, %v433
    %v496 = vmul.f32 %v425, %v433
    %v497 = vmul.f32 %v426, %v433
    %v498 = vmul.f32 %v427, %v433
    %v499 = vld [vmem:[%s2] sm:$0x1]
    %v501 = vlaneseq
    %v502 = vshrl.u32 %v501, 7
    %v503 = vsub.s32 0, %v502
    %v504 = vrot.slane %v499, %v503
    %v506 = vadd.f32 %v435, %v504
    %v507 = vadd.f32 %v436, %v504
    %v508 = vadd.f32 %v437, %v504
    %v509 = vadd.f32 %v438, %v504
    %v510 = vadd.f32 %v439, %v504
    %v511 = vadd.f32 %v440, %v504
    %v512 = vadd.f32 %v441, %v504
    %v513 = vadd.f32 %v442, %v504
    %v514 = vadd.f32 %v443, %v504
    %v515 = vadd.f32 %v444, %v504
    %v516 = vadd.f32 %v445, %v504
    %v517 = vadd.f32 %v446, %v504
    %v518 = vadd.f32 %v447, %v504
    %v519 = vadd.f32 %v448, %v504
    %v520 = vadd.f32 %v449, %v504
    %v521 = vadd.f32 %v450, %v504
    %v522 = vadd.f32 %v451, %v504
    %v523 = vadd.f32 %v452, %v504
    %v524 = vadd.f32 %v453, %v504
    %v525 = vadd.f32 %v454, %v504
    %v526 = vadd.f32 %v455, %v504
    %v527 = vadd.f32 %v456, %v504
    %v528 = vadd.f32 %v457, %v504
    %v529 = vadd.f32 %v458, %v504
    %v530 = vadd.f32 %v459, %v504
    %v531 = vadd.f32 %v460, %v504
    %v532 = vadd.f32 %v461, %v504
    %v533 = vadd.f32 %v462, %v504
    %v534 = vadd.f32 %v463, %v504
    %v535 = vadd.f32 %v464, %v504
    %v536 = vadd.f32 %v465, %v504
    %v537 = vadd.f32 %v466, %v504
    %v538 = vadd.f32 %v467, %v504
    %v539 = vadd.f32 %v468, %v504
    %v540 = vadd.f32 %v469, %v504
    %v541 = vadd.f32 %v470, %v504
    %v542 = vadd.f32 %v471, %v504
    %v543 = vadd.f32 %v472, %v504
    %v544 = vadd.f32 %v473, %v504
    %v545 = vadd.f32 %v474, %v504
    %v546 = vadd.f32 %v475, %v504
    %v547 = vadd.f32 %v476, %v504
    %v548 = vadd.f32 %v477, %v504
    %v549 = vadd.f32 %v478, %v504
    %v550 = vadd.f32 %v479, %v504
    %v551 = vadd.f32 %v480, %v504
    %v552 = vadd.f32 %v481, %v504
    %v553 = vadd.f32 %v482, %v504
    %v554 = vadd.f32 %v483, %v504
    %v555 = vadd.f32 %v484, %v504
    %v556 = vadd.f32 %v485, %v504
    %v557 = vadd.f32 %v486, %v504
    %v558 = vadd.f32 %v487, %v504
    %v559 = vadd.f32 %v488, %v504
    %v560 = vadd.f32 %v489, %v504
    %v561 = vadd.f32 %v490, %v504
    %v562 = vadd.f32 %v491, %v504
    %v563 = vadd.f32 %v492, %v504
    %v564 = vadd.f32 %v493, %v504
    %v565 = vadd.f32 %v494, %v504
    %v566 = vadd.f32 %v495, %v504
    %v567 = vadd.f32 %v496, %v504
    %v568 = vadd.f32 %v497, %v504
    %v569 = vadd.f32 %v498, %v504
    %v570 = vmax.f32 %v506, 0.0
    %v571 = vmax.f32 %v507, 0.0
    %v572 = vmax.f32 %v508, 0.0
    %v573 = vmax.f32 %v509, 0.0
    %v574 = vmax.f32 %v510, 0.0
    %v575 = vmax.f32 %v511, 0.0
    %v576 = vmax.f32 %v512, 0.0
    %v577 = vmax.f32 %v513, 0.0
    %v578 = vmax.f32 %v514, 0.0
    %v579 = vmax.f32 %v515, 0.0
    %v580 = vmax.f32 %v516, 0.0
    %v581 = vmax.f32 %v517, 0.0
    %v582 = vmax.f32 %v518, 0.0
    %v583 = vmax.f32 %v519, 0.0
    %v584 = vmax.f32 %v520, 0.0
    %v585 = vmax.f32 %v521, 0.0
    %v586 = vmax.f32 %v522, 0.0
    %v587 = vmax.f32 %v523, 0.0
    %v588 = vmax.f32 %v524, 0.0
    %v589 = vmax.f32 %v525, 0.0
    %v590 = vmax.f32 %v526, 0.0
    %v591 = vmax.f32 %v527, 0.0
    %v592 = vmax.f32 %v528, 0.0
    %v593 = vmax.f32 %v529, 0.0
    %v594 = vmax.f32 %v530, 0.0
    %v595 = vmax.f32 %v531, 0.0
    %v596 = vmax.f32 %v532, 0.0
    %v597 = vmax.f32 %v533, 0.0
    %v598 = vmax.f32 %v534, 0.0
    %v599 = vmax.f32 %v535, 0.0
    %v600 = vmax.f32 %v536, 0.0
    %v601 = vmax.f32 %v537, 0.0
    %v602 = vmax.f32 %v538, 0.0
    %v603 = vmax.f32 %v539, 0.0
    %v604 = vmax.f32 %v540, 0.0
    %v605 = vmax.f32 %v541, 0.0
    %v606 = vmax.f32 %v542, 0.0
    %v607 = vmax.f32 %v543, 0.0
    %v608 = vmax.f32 %v544, 0.0
    %v609 = vmax.f32 %v545, 0.0
    %v610 = vmax.f32 %v546, 0.0
    %v611 = vmax.f32 %v547, 0.0
    %v612 = vmax.f32 %v548, 0.0
    %v613 = vmax.f32 %v549, 0.0
    %v614 = vmax.f32 %v550, 0.0
    %v615 = vmax.f32 %v551, 0.0
    %v616 = vmax.f32 %v552, 0.0
    %v617 = vmax.f32 %v553, 0.0
    %v618 = vmax.f32 %v554, 0.0
    %v619 = vmax.f32 %v555, 0.0
    %v620 = vmax.f32 %v556, 0.0
    %v621 = vmax.f32 %v557, 0.0
    %v622 = vmax.f32 %v558, 0.0
    %v623 = vmax.f32 %v559, 0.0
    %v624 = vmax.f32 %v560, 0.0
    %v625 = vmax.f32 %v561, 0.0
    %v626 = vmax.f32 %v562, 0.0
    %v627 = vmax.f32 %v563, 0.0
    %v628 = vmax.f32 %v564, 0.0
    %v629 = vmax.f32 %v565, 0.0
    %v630 = vmax.f32 %v566, 0.0
    %v631 = vmax.f32 %v567, 0.0
    %v632 = vmax.f32 %v568, 0.0
    %v633 = vmax.f32 %v569, 0.0
    %v634 = vld [vmem:[%s3] sm:$0xff]
    %v635 = vld [vmem:[%s3 + $0x8] sm:$0xff]
    %v636 = vld [vmem:[%s3 + $0x10] sm:$0xff]
    %v637 = vld [vmem:[%s3 + $0x18] sm:$0xff]
    %v638 = vld [vmem:[%s3 + $0x20] sm:$0xff]
    %v639 = vld [vmem:[%s3 + $0x28] sm:$0xff]
    %v640 = vld [vmem:[%s3 + $0x30] sm:$0xff]
    %v641 = vld [vmem:[%s3 + $0x38] sm:$0xff]
    %v642 = vld [vmem:[%s3 + $0x40] sm:$0xff]
    %v643 = vld [vmem:[%s3 + $0x48] sm:$0xff]
    %v644 = vld [vmem:[%s3 + $0x50] sm:$0xff]
    %v645 = vld [vmem:[%s3 + $0x58] sm:$0xff]
    %v646 = vld [vmem:[%s3 + $0x60] sm:$0xff]
    %v647 = vld [vmem:[%s3 + $0x68] sm:$0xff]
    %v648 = vld [vmem:[%s3 + $0x70] sm:$0xff]
    %v649 = vld [vmem:[%s3 + $0x78] sm:$0xff]
    %650 = vmatprep.subr.mxu0 0.0
    %651 = vmatpush1.msra.mxu0 %v634
    %652 = vmatprep.subr.mxu0 0.0
    %653 = vmatpush1.msra.mxu0 %v635
    %654 = vmatprep.subr.mxu0 0.0
    %655 = vmatpush1.msra.mxu0 %v636
    %656 = vmatprep.subr.mxu0 0.0
    %657 = vmatpush1.msra.mxu0 %v637
    %658 = vmatprep.subr.mxu0 0.0
    %659 = vmatpush1.msra.mxu0 %v638
    %660 = vmatprep.subr.mxu0 0.0
    %661 = vmatpush1.msra.mxu0 %v639
    %662 = vmatprep.subr.mxu0 0.0
    %663 = vmatpush1.msra.mxu0 %v640
    %664 = vmatprep.subr.mxu0 0.0
    %665 = vmatpush1.msra.mxu0 %v641
    %666 = vmatprep.subr.mxu0 0.0
    %667 = vmatpush1.msra.mxu0 %v642
    %668 = vmatprep.subr.mxu0 0.0
    %669 = vmatpush1.msra.mxu0 %v643
    %670 = vmatprep.subr.mxu0 0.0
    %671 = vmatpush1.msra.mxu0 %v644
    %672 = vmatprep.subr.mxu0 0.0
    %673 = vmatpush1.msra.mxu0 %v645
    %674 = vmatprep.subr.mxu0 0.0
    %675 = vmatpush1.msra.mxu0 %v646
    %676 = vmatprep.subr.mxu0 0.0
    %677 = vmatpush1.msra.mxu0 %v647
    %678 = vmatprep.subr.mxu0 0.0
    %679 = vmatpush1.msra.mxu0 %v648
    %680 = vmatprep.subr.mxu0 0.0
    %681 = vmatpush1.msra.mxu0 %v649
    %682 = vmatprep.subr.mxu0 0.0
    %683 = vmatpush1.msra.mxu0 0.0
    %684 = vmatprep.subr.mxu0 0.0
    %685 = vmatpush1.msra.mxu0 0.0
    %686 = vmatprep.subr.mxu0 0.0
    %687 = vmatpush1.msra.mxu0 0.0
    %688 = vmatprep.subr.mxu0 0.0
    %689 = vmatpush1.msra.mxu0 0.0
    %690 = vmatprep.subr.mxu0 0.0
    %691 = vmatpush1.msra.mxu0 0.0
    %692 = vmatprep.subr.mxu0 0.0
    %693 = vmatpush1.msra.mxu0 0.0
    %694 = vmatprep.subr.mxu0 0.0
    %695 = vmatpush1.msra.mxu0 0.0
    %696 = vmatprep.subr.mxu0 0.0
    %697 = vmatpush1.msra.mxu0 0.0
    %698 = vmatprep.subr.mxu0 0.0
    %699 = vmatpush1.msra.mxu0 0.0
    %700 = vmatprep.subr.mxu0 0.0
    %701 = vmatpush1.msra.mxu0 0.0
    %702 = vmatprep.subr.mxu0 0.0
    %703 = vmatpush1.msra.mxu0 0.0
    %704 = vmatprep.subr.mxu0 0.0
    %705 = vmatpush1.msra.mxu0 0.0
    %706 = vmatprep.subr.mxu0 0.0
    %707 = vmatpush1.msra.mxu0 0.0
    %708 = vmatprep.subr.mxu0 0.0
    %709 = vmatpush1.msra.mxu0 0.0
    %710 = vmatprep.subr.mxu0 0.0
    %711 = vmatpush1.msra.mxu0 0.0
    %712 = vmatprep.subr.mxu0 0.0
    %713 = vmatpush1.msra.mxu0 0.0
    %714 = vmatprep.mubr.f32.mxu0 0.0
    %715 = vmatmul.mubr.f32.gmra.mrb[0].mxu0 %v570
    %v716 = vpop.f32.mrb[0].mxu0
    %v717 = vadd.f32 0.0, %v716
    %v718 = vpop.f32.mrb[0].mxu0
    %719 = vmatprep.mubr.f32.mxu0 0.0
    %720 = vmatmul.mubr.f32.gmra.mrb[0].mxu0 %v571
    %v721 = vpop.f32.mrb[0].mxu0
    %v722 = vadd.f32 0.0, %v721
    %v723 = vpop.f32.mrb[0].mxu0
    %724 = vmatprep.mubr.f32.mxu0 0.0
    %725 = vmatmul.mubr.f32.gmra.mrb[0].mxu0 %v572
    %v726 = vpop.f32.mrb[0].mxu0
    %v727 = vadd.f32 0.0, %v726
    %v728 = vpop.f32.mrb[0].mxu0
    %729 = vmatprep.mubr.f32.mxu0 0.0
    %730 = vmatmul.mubr.f32.gmra.mrb[0].mxu0 %v573
    %v731 = vpop.f32.mrb[0].mxu0
    %v732 = vadd.f32 0.0, %v731
    %v733 = vpop.f32.mrb[0].mxu0
    %734 = vmatprep.mubr.f32.mxu0 0.0
    %735 = vmatmul.mubr.f32.gmra.mrb[0].mxu0 %v574
    %v736 = vpop.f32.mrb[0].mxu0
    %v737 = vadd.f32 0.0, %v736
    %v738 = vpop.f32.mrb[0].mxu0
    %739 = vmatprep.mubr.f32.mxu0 0.0
    %740 = vmatmul.mubr.f32.gmra.mrb[0].mxu0 %v575
    %v741 = vpop.f32.mrb[0].mxu0
    %v742 = vadd.f32 0.0, %v741
    %v743 = vpop.f32.mrb[0].mxu0
    %744 = vmatprep.mubr.f32.mxu0 0.0
    %745 = vmatmul.mubr.f32.gmra.mrb[0].mxu0 %v576
    %v746 = vpop.f32.mrb[0].mxu0
    %v747 = vadd.f32 0.0, %v746
    %v748 = vpop.f32.mrb[0].mxu0
    %749 = vmatprep.mubr.f32.mxu0 0.0
    %750 = vmatmul.mubr.f32.gmra.mrb[0].mxu0 %v577
    %v751 = vpop.f32.mrb[0].mxu0
    %v752 = vadd.f32 0.0, %v751
    %v753 = vpop.f32.mrb[0].mxu0
    %754 = vmatprep.mubr.f32.mxu0 0.0
    %755 = vmatmul.mubr.f32.gmra.mrb[0].mxu0 %v578
    %v756 = vpop.f32.mrb[0].mxu0
    %v757 = vadd.f32 0.0, %v756
    %v758 = vpop.f32.mrb[0].mxu0
    %759 = vmatprep.mubr.f32.mxu0 0.0
    %760 = vmatmul.mubr.f32.gmra.mrb[0].mxu0 %v579
    %v761 = vpop.f32.mrb[0].mxu0
    %v762 = vadd.f32 0.0, %v761
    %v763 = vpop.f32.mrb[0].mxu0
    %764 = vmatprep.mubr.f32.mxu0 0.0
    %765 = vmatmul.mubr.f32.gmra.mrb[0].mxu0 %v580
    %v766 = vpop.f32.mrb[0].mxu0
    %v767 = vadd.f32 0.0, %v766
    %v768 = vpop.f32.mrb[0].mxu0
    %769 = vmatprep.mubr.f32.mxu0 0.0
    %770 = vmatmul.mubr.f32.gmra.mrb[0].mxu0 %v581
    %v771 = vpop.f32.mrb[0].mxu0
    %v772 = vadd.f32 0.0, %v771
    %v773 = vpop.f32.mrb[0].mxu0
    %774 = vmatprep.mubr.f32.mxu0 0.0
    %775 = vmatmul.mubr.f32.gmra.mrb[0].mxu0 %v582
    %v776 = vpop.f32.mrb[0].mxu0
    %v777 = vadd.f32 0.0, %v776
    %v778 = vpop.f32.mrb[0].mxu0
    %779 = vmatprep.mubr.f32.mxu0 0.0
    %780 = vmatmul.mubr.f32.gmra.mrb[0].mxu0 %v583
    %v781 = vpop.f32.mrb[0].mxu0
    %v782 = vadd.f32 0.0, %v781
    %v783 = vpop.f32.mrb[0].mxu0
    %784 = vmatprep.mubr.f32.mxu0 0.0
    %785 = vmatmul.mubr.f32.gmra.mrb[0].mxu0 %v584
    %v786 = vpop.f32.mrb[0].mxu0
    %v787 = vadd.f32 0.0, %v786
    %v788 = vpop.f32.mrb[0].mxu0
    %789 = vmatprep.mubr.f32.mxu0 0.0
    %790 = vmatmul.mubr.f32.gmra.mrb[0].mxu0 %v585
    %v791 = vpop.f32.mrb[0].mxu0
    %v792 = vadd.f32 0.0, %v791
    %v793 = vpop.f32.mrb[0].mxu0
    %794 = vmatprep.mubr.f32.mxu0 0.0
    %795 = vmatmul.mubr.f32.gmra.mrb[0].mxu0 %v586
    %v796 = vpop.f32.mrb[0].mxu0
    %v797 = vadd.f32 0.0, %v796
    %v798 = vpop.f32.mrb[0].mxu0
    %799 = vmatprep.mubr.f32.mxu0 0.0
    %800 = vmatmul.mubr.f32.gmra.mrb[0].mxu0 %v587
    %v801 = vpop.f32.mrb[0].mxu0
    %v802 = vadd.f32 0.0, %v801
    %v803 = vpop.f32.mrb[0].mxu0
    %804 = vmatprep.mubr.f32.mxu0 0.0
    %805 = vmatmul.mubr.f32.gmra.mrb[0].mxu0 %v588
    %v806 = vpop.f32.mrb[0].mxu0
    %v807 = vadd.f32 0.0, %v806
    %v808 = vpop.f32.mrb[0].mxu0
    %809 = vmatprep.mubr.f32.mxu0 0.0
    %810 = vmatmul.mubr.f32.gmra.mrb[0].mxu0 %v589
    %v811 = vpop.f32.mrb[0].mxu0
    %v812 = vadd.f32 0.0, %v811
    %v813 = vpop.f32.mrb[0].mxu0
    %814 = vmatprep.mubr.f32.mxu0 0.0
    %815 = vmatmul.mubr.f32.gmra.mrb[0].mxu0 %v590
    %v816 = vpop.f32.mrb[0].mxu0
    %v817 = vadd.f32 0.0, %v816
    %v818 = vpop.f32.mrb[0].mxu0
    %819 = vmatprep.mubr.f32.mxu0 0.0
    %820 = vmatmul.mubr.f32.gmra.mrb[0].mxu0 %v591
    %v821 = vpop.f32.mrb[0].mxu0
    %v822 = vadd.f32 0.0, %v821
    %v823 = vpop.f32.mrb[0].mxu0
    %824 = vmatprep.mubr.f32.mxu0 0.0
    %825 = vmatmul.mubr.f32.gmra.mrb[0].mxu0 %v592
    %v826 = vpop.f32.mrb[0].mxu0
    %v827 = vadd.f32 0.0, %v826
    %v828 = vpop.f32.mrb[0].mxu0
    %829 = vmatprep.mubr.f32.mxu0 0.0
    %830 = vmatmul.mubr.f32.gmra.mrb[0].mxu0 %v593
    %v831 = vpop.f32.mrb[0].mxu0
    %v832 = vadd.f32 0.0, %v831
    %v833 = vpop.f32.mrb[0].mxu0
    %834 = vmatprep.mubr.f32.mxu0 0.0
    %835 = vmatmul.mubr.f32.gmra.mrb[0].mxu0 %v594
    %v836 = vpop.f32.mrb[0].mxu0
    %v837 = vadd.f32 0.0, %v836
    %v838 = vpop.f32.mrb[0].mxu0
    %839 = vmatprep.mubr.f32.mxu0 0.0
    %840 = vmatmul.mubr.f32.gmra.mrb[0].mxu0 %v595
    %v841 = vpop.f32.mrb[0].mxu0
    %v842 = vadd.f32 0.0, %v841
    %v843 = vpop.f32.mrb[0].mxu0
    %844 = vmatprep.mubr.f32.mxu0 0.0
    %845 = vmatmul.mubr.f32.gmra.mrb[0].mxu0 %v596
    %v846 = vpop.f32.mrb[0].mxu0
    %v847 = vadd.f32 0.0, %v846
    %v848 = vpop.f32.mrb[0].mxu0
    %849 = vmatprep.mubr.f32.mxu0 0.0
    %850 = vmatmul.mubr.f32.gmra.mrb[0].mxu0 %v597
    %v851 = vpop.f32.mrb[0].mxu0
    %v852 = vadd.f32 0.0, %v851
    %v853 = vpop.f32.mrb[0].mxu0
    %854 = vmatprep.mubr.f32.mxu0 0.0
    %855 = vmatmul.mubr.f32.gmra.mrb[0].mxu0 %v598
    %v856 = vpop.f32.mrb[0].mxu0
    %v857 = vadd.f32 0.0, %v856
    %v858 = vpop.f32.mrb[0].mxu0
    %859 = vmatprep.mubr.f32.mxu0 0.0
    %860 = vmatmul.mubr.f32.gmra.mrb[0].mxu0 %v599
    %v861 = vpop.f32.mrb[0].mxu0
    %v862 = vadd.f32 0.0, %v861
    %v863 = vpop.f32.mrb[0].mxu0
    %864 = vmatprep.mubr.f32.mxu0 0.0
    %865 = vmatmul.mubr.f32.gmra.mrb[0].mxu0 %v600
    %v866 = vpop.f32.mrb[0].mxu0
    %v867 = vadd.f32 0.0, %v866
    %v868 = vpop.f32.mrb[0].mxu0
    %869 = vmatprep.mubr.f32.mxu0 0.0
    %870 = vmatmul.mubr.f32.gmra.mrb[0].mxu0 %v601
    %v871 = vpop.f32.mrb[0].mxu0
    %v872 = vadd.f32 0.0, %v871
    %v873 = vpop.f32.mrb[0].mxu0
    %874 = vmatprep.mubr.f32.mxu0 0.0
    %875 = vmatmul.mubr.f32.gmra.mrb[0].mxu0 %v602
    %v876 = vpop.f32.mrb[0].mxu0
    %v877 = vadd.f32 0.0, %v876
    %v878 = vpop.f32.mrb[0].mxu0
    %879 = vmatprep.mubr.f32.mxu0 0.0
    %880 = vmatmul.mubr.f32.gmra.mrb[0].mxu0 %v603
    %v881 = vpop.f32.mrb[0].mxu0
    %v882 = vadd.f32 0.0, %v881
    %v883 = vpop.f32.mrb[0].mxu0
    %884 = vmatprep.mubr.f32.mxu0 0.0
    %885 = vmatmul.mubr.f32.gmra.mrb[0].mxu0 %v604
    %v886 = vpop.f32.mrb[0].mxu0
    %v887 = vadd.f32 0.0, %v886
    %v888 = vpop.f32.mrb[0].mxu0
    %889 = vmatprep.mubr.f32.mxu0 0.0
    %890 = vmatmul.mubr.f32.gmra.mrb[0].mxu0 %v605
    %v891 = vpop.f32.mrb[0].mxu0
    %v892 = vadd.f32 0.0, %v891
    %v893 = vpop.f32.mrb[0].mxu0
    %894 = vmatprep.mubr.f32.mxu0 0.0
    %895 = vmatmul.mubr.f32.gmra.mrb[0].mxu0 %v606
    %v896 = vpop.f32.mrb[0].mxu0
    %v897 = vadd.f32 0.0, %v896
    %v898 = vpop.f32.mrb[0].mxu0
    %899 = vmatprep.mubr.f32.mxu0 0.0
    %900 = vmatmul.mubr.f32.gmra.mrb[0].mxu0 %v607
    %v901 = vpop.f32.mrb[0].mxu0
    %v902 = vadd.f32 0.0, %v901
    %v903 = vpop.f32.mrb[0].mxu0
    %904 = vmatprep.mubr.f32.mxu0 0.0
    %905 = vmatmul.mubr.f32.gmra.mrb[0].mxu0 %v608
    %v906 = vpop.f32.mrb[0].mxu0
    %v907 = vadd.f32 0.0, %v906
    %v908 = vpop.f32.mrb[0].mxu0
    %909 = vmatprep.mubr.f32.mxu0 0.0
    %910 = vmatmul.mubr.f32.gmra.mrb[0].mxu0 %v609
    %v911 = vpop.f32.mrb[0].mxu0
    %v912 = vadd.f32 0.0, %v911
    %v913 = vpop.f32.mrb[0].mxu0
    %914 = vmatprep.mubr.f32.mxu0 0.0
    %915 = vmatmul.mubr.f32.gmra.mrb[0].mxu0 %v610
    %v916 = vpop.f32.mrb[0].mxu0
    %v917 = vadd.f32 0.0, %v916
    %v918 = vpop.f32.mrb[0].mxu0
    %919 = vmatprep.mubr.f32.mxu0 0.0
    %920 = vmatmul.mubr.f32.gmra.mrb[0].mxu0 %v611
    %v921 = vpop.f32.mrb[0].mxu0
    %v922 = vadd.f32 0.0, %v921
    %v923 = vpop.f32.mrb[0].mxu0
    %924 = vmatprep.mubr.f32.mxu0 0.0
    %925 = vmatmul.mubr.f32.gmra.mrb[0].mxu0 %v612
    %v926 = vpop.f32.mrb[0].mxu0
    %v927 = vadd.f32 0.0, %v926
    %v928 = vpop.f32.mrb[0].mxu0
    %929 = vmatprep.mubr.f32.mxu0 0.0
    %930 = vmatmul.mubr.f32.gmra.mrb[0].mxu0 %v613
    %v931 = vpop.f32.mrb[0].mxu0
    %v932 = vadd.f32 0.0, %v931
    %v933 = vpop.f32.mrb[0].mxu0
    %934 = vmatprep.mubr.f32.mxu0 0.0
    %935 = vmatmul.mubr.f32.gmra.mrb[0].mxu0 %v614
    %v936 = vpop.f32.mrb[0].mxu0
    %v937 = vadd.f32 0.0, %v936
    %v938 = vpop.f32.mrb[0].mxu0
    %939 = vmatprep.mubr.f32.mxu0 0.0
    %940 = vmatmul.mubr.f32.gmra.mrb[0].mxu0 %v615
    %v941 = vpop.f32.mrb[0].mxu0
    %v942 = vadd.f32 0.0, %v941
    %v943 = vpop.f32.mrb[0].mxu0
    %944 = vmatprep.mubr.f32.mxu0 0.0
    %945 = vmatmul.mubr.f32.gmra.mrb[0].mxu0 %v616
    %v946 = vpop.f32.mrb[0].mxu0
    %v947 = vadd.f32 0.0, %v946
    %v948 = vpop.f32.mrb[0].mxu0
    %949 = vmatprep.mubr.f32.mxu0 0.0
    %950 = vmatmul.mubr.f32.gmra.mrb[0].mxu0 %v617
    %v951 = vpop.f32.mrb[0].mxu0
    %v952 = vadd.f32 0.0, %v951
    %v953 = vpop.f32.mrb[0].mxu0
    %954 = vmatprep.mubr.f32.mxu0 0.0
    %955 = vmatmul.mubr.f32.gmra.mrb[0].mxu0 %v618
    %v956 = vpop.f32.mrb[0].mxu0
    %v957 = vadd.f32 0.0, %v956
    %v958 = vpop.f32.mrb[0].mxu0
    %959 = vmatprep.mubr.f32.mxu0 0.0
    %960 = vmatmul.mubr.f32.gmra.mrb[0].mxu0 %v619
    %v961 = vpop.f32.mrb[0].mxu0
    %v962 = vadd.f32 0.0, %v961
    %v963 = vpop.f32.mrb[0].mxu0
    %964 = vmatprep.mubr.f32.mxu0 0.0
    %965 = vmatmul.mubr.f32.gmra.mrb[0].mxu0 %v620
    %v966 = vpop.f32.mrb[0].mxu0
    %v967 = vadd.f32 0.0, %v966
    %v968 = vpop.f32.mrb[0].mxu0
    %969 = vmatprep.mubr.f32.mxu0 0.0
    %970 = vmatmul.mubr.f32.gmra.mrb[0].mxu0 %v621
    %v971 = vpop.f32.mrb[0].mxu0
    %v972 = vadd.f32 0.0, %v971
    %v973 = vpop.f32.mrb[0].mxu0
    %974 = vmatprep.mubr.f32.mxu0 0.0
    %975 = vmatmul.mubr.f32.gmra.mrb[0].mxu0 %v622
    %v976 = vpop.f32.mrb[0].mxu0
    %v977 = vadd.f32 0.0, %v976
    %v978 = vpop.f32.mrb[0].mxu0
    %979 = vmatprep.mubr.f32.mxu0 0.0
    %980 = vmatmul.mubr.f32.gmra.mrb[0].mxu0 %v623
    %v981 = vpop.f32.mrb[0].mxu0
    %v982 = vadd.f32 0.0, %v981
    %v983 = vpop.f32.mrb[0].mxu0
    %984 = vmatprep.mubr.f32.mxu0 0.0
    %985 = vmatmul.mubr.f32.gmra.mrb[0].mxu0 %v624
    %v986 = vpop.f32.mrb[0].mxu0
    %v987 = vadd.f32 0.0, %v986
    %v988 = vpop.f32.mrb[0].mxu0
    %989 = vmatprep.mubr.f32.mxu0 0.0
    %990 = vmatmul.mubr.f32.gmra.mrb[0].mxu0 %v625
    %v991 = vpop.f32.mrb[0].mxu0
    %v992 = vadd.f32 0.0, %v991
    %v993 = vpop.f32.mrb[0].mxu0
    %994 = vmatprep.mubr.f32.mxu0 0.0
    %995 = vmatmul.mubr.f32.gmra.mrb[0].mxu0 %v626
    %v996 = vpop.f32.mrb[0].mxu0
    %v997 = vadd.f32 0.0, %v996
    %v998 = vpop.f32.mrb[0].mxu0
    %999 = vmatprep.mubr.f32.mxu0 0.0
    %1000 = vmatmul.mubr.f32.gmra.mrb[0].mxu0 %v627
    %v1001 = vpop.f32.mrb[0].mxu0
    %v1002 = vadd.f32 0.0, %v1001
    %v1003 = vpop.f32.mrb[0].mxu0
    %1004 = vmatprep.mubr.f32.mxu0 0.0
    %1005 = vmatmul.mubr.f32.gmra.mrb[0].mxu0 %v628
    %v1006 = vpop.f32.mrb[0].mxu0
    %v1007 = vadd.f32 0.0, %v1006
    %v1008 = vpop.f32.mrb[0].mxu0
    %1009 = vmatprep.mubr.f32.mxu0 0.0
    %1010 = vmatmul.mubr.f32.gmra.mrb[0].mxu0 %v629
    %v1011 = vpop.f32.mrb[0].mxu0
    %v1012 = vadd.f32 0.0, %v1011
    %v1013 = vpop.f32.mrb[0].mxu0
    %1014 = vmatprep.mubr.f32.mxu0 0.0
    %1015 = vmatmul.mubr.f32.gmra.mrb[0].mxu0 %v630
    %v1016 = vpop.f32.mrb[0].mxu0
    %v1017 = vadd.f32 0.0, %v1016
    %v1018 = vpop.f32.mrb[0].mxu0
    %1019 = vmatprep.mubr.f32.mxu0 0.0
    %1020 = vmatmul.mubr.f32.gmra.mrb[0].mxu0 %v631
    %v1021 = vpop.f32.mrb[0].mxu0
    %v1022 = vadd.f32 0.0, %v1021
    %v1023 = vpop.f32.mrb[0].mxu0
    %1024 = vmatprep.mubr.f32.mxu0 0.0
    %1025 = vmatmul.mubr.f32.gmra.mrb[0].mxu0 %v632
    %v1026 = vpop.f32.mrb[0].mxu0
    %v1027 = vadd.f32 0.0, %v1026
    %v1028 = vpop.f32.mrb[0].mxu0
    %1029 = vmatprep.mubr.f32.mxu0 0.0
    %1030 = vmatmul.mubr.f32.gmra.mrb[0].mxu0 %v633
    %v1031 = vpop.f32.mrb[0].mxu0
    %v1032 = vadd.f32 0.0, %v1031
    %v1033 = vpop.f32.mrb[0].mxu0
    %1034 = vdwg.mxu0
    %v1035 = vadd.f32 %v717, %v722
    %v1036 = vadd.f32 %v1035, %v727
    %v1037 = vadd.f32 %v1036, %v732
    %v1038 = vadd.f32 %v1037, %v737
    %v1039 = vadd.f32 %v1038, %v742
    %v1040 = vadd.f32 %v1039, %v747
    %v1041 = vadd.f32 %v1040, %v752
    %v1042 = vadd.f32 %v1041, %v757
    %v1043 = vadd.f32 %v1042, %v762
    %v1044 = vadd.f32 %v1043, %v767
    %v1045 = vadd.f32 %v1044, %v772
    %v1046 = vadd.f32 %v1045, %v777
    %v1047 = vadd.f32 %v1046, %v782
    %v1048 = vadd.f32 %v1047, %v787
    %v1049 = vadd.f32 %v1048, %v792
    %v1050 = vadd.f32 %v1049, %v797
    %v1051 = vadd.f32 %v1050, %v802
    %v1052 = vadd.f32 %v1051, %v807
    %v1053 = vadd.f32 %v1052, %v812
    %v1054 = vadd.f32 %v1053, %v817
    %v1055 = vadd.f32 %v1054, %v822
    %v1056 = vadd.f32 %v1055, %v827
    %v1057 = vadd.f32 %v1056, %v832
    %v1058 = vadd.f32 %v1057, %v837
    %v1059 = vadd.f32 %v1058, %v842
    %v1060 = vadd.f32 %v1059, %v847
    %v1061 = vadd.f32 %v1060, %v852
    %v1062 = vadd.f32 %v1061, %v857
    %v1063 = vadd.f32 %v1062, %v862
    %v1064 = vadd.f32 %v1063, %v867
    %v1065 = vadd.f32 %v1064, %v872
    %v1066 = vadd.f32 %v1065, %v877
    %v1067 = vadd.f32 %v1066, %v882
    %v1068 = vadd.f32 %v1067, %v887
    %v1069 = vadd.f32 %v1068, %v892
    %v1070 = vadd.f32 %v1069, %v897
    %v1071 = vadd.f32 %v1070, %v902
    %v1072 = vadd.f32 %v1071, %v907
    %v1073 = vadd.f32 %v1072, %v912
    %v1074 = vadd.f32 %v1073, %v917
    %v1075 = vadd.f32 %v1074, %v922
    %v1076 = vadd.f32 %v1075, %v927
    %v1077 = vadd.f32 %v1076, %v932
    %v1078 = vadd.f32 %v1077, %v937
    %v1079 = vadd.f32 %v1078, %v942
    %v1080 = vadd.f32 %v1079, %v947
    %v1081 = vadd.f32 %v1080, %v952
    %v1082 = vadd.f32 %v1081, %v957
    %v1083 = vadd.f32 %v1082, %v962
    %v1084 = vadd.f32 %v1083, %v967
    %v1085 = vadd.f32 %v1084, %v972
    %v1086 = vadd.f32 %v1085, %v977
    %v1087 = vadd.f32 %v1086, %v982
    %v1088 = vadd.f32 %v1087, %v987
    %v1089 = vadd.f32 %v1088, %v992
    %v1090 = vadd.f32 %v1089, %v997
    %v1091 = vadd.f32 %v1090, %v1002
    %v1092 = vadd.f32 %v1091, %v1007
    %v1093 = vadd.f32 %v1092, %v1012
    %v1094 = vadd.f32 %v1093, %v1017
    %v1095 = vadd.f32 %v1094, %v1022
    %v1096 = vadd.f32 %v1095, %v1027
    %v1097 = vadd.f32 %v1096, %v1032
    %v1098 = vrot.slane %v1097, 4
    %v1099 = vadd.f32 %v1097, %v1098
    %v1100 = vrot.slane %v1099, 2
    %v1101 = vadd.f32 %v1099, %v1100
    %v1102 = vrot.slane %v1101, 1
    %v1103 = vadd.f32 %v1101, %v1102
    %v1104 = vmul.f32 %v1103, 0.001953125
    %v1105 = vsub.f32 %v717, %v1104
    %v1106 = vsub.f32 %v722, %v1104
    %v1107 = vsub.f32 %v727, %v1104
    %v1108 = vsub.f32 %v732, %v1104
    %v1109 = vsub.f32 %v737, %v1104
    %v1110 = vsub.f32 %v742, %v1104
    %v1111 = vsub.f32 %v747, %v1104
    %v1112 = vsub.f32 %v752, %v1104
    %v1113 = vsub.f32 %v757, %v1104
    %v1114 = vsub.f32 %v762, %v1104
    %v1115 = vsub.f32 %v767, %v1104
    %v1116 = vsub.f32 %v772, %v1104
    %v1117 = vsub.f32 %v777, %v1104
    %v1118 = vsub.f32 %v782, %v1104
    %v1119 = vsub.f32 %v787, %v1104
    %v1120 = vsub.f32 %v792, %v1104
    %v1121 = vsub.f32 %v797, %v1104
    %v1122 = vsub.f32 %v802, %v1104
    %v1123 = vsub.f32 %v807, %v1104
    %v1124 = vsub.f32 %v812, %v1104
    %v1125 = vsub.f32 %v817, %v1104
    %v1126 = vsub.f32 %v822, %v1104
    %v1127 = vsub.f32 %v827, %v1104
    %v1128 = vsub.f32 %v832, %v1104
    %v1129 = vsub.f32 %v837, %v1104
    %v1130 = vsub.f32 %v842, %v1104
    %v1131 = vsub.f32 %v847, %v1104
    %v1132 = vsub.f32 %v852, %v1104
    %v1133 = vsub.f32 %v857, %v1104
    %v1134 = vsub.f32 %v862, %v1104
    %v1135 = vsub.f32 %v867, %v1104
    %v1136 = vsub.f32 %v872, %v1104
    %v1137 = vsub.f32 %v877, %v1104
    %v1138 = vsub.f32 %v882, %v1104
    %v1139 = vsub.f32 %v887, %v1104
    %v1140 = vsub.f32 %v892, %v1104
    %v1141 = vsub.f32 %v897, %v1104
    %v1142 = vsub.f32 %v902, %v1104
    %v1143 = vsub.f32 %v907, %v1104
    %v1144 = vsub.f32 %v912, %v1104
    %v1145 = vsub.f32 %v917, %v1104
    %v1146 = vsub.f32 %v922, %v1104
    %v1147 = vsub.f32 %v927, %v1104
    %v1148 = vsub.f32 %v932, %v1104
    %v1149 = vsub.f32 %v937, %v1104
    %v1150 = vsub.f32 %v942, %v1104
    %v1151 = vsub.f32 %v947, %v1104
    %v1152 = vsub.f32 %v952, %v1104
    %v1153 = vsub.f32 %v957, %v1104
    %v1154 = vsub.f32 %v962, %v1104
    %v1155 = vsub.f32 %v967, %v1104
    %v1156 = vsub.f32 %v972, %v1104
    %v1157 = vsub.f32 %v977, %v1104
    %v1158 = vsub.f32 %v982, %v1104
    %v1159 = vsub.f32 %v987, %v1104
    %v1160 = vsub.f32 %v992, %v1104
    %v1161 = vsub.f32 %v997, %v1104
    %v1162 = vsub.f32 %v1002, %v1104
    %v1163 = vsub.f32 %v1007, %v1104
    %v1164 = vsub.f32 %v1012, %v1104
    %v1165 = vsub.f32 %v1017, %v1104
    %v1166 = vsub.f32 %v1022, %v1104
    %v1167 = vsub.f32 %v1027, %v1104
    %v1168 = vsub.f32 %v1032, %v1104
    %v1169 = vmul.f32 %v1105, %v1105
    %v1170 = vmul.f32 %v1106, %v1106
    %v1171 = vmul.f32 %v1107, %v1107
    %v1172 = vmul.f32 %v1108, %v1108
    %v1173 = vmul.f32 %v1109, %v1109
    %v1174 = vmul.f32 %v1110, %v1110
    %v1175 = vmul.f32 %v1111, %v1111
    %v1176 = vmul.f32 %v1112, %v1112
    %v1177 = vmul.f32 %v1113, %v1113
    %v1178 = vmul.f32 %v1114, %v1114
    %v1179 = vmul.f32 %v1115, %v1115
    %v1180 = vmul.f32 %v1116, %v1116
    %v1181 = vmul.f32 %v1117, %v1117
    %v1182 = vmul.f32 %v1118, %v1118
    %v1183 = vmul.f32 %v1119, %v1119
    %v1184 = vmul.f32 %v1120, %v1120
    %v1185 = vmul.f32 %v1121, %v1121
    %v1186 = vmul.f32 %v1122, %v1122
    %v1187 = vmul.f32 %v1123, %v1123
    %v1188 = vmul.f32 %v1124, %v1124
    %v1189 = vmul.f32 %v1125, %v1125
    %v1190 = vmul.f32 %v1126, %v1126
    %v1191 = vmul.f32 %v1127, %v1127
    %v1192 = vmul.f32 %v1128, %v1128
    %v1193 = vmul.f32 %v1129, %v1129
    %v1194 = vmul.f32 %v1130, %v1130
    %v1195 = vmul.f32 %v1131, %v1131
    %v1196 = vmul.f32 %v1132, %v1132
    %v1197 = vmul.f32 %v1133, %v1133
    %v1198 = vmul.f32 %v1134, %v1134
    %v1199 = vmul.f32 %v1135, %v1135
    %v1200 = vmul.f32 %v1136, %v1136
    %v1201 = vmul.f32 %v1137, %v1137
    %v1202 = vmul.f32 %v1138, %v1138
    %v1203 = vmul.f32 %v1139, %v1139
    %v1204 = vmul.f32 %v1140, %v1140
    %v1205 = vmul.f32 %v1141, %v1141
    %v1206 = vmul.f32 %v1142, %v1142
    %v1207 = vmul.f32 %v1143, %v1143
    %v1208 = vmul.f32 %v1144, %v1144
    %v1209 = vmul.f32 %v1145, %v1145
    %v1210 = vmul.f32 %v1146, %v1146
    %v1211 = vmul.f32 %v1147, %v1147
    %v1212 = vmul.f32 %v1148, %v1148
    %v1213 = vmul.f32 %v1149, %v1149
    %v1214 = vmul.f32 %v1150, %v1150
    %v1215 = vmul.f32 %v1151, %v1151
    %v1216 = vmul.f32 %v1152, %v1152
    %v1217 = vmul.f32 %v1153, %v1153
    %v1218 = vmul.f32 %v1154, %v1154
    %v1219 = vmul.f32 %v1155, %v1155
    %v1220 = vmul.f32 %v1156, %v1156
    %v1221 = vmul.f32 %v1157, %v1157
    %v1222 = vmul.f32 %v1158, %v1158
    %v1223 = vmul.f32 %v1159, %v1159
    %v1224 = vmul.f32 %v1160, %v1160
    %v1225 = vmul.f32 %v1161, %v1161
    %v1226 = vmul.f32 %v1162, %v1162
    %v1227 = vmul.f32 %v1163, %v1163
    %v1228 = vmul.f32 %v1164, %v1164
    %v1229 = vmul.f32 %v1165, %v1165
    %v1230 = vmul.f32 %v1166, %v1166
    %v1231 = vmul.f32 %v1167, %v1167
    %v1232 = vmul.f32 %v1168, %v1168
    %v1233 = vadd.f32 %v1169, %v1170
    %v1234 = vadd.f32 %v1233, %v1171
    %v1235 = vadd.f32 %v1234, %v1172
    %v1236 = vadd.f32 %v1235, %v1173
    %v1237 = vadd.f32 %v1236, %v1174
    %v1238 = vadd.f32 %v1237, %v1175
    %v1239 = vadd.f32 %v1238, %v1176
    %v1240 = vadd.f32 %v1239, %v1177
    %v1241 = vadd.f32 %v1240, %v1178
    %v1242 = vadd.f32 %v1241, %v1179
    %v1243 = vadd.f32 %v1242, %v1180
    %v1244 = vadd.f32 %v1243, %v1181
    %v1245 = vadd.f32 %v1244, %v1182
    %v1246 = vadd.f32 %v1245, %v1183
    %v1247 = vadd.f32 %v1246, %v1184
    %v1248 = vadd.f32 %v1247, %v1185
    %v1249 = vadd.f32 %v1248, %v1186
    %v1250 = vadd.f32 %v1249, %v1187
    %v1251 = vadd.f32 %v1250, %v1188
    %v1252 = vadd.f32 %v1251, %v1189
    %v1253 = vadd.f32 %v1252, %v1190
    %v1254 = vadd.f32 %v1253, %v1191
    %v1255 = vadd.f32 %v1254, %v1192
    %v1256 = vadd.f32 %v1255, %v1193
    %v1257 = vadd.f32 %v1256, %v1194
    %v1258 = vadd.f32 %v1257, %v1195
    %v1259 = vadd.f32 %v1258, %v1196
    %v1260 = vadd.f32 %v1259, %v1197
    %v1261 = vadd.f32 %v1260, %v1198
    %v1262 = vadd.f32 %v1261, %v1199
    %v1263 = vadd.f32 %v1262, %v1200
    %v1264 = vadd.f32 %v1263, %v1201
    %v1265 = vadd.f32 %v1264, %v1202
    %v1266 = vadd.f32 %v1265, %v1203
    %v1267 = vadd.f32 %v1266, %v1204
    %v1268 = vadd.f32 %v1267, %v1205
    %v1269 = vadd.f32 %v1268, %v1206
    %v1270 = vadd.f32 %v1269, %v1207
    %v1271 = vadd.f32 %v1270, %v1208
    %v1272 = vadd.f32 %v1271, %v1209
    %v1273 = vadd.f32 %v1272, %v1210
    %v1274 = vadd.f32 %v1273, %v1211
    %v1275 = vadd.f32 %v1274, %v1212
    %v1276 = vadd.f32 %v1275, %v1213
    %v1277 = vadd.f32 %v1276, %v1214
    %v1278 = vadd.f32 %v1277, %v1215
    %v1279 = vadd.f32 %v1278, %v1216
    %v1280 = vadd.f32 %v1279, %v1217
    %v1281 = vadd.f32 %v1280, %v1218
    %v1282 = vadd.f32 %v1281, %v1219
    %v1283 = vadd.f32 %v1282, %v1220
    %v1284 = vadd.f32 %v1283, %v1221
    %v1285 = vadd.f32 %v1284, %v1222
    %v1286 = vadd.f32 %v1285, %v1223
    %v1287 = vadd.f32 %v1286, %v1224
    %v1288 = vadd.f32 %v1287, %v1225
    %v1289 = vadd.f32 %v1288, %v1226
    %v1290 = vadd.f32 %v1289, %v1227
    %v1291 = vadd.f32 %v1290, %v1228
    %v1292 = vadd.f32 %v1291, %v1229
    %v1293 = vadd.f32 %v1292, %v1230
    %v1294 = vadd.f32 %v1293, %v1231
    %v1295 = vadd.f32 %v1294, %v1232
    %v1296 = vrot.slane %v1295, 4
    %v1297 = vadd.f32 %v1295, %v1296
    %v1298 = vrot.slane %v1297, 2
    %v1299 = vadd.f32 %v1297, %v1298
    %v1300 = vrot.slane %v1299, 1
    %v1301 = vadd.f32 %v1299, %v1300
    %v1302 = vmul.f32 %v1301, 0.001953125
    %v1303 = vadd.f32 %v1302, 1e-05
    %v1304 = vrsqrt.pop %v1303
    %v1305 = vmul.f32 %v1105, %v1304
    %v1306 = vmul.f32 %v1106, %v1304
    %v1307 = vmul.f32 %v1107, %v1304
    %v1308 = vmul.f32 %v1108, %v1304
    %v1309 = vmul.f32 %v1109, %v1304
    %v1310 = vmul.f32 %v1110, %v1304
    %v1311 = vmul.f32 %v1111, %v1304
    %v1312 = vmul.f32 %v1112, %v1304
    %v1313 = vmul.f32 %v1113, %v1304
    %v1314 = vmul.f32 %v1114, %v1304
    %v1315 = vmul.f32 %v1115, %v1304
    %v1316 = vmul.f32 %v1116, %v1304
    %v1317 = vmul.f32 %v1117, %v1304
    %v1318 = vmul.f32 %v1118, %v1304
    %v1319 = vmul.f32 %v1119, %v1304
    %v1320 = vmul.f32 %v1120, %v1304
    %v1321 = vmul.f32 %v1121, %v1304
    %v1322 = vmul.f32 %v1122, %v1304
    %v1323 = vmul.f32 %v1123, %v1304
    %v1324 = vmul.f32 %v1124, %v1304
    %v1325 = vmul.f32 %v1125, %v1304
    %v1326 = vmul.f32 %v1126, %v1304
    %v1327 = vmul.f32 %v1127, %v1304
    %v1328 = vmul.f32 %v1128, %v1304
    %v1329 = vmul.f32 %v1129, %v1304
    %v1330 = vmul.f32 %v1130, %v1304
    %v1331 = vmul.f32 %v1131, %v1304
    %v1332 = vmul.f32 %v1132, %v1304
    %v1333 = vmul.f32 %v1133, %v1304
    %v1334 = vmul.f32 %v1134, %v1304
    %v1335 = vmul.f32 %v1135, %v1304
    %v1336 = vmul.f32 %v1136, %v1304
    %v1337 = vmul.f32 %v1137, %v1304
    %v1338 = vmul.f32 %v1138, %v1304
    %v1339 = vmul.f32 %v1139, %v1304
    %v1340 = vmul.f32 %v1140, %v1304
    %v1341 = vmul.f32 %v1141, %v1304
    %v1342 = vmul.f32 %v1142, %v1304
    %v1343 = vmul.f32 %v1143, %v1304
    %v1344 = vmul.f32 %v1144, %v1304
    %v1345 = vmul.f32 %v1145, %v1304
    %v1346 = vmul.f32 %v1146, %v1304
    %v1347 = vmul.f32 %v1147, %v1304
    %v1348 = vmul.f32 %v1148, %v1304
    %v1349 = vmul.f32 %v1149, %v1304
    %v1350 = vmul.f32 %v1150, %v1304
    %v1351 = vmul.f32 %v1151, %v1304
    %v1352 = vmul.f32 %v1152, %v1304
    %v1353 = vmul.f32 %v1153, %v1304
    %v1354 = vmul.f32 %v1154, %v1304
    %v1355 = vmul.f32 %v1155, %v1304
    %v1356 = vmul.f32 %v1156, %v1304
    %v1357 = vmul.f32 %v1157, %v1304
    %v1358 = vmul.f32 %v1158, %v1304
    %v1359 = vmul.f32 %v1159, %v1304
    %v1360 = vmul.f32 %v1160, %v1304
    %v1361 = vmul.f32 %v1161, %v1304
    %v1362 = vmul.f32 %v1162, %v1304
    %v1363 = vmul.f32 %v1163, %v1304
    %v1364 = vmul.f32 %v1164, %v1304
    %v1365 = vmul.f32 %v1165, %v1304
    %v1366 = vmul.f32 %v1166, %v1304
    %v1367 = vmul.f32 %v1167, %v1304
    %v1368 = vmul.f32 %v1168, %v1304
    %v1369 = vld [vmem:[%s4] sm:$0x1]
    %v1371 = vlaneseq
    %v1372 = vshrl.u32 %v1371, 7
    %v1373 = vsub.s32 0, %v1372
    %v1374 = vrot.slane %v1369, %v1373
    %v1376 = vmul.f32 %v1305, %v1374
    %v1377 = vmul.f32 %v1306, %v1374
    %v1378 = vmul.f32 %v1307, %v1374
    %v1379 = vmul.f32 %v1308, %v1374
    %v1380 = vmul.f32 %v1309, %v1374
    %v1381 = vmul.f32 %v1310, %v1374
    %v1382 = vmul.f32 %v1311, %v1374
    %v1383 = vmul.f32 %v1312, %v1374
    %v1384 = vmul.f32 %v1313, %v1374
    %v1385 = vmul.f32 %v1314, %v1374
    %v1386 = vmul.f32 %v1315, %v1374
    %v1387 = vmul.f32 %v1316, %v1374
    %v1388 = vmul.f32 %v1317, %v1374
    %v1389 = vmul.f32 %v1318, %v1374
    %v1390 = vmul.f32 %v1319, %v1374
    %v1391 = vmul.f32 %v1320, %v1374
    %v1392 = vmul.f32 %v1321, %v1374
    %v1393 = vmul.f32 %v1322, %v1374
    %v1394 = vmul.f32 %v1323, %v1374
    %v1395 = vmul.f32 %v1324, %v1374
    %v1396 = vmul.f32 %v1325, %v1374
    %v1397 = vmul.f32 %v1326, %v1374
    %v1398 = vmul.f32 %v1327, %v1374
    %v1399 = vmul.f32 %v1328, %v1374
    %v1400 = vmul.f32 %v1329, %v1374
    %v1401 = vmul.f32 %v1330, %v1374
    %v1402 = vmul.f32 %v1331, %v1374
    %v1403 = vmul.f32 %v1332, %v1374
    %v1404 = vmul.f32 %v1333, %v1374
    %v1405 = vmul.f32 %v1334, %v1374
    %v1406 = vmul.f32 %v1335, %v1374
    %v1407 = vmul.f32 %v1336, %v1374
    %v1408 = vmul.f32 %v1337, %v1374
    %v1409 = vmul.f32 %v1338, %v1374
    %v1410 = vmul.f32 %v1339, %v1374
    %v1411 = vmul.f32 %v1340, %v1374
    %v1412 = vmul.f32 %v1341, %v1374
    %v1413 = vmul.f32 %v1342, %v1374
    %v1414 = vmul.f32 %v1343, %v1374
    %v1415 = vmul.f32 %v1344, %v1374
    %v1416 = vmul.f32 %v1345, %v1374
    %v1417 = vmul.f32 %v1346, %v1374
    %v1418 = vmul.f32 %v1347, %v1374
    %v1419 = vmul.f32 %v1348, %v1374
    %v1420 = vmul.f32 %v1349, %v1374
    %v1421 = vmul.f32 %v1350, %v1374
    %v1422 = vmul.f32 %v1351, %v1374
    %v1423 = vmul.f32 %v1352, %v1374
    %v1424 = vmul.f32 %v1353, %v1374
    %v1425 = vmul.f32 %v1354, %v1374
    %v1426 = vmul.f32 %v1355, %v1374
    %v1427 = vmul.f32 %v1356, %v1374
    %v1428 = vmul.f32 %v1357, %v1374
    %v1429 = vmul.f32 %v1358, %v1374
    %v1430 = vmul.f32 %v1359, %v1374
    %v1431 = vmul.f32 %v1360, %v1374
    %v1432 = vmul.f32 %v1361, %v1374
    %v1433 = vmul.f32 %v1362, %v1374
    %v1434 = vmul.f32 %v1363, %v1374
    %v1435 = vmul.f32 %v1364, %v1374
    %v1436 = vmul.f32 %v1365, %v1374
    %v1437 = vmul.f32 %v1366, %v1374
    %v1438 = vmul.f32 %v1367, %v1374
    %v1439 = vmul.f32 %v1368, %v1374
    %v1440 = vld [vmem:[%s5] sm:$0x1]
    %v1442 = vlaneseq
    %v1443 = vshrl.u32 %v1442, 7
    %v1444 = vsub.s32 0, %v1443
    %v1445 = vrot.slane %v1440, %v1444
    %v1447 = vadd.f32 %v1376, %v1445
    %v1448 = vadd.f32 %v1377, %v1445
    %v1449 = vadd.f32 %v1378, %v1445
    %v1450 = vadd.f32 %v1379, %v1445
    %v1451 = vadd.f32 %v1380, %v1445
    %v1452 = vadd.f32 %v1381, %v1445
    %v1453 = vadd.f32 %v1382, %v1445
    %v1454 = vadd.f32 %v1383, %v1445
    %v1455 = vadd.f32 %v1384, %v1445
    %v1456 = vadd.f32 %v1385, %v1445
    %v1457 = vadd.f32 %v1386, %v1445
    %v1458 = vadd.f32 %v1387, %v1445
    %v1459 = vadd.f32 %v1388, %v1445
    %v1460 = vadd.f32 %v1389, %v1445
    %v1461 = vadd.f32 %v1390, %v1445
    %v1462 = vadd.f32 %v1391, %v1445
    %v1463 = vadd.f32 %v1392, %v1445
    %v1464 = vadd.f32 %v1393, %v1445
    %v1465 = vadd.f32 %v1394, %v1445
    %v1466 = vadd.f32 %v1395, %v1445
    %v1467 = vadd.f32 %v1396, %v1445
    %v1468 = vadd.f32 %v1397, %v1445
    %v1469 = vadd.f32 %v1398, %v1445
    %v1470 = vadd.f32 %v1399, %v1445
    %v1471 = vadd.f32 %v1400, %v1445
    %v1472 = vadd.f32 %v1401, %v1445
    %v1473 = vadd.f32 %v1402, %v1445
    %v1474 = vadd.f32 %v1403, %v1445
    %v1475 = vadd.f32 %v1404, %v1445
    %v1476 = vadd.f32 %v1405, %v1445
    %v1477 = vadd.f32 %v1406, %v1445
    %v1478 = vadd.f32 %v1407, %v1445
    %v1479 = vadd.f32 %v1408, %v1445
    %v1480 = vadd.f32 %v1409, %v1445
    %v1481 = vadd.f32 %v1410, %v1445
    %v1482 = vadd.f32 %v1411, %v1445
    %v1483 = vadd.f32 %v1412, %v1445
    %v1484 = vadd.f32 %v1413, %v1445
    %v1485 = vadd.f32 %v1414, %v1445
    %v1486 = vadd.f32 %v1415, %v1445
    %v1487 = vadd.f32 %v1416, %v1445
    %v1488 = vadd.f32 %v1417, %v1445
    %v1489 = vadd.f32 %v1418, %v1445
    %v1490 = vadd.f32 %v1419, %v1445
    %v1491 = vadd.f32 %v1420, %v1445
    %v1492 = vadd.f32 %v1421, %v1445
    %v1493 = vadd.f32 %v1422, %v1445
    %v1494 = vadd.f32 %v1423, %v1445
    %v1495 = vadd.f32 %v1424, %v1445
    %v1496 = vadd.f32 %v1425, %v1445
    %v1497 = vadd.f32 %v1426, %v1445
    %v1498 = vadd.f32 %v1427, %v1445
    %v1499 = vadd.f32 %v1428, %v1445
    %v1500 = vadd.f32 %v1429, %v1445
    %v1501 = vadd.f32 %v1430, %v1445
    %v1502 = vadd.f32 %v1431, %v1445
    %v1503 = vadd.f32 %v1432, %v1445
    %v1504 = vadd.f32 %v1433, %v1445
    %v1505 = vadd.f32 %v1434, %v1445
    %v1506 = vadd.f32 %v1435, %v1445
    %v1507 = vadd.f32 %v1436, %v1445
    %v1508 = vadd.f32 %v1437, %v1445
    %v1509 = vadd.f32 %v1438, %v1445
    %v1510 = vadd.f32 %v1439, %v1445
    %v1511 = vmax.f32 %v1447, 0.0
    %v1512 = vmax.f32 %v1448, 0.0
    %v1513 = vmax.f32 %v1449, 0.0
    %v1514 = vmax.f32 %v1450, 0.0
    %v1515 = vmax.f32 %v1451, 0.0
    %v1516 = vmax.f32 %v1452, 0.0
    %v1517 = vmax.f32 %v1453, 0.0
    %v1518 = vmax.f32 %v1454, 0.0
    %v1519 = vmax.f32 %v1455, 0.0
    %v1520 = vmax.f32 %v1456, 0.0
    %v1521 = vmax.f32 %v1457, 0.0
    %v1522 = vmax.f32 %v1458, 0.0
    %v1523 = vmax.f32 %v1459, 0.0
    %v1524 = vmax.f32 %v1460, 0.0
    %v1525 = vmax.f32 %v1461, 0.0
    %v1526 = vmax.f32 %v1462, 0.0
    %v1527 = vmax.f32 %v1463, 0.0
    %v1528 = vmax.f32 %v1464, 0.0
    %v1529 = vmax.f32 %v1465, 0.0
    %v1530 = vmax.f32 %v1466, 0.0
    %v1531 = vmax.f32 %v1467, 0.0
    %v1532 = vmax.f32 %v1468, 0.0
    %v1533 = vmax.f32 %v1469, 0.0
    %v1534 = vmax.f32 %v1470, 0.0
    %v1535 = vmax.f32 %v1471, 0.0
    %v1536 = vmax.f32 %v1472, 0.0
    %v1537 = vmax.f32 %v1473, 0.0
    %v1538 = vmax.f32 %v1474, 0.0
    %v1539 = vmax.f32 %v1475, 0.0
    %v1540 = vmax.f32 %v1476, 0.0
    %v1541 = vmax.f32 %v1477, 0.0
    %v1542 = vmax.f32 %v1478, 0.0
    %v1543 = vmax.f32 %v1479, 0.0
    %v1544 = vmax.f32 %v1480, 0.0
    %v1545 = vmax.f32 %v1481, 0.0
    %v1546 = vmax.f32 %v1482, 0.0
    %v1547 = vmax.f32 %v1483, 0.0
    %v1548 = vmax.f32 %v1484, 0.0
    %v1549 = vmax.f32 %v1485, 0.0
    %v1550 = vmax.f32 %v1486, 0.0
    %v1551 = vmax.f32 %v1487, 0.0
    %v1552 = vmax.f32 %v1488, 0.0
    %v1553 = vmax.f32 %v1489, 0.0
    %v1554 = vmax.f32 %v1490, 0.0
    %v1555 = vmax.f32 %v1491, 0.0
    %v1556 = vmax.f32 %v1492, 0.0
    %v1557 = vmax.f32 %v1493, 0.0
    %v1558 = vmax.f32 %v1494, 0.0
    %v1559 = vmax.f32 %v1495, 0.0
    %v1560 = vmax.f32 %v1496, 0.0
    %v1561 = vmax.f32 %v1497, 0.0
    %v1562 = vmax.f32 %v1498, 0.0
    %v1563 = vmax.f32 %v1499, 0.0
    %v1564 = vmax.f32 %v1500, 0.0
    %v1565 = vmax.f32 %v1501, 0.0
    %v1566 = vmax.f32 %v1502, 0.0
    %v1567 = vmax.f32 %v1503, 0.0
    %v1568 = vmax.f32 %v1504, 0.0
    %v1569 = vmax.f32 %v1505, 0.0
    %v1570 = vmax.f32 %v1506, 0.0
    %v1571 = vmax.f32 %v1507, 0.0
    %v1572 = vmax.f32 %v1508, 0.0
    %v1573 = vmax.f32 %v1509, 0.0
    %v1574 = vmax.f32 %v1510, 0.0
    %v1575 = vld [vmem:[%s7] sm:$0xff]
    %v1576 = vld [vmem:[%s7 + $0x8] sm:$0xff]
    %v1577 = vld [vmem:[%s7 + $0x10] sm:$0xff]
    %v1578 = vld [vmem:[%s7 + $0x18] sm:$0xff]
    %v1579 = vld [vmem:[%s7 + $0x20] sm:$0xff]
    %v1580 = vld [vmem:[%s7 + $0x28] sm:$0xff]
    %v1581 = vld [vmem:[%s7 + $0x30] sm:$0xff]
    %v1582 = vld [vmem:[%s7 + $0x38] sm:$0xff]
    %v1583 = vld [vmem:[%s7 + $0x40] sm:$0xff]
    %v1584 = vld [vmem:[%s7 + $0x48] sm:$0xff]
    %v1585 = vld [vmem:[%s7 + $0x50] sm:$0xff]
    %v1586 = vld [vmem:[%s7 + $0x58] sm:$0xff]
    %v1587 = vld [vmem:[%s7 + $0x60] sm:$0xff]
    %v1588 = vld [vmem:[%s7 + $0x68] sm:$0xff]
    %v1589 = vld [vmem:[%s7 + $0x70] sm:$0xff]
    %v1590 = vld [vmem:[%s7 + $0x78] sm:$0xff]
    %v1591 = vld [vmem:[%s7 + $0x80] sm:$0xff]
    %v1592 = vld [vmem:[%s7 + $0x88] sm:$0xff]
    %v1593 = vld [vmem:[%s7 + $0x90] sm:$0xff]
    %v1594 = vld [vmem:[%s7 + $0x98] sm:$0xff]
    %v1595 = vld [vmem:[%s7 + $0xa0] sm:$0xff]
    %v1596 = vld [vmem:[%s7 + $0xa8] sm:$0xff]
    %v1597 = vld [vmem:[%s7 + $0xb0] sm:$0xff]
    %v1598 = vld [vmem:[%s7 + $0xb8] sm:$0xff]
    %v1599 = vld [vmem:[%s7 + $0xc0] sm:$0xff]
    %v1600 = vld [vmem:[%s7 + $0xc8] sm:$0xff]
    %v1601 = vld [vmem:[%s7 + $0xd0] sm:$0xff]
    %v1602 = vld [vmem:[%s7 + $0xd8] sm:$0xff]
    %v1603 = vld [vmem:[%s7 + $0xe0] sm:$0xff]
    %v1604 = vld [vmem:[%s7 + $0xe8] sm:$0xff]
    %v1605 = vld [vmem:[%s7 + $0xf0] sm:$0xff]
    %v1606 = vld [vmem:[%s7 + $0xf8] sm:$0xff]
    %v1607 = vld [vmem:[%s7 + $0x100] sm:$0xff]
    %v1608 = vld [vmem:[%s7 + $0x108] sm:$0xff]
    %v1609 = vld [vmem:[%s7 + $0x110] sm:$0xff]
    %v1610 = vld [vmem:[%s7 + $0x118] sm:$0xff]
    %v1611 = vld [vmem:[%s7 + $0x120] sm:$0xff]
    %v1612 = vld [vmem:[%s7 + $0x128] sm:$0xff]
    %v1613 = vld [vmem:[%s7 + $0x130] sm:$0xff]
    %v1614 = vld [vmem:[%s7 + $0x138] sm:$0xff]
    %v1615 = vld [vmem:[%s7 + $0x140] sm:$0xff]
    %v1616 = vld [vmem:[%s7 + $0x148] sm:$0xff]
    %v1617 = vld [vmem:[%s7 + $0x150] sm:$0xff]
    %v1618 = vld [vmem:[%s7 + $0x158] sm:$0xff]
    %v1619 = vld [vmem:[%s7 + $0x160] sm:$0xff]
    %v1620 = vld [vmem:[%s7 + $0x168] sm:$0xff]
    %v1621 = vld [vmem:[%s7 + $0x170] sm:$0xff]
    %v1622 = vld [vmem:[%s7 + $0x178] sm:$0xff]
    %v1623 = vld [vmem:[%s7 + $0x180] sm:$0xff]
    %v1624 = vld [vmem:[%s7 + $0x188] sm:$0xff]
    %v1625 = vld [vmem:[%s7 + $0x190] sm:$0xff]
    %v1626 = vld [vmem:[%s7 + $0x198] sm:$0xff]
    %v1627 = vld [vmem:[%s7 + $0x1a0] sm:$0xff]
    %v1628 = vld [vmem:[%s7 + $0x1a8] sm:$0xff]
    %v1629 = vld [vmem:[%s7 + $0x1b0] sm:$0xff]
    %v1630 = vld [vmem:[%s7 + $0x1b8] sm:$0xff]
    %v1631 = vld [vmem:[%s7 + $0x1c0] sm:$0xff]
    %v1632 = vld [vmem:[%s7 + $0x1c8] sm:$0xff]
    %v1633 = vld [vmem:[%s7 + $0x1d0] sm:$0xff]
    %v1634 = vld [vmem:[%s7 + $0x1d8] sm:$0xff]
    %v1635 = vld [vmem:[%s7 + $0x1e0] sm:$0xff]
    %v1636 = vld [vmem:[%s7 + $0x1e8] sm:$0xff]
    %v1637 = vld [vmem:[%s7 + $0x1f0] sm:$0xff]
    %v1638 = vld [vmem:[%s7 + $0x1f8] sm:$0xff]
    %v1639 = vld [vmem:[%s7 + $0x200] sm:$0xff]
    %v1640 = vld [vmem:[%s7 + $0x208] sm:$0xff]
    %v1641 = vld [vmem:[%s7 + $0x210] sm:$0xff]
    %v1642 = vld [vmem:[%s7 + $0x218] sm:$0xff]
    %v1643 = vld [vmem:[%s7 + $0x220] sm:$0xff]
    %v1644 = vld [vmem:[%s7 + $0x228] sm:$0xff]
    %v1645 = vld [vmem:[%s7 + $0x230] sm:$0xff]
    %v1646 = vld [vmem:[%s7 + $0x238] sm:$0xff]
    %v1647 = vld [vmem:[%s7 + $0x240] sm:$0xff]
    %v1648 = vld [vmem:[%s7 + $0x248] sm:$0xff]
    %v1649 = vld [vmem:[%s7 + $0x250] sm:$0xff]
    %v1650 = vld [vmem:[%s7 + $0x258] sm:$0xff]
    %v1651 = vld [vmem:[%s7 + $0x260] sm:$0xff]
    %v1652 = vld [vmem:[%s7 + $0x268] sm:$0xff]
    %v1653 = vld [vmem:[%s7 + $0x270] sm:$0xff]
    %v1654 = vld [vmem:[%s7 + $0x278] sm:$0xff]
    %v1655 = vld [vmem:[%s7 + $0x280] sm:$0xff]
    %v1656 = vld [vmem:[%s7 + $0x288] sm:$0xff]
    %v1657 = vld [vmem:[%s7 + $0x290] sm:$0xff]
    %v1658 = vld [vmem:[%s7 + $0x298] sm:$0xff]
    %v1659 = vld [vmem:[%s7 + $0x2a0] sm:$0xff]
    %v1660 = vld [vmem:[%s7 + $0x2a8] sm:$0xff]
    %v1661 = vld [vmem:[%s7 + $0x2b0] sm:$0xff]
    %v1662 = vld [vmem:[%s7 + $0x2b8] sm:$0xff]
    %v1663 = vld [vmem:[%s7 + $0x2c0] sm:$0xff]
    %v1664 = vld [vmem:[%s7 + $0x2c8] sm:$0xff]
    %v1665 = vld [vmem:[%s7 + $0x2d0] sm:$0xff]
    %v1666 = vld [vmem:[%s7 + $0x2d8] sm:$0xff]
    %v1667 = vld [vmem:[%s7 + $0x2e0] sm:$0xff]
    %v1668 = vld [vmem:[%s7 + $0x2e8] sm:$0xff]
    %v1669 = vld [vmem:[%s7 + $0x2f0] sm:$0xff]
    %v1670 = vld [vmem:[%s7 + $0x2f8] sm:$0xff]
    %v1671 = vld [vmem:[%s7 + $0x300] sm:$0xff]
    %v1672 = vld [vmem:[%s7 + $0x308] sm:$0xff]
    %v1673 = vld [vmem:[%s7 + $0x310] sm:$0xff]
    %v1674 = vld [vmem:[%s7 + $0x318] sm:$0xff]
    %v1675 = vld [vmem:[%s7 + $0x320] sm:$0xff]
    %v1676 = vld [vmem:[%s7 + $0x328] sm:$0xff]
    %v1677 = vld [vmem:[%s7 + $0x330] sm:$0xff]
    %v1678 = vld [vmem:[%s7 + $0x338] sm:$0xff]
    %v1679 = vld [vmem:[%s7 + $0x340] sm:$0xff]
    %v1680 = vld [vmem:[%s7 + $0x348] sm:$0xff]
    %v1681 = vld [vmem:[%s7 + $0x350] sm:$0xff]
    %v1682 = vld [vmem:[%s7 + $0x358] sm:$0xff]
    %v1683 = vld [vmem:[%s7 + $0x360] sm:$0xff]
    %v1684 = vld [vmem:[%s7 + $0x368] sm:$0xff]
    %v1685 = vld [vmem:[%s7 + $0x370] sm:$0xff]
    %v1686 = vld [vmem:[%s7 + $0x378] sm:$0xff]
    %v1687 = vld [vmem:[%s7 + $0x380] sm:$0xff]
    %v1688 = vld [vmem:[%s7 + $0x388] sm:$0xff]
    %v1689 = vld [vmem:[%s7 + $0x390] sm:$0xff]
    %v1690 = vld [vmem:[%s7 + $0x398] sm:$0xff]
    %v1691 = vld [vmem:[%s7 + $0x3a0] sm:$0xff]
    %v1692 = vld [vmem:[%s7 + $0x3a8] sm:$0xff]
    %v1693 = vld [vmem:[%s7 + $0x3b0] sm:$0xff]
    %v1694 = vld [vmem:[%s7 + $0x3b8] sm:$0xff]
    %v1695 = vld [vmem:[%s7 + $0x3c0] sm:$0xff]
    %v1696 = vld [vmem:[%s7 + $0x3c8] sm:$0xff]
    %v1697 = vld [vmem:[%s7 + $0x3d0] sm:$0xff]
    %v1698 = vld [vmem:[%s7 + $0x3d8] sm:$0xff]
    %v1699 = vld [vmem:[%s7 + $0x3e0] sm:$0xff]
    %v1700 = vld [vmem:[%s7 + $0x3e8] sm:$0xff]
    %v1701 = vld [vmem:[%s7 + $0x3f0] sm:$0xff]
    %v1702 = vld [vmem:[%s7 + $0x3f8] sm:$0xff]
    %v1703 = vld [vmem:[%s7 + $0x400] sm:$0xff]
    %v1704 = vld [vmem:[%s7 + $0x408] sm:$0xff]
    %v1705 = vld [vmem:[%s7 + $0x410] sm:$0xff]
    %v1706 = vld [vmem:[%s7 + $0x418] sm:$0xff]
    %v1707 = vld [vmem:[%s7 + $0x420] sm:$0xff]
    %v1708 = vld [vmem:[%s7 + $0x428] sm:$0xff]
    %v1709 = vld [vmem:[%s7 + $0x430] sm:$0xff]
    %v1710 = vld [vmem:[%s7 + $0x438] sm:$0xff]
    %v1711 = vld [vmem:[%s7 + $0x440] sm:$0xff]
    %v1712 = vld [vmem:[%s7 + $0x448] sm:$0xff]
    %v1713 = vld [vmem:[%s7 + $0x450] sm:$0xff]
    %v1714 = vld [vmem:[%s7 + $0x458] sm:$0xff]
    %v1715 = vld [vmem:[%s7 + $0x460] sm:$0xff]
    %v1716 = vld [vmem:[%s7 + $0x468] sm:$0xff]
    %v1717 = vld [vmem:[%s7 + $0x470] sm:$0xff]
    %v1718 = vld [vmem:[%s7 + $0x478] sm:$0xff]
    %v1719 = vld [vmem:[%s7 + $0x480] sm:$0xff]
    %v1720 = vld [vmem:[%s7 + $0x488] sm:$0xff]
    %v1721 = vld [vmem:[%s7 + $0x490] sm:$0xff]
    %v1722 = vld [vmem:[%s7 + $0x498] sm:$0xff]
    %v1723 = vld [vmem:[%s7 + $0x4a0] sm:$0xff]
    %v1724 = vld [vmem:[%s7 + $0x4a8] sm:$0xff]
    %v1725 = vld [vmem:[%s7 + $0x4b0] sm:$0xff]
    %v1726 = vld [vmem:[%s7 + $0x4b8] sm:$0xff]
    %v1727 = vld [vmem:[%s7 + $0x4c0] sm:$0xff]
    %v1728 = vld [vmem:[%s7 + $0x4c8] sm:$0xff]
    %v1729 = vld [vmem:[%s7 + $0x4d0] sm:$0xff]
    %v1730 = vld [vmem:[%s7 + $0x4d8] sm:$0xff]
    %v1731 = vld [vmem:[%s7 + $0x4e0] sm:$0xff]
    %v1732 = vld [vmem:[%s7 + $0x4e8] sm:$0xff]
    %v1733 = vld [vmem:[%s7 + $0x4f0] sm:$0xff]
    %v1734 = vld [vmem:[%s7 + $0x4f8] sm:$0xff]
    %v1735 = vld [vmem:[%s7 + $0x500] sm:$0xff]
    %v1736 = vld [vmem:[%s7 + $0x508] sm:$0xff]
    %v1737 = vld [vmem:[%s7 + $0x510] sm:$0xff]
    %v1738 = vld [vmem:[%s7 + $0x518] sm:$0xff]
    %v1739 = vld [vmem:[%s7 + $0x520] sm:$0xff]
    %v1740 = vld [vmem:[%s7 + $0x528] sm:$0xff]
    %v1741 = vld [vmem:[%s7 + $0x530] sm:$0xff]
    %v1742 = vld [vmem:[%s7 + $0x538] sm:$0xff]
    %v1743 = vld [vmem:[%s7 + $0x540] sm:$0xff]
    %v1744 = vld [vmem:[%s7 + $0x548] sm:$0xff]
    %v1745 = vld [vmem:[%s7 + $0x550] sm:$0xff]
    %v1746 = vld [vmem:[%s7 + $0x558] sm:$0xff]
    %v1747 = vld [vmem:[%s7 + $0x560] sm:$0xff]
    %v1748 = vld [vmem:[%s7 + $0x568] sm:$0xff]
    %v1749 = vld [vmem:[%s7 + $0x570] sm:$0xff]
    %v1750 = vld [vmem:[%s7 + $0x578] sm:$0xff]
    %v1751 = vld [vmem:[%s7 + $0x580] sm:$0xff]
    %v1752 = vld [vmem:[%s7 + $0x588] sm:$0xff]
    %v1753 = vld [vmem:[%s7 + $0x590] sm:$0xff]
    %v1754 = vld [vmem:[%s7 + $0x598] sm:$0xff]
    %v1755 = vld [vmem:[%s7 + $0x5a0] sm:$0xff]
    %v1756 = vld [vmem:[%s7 + $0x5a8] sm:$0xff]
    %v1757 = vld [vmem:[%s7 + $0x5b0] sm:$0xff]
    %v1758 = vld [vmem:[%s7 + $0x5b8] sm:$0xff]
    %v1759 = vld [vmem:[%s7 + $0x5c0] sm:$0xff]
    %v1760 = vld [vmem:[%s7 + $0x5c8] sm:$0xff]
    %v1761 = vld [vmem:[%s7 + $0x5d0] sm:$0xff]
    %v1762 = vld [vmem:[%s7 + $0x5d8] sm:$0xff]
    %v1763 = vld [vmem:[%s7 + $0x5e0] sm:$0xff]
    %v1764 = vld [vmem:[%s7 + $0x5e8] sm:$0xff]
    %v1765 = vld [vmem:[%s7 + $0x5f0] sm:$0xff]
    %v1766 = vld [vmem:[%s7 + $0x5f8] sm:$0xff]
    %v1767 = vld [vmem:[%s7 + $0x600] sm:$0xff]
    %v1768 = vld [vmem:[%s7 + $0x608] sm:$0xff]
    %v1769 = vld [vmem:[%s7 + $0x610] sm:$0xff]
    %v1770 = vld [vmem:[%s7 + $0x618] sm:$0xff]
    %v1771 = vld [vmem:[%s7 + $0x620] sm:$0xff]
    %v1772 = vld [vmem:[%s7 + $0x628] sm:$0xff]
    %v1773 = vld [vmem:[%s7 + $0x630] sm:$0xff]
    %v1774 = vld [vmem:[%s7 + $0x638] sm:$0xff]
    %v1775 = vld [vmem:[%s7 + $0x640] sm:$0xff]
    %v1776 = vld [vmem:[%s7 + $0x648] sm:$0xff]
    %v1777 = vld [vmem:[%s7 + $0x650] sm:$0xff]
    %v1778 = vld [vmem:[%s7 + $0x658] sm:$0xff]
    %v1779 = vld [vmem:[%s7 + $0x660] sm:$0xff]
    %v1780 = vld [vmem:[%s7 + $0x668] sm:$0xff]
    %v1781 = vld [vmem:[%s7 + $0x670] sm:$0xff]
    %v1782 = vld [vmem:[%s7 + $0x678] sm:$0xff]
    %v1783 = vld [vmem:[%s7 + $0x680] sm:$0xff]
    %v1784 = vld [vmem:[%s7 + $0x688] sm:$0xff]
    %v1785 = vld [vmem:[%s7 + $0x690] sm:$0xff]
    %v1786 = vld [vmem:[%s7 + $0x698] sm:$0xff]
    %v1787 = vld [vmem:[%s7 + $0x6a0] sm:$0xff]
    %v1788 = vld [vmem:[%s7 + $0x6a8] sm:$0xff]
    %v1789 = vld [vmem:[%s7 + $0x6b0] sm:$0xff]
    %v1790 = vld [vmem:[%s7 + $0x6b8] sm:$0xff]
    %v1791 = vld [vmem:[%s7 + $0x6c0] sm:$0xff]
    %v1792 = vld [vmem:[%s7 + $0x6c8] sm:$0xff]
    %v1793 = vld [vmem:[%s7 + $0x6d0] sm:$0xff]
    %v1794 = vld [vmem:[%s7 + $0x6d8] sm:$0xff]
    %v1795 = vld [vmem:[%s7 + $0x6e0] sm:$0xff]
    %v1796 = vld [vmem:[%s7 + $0x6e8] sm:$0xff]
    %v1797 = vld [vmem:[%s7 + $0x6f0] sm:$0xff]
    %v1798 = vld [vmem:[%s7 + $0x6f8] sm:$0xff]
    %v1799 = vld [vmem:[%s7 + $0x700] sm:$0xff]
    %v1800 = vld [vmem:[%s7 + $0x708] sm:$0xff]
    %v1801 = vld [vmem:[%s7 + $0x710] sm:$0xff]
    %v1802 = vld [vmem:[%s7 + $0x718] sm:$0xff]
    %v1803 = vld [vmem:[%s7 + $0x720] sm:$0xff]
    %v1804 = vld [vmem:[%s7 + $0x728] sm:$0xff]
    %v1805 = vld [vmem:[%s7 + $0x730] sm:$0xff]
    %v1806 = vld [vmem:[%s7 + $0x738] sm:$0xff]
    %v1807 = vld [vmem:[%s7 + $0x740] sm:$0xff]
    %v1808 = vld [vmem:[%s7 + $0x748] sm:$0xff]
    %v1809 = vld [vmem:[%s7 + $0x750] sm:$0xff]
    %v1810 = vld [vmem:[%s7 + $0x758] sm:$0xff]
    %v1811 = vld [vmem:[%s7 + $0x760] sm:$0xff]
    %v1812 = vld [vmem:[%s7 + $0x768] sm:$0xff]
    %v1813 = vld [vmem:[%s7 + $0x770] sm:$0xff]
    %v1814 = vld [vmem:[%s7 + $0x778] sm:$0xff]
    %v1815 = vld [vmem:[%s7 + $0x780] sm:$0xff]
    %v1816 = vld [vmem:[%s7 + $0x788] sm:$0xff]
    %v1817 = vld [vmem:[%s7 + $0x790] sm:$0xff]
    %v1818 = vld [vmem:[%s7 + $0x798] sm:$0xff]
    %v1819 = vld [vmem:[%s7 + $0x7a0] sm:$0xff]
    %v1820 = vld [vmem:[%s7 + $0x7a8] sm:$0xff]
    %v1821 = vld [vmem:[%s7 + $0x7b0] sm:$0xff]
    %v1822 = vld [vmem:[%s7 + $0x7b8] sm:$0xff]
    %v1823 = vld [vmem:[%s7 + $0x7c0] sm:$0xff]
    %v1824 = vld [vmem:[%s7 + $0x7c8] sm:$0xff]
    %v1825 = vld [vmem:[%s7 + $0x7d0] sm:$0xff]
    %v1826 = vld [vmem:[%s7 + $0x7d8] sm:$0xff]
    %v1827 = vld [vmem:[%s7 + $0x7e0] sm:$0xff]
    %v1828 = vld [vmem:[%s7 + $0x7e8] sm:$0xff]
    %v1829 = vld [vmem:[%s7 + $0x7f0] sm:$0xff]
    %v1830 = vld [vmem:[%s7 + $0x7f8] sm:$0xff]
    %v1831 = vld [vmem:[%s7 + $0x800] sm:$0xff]
    %v1832 = vld [vmem:[%s7 + $0x808] sm:$0xff]
    %v1833 = vld [vmem:[%s7 + $0x810] sm:$0xff]
    %v1834 = vld [vmem:[%s7 + $0x818] sm:$0xff]
    %v1835 = vld [vmem:[%s7 + $0x820] sm:$0xff]
    %v1836 = vld [vmem:[%s7 + $0x828] sm:$0xff]
    %v1837 = vld [vmem:[%s7 + $0x830] sm:$0xff]
    %v1838 = vld [vmem:[%s7 + $0x838] sm:$0xff]
    %v1839 = vld [vmem:[%s7 + $0x840] sm:$0xff]
    %v1840 = vld [vmem:[%s7 + $0x848] sm:$0xff]
    %v1841 = vld [vmem:[%s7 + $0x850] sm:$0xff]
    %v1842 = vld [vmem:[%s7 + $0x858] sm:$0xff]
    %v1843 = vld [vmem:[%s7 + $0x860] sm:$0xff]
    %v1844 = vld [vmem:[%s7 + $0x868] sm:$0xff]
    %v1845 = vld [vmem:[%s7 + $0x870] sm:$0xff]
    %v1846 = vld [vmem:[%s7 + $0x878] sm:$0xff]
    %v1847 = vld [vmem:[%s7 + $0x880] sm:$0xff]
    %v1848 = vld [vmem:[%s7 + $0x888] sm:$0xff]
    %v1849 = vld [vmem:[%s7 + $0x890] sm:$0xff]
    %v1850 = vld [vmem:[%s7 + $0x898] sm:$0xff]
    %v1851 = vld [vmem:[%s7 + $0x8a0] sm:$0xff]
    %v1852 = vld [vmem:[%s7 + $0x8a8] sm:$0xff]
    %v1853 = vld [vmem:[%s7 + $0x8b0] sm:$0xff]
    %v1854 = vld [vmem:[%s7 + $0x8b8] sm:$0xff]
    %v1855 = vld [vmem:[%s7 + $0x8c0] sm:$0xff]
    %v1856 = vld [vmem:[%s7 + $0x8c8] sm:$0xff]
    %v1857 = vld [vmem:[%s7 + $0x8d0] sm:$0xff]
    %v1858 = vld [vmem:[%s7 + $0x8d8] sm:$0xff]
    %v1859 = vld [vmem:[%s7 + $0x8e0] sm:$0xff]
    %v1860 = vld [vmem:[%s7 + $0x8e8] sm:$0xff]
    %v1861 = vld [vmem:[%s7 + $0x8f0] sm:$0xff]
    %v1862 = vld [vmem:[%s7 + $0x8f8] sm:$0xff]
    %v1863 = vld [vmem:[%s7 + $0x900] sm:$0xff]
    %v1864 = vld [vmem:[%s7 + $0x908] sm:$0xff]
    %v1865 = vld [vmem:[%s7 + $0x910] sm:$0xff]
    %v1866 = vld [vmem:[%s7 + $0x918] sm:$0xff]
    %v1867 = vld [vmem:[%s7 + $0x920] sm:$0xff]
    %v1868 = vld [vmem:[%s7 + $0x928] sm:$0xff]
    %v1869 = vld [vmem:[%s7 + $0x930] sm:$0xff]
    %v1870 = vld [vmem:[%s7 + $0x938] sm:$0xff]
    %v1871 = vld [vmem:[%s7 + $0x940] sm:$0xff]
    %v1872 = vld [vmem:[%s7 + $0x948] sm:$0xff]
    %v1873 = vld [vmem:[%s7 + $0x950] sm:$0xff]
    %v1874 = vld [vmem:[%s7 + $0x958] sm:$0xff]
    %v1875 = vld [vmem:[%s7 + $0x960] sm:$0xff]
    %v1876 = vld [vmem:[%s7 + $0x968] sm:$0xff]
    %v1877 = vld [vmem:[%s7 + $0x970] sm:$0xff]
    %v1878 = vld [vmem:[%s7 + $0x978] sm:$0xff]
    %v1879 = vld [vmem:[%s7 + $0x980] sm:$0xff]
    %v1880 = vld [vmem:[%s7 + $0x988] sm:$0xff]
    %v1881 = vld [vmem:[%s7 + $0x990] sm:$0xff]
    %v1882 = vld [vmem:[%s7 + $0x998] sm:$0xff]
    %v1883 = vld [vmem:[%s7 + $0x9a0] sm:$0xff]
    %v1884 = vld [vmem:[%s7 + $0x9a8] sm:$0xff]
    %v1885 = vld [vmem:[%s7 + $0x9b0] sm:$0xff]
    %v1886 = vld [vmem:[%s7 + $0x9b8] sm:$0xff]
    %v1887 = vld [vmem:[%s7 + $0x9c0] sm:$0xff]
    %v1888 = vld [vmem:[%s7 + $0x9c8] sm:$0xff]
    %v1889 = vld [vmem:[%s7 + $0x9d0] sm:$0xff]
    %v1890 = vld [vmem:[%s7 + $0x9d8] sm:$0xff]
    %v1891 = vld [vmem:[%s7 + $0x9e0] sm:$0xff]
    %v1892 = vld [vmem:[%s7 + $0x9e8] sm:$0xff]
    %v1893 = vld [vmem:[%s7 + $0x9f0] sm:$0xff]
    %v1894 = vld [vmem:[%s7 + $0x9f8] sm:$0xff]
    %v1895 = vld [vmem:[%s7 + $0xa00] sm:$0xff]
    %v1896 = vld [vmem:[%s7 + $0xa08] sm:$0xff]
    %v1897 = vld [vmem:[%s7 + $0xa10] sm:$0xff]
    %v1898 = vld [vmem:[%s7 + $0xa18] sm:$0xff]
    %v1899 = vld [vmem:[%s7 + $0xa20] sm:$0xff]
    %v1900 = vld [vmem:[%s7 + $0xa28] sm:$0xff]
    %v1901 = vld [vmem:[%s7 + $0xa30] sm:$0xff]
    %v1902 = vld [vmem:[%s7 + $0xa38] sm:$0xff]
    %v1903 = vld [vmem:[%s7 + $0xa40] sm:$0xff]
    %v1904 = vld [vmem:[%s7 + $0xa48] sm:$0xff]
    %v1905 = vld [vmem:[%s7 + $0xa50] sm:$0xff]
    %v1906 = vld [vmem:[%s7 + $0xa58] sm:$0xff]
    %v1907 = vld [vmem:[%s7 + $0xa60] sm:$0xff]
    %v1908 = vld [vmem:[%s7 + $0xa68] sm:$0xff]
    %v1909 = vld [vmem:[%s7 + $0xa70] sm:$0xff]
    %v1910 = vld [vmem:[%s7 + $0xa78] sm:$0xff]
    %v1911 = vld [vmem:[%s7 + $0xa80] sm:$0xff]
    %v1912 = vld [vmem:[%s7 + $0xa88] sm:$0xff]
    %v1913 = vld [vmem:[%s7 + $0xa90] sm:$0xff]
    %v1914 = vld [vmem:[%s7 + $0xa98] sm:$0xff]
    %v1915 = vld [vmem:[%s7 + $0xaa0] sm:$0xff]
    %v1916 = vld [vmem:[%s7 + $0xaa8] sm:$0xff]
    %v1917 = vld [vmem:[%s7 + $0xab0] sm:$0xff]
    %v1918 = vld [vmem:[%s7 + $0xab8] sm:$0xff]
    %v1919 = vld [vmem:[%s7 + $0xac0] sm:$0xff]
    %v1920 = vld [vmem:[%s7 + $0xac8] sm:$0xff]
    %v1921 = vld [vmem:[%s7 + $0xad0] sm:$0xff]
    %v1922 = vld [vmem:[%s7 + $0xad8] sm:$0xff]
    %v1923 = vld [vmem:[%s7 + $0xae0] sm:$0xff]
    %v1924 = vld [vmem:[%s7 + $0xae8] sm:$0xff]
    %v1925 = vld [vmem:[%s7 + $0xaf0] sm:$0xff]
    %v1926 = vld [vmem:[%s7 + $0xaf8] sm:$0xff]
    %v1927 = vld [vmem:[%s7 + $0xb00] sm:$0xff]
    %v1928 = vld [vmem:[%s7 + $0xb08] sm:$0xff]
    %v1929 = vld [vmem:[%s7 + $0xb10] sm:$0xff]
    %v1930 = vld [vmem:[%s7 + $0xb18] sm:$0xff]
    %v1931 = vld [vmem:[%s7 + $0xb20] sm:$0xff]
    %v1932 = vld [vmem:[%s7 + $0xb28] sm:$0xff]
    %v1933 = vld [vmem:[%s7 + $0xb30] sm:$0xff]
    %v1934 = vld [vmem:[%s7 + $0xb38] sm:$0xff]
    %v1935 = vld [vmem:[%s7 + $0xb40] sm:$0xff]
    %v1936 = vld [vmem:[%s7 + $0xb48] sm:$0xff]
    %v1937 = vld [vmem:[%s7 + $0xb50] sm:$0xff]
    %v1938 = vld [vmem:[%s7 + $0xb58] sm:$0xff]
    %v1939 = vld [vmem:[%s7 + $0xb60] sm:$0xff]
    %v1940 = vld [vmem:[%s7 + $0xb68] sm:$0xff]
    %v1941 = vld [vmem:[%s7 + $0xb70] sm:$0xff]
    %v1942 = vld [vmem:[%s7 + $0xb78] sm:$0xff]
    %v1943 = vld [vmem:[%s7 + $0xb80] sm:$0xff]
    %v1944 = vld [vmem:[%s7 + $0xb88] sm:$0xff]
    %v1945 = vld [vmem:[%s7 + $0xb90] sm:$0xff]
    %v1946 = vld [vmem:[%s7 + $0xb98] sm:$0xff]
    %v1947 = vld [vmem:[%s7 + $0xba0] sm:$0xff]
    %v1948 = vld [vmem:[%s7 + $0xba8] sm:$0xff]
    %v1949 = vld [vmem:[%s7 + $0xbb0] sm:$0xff]
    %v1950 = vld [vmem:[%s7 + $0xbb8] sm:$0xff]
    %v1951 = vld [vmem:[%s7 + $0xbc0] sm:$0xff]
    %v1952 = vld [vmem:[%s7 + $0xbc8] sm:$0xff]
    %v1953 = vld [vmem:[%s7 + $0xbd0] sm:$0xff]
    %v1954 = vld [vmem:[%s7 + $0xbd8] sm:$0xff]
    %v1955 = vld [vmem:[%s7 + $0xbe0] sm:$0xff]
    %v1956 = vld [vmem:[%s7 + $0xbe8] sm:$0xff]
    %v1957 = vld [vmem:[%s7 + $0xbf0] sm:$0xff]
    %v1958 = vld [vmem:[%s7 + $0xbf8] sm:$0xff]
    %v1959 = vld [vmem:[%s7 + $0xc00] sm:$0xff]
    %v1960 = vld [vmem:[%s7 + $0xc08] sm:$0xff]
    %v1961 = vld [vmem:[%s7 + $0xc10] sm:$0xff]
    %v1962 = vld [vmem:[%s7 + $0xc18] sm:$0xff]
    %v1963 = vld [vmem:[%s7 + $0xc20] sm:$0xff]
    %v1964 = vld [vmem:[%s7 + $0xc28] sm:$0xff]
    %v1965 = vld [vmem:[%s7 + $0xc30] sm:$0xff]
    %v1966 = vld [vmem:[%s7 + $0xc38] sm:$0xff]
    %v1967 = vld [vmem:[%s7 + $0xc40] sm:$0xff]
    %v1968 = vld [vmem:[%s7 + $0xc48] sm:$0xff]
    %v1969 = vld [vmem:[%s7 + $0xc50] sm:$0xff]
    %v1970 = vld [vmem:[%s7 + $0xc58] sm:$0xff]
    %v1971 = vld [vmem:[%s7 + $0xc60] sm:$0xff]
    %v1972 = vld [vmem:[%s7 + $0xc68] sm:$0xff]
    %v1973 = vld [vmem:[%s7 + $0xc70] sm:$0xff]
    %v1974 = vld [vmem:[%s7 + $0xc78] sm:$0xff]
    %v1975 = vld [vmem:[%s7 + $0xc80] sm:$0xff]
    %v1976 = vld [vmem:[%s7 + $0xc88] sm:$0xff]
    %v1977 = vld [vmem:[%s7 + $0xc90] sm:$0xff]
    %v1978 = vld [vmem:[%s7 + $0xc98] sm:$0xff]
    %v1979 = vld [vmem:[%s7 + $0xca0] sm:$0xff]
    %v1980 = vld [vmem:[%s7 + $0xca8] sm:$0xff]
    %v1981 = vld [vmem:[%s7 + $0xcb0] sm:$0xff]
    %v1982 = vld [vmem:[%s7 + $0xcb8] sm:$0xff]
    %v1983 = vld [vmem:[%s7 + $0xcc0] sm:$0xff]
    %v1984 = vld [vmem:[%s7 + $0xcc8] sm:$0xff]
    %v1985 = vld [vmem:[%s7 + $0xcd0] sm:$0xff]
    %v1986 = vld [vmem:[%s7 + $0xcd8] sm:$0xff]
    %v1987 = vld [vmem:[%s7 + $0xce0] sm:$0xff]
    %v1988 = vld [vmem:[%s7 + $0xce8] sm:$0xff]
    %v1989 = vld [vmem:[%s7 + $0xcf0] sm:$0xff]
    %v1990 = vld [vmem:[%s7 + $0xcf8] sm:$0xff]
    %v1991 = vld [vmem:[%s7 + $0xd00] sm:$0xff]
    %v1992 = vld [vmem:[%s7 + $0xd08] sm:$0xff]
    %v1993 = vld [vmem:[%s7 + $0xd10] sm:$0xff]
    %v1994 = vld [vmem:[%s7 + $0xd18] sm:$0xff]
    %v1995 = vld [vmem:[%s7 + $0xd20] sm:$0xff]
    %v1996 = vld [vmem:[%s7 + $0xd28] sm:$0xff]
    %v1997 = vld [vmem:[%s7 + $0xd30] sm:$0xff]
    %v1998 = vld [vmem:[%s7 + $0xd38] sm:$0xff]
    %v1999 = vld [vmem:[%s7 + $0xd40] sm:$0xff]
    %v2000 = vld [vmem:[%s7 + $0xd48] sm:$0xff]
    %v2001 = vld [vmem:[%s7 + $0xd50] sm:$0xff]
    %v2002 = vld [vmem:[%s7 + $0xd58] sm:$0xff]
    %v2003 = vld [vmem:[%s7 + $0xd60] sm:$0xff]
    %v2004 = vld [vmem:[%s7 + $0xd68] sm:$0xff]
    %v2005 = vld [vmem:[%s7 + $0xd70] sm:$0xff]
    %v2006 = vld [vmem:[%s7 + $0xd78] sm:$0xff]
    %v2007 = vld [vmem:[%s7 + $0xd80] sm:$0xff]
    %v2008 = vld [vmem:[%s7 + $0xd88] sm:$0xff]
    %v2009 = vld [vmem:[%s7 + $0xd90] sm:$0xff]
    %v2010 = vld [vmem:[%s7 + $0xd98] sm:$0xff]
    %v2011 = vld [vmem:[%s7 + $0xda0] sm:$0xff]
    %v2012 = vld [vmem:[%s7 + $0xda8] sm:$0xff]
    %v2013 = vld [vmem:[%s7 + $0xdb0] sm:$0xff]
    %v2014 = vld [vmem:[%s7 + $0xdb8] sm:$0xff]
    %v2015 = vld [vmem:[%s7 + $0xdc0] sm:$0xff]
    %v2016 = vld [vmem:[%s7 + $0xdc8] sm:$0xff]
    %v2017 = vld [vmem:[%s7 + $0xdd0] sm:$0xff]
    %v2018 = vld [vmem:[%s7 + $0xdd8] sm:$0xff]
    %v2019 = vld [vmem:[%s7 + $0xde0] sm:$0xff]
    %v2020 = vld [vmem:[%s7 + $0xde8] sm:$0xff]
    %v2021 = vld [vmem:[%s7 + $0xdf0] sm:$0xff]
    %v2022 = vld [vmem:[%s7 + $0xdf8] sm:$0xff]
    %v2023 = vld [vmem:[%s7 + $0xe00] sm:$0xff]
    %v2024 = vld [vmem:[%s7 + $0xe08] sm:$0xff]
    %v2025 = vld [vmem:[%s7 + $0xe10] sm:$0xff]
    %v2026 = vld [vmem:[%s7 + $0xe18] sm:$0xff]
    %v2027 = vld [vmem:[%s7 + $0xe20] sm:$0xff]
    %v2028 = vld [vmem:[%s7 + $0xe28] sm:$0xff]
    %v2029 = vld [vmem:[%s7 + $0xe30] sm:$0xff]
    %v2030 = vld [vmem:[%s7 + $0xe38] sm:$0xff]
    %v2031 = vld [vmem:[%s7 + $0xe40] sm:$0xff]
    %v2032 = vld [vmem:[%s7 + $0xe48] sm:$0xff]
    %v2033 = vld [vmem:[%s7 + $0xe50] sm:$0xff]
    %v2034 = vld [vmem:[%s7 + $0xe58] sm:$0xff]
    %v2035 = vld [vmem:[%s7 + $0xe60] sm:$0xff]
    %v2036 = vld [vmem:[%s7 + $0xe68] sm:$0xff]
    %v2037 = vld [vmem:[%s7 + $0xe70] sm:$0xff]
    %v2038 = vld [vmem:[%s7 + $0xe78] sm:$0xff]
    %v2039 = vld [vmem:[%s7 + $0xe80] sm:$0xff]
    %v2040 = vld [vmem:[%s7 + $0xe88] sm:$0xff]
    %v2041 = vld [vmem:[%s7 + $0xe90] sm:$0xff]
    %v2042 = vld [vmem:[%s7 + $0xe98] sm:$0xff]
    %v2043 = vld [vmem:[%s7 + $0xea0] sm:$0xff]
    %v2044 = vld [vmem:[%s7 + $0xea8] sm:$0xff]
    %v2045 = vld [vmem:[%s7 + $0xeb0] sm:$0xff]
    %v2046 = vld [vmem:[%s7 + $0xeb8] sm:$0xff]
    %v2047 = vld [vmem:[%s7 + $0xec0] sm:$0xff]
    %v2048 = vld [vmem:[%s7 + $0xec8] sm:$0xff]
    %v2049 = vld [vmem:[%s7 + $0xed0] sm:$0xff]
    %v2050 = vld [vmem:[%s7 + $0xed8] sm:$0xff]
    %v2051 = vld [vmem:[%s7 + $0xee0] sm:$0xff]
    %v2052 = vld [vmem:[%s7 + $0xee8] sm:$0xff]
    %v2053 = vld [vmem:[%s7 + $0xef0] sm:$0xff]
    %v2054 = vld [vmem:[%s7 + $0xef8] sm:$0xff]
    %v2055 = vld [vmem:[%s7 + $0xf00] sm:$0xff]
    %v2056 = vld [vmem:[%s7 + $0xf08] sm:$0xff]
    %v2057 = vld [vmem:[%s7 + $0xf10] sm:$0xff]
    %v2058 = vld [vmem:[%s7 + $0xf18] sm:$0xff]
    %v2059 = vld [vmem:[%s7 + $0xf20] sm:$0xff]
    %v2060 = vld [vmem:[%s7 + $0xf28] sm:$0xff]
    %v2061 = vld [vmem:[%s7 + $0xf30] sm:$0xff]
    %v2062 = vld [vmem:[%s7 + $0xf38] sm:$0xff]
    %v2063 = vld [vmem:[%s7 + $0xf40] sm:$0xff]
    %v2064 = vld [vmem:[%s7 + $0xf48] sm:$0xff]
    %v2065 = vld [vmem:[%s7 + $0xf50] sm:$0xff]
    %v2066 = vld [vmem:[%s7 + $0xf58] sm:$0xff]
    %v2067 = vld [vmem:[%s7 + $0xf60] sm:$0xff]
    %v2068 = vld [vmem:[%s7 + $0xf68] sm:$0xff]
    %v2069 = vld [vmem:[%s7 + $0xf70] sm:$0xff]
    %v2070 = vld [vmem:[%s7 + $0xf78] sm:$0xff]
    %v2071 = vld [vmem:[%s7 + $0xf80] sm:$0xff]
    %v2072 = vld [vmem:[%s7 + $0xf88] sm:$0xff]
    %v2073 = vld [vmem:[%s7 + $0xf90] sm:$0xff]
    %v2074 = vld [vmem:[%s7 + $0xf98] sm:$0xff]
    %v2075 = vld [vmem:[%s7 + $0xfa0] sm:$0xff]
    %v2076 = vld [vmem:[%s7 + $0xfa8] sm:$0xff]
    %v2077 = vld [vmem:[%s7 + $0xfb0] sm:$0xff]
    %v2078 = vld [vmem:[%s7 + $0xfb8] sm:$0xff]
    %v2079 = vld [vmem:[%s7 + $0xfc0] sm:$0xff]
    %v2080 = vld [vmem:[%s7 + $0xfc8] sm:$0xff]
    %v2081 = vld [vmem:[%s7 + $0xfd0] sm:$0xff]
    %v2082 = vld [vmem:[%s7 + $0xfd8] sm:$0xff]
    %v2083 = vld [vmem:[%s7 + $0xfe0] sm:$0xff]
    %v2084 = vld [vmem:[%s7 + $0xfe8] sm:$0xff]
    %v2085 = vld [vmem:[%s7 + $0xff0] sm:$0xff]
    %v2086 = vld [vmem:[%s7 + $0xff8] sm:$0xff]
    %v2087 = vld [vmem:[%s7 + $0x1000] sm:$0xff]
    %v2088 = vld [vmem:[%s7 + $0x1008] sm:$0xff]
    %v2089 = vld [vmem:[%s7 + $0x1010] sm:$0xff]
    %v2090 = vld [vmem:[%s7 + $0x1018] sm:$0xff]
    %v2091 = vld [vmem:[%s7 + $0x1020] sm:$0xff]
    %v2092 = vld [vmem:[%s7 + $0x1028] sm:$0xff]
    %v2093 = vld [vmem:[%s7 + $0x1030] sm:$0xff]
    %v2094 = vld [vmem:[%s7 + $0x1038] sm:$0xff]
    %v2095 = vld [vmem:[%s7 + $0x1040] sm:$0xff]
    %v2096 = vld [vmem:[%s7 + $0x1048] sm:$0xff]
    %v2097 = vld [vmem:[%s7 + $0x1050] sm:$0xff]
    %v2098 = vld [vmem:[%s7 + $0x1058] sm:$0xff]
    %v2099 = vld [vmem:[%s7 + $0x1060] sm:$0xff]
    %v2100 = vld [vmem:[%s7 + $0x1068] sm:$0xff]
    %v2101 = vld [vmem:[%s7 + $0x1070] sm:$0xff]
    %v2102 = vld [vmem:[%s7 + $0x1078] sm:$0xff]
    %v2103 = vld [vmem:[%s7 + $0x1080] sm:$0xff]
    %v2104 = vld [vmem:[%s7 + $0x1088] sm:$0xff]
    %v2105 = vld [vmem:[%s7 + $0x1090] sm:$0xff]
    %v2106 = vld [vmem:[%s7 + $0x1098] sm:$0xff]
    %v2107 = vld [vmem:[%s7 + $0x10a0] sm:$0xff]
    %v2108 = vld [vmem:[%s7 + $0x10a8] sm:$0xff]
    %v2109 = vld [vmem:[%s7 + $0x10b0] sm:$0xff]
    %v2110 = vld [vmem:[%s7 + $0x10b8] sm:$0xff]
    %v2111 = vld [vmem:[%s7 + $0x10c0] sm:$0xff]
    %v2112 = vld [vmem:[%s7 + $0x10c8] sm:$0xff]
    %v2113 = vld [vmem:[%s7 + $0x10d0] sm:$0xff]
    %v2114 = vld [vmem:[%s7 + $0x10d8] sm:$0xff]
    %v2115 = vld [vmem:[%s7 + $0x10e0] sm:$0xff]
    %v2116 = vld [vmem:[%s7 + $0x10e8] sm:$0xff]
    %v2117 = vld [vmem:[%s7 + $0x10f0] sm:$0xff]
    %v2118 = vld [vmem:[%s7 + $0x10f8] sm:$0xff]
    %v2119 = vld [vmem:[%s7 + $0x1100] sm:$0xff]
    %v2120 = vld [vmem:[%s7 + $0x1108] sm:$0xff]
    %v2121 = vld [vmem:[%s7 + $0x1110] sm:$0xff]
    %v2122 = vld [vmem:[%s7 + $0x1118] sm:$0xff]
    %v2123 = vld [vmem:[%s7 + $0x1120] sm:$0xff]
    %v2124 = vld [vmem:[%s7 + $0x1128] sm:$0xff]
    %v2125 = vld [vmem:[%s7 + $0x1130] sm:$0xff]
    %v2126 = vld [vmem:[%s7 + $0x1138] sm:$0xff]
    %v2127 = vld [vmem:[%s7 + $0x1140] sm:$0xff]
    %v2128 = vld [vmem:[%s7 + $0x1148] sm:$0xff]
    %v2129 = vld [vmem:[%s7 + $0x1150] sm:$0xff]
    %v2130 = vld [vmem:[%s7 + $0x1158] sm:$0xff]
    %v2131 = vld [vmem:[%s7 + $0x1160] sm:$0xff]
    %v2132 = vld [vmem:[%s7 + $0x1168] sm:$0xff]
    %v2133 = vld [vmem:[%s7 + $0x1170] sm:$0xff]
    %v2134 = vld [vmem:[%s7 + $0x1178] sm:$0xff]
    %v2135 = vld [vmem:[%s7 + $0x1180] sm:$0xff]
    %v2136 = vld [vmem:[%s7 + $0x1188] sm:$0xff]
    %v2137 = vld [vmem:[%s7 + $0x1190] sm:$0xff]
    %v2138 = vld [vmem:[%s7 + $0x1198] sm:$0xff]
    %v2139 = vld [vmem:[%s7 + $0x11a0] sm:$0xff]
    %v2140 = vld [vmem:[%s7 + $0x11a8] sm:$0xff]
    %v2141 = vld [vmem:[%s7 + $0x11b0] sm:$0xff]
    %v2142 = vld [vmem:[%s7 + $0x11b8] sm:$0xff]
    %v2143 = vld [vmem:[%s7 + $0x11c0] sm:$0xff]
    %v2144 = vld [vmem:[%s7 + $0x11c8] sm:$0xff]
    %v2145 = vld [vmem:[%s7 + $0x11d0] sm:$0xff]
    %v2146 = vld [vmem:[%s7 + $0x11d8] sm:$0xff]
    %v2147 = vld [vmem:[%s7 + $0x11e0] sm:$0xff]
    %v2148 = vld [vmem:[%s7 + $0x11e8] sm:$0xff]
    %v2149 = vld [vmem:[%s7 + $0x11f0] sm:$0xff]
    %v2150 = vld [vmem:[%s7 + $0x11f8] sm:$0xff]
    %vm2151 = vcmp.gt.f32.partialorder %v1575, 0.5
    %vm2152 = vcmp.gt.f32.partialorder %v1576, 0.5
    %vm2153 = vcmp.gt.f32.partialorder %v1577, 0.5
    %vm2154 = vcmp.gt.f32.partialorder %v1578, 0.5
    %vm2155 = vcmp.gt.f32.partialorder %v1579, 0.5
    %vm2156 = vcmp.gt.f32.partialorder %v1580, 0.5
    %vm2157 = vcmp.gt.f32.partialorder %v1581, 0.5
    %vm2158 = vcmp.gt.f32.partialorder %v1582, 0.5
    %vm2159 = vcmp.gt.f32.partialorder %v1583, 0.5
    %vm2160 = vcmp.gt.f32.partialorder %v1584, 0.5
    %vm2161 = vcmp.gt.f32.partialorder %v1585, 0.5
    %vm2162 = vcmp.gt.f32.partialorder %v1586, 0.5
    %vm2163 = vcmp.gt.f32.partialorder %v1587, 0.5
    %vm2164 = vcmp.gt.f32.partialorder %v1588, 0.5
    %vm2165 = vcmp.gt.f32.partialorder %v1589, 0.5
    %vm2166 = vcmp.gt.f32.partialorder %v1590, 0.5
    %vm2167 = vcmp.gt.f32.partialorder %v1591, 0.5
    %vm2168 = vcmp.gt.f32.partialorder %v1592, 0.5
    %vm2169 = vcmp.gt.f32.partialorder %v1593, 0.5
    %vm2170 = vcmp.gt.f32.partialorder %v1594, 0.5
    %vm2171 = vcmp.gt.f32.partialorder %v1595, 0.5
    %vm2172 = vcmp.gt.f32.partialorder %v1596, 0.5
    %vm2173 = vcmp.gt.f32.partialorder %v1597, 0.5
    %vm2174 = vcmp.gt.f32.partialorder %v1598, 0.5
    %vm2175 = vcmp.gt.f32.partialorder %v1599, 0.5
    %vm2176 = vcmp.gt.f32.partialorder %v1600, 0.5
    %vm2177 = vcmp.gt.f32.partialorder %v1601, 0.5
    %vm2178 = vcmp.gt.f32.partialorder %v1602, 0.5
    %vm2179 = vcmp.gt.f32.partialorder %v1603, 0.5
    %vm2180 = vcmp.gt.f32.partialorder %v1604, 0.5
    %vm2181 = vcmp.gt.f32.partialorder %v1605, 0.5
    %vm2182 = vcmp.gt.f32.partialorder %v1606, 0.5
    %vm2183 = vcmp.gt.f32.partialorder %v1607, 0.5
    %vm2184 = vcmp.gt.f32.partialorder %v1608, 0.5
    %vm2185 = vcmp.gt.f32.partialorder %v1609, 0.5
    %vm2186 = vcmp.gt.f32.partialorder %v1610, 0.5
    %vm2187 = vcmp.gt.f32.partialorder %v1611, 0.5
    %vm2188 = vcmp.gt.f32.partialorder %v1612, 0.5
    %vm2189 = vcmp.gt.f32.partialorder %v1613, 0.5
    %vm2190 = vcmp.gt.f32.partialorder %v1614, 0.5
    %vm2191 = vcmp.gt.f32.partialorder %v1615, 0.5
    %vm2192 = vcmp.gt.f32.partialorder %v1616, 0.5
    %vm2193 = vcmp.gt.f32.partialorder %v1617, 0.5
    %vm2194 = vcmp.gt.f32.partialorder %v1618, 0.5
    %vm2195 = vcmp.gt.f32.partialorder %v1619, 0.5
    %vm2196 = vcmp.gt.f32.partialorder %v1620, 0.5
    %vm2197 = vcmp.gt.f32.partialorder %v1621, 0.5
    %vm2198 = vcmp.gt.f32.partialorder %v1622, 0.5
    %vm2199 = vcmp.gt.f32.partialorder %v1623, 0.5
    %vm2200 = vcmp.gt.f32.partialorder %v1624, 0.5
    %vm2201 = vcmp.gt.f32.partialorder %v1625, 0.5
    %vm2202 = vcmp.gt.f32.partialorder %v1626, 0.5
    %vm2203 = vcmp.gt.f32.partialorder %v1627, 0.5
    %vm2204 = vcmp.gt.f32.partialorder %v1628, 0.5
    %vm2205 = vcmp.gt.f32.partialorder %v1629, 0.5
    %vm2206 = vcmp.gt.f32.partialorder %v1630, 0.5
    %vm2207 = vcmp.gt.f32.partialorder %v1631, 0.5
    %vm2208 = vcmp.gt.f32.partialorder %v1632, 0.5
    %vm2209 = vcmp.gt.f32.partialorder %v1633, 0.5
    %vm2210 = vcmp.gt.f32.partialorder %v1634, 0.5
    %vm2211 = vcmp.gt.f32.partialorder %v1635, 0.5
    %vm2212 = vcmp.gt.f32.partialorder %v1636, 0.5
    %vm2213 = vcmp.gt.f32.partialorder %v1637, 0.5
    %vm2214 = vcmp.gt.f32.partialorder %v1638, 0.5
    %vm2215 = vcmp.gt.f32.partialorder %v1639, 0.5
    %vm2216 = vcmp.gt.f32.partialorder %v1640, 0.5
    %vm2217 = vcmp.gt.f32.partialorder %v1641, 0.5
    %vm2218 = vcmp.gt.f32.partialorder %v1642, 0.5
    %vm2219 = vcmp.gt.f32.partialorder %v1643, 0.5
    %vm2220 = vcmp.gt.f32.partialorder %v1644, 0.5
    %vm2221 = vcmp.gt.f32.partialorder %v1645, 0.5
    %vm2222 = vcmp.gt.f32.partialorder %v1646, 0.5
    %vm2223 = vcmp.gt.f32.partialorder %v1647, 0.5
    %vm2224 = vcmp.gt.f32.partialorder %v1648, 0.5
    %vm2225 = vcmp.gt.f32.partialorder %v1649, 0.5
    %vm2226 = vcmp.gt.f32.partialorder %v1650, 0.5
    %vm2227 = vcmp.gt.f32.partialorder %v1651, 0.5
    %vm2228 = vcmp.gt.f32.partialorder %v1652, 0.5
    %vm2229 = vcmp.gt.f32.partialorder %v1653, 0.5
    %vm2230 = vcmp.gt.f32.partialorder %v1654, 0.5
    %vm2231 = vcmp.gt.f32.partialorder %v1655, 0.5
    %vm2232 = vcmp.gt.f32.partialorder %v1656, 0.5
    %vm2233 = vcmp.gt.f32.partialorder %v1657, 0.5
    %vm2234 = vcmp.gt.f32.partialorder %v1658, 0.5
    %vm2235 = vcmp.gt.f32.partialorder %v1659, 0.5
    %vm2236 = vcmp.gt.f32.partialorder %v1660, 0.5
    %vm2237 = vcmp.gt.f32.partialorder %v1661, 0.5
    %vm2238 = vcmp.gt.f32.partialorder %v1662, 0.5
    %vm2239 = vcmp.gt.f32.partialorder %v1663, 0.5
    %vm2240 = vcmp.gt.f32.partialorder %v1664, 0.5
    %vm2241 = vcmp.gt.f32.partialorder %v1665, 0.5
    %vm2242 = vcmp.gt.f32.partialorder %v1666, 0.5
    %vm2243 = vcmp.gt.f32.partialorder %v1667, 0.5
    %vm2244 = vcmp.gt.f32.partialorder %v1668, 0.5
    %vm2245 = vcmp.gt.f32.partialorder %v1669, 0.5
    %vm2246 = vcmp.gt.f32.partialorder %v1670, 0.5
    %vm2247 = vcmp.gt.f32.partialorder %v1671, 0.5
    %vm2248 = vcmp.gt.f32.partialorder %v1672, 0.5
    %vm2249 = vcmp.gt.f32.partialorder %v1673, 0.5
    %vm2250 = vcmp.gt.f32.partialorder %v1674, 0.5
    %vm2251 = vcmp.gt.f32.partialorder %v1675, 0.5
    %vm2252 = vcmp.gt.f32.partialorder %v1676, 0.5
    %vm2253 = vcmp.gt.f32.partialorder %v1677, 0.5
    %vm2254 = vcmp.gt.f32.partialorder %v1678, 0.5
    %vm2255 = vcmp.gt.f32.partialorder %v1679, 0.5
    %vm2256 = vcmp.gt.f32.partialorder %v1680, 0.5
    %vm2257 = vcmp.gt.f32.partialorder %v1681, 0.5
    %vm2258 = vcmp.gt.f32.partialorder %v1682, 0.5
    %vm2259 = vcmp.gt.f32.partialorder %v1683, 0.5
    %vm2260 = vcmp.gt.f32.partialorder %v1684, 0.5
    %vm2261 = vcmp.gt.f32.partialorder %v1685, 0.5
    %vm2262 = vcmp.gt.f32.partialorder %v1686, 0.5
    %vm2263 = vcmp.gt.f32.partialorder %v1687, 0.5
    %vm2264 = vcmp.gt.f32.partialorder %v1688, 0.5
    %vm2265 = vcmp.gt.f32.partialorder %v1689, 0.5
    %vm2266 = vcmp.gt.f32.partialorder %v1690, 0.5
    %vm2267 = vcmp.gt.f32.partialorder %v1691, 0.5
    %vm2268 = vcmp.gt.f32.partialorder %v1692, 0.5
    %vm2269 = vcmp.gt.f32.partialorder %v1693, 0.5
    %vm2270 = vcmp.gt.f32.partialorder %v1694, 0.5
    %vm2271 = vcmp.gt.f32.partialorder %v1695, 0.5
    %vm2272 = vcmp.gt.f32.partialorder %v1696, 0.5
    %vm2273 = vcmp.gt.f32.partialorder %v1697, 0.5
    %vm2274 = vcmp.gt.f32.partialorder %v1698, 0.5
    %vm2275 = vcmp.gt.f32.partialorder %v1699, 0.5
    %vm2276 = vcmp.gt.f32.partialorder %v1700, 0.5
    %vm2277 = vcmp.gt.f32.partialorder %v1701, 0.5
    %vm2278 = vcmp.gt.f32.partialorder %v1702, 0.5
    %vm2279 = vcmp.gt.f32.partialorder %v1703, 0.5
    %vm2280 = vcmp.gt.f32.partialorder %v1704, 0.5
    %vm2281 = vcmp.gt.f32.partialorder %v1705, 0.5
    %vm2282 = vcmp.gt.f32.partialorder %v1706, 0.5
    %vm2283 = vcmp.gt.f32.partialorder %v1707, 0.5
    %vm2284 = vcmp.gt.f32.partialorder %v1708, 0.5
    %vm2285 = vcmp.gt.f32.partialorder %v1709, 0.5
    %vm2286 = vcmp.gt.f32.partialorder %v1710, 0.5
    %vm2287 = vcmp.gt.f32.partialorder %v1711, 0.5
    %vm2288 = vcmp.gt.f32.partialorder %v1712, 0.5
    %vm2289 = vcmp.gt.f32.partialorder %v1713, 0.5
    %vm2290 = vcmp.gt.f32.partialorder %v1714, 0.5
    %vm2291 = vcmp.gt.f32.partialorder %v1715, 0.5
    %vm2292 = vcmp.gt.f32.partialorder %v1716, 0.5
    %vm2293 = vcmp.gt.f32.partialorder %v1717, 0.5
    %vm2294 = vcmp.gt.f32.partialorder %v1718, 0.5
    %vm2295 = vcmp.gt.f32.partialorder %v1719, 0.5
    %vm2296 = vcmp.gt.f32.partialorder %v1720, 0.5
    %vm2297 = vcmp.gt.f32.partialorder %v1721, 0.5
    %vm2298 = vcmp.gt.f32.partialorder %v1722, 0.5
    %vm2299 = vcmp.gt.f32.partialorder %v1723, 0.5
    %vm2300 = vcmp.gt.f32.partialorder %v1724, 0.5
    %vm2301 = vcmp.gt.f32.partialorder %v1725, 0.5
    %vm2302 = vcmp.gt.f32.partialorder %v1726, 0.5
    %vm2303 = vcmp.gt.f32.partialorder %v1727, 0.5
    %vm2304 = vcmp.gt.f32.partialorder %v1728, 0.5
    %vm2305 = vcmp.gt.f32.partialorder %v1729, 0.5
    %vm2306 = vcmp.gt.f32.partialorder %v1730, 0.5
    %vm2307 = vcmp.gt.f32.partialorder %v1731, 0.5
    %vm2308 = vcmp.gt.f32.partialorder %v1732, 0.5
    %vm2309 = vcmp.gt.f32.partialorder %v1733, 0.5
    %vm2310 = vcmp.gt.f32.partialorder %v1734, 0.5
    %vm2311 = vcmp.gt.f32.partialorder %v1735, 0.5
    %vm2312 = vcmp.gt.f32.partialorder %v1736, 0.5
    %vm2313 = vcmp.gt.f32.partialorder %v1737, 0.5
    %vm2314 = vcmp.gt.f32.partialorder %v1738, 0.5
    %vm2315 = vcmp.gt.f32.partialorder %v1739, 0.5
    %vm2316 = vcmp.gt.f32.partialorder %v1740, 0.5
    %vm2317 = vcmp.gt.f32.partialorder %v1741, 0.5
    %vm2318 = vcmp.gt.f32.partialorder %v1742, 0.5
    %vm2319 = vcmp.gt.f32.partialorder %v1743, 0.5
    %vm2320 = vcmp.gt.f32.partialorder %v1744, 0.5
    %vm2321 = vcmp.gt.f32.partialorder %v1745, 0.5
    %vm2322 = vcmp.gt.f32.partialorder %v1746, 0.5
    %vm2323 = vcmp.gt.f32.partialorder %v1747, 0.5
    %vm2324 = vcmp.gt.f32.partialorder %v1748, 0.5
    %vm2325 = vcmp.gt.f32.partialorder %v1749, 0.5
    %vm2326 = vcmp.gt.f32.partialorder %v1750, 0.5
    %vm2327 = vcmp.gt.f32.partialorder %v1751, 0.5
    %vm2328 = vcmp.gt.f32.partialorder %v1752, 0.5
    %vm2329 = vcmp.gt.f32.partialorder %v1753, 0.5
    %vm2330 = vcmp.gt.f32.partialorder %v1754, 0.5
    %vm2331 = vcmp.gt.f32.partialorder %v1755, 0.5
    %vm2332 = vcmp.gt.f32.partialorder %v1756, 0.5
    %vm2333 = vcmp.gt.f32.partialorder %v1757, 0.5
    %vm2334 = vcmp.gt.f32.partialorder %v1758, 0.5
    %vm2335 = vcmp.gt.f32.partialorder %v1759, 0.5
    %vm2336 = vcmp.gt.f32.partialorder %v1760, 0.5
    %vm2337 = vcmp.gt.f32.partialorder %v1761, 0.5
    %vm2338 = vcmp.gt.f32.partialorder %v1762, 0.5
    %vm2339 = vcmp.gt.f32.partialorder %v1763, 0.5
    %vm2340 = vcmp.gt.f32.partialorder %v1764, 0.5
    %vm2341 = vcmp.gt.f32.partialorder %v1765, 0.5
    %vm2342 = vcmp.gt.f32.partialorder %v1766, 0.5
    %vm2343 = vcmp.gt.f32.partialorder %v1767, 0.5
    %vm2344 = vcmp.gt.f32.partialorder %v1768, 0.5
    %vm2345 = vcmp.gt.f32.partialorder %v1769, 0.5
    %vm2346 = vcmp.gt.f32.partialorder %v1770, 0.5
    %vm2347 = vcmp.gt.f32.partialorder %v1771, 0.5
    %vm2348 = vcmp.gt.f32.partialorder %v1772, 0.5
    %vm2349 = vcmp.gt.f32.partialorder %v1773, 0.5
    %vm2350 = vcmp.gt.f32.partialorder %v1774, 0.5
    %vm2351 = vcmp.gt.f32.partialorder %v1775, 0.5
    %vm2352 = vcmp.gt.f32.partialorder %v1776, 0.5
    %vm2353 = vcmp.gt.f32.partialorder %v1777, 0.5
    %vm2354 = vcmp.gt.f32.partialorder %v1778, 0.5
    %vm2355 = vcmp.gt.f32.partialorder %v1779, 0.5
    %vm2356 = vcmp.gt.f32.partialorder %v1780, 0.5
    %vm2357 = vcmp.gt.f32.partialorder %v1781, 0.5
    %vm2358 = vcmp.gt.f32.partialorder %v1782, 0.5
    %vm2359 = vcmp.gt.f32.partialorder %v1783, 0.5
    %vm2360 = vcmp.gt.f32.partialorder %v1784, 0.5
    %vm2361 = vcmp.gt.f32.partialorder %v1785, 0.5
    %vm2362 = vcmp.gt.f32.partialorder %v1786, 0.5
    %vm2363 = vcmp.gt.f32.partialorder %v1787, 0.5
    %vm2364 = vcmp.gt.f32.partialorder %v1788, 0.5
    %vm2365 = vcmp.gt.f32.partialorder %v1789, 0.5
    %vm2366 = vcmp.gt.f32.partialorder %v1790, 0.5
    %vm2367 = vcmp.gt.f32.partialorder %v1791, 0.5
    %vm2368 = vcmp.gt.f32.partialorder %v1792, 0.5
    %vm2369 = vcmp.gt.f32.partialorder %v1793, 0.5
    %vm2370 = vcmp.gt.f32.partialorder %v1794, 0.5
    %vm2371 = vcmp.gt.f32.partialorder %v1795, 0.5
    %vm2372 = vcmp.gt.f32.partialorder %v1796, 0.5
    %vm2373 = vcmp.gt.f32.partialorder %v1797, 0.5
    %vm2374 = vcmp.gt.f32.partialorder %v1798, 0.5
    %vm2375 = vcmp.gt.f32.partialorder %v1799, 0.5
    %vm2376 = vcmp.gt.f32.partialorder %v1800, 0.5
    %vm2377 = vcmp.gt.f32.partialorder %v1801, 0.5
    %vm2378 = vcmp.gt.f32.partialorder %v1802, 0.5
    %vm2379 = vcmp.gt.f32.partialorder %v1803, 0.5
    %vm2380 = vcmp.gt.f32.partialorder %v1804, 0.5
    %vm2381 = vcmp.gt.f32.partialorder %v1805, 0.5
    %vm2382 = vcmp.gt.f32.partialorder %v1806, 0.5
    %vm2383 = vcmp.gt.f32.partialorder %v1807, 0.5
    %vm2384 = vcmp.gt.f32.partialorder %v1808, 0.5
    %vm2385 = vcmp.gt.f32.partialorder %v1809, 0.5
    %vm2386 = vcmp.gt.f32.partialorder %v1810, 0.5
    %vm2387 = vcmp.gt.f32.partialorder %v1811, 0.5
    %vm2388 = vcmp.gt.f32.partialorder %v1812, 0.5
    %vm2389 = vcmp.gt.f32.partialorder %v1813, 0.5
    %vm2390 = vcmp.gt.f32.partialorder %v1814, 0.5
    %vm2391 = vcmp.gt.f32.partialorder %v1815, 0.5
    %vm2392 = vcmp.gt.f32.partialorder %v1816, 0.5
    %vm2393 = vcmp.gt.f32.partialorder %v1817, 0.5
    %vm2394 = vcmp.gt.f32.partialorder %v1818, 0.5
    %vm2395 = vcmp.gt.f32.partialorder %v1819, 0.5
    %vm2396 = vcmp.gt.f32.partialorder %v1820, 0.5
    %vm2397 = vcmp.gt.f32.partialorder %v1821, 0.5
    %vm2398 = vcmp.gt.f32.partialorder %v1822, 0.5
    %vm2399 = vcmp.gt.f32.partialorder %v1823, 0.5
    %vm2400 = vcmp.gt.f32.partialorder %v1824, 0.5
    %vm2401 = vcmp.gt.f32.partialorder %v1825, 0.5
    %vm2402 = vcmp.gt.f32.partialorder %v1826, 0.5
    %vm2403 = vcmp.gt.f32.partialorder %v1827, 0.5
    %vm2404 = vcmp.gt.f32.partialorder %v1828, 0.5
    %vm2405 = vcmp.gt.f32.partialorder %v1829, 0.5
    %vm2406 = vcmp.gt.f32.partialorder %v1830, 0.5
    %vm2407 = vcmp.gt.f32.partialorder %v1831, 0.5
    %vm2408 = vcmp.gt.f32.partialorder %v1832, 0.5
    %vm2409 = vcmp.gt.f32.partialorder %v1833, 0.5
    %vm2410 = vcmp.gt.f32.partialorder %v1834, 0.5
    %vm2411 = vcmp.gt.f32.partialorder %v1835, 0.5
    %vm2412 = vcmp.gt.f32.partialorder %v1836, 0.5
    %vm2413 = vcmp.gt.f32.partialorder %v1837, 0.5
    %vm2414 = vcmp.gt.f32.partialorder %v1838, 0.5
    %vm2415 = vcmp.gt.f32.partialorder %v1839, 0.5
    %vm2416 = vcmp.gt.f32.partialorder %v1840, 0.5
    %vm2417 = vcmp.gt.f32.partialorder %v1841, 0.5
    %vm2418 = vcmp.gt.f32.partialorder %v1842, 0.5
    %vm2419 = vcmp.gt.f32.partialorder %v1843, 0.5
    %vm2420 = vcmp.gt.f32.partialorder %v1844, 0.5
    %vm2421 = vcmp.gt.f32.partialorder %v1845, 0.5
    %vm2422 = vcmp.gt.f32.partialorder %v1846, 0.5
    %vm2423 = vcmp.gt.f32.partialorder %v1847, 0.5
    %vm2424 = vcmp.gt.f32.partialorder %v1848, 0.5
    %vm2425 = vcmp.gt.f32.partialorder %v1849, 0.5
    %vm2426 = vcmp.gt.f32.partialorder %v1850, 0.5
    %vm2427 = vcmp.gt.f32.partialorder %v1851, 0.5
    %vm2428 = vcmp.gt.f32.partialorder %v1852, 0.5
    %vm2429 = vcmp.gt.f32.partialorder %v1853, 0.5
    %vm2430 = vcmp.gt.f32.partialorder %v1854, 0.5
    %vm2431 = vcmp.gt.f32.partialorder %v1855, 0.5
    %vm2432 = vcmp.gt.f32.partialorder %v1856, 0.5
    %vm2433 = vcmp.gt.f32.partialorder %v1857, 0.5
    %vm2434 = vcmp.gt.f32.partialorder %v1858, 0.5
    %vm2435 = vcmp.gt.f32.partialorder %v1859, 0.5
    %vm2436 = vcmp.gt.f32.partialorder %v1860, 0.5
    %vm2437 = vcmp.gt.f32.partialorder %v1861, 0.5
    %vm2438 = vcmp.gt.f32.partialorder %v1862, 0.5
    %vm2439 = vcmp.gt.f32.partialorder %v1863, 0.5
    %vm2440 = vcmp.gt.f32.partialorder %v1864, 0.5
    %vm2441 = vcmp.gt.f32.partialorder %v1865, 0.5
    %vm2442 = vcmp.gt.f32.partialorder %v1866, 0.5
    %vm2443 = vcmp.gt.f32.partialorder %v1867, 0.5
    %vm2444 = vcmp.gt.f32.partialorder %v1868, 0.5
    %vm2445 = vcmp.gt.f32.partialorder %v1869, 0.5
    %vm2446 = vcmp.gt.f32.partialorder %v1870, 0.5
    %vm2447 = vcmp.gt.f32.partialorder %v1871, 0.5
    %vm2448 = vcmp.gt.f32.partialorder %v1872, 0.5
    %vm2449 = vcmp.gt.f32.partialorder %v1873, 0.5
    %vm2450 = vcmp.gt.f32.partialorder %v1874, 0.5
    %vm2451 = vcmp.gt.f32.partialorder %v1875, 0.5
    %vm2452 = vcmp.gt.f32.partialorder %v1876, 0.5
    %vm2453 = vcmp.gt.f32.partialorder %v1877, 0.5
    %vm2454 = vcmp.gt.f32.partialorder %v1878, 0.5
    %vm2455 = vcmp.gt.f32.partialorder %v1879, 0.5
    %vm2456 = vcmp.gt.f32.partialorder %v1880, 0.5
    %vm2457 = vcmp.gt.f32.partialorder %v1881, 0.5
    %vm2458 = vcmp.gt.f32.partialorder %v1882, 0.5
    %vm2459 = vcmp.gt.f32.partialorder %v1883, 0.5
    %vm2460 = vcmp.gt.f32.partialorder %v1884, 0.5
    %vm2461 = vcmp.gt.f32.partialorder %v1885, 0.5
    %vm2462 = vcmp.gt.f32.partialorder %v1886, 0.5
    %vm2463 = vcmp.gt.f32.partialorder %v1887, 0.5
    %vm2464 = vcmp.gt.f32.partialorder %v1888, 0.5
    %vm2465 = vcmp.gt.f32.partialorder %v1889, 0.5
    %vm2466 = vcmp.gt.f32.partialorder %v1890, 0.5
    %vm2467 = vcmp.gt.f32.partialorder %v1891, 0.5
    %vm2468 = vcmp.gt.f32.partialorder %v1892, 0.5
    %vm2469 = vcmp.gt.f32.partialorder %v1893, 0.5
    %vm2470 = vcmp.gt.f32.partialorder %v1894, 0.5
    %vm2471 = vcmp.gt.f32.partialorder %v1895, 0.5
    %vm2472 = vcmp.gt.f32.partialorder %v1896, 0.5
    %vm2473 = vcmp.gt.f32.partialorder %v1897, 0.5
    %vm2474 = vcmp.gt.f32.partialorder %v1898, 0.5
    %vm2475 = vcmp.gt.f32.partialorder %v1899, 0.5
    %vm2476 = vcmp.gt.f32.partialorder %v1900, 0.5
    %vm2477 = vcmp.gt.f32.partialorder %v1901, 0.5
    %vm2478 = vcmp.gt.f32.partialorder %v1902, 0.5
    %vm2479 = vcmp.gt.f32.partialorder %v1903, 0.5
    %vm2480 = vcmp.gt.f32.partialorder %v1904, 0.5
    %vm2481 = vcmp.gt.f32.partialorder %v1905, 0.5
    %vm2482 = vcmp.gt.f32.partialorder %v1906, 0.5
    %vm2483 = vcmp.gt.f32.partialorder %v1907, 0.5
    %vm2484 = vcmp.gt.f32.partialorder %v1908, 0.5
    %vm2485 = vcmp.gt.f32.partialorder %v1909, 0.5
    %vm2486 = vcmp.gt.f32.partialorder %v1910, 0.5
    %vm2487 = vcmp.gt.f32.partialorder %v1911, 0.5
    %vm2488 = vcmp.gt.f32.partialorder %v1912, 0.5
    %vm2489 = vcmp.gt.f32.partialorder %v1913, 0.5
    %vm2490 = vcmp.gt.f32.partialorder %v1914, 0.5
    %vm2491 = vcmp.gt.f32.partialorder %v1915, 0.5
    %vm2492 = vcmp.gt.f32.partialorder %v1916, 0.5
    %vm2493 = vcmp.gt.f32.partialorder %v1917, 0.5
    %vm2494 = vcmp.gt.f32.partialorder %v1918, 0.5
    %vm2495 = vcmp.gt.f32.partialorder %v1919, 0.5
    %vm2496 = vcmp.gt.f32.partialorder %v1920, 0.5
    %vm2497 = vcmp.gt.f32.partialorder %v1921, 0.5
    %vm2498 = vcmp.gt.f32.partialorder %v1922, 0.5
    %vm2499 = vcmp.gt.f32.partialorder %v1923, 0.5
    %vm2500 = vcmp.gt.f32.partialorder %v1924, 0.5
    %vm2501 = vcmp.gt.f32.partialorder %v1925, 0.5
    %vm2502 = vcmp.gt.f32.partialorder %v1926, 0.5
    %vm2503 = vcmp.gt.f32.partialorder %v1927, 0.5
    %vm2504 = vcmp.gt.f32.partialorder %v1928, 0.5
    %vm2505 = vcmp.gt.f32.partialorder %v1929, 0.5
    %vm2506 = vcmp.gt.f32.partialorder %v1930, 0.5
    %vm2507 = vcmp.gt.f32.partialorder %v1931, 0.5
    %vm2508 = vcmp.gt.f32.partialorder %v1932, 0.5
    %vm2509 = vcmp.gt.f32.partialorder %v1933, 0.5
    %vm2510 = vcmp.gt.f32.partialorder %v1934, 0.5
    %vm2511 = vcmp.gt.f32.partialorder %v1935, 0.5
    %vm2512 = vcmp.gt.f32.partialorder %v1936, 0.5
    %vm2513 = vcmp.gt.f32.partialorder %v1937, 0.5
    %vm2514 = vcmp.gt.f32.partialorder %v1938, 0.5
    %vm2515 = vcmp.gt.f32.partialorder %v1939, 0.5
    %vm2516 = vcmp.gt.f32.partialorder %v1940, 0.5
    %vm2517 = vcmp.gt.f32.partialorder %v1941, 0.5
    %vm2518 = vcmp.gt.f32.partialorder %v1942, 0.5
    %vm2519 = vcmp.gt.f32.partialorder %v1943, 0.5
    %vm2520 = vcmp.gt.f32.partialorder %v1944, 0.5
    %vm2521 = vcmp.gt.f32.partialorder %v1945, 0.5
    %vm2522 = vcmp.gt.f32.partialorder %v1946, 0.5
    %vm2523 = vcmp.gt.f32.partialorder %v1947, 0.5
    %vm2524 = vcmp.gt.f32.partialorder %v1948, 0.5
    %vm2525 = vcmp.gt.f32.partialorder %v1949, 0.5
    %vm2526 = vcmp.gt.f32.partialorder %v1950, 0.5
    %vm2527 = vcmp.gt.f32.partialorder %v1951, 0.5
    %vm2528 = vcmp.gt.f32.partialorder %v1952, 0.5
    %vm2529 = vcmp.gt.f32.partialorder %v1953, 0.5
    %vm2530 = vcmp.gt.f32.partialorder %v1954, 0.5
    %vm2531 = vcmp.gt.f32.partialorder %v1955, 0.5
    %vm2532 = vcmp.gt.f32.partialorder %v1956, 0.5
    %vm2533 = vcmp.gt.f32.partialorder %v1957, 0.5
    %vm2534 = vcmp.gt.f32.partialorder %v1958, 0.5
    %vm2535 = vcmp.gt.f32.partialorder %v1959, 0.5
    %vm2536 = vcmp.gt.f32.partialorder %v1960, 0.5
    %vm2537 = vcmp.gt.f32.partialorder %v1961, 0.5
    %vm2538 = vcmp.gt.f32.partialorder %v1962, 0.5
    %vm2539 = vcmp.gt.f32.partialorder %v1963, 0.5
    %vm2540 = vcmp.gt.f32.partialorder %v1964, 0.5
    %vm2541 = vcmp.gt.f32.partialorder %v1965, 0.5
    %vm2542 = vcmp.gt.f32.partialorder %v1966, 0.5
    %vm2543 = vcmp.gt.f32.partialorder %v1967, 0.5
    %vm2544 = vcmp.gt.f32.partialorder %v1968, 0.5
    %vm2545 = vcmp.gt.f32.partialorder %v1969, 0.5
    %vm2546 = vcmp.gt.f32.partialorder %v1970, 0.5
    %vm2547 = vcmp.gt.f32.partialorder %v1971, 0.5
    %vm2548 = vcmp.gt.f32.partialorder %v1972, 0.5
    %vm2549 = vcmp.gt.f32.partialorder %v1973, 0.5
    %vm2550 = vcmp.gt.f32.partialorder %v1974, 0.5
    %vm2551 = vcmp.gt.f32.partialorder %v1975, 0.5
    %vm2552 = vcmp.gt.f32.partialorder %v1976, 0.5
    %vm2553 = vcmp.gt.f32.partialorder %v1977, 0.5
    %vm2554 = vcmp.gt.f32.partialorder %v1978, 0.5
    %vm2555 = vcmp.gt.f32.partialorder %v1979, 0.5
    %vm2556 = vcmp.gt.f32.partialorder %v1980, 0.5
    %vm2557 = vcmp.gt.f32.partialorder %v1981, 0.5
    %vm2558 = vcmp.gt.f32.partialorder %v1982, 0.5
    %vm2559 = vcmp.gt.f32.partialorder %v1983, 0.5
    %vm2560 = vcmp.gt.f32.partialorder %v1984, 0.5
    %vm2561 = vcmp.gt.f32.partialorder %v1985, 0.5
    %vm2562 = vcmp.gt.f32.partialorder %v1986, 0.5
    %vm2563 = vcmp.gt.f32.partialorder %v1987, 0.5
    %vm2564 = vcmp.gt.f32.partialorder %v1988, 0.5
    %vm2565 = vcmp.gt.f32.partialorder %v1989, 0.5
    %vm2566 = vcmp.gt.f32.partialorder %v1990, 0.5
    %vm2567 = vcmp.gt.f32.partialorder %v1991, 0.5
    %vm2568 = vcmp.gt.f32.partialorder %v1992, 0.5
    %vm2569 = vcmp.gt.f32.partialorder %v1993, 0.5
    %vm2570 = vcmp.gt.f32.partialorder %v1994, 0.5
    %vm2571 = vcmp.gt.f32.partialorder %v1995, 0.5
    %vm2572 = vcmp.gt.f32.partialorder %v1996, 0.5
    %vm2573 = vcmp.gt.f32.partialorder %v1997, 0.5
    %vm2574 = vcmp.gt.f32.partialorder %v1998, 0.5
    %vm2575 = vcmp.gt.f32.partialorder %v1999, 0.5
    %vm2576 = vcmp.gt.f32.partialorder %v2000, 0.5
    %vm2577 = vcmp.gt.f32.partialorder %v2001, 0.5
    %vm2578 = vcmp.gt.f32.partialorder %v2002, 0.5
    %vm2579 = vcmp.gt.f32.partialorder %v2003, 0.5
    %vm2580 = vcmp.gt.f32.partialorder %v2004, 0.5
    %vm2581 = vcmp.gt.f32.partialorder %v2005, 0.5
    %vm2582 = vcmp.gt.f32.partialorder %v2006, 0.5
    %vm2583 = vcmp.gt.f32.partialorder %v2007, 0.5
    %vm2584 = vcmp.gt.f32.partialorder %v2008, 0.5
    %vm2585 = vcmp.gt.f32.partialorder %v2009, 0.5
    %vm2586 = vcmp.gt.f32.partialorder %v2010, 0.5
    %vm2587 = vcmp.gt.f32.partialorder %v2011, 0.5
    %vm2588 = vcmp.gt.f32.partialorder %v2012, 0.5
    %vm2589 = vcmp.gt.f32.partialorder %v2013, 0.5
    %vm2590 = vcmp.gt.f32.partialorder %v2014, 0.5
    %vm2591 = vcmp.gt.f32.partialorder %v2015, 0.5
    %vm2592 = vcmp.gt.f32.partialorder %v2016, 0.5
    %vm2593 = vcmp.gt.f32.partialorder %v2017, 0.5
    %vm2594 = vcmp.gt.f32.partialorder %v2018, 0.5
    %vm2595 = vcmp.gt.f32.partialorder %v2019, 0.5
    %vm2596 = vcmp.gt.f32.partialorder %v2020, 0.5
    %vm2597 = vcmp.gt.f32.partialorder %v2021, 0.5
    %vm2598 = vcmp.gt.f32.partialorder %v2022, 0.5
    %vm2599 = vcmp.gt.f32.partialorder %v2023, 0.5
    %vm2600 = vcmp.gt.f32.partialorder %v2024, 0.5
    %vm2601 = vcmp.gt.f32.partialorder %v2025, 0.5
    %vm2602 = vcmp.gt.f32.partialorder %v2026, 0.5
    %vm2603 = vcmp.gt.f32.partialorder %v2027, 0.5
    %vm2604 = vcmp.gt.f32.partialorder %v2028, 0.5
    %vm2605 = vcmp.gt.f32.partialorder %v2029, 0.5
    %vm2606 = vcmp.gt.f32.partialorder %v2030, 0.5
    %vm2607 = vcmp.gt.f32.partialorder %v2031, 0.5
    %vm2608 = vcmp.gt.f32.partialorder %v2032, 0.5
    %vm2609 = vcmp.gt.f32.partialorder %v2033, 0.5
    %vm2610 = vcmp.gt.f32.partialorder %v2034, 0.5
    %vm2611 = vcmp.gt.f32.partialorder %v2035, 0.5
    %vm2612 = vcmp.gt.f32.partialorder %v2036, 0.5
    %vm2613 = vcmp.gt.f32.partialorder %v2037, 0.5
    %vm2614 = vcmp.gt.f32.partialorder %v2038, 0.5
    %vm2615 = vcmp.gt.f32.partialorder %v2039, 0.5
    %vm2616 = vcmp.gt.f32.partialorder %v2040, 0.5
    %vm2617 = vcmp.gt.f32.partialorder %v2041, 0.5
    %vm2618 = vcmp.gt.f32.partialorder %v2042, 0.5
    %vm2619 = vcmp.gt.f32.partialorder %v2043, 0.5
    %vm2620 = vcmp.gt.f32.partialorder %v2044, 0.5
    %vm2621 = vcmp.gt.f32.partialorder %v2045, 0.5
    %vm2622 = vcmp.gt.f32.partialorder %v2046, 0.5
    %vm2623 = vcmp.gt.f32.partialorder %v2047, 0.5
    %vm2624 = vcmp.gt.f32.partialorder %v2048, 0.5
    %vm2625 = vcmp.gt.f32.partialorder %v2049, 0.5
    %vm2626 = vcmp.gt.f32.partialorder %v2050, 0.5
    %vm2627 = vcmp.gt.f32.partialorder %v2051, 0.5
    %vm2628 = vcmp.gt.f32.partialorder %v2052, 0.5
    %vm2629 = vcmp.gt.f32.partialorder %v2053, 0.5
    %vm2630 = vcmp.gt.f32.partialorder %v2054, 0.5
    %vm2631 = vcmp.gt.f32.partialorder %v2055, 0.5
    %vm2632 = vcmp.gt.f32.partialorder %v2056, 0.5
    %vm2633 = vcmp.gt.f32.partialorder %v2057, 0.5
    %vm2634 = vcmp.gt.f32.partialorder %v2058, 0.5
    %vm2635 = vcmp.gt.f32.partialorder %v2059, 0.5
    %vm2636 = vcmp.gt.f32.partialorder %v2060, 0.5
    %vm2637 = vcmp.gt.f32.partialorder %v2061, 0.5
    %vm2638 = vcmp.gt.f32.partialorder %v2062, 0.5
    %vm2639 = vcmp.gt.f32.partialorder %v2063, 0.5
    %vm2640 = vcmp.gt.f32.partialorder %v2064, 0.5
    %vm2641 = vcmp.gt.f32.partialorder %v2065, 0.5
    %vm2642 = vcmp.gt.f32.partialorder %v2066, 0.5
    %vm2643 = vcmp.gt.f32.partialorder %v2067, 0.5
    %vm2644 = vcmp.gt.f32.partialorder %v2068, 0.5
    %vm2645 = vcmp.gt.f32.partialorder %v2069, 0.5
    %vm2646 = vcmp.gt.f32.partialorder %v2070, 0.5
    %vm2647 = vcmp.gt.f32.partialorder %v2071, 0.5
    %vm2648 = vcmp.gt.f32.partialorder %v2072, 0.5
    %vm2649 = vcmp.gt.f32.partialorder %v2073, 0.5
    %vm2650 = vcmp.gt.f32.partialorder %v2074, 0.5
    %vm2651 = vcmp.gt.f32.partialorder %v2075, 0.5
    %vm2652 = vcmp.gt.f32.partialorder %v2076, 0.5
    %vm2653 = vcmp.gt.f32.partialorder %v2077, 0.5
    %vm2654 = vcmp.gt.f32.partialorder %v2078, 0.5
    %vm2655 = vcmp.gt.f32.partialorder %v2079, 0.5
    %vm2656 = vcmp.gt.f32.partialorder %v2080, 0.5
    %vm2657 = vcmp.gt.f32.partialorder %v2081, 0.5
    %vm2658 = vcmp.gt.f32.partialorder %v2082, 0.5
    %vm2659 = vcmp.gt.f32.partialorder %v2083, 0.5
    %vm2660 = vcmp.gt.f32.partialorder %v2084, 0.5
    %vm2661 = vcmp.gt.f32.partialorder %v2085, 0.5
    %vm2662 = vcmp.gt.f32.partialorder %v2086, 0.5
    %vm2663 = vcmp.gt.f32.partialorder %v2087, 0.5
    %vm2664 = vcmp.gt.f32.partialorder %v2088, 0.5
    %vm2665 = vcmp.gt.f32.partialorder %v2089, 0.5
    %vm2666 = vcmp.gt.f32.partialorder %v2090, 0.5
    %vm2667 = vcmp.gt.f32.partialorder %v2091, 0.5
    %vm2668 = vcmp.gt.f32.partialorder %v2092, 0.5
    %vm2669 = vcmp.gt.f32.partialorder %v2093, 0.5
    %vm2670 = vcmp.gt.f32.partialorder %v2094, 0.5
    %vm2671 = vcmp.gt.f32.partialorder %v2095, 0.5
    %vm2672 = vcmp.gt.f32.partialorder %v2096, 0.5
    %vm2673 = vcmp.gt.f32.partialorder %v2097, 0.5
    %vm2674 = vcmp.gt.f32.partialorder %v2098, 0.5
    %vm2675 = vcmp.gt.f32.partialorder %v2099, 0.5
    %vm2676 = vcmp.gt.f32.partialorder %v2100, 0.5
    %vm2677 = vcmp.gt.f32.partialorder %v2101, 0.5
    %vm2678 = vcmp.gt.f32.partialorder %v2102, 0.5
    %vm2679 = vcmp.gt.f32.partialorder %v2103, 0.5
    %vm2680 = vcmp.gt.f32.partialorder %v2104, 0.5
    %vm2681 = vcmp.gt.f32.partialorder %v2105, 0.5
    %vm2682 = vcmp.gt.f32.partialorder %v2106, 0.5
    %vm2683 = vcmp.gt.f32.partialorder %v2107, 0.5
    %vm2684 = vcmp.gt.f32.partialorder %v2108, 0.5
    %vm2685 = vcmp.gt.f32.partialorder %v2109, 0.5
    %vm2686 = vcmp.gt.f32.partialorder %v2110, 0.5
    %vm2687 = vcmp.gt.f32.partialorder %v2111, 0.5
    %vm2688 = vcmp.gt.f32.partialorder %v2112, 0.5
    %vm2689 = vcmp.gt.f32.partialorder %v2113, 0.5
    %vm2690 = vcmp.gt.f32.partialorder %v2114, 0.5
    %vm2691 = vcmp.gt.f32.partialorder %v2115, 0.5
    %vm2692 = vcmp.gt.f32.partialorder %v2116, 0.5
    %vm2693 = vcmp.gt.f32.partialorder %v2117, 0.5
    %vm2694 = vcmp.gt.f32.partialorder %v2118, 0.5
    %vm2695 = vcmp.gt.f32.partialorder %v2119, 0.5
    %vm2696 = vcmp.gt.f32.partialorder %v2120, 0.5
    %vm2697 = vcmp.gt.f32.partialorder %v2121, 0.5
    %vm2698 = vcmp.gt.f32.partialorder %v2122, 0.5
    %vm2699 = vcmp.gt.f32.partialorder %v2123, 0.5
    %vm2700 = vcmp.gt.f32.partialorder %v2124, 0.5
    %vm2701 = vcmp.gt.f32.partialorder %v2125, 0.5
    %vm2702 = vcmp.gt.f32.partialorder %v2126, 0.5
    %vm2703 = vcmp.gt.f32.partialorder %v2127, 0.5
    %vm2704 = vcmp.gt.f32.partialorder %v2128, 0.5
    %vm2705 = vcmp.gt.f32.partialorder %v2129, 0.5
    %vm2706 = vcmp.gt.f32.partialorder %v2130, 0.5
    %vm2707 = vcmp.gt.f32.partialorder %v2131, 0.5
    %vm2708 = vcmp.gt.f32.partialorder %v2132, 0.5
    %vm2709 = vcmp.gt.f32.partialorder %v2133, 0.5
    %vm2710 = vcmp.gt.f32.partialorder %v2134, 0.5
    %vm2711 = vcmp.gt.f32.partialorder %v2135, 0.5
    %vm2712 = vcmp.gt.f32.partialorder %v2136, 0.5
    %vm2713 = vcmp.gt.f32.partialorder %v2137, 0.5
    %vm2714 = vcmp.gt.f32.partialorder %v2138, 0.5
    %vm2715 = vcmp.gt.f32.partialorder %v2139, 0.5
    %vm2716 = vcmp.gt.f32.partialorder %v2140, 0.5
    %vm2717 = vcmp.gt.f32.partialorder %v2141, 0.5
    %vm2718 = vcmp.gt.f32.partialorder %v2142, 0.5
    %vm2719 = vcmp.gt.f32.partialorder %v2143, 0.5
    %vm2720 = vcmp.gt.f32.partialorder %v2144, 0.5
    %vm2721 = vcmp.gt.f32.partialorder %v2145, 0.5
    %vm2722 = vcmp.gt.f32.partialorder %v2146, 0.5
    %vm2723 = vcmp.gt.f32.partialorder %v2147, 0.5
    %vm2724 = vcmp.gt.f32.partialorder %v2148, 0.5
    %vm2725 = vcmp.gt.f32.partialorder %v2149, 0.5
    %vm2726 = vcmp.gt.f32.partialorder %v2150, 0.5
    %v2727 = vld [vmem:[%s6] sm:$0xff]
    %v2728 = vld [vmem:[%s6 + $0x8] sm:$0xff]
    %v2729 = vld [vmem:[%s6 + $0x10] sm:$0xff]
    %v2730 = vld [vmem:[%s6 + $0x18] sm:$0xff]
    %v2731 = vld [vmem:[%s6 + $0x20] sm:$0xff]
    %v2732 = vld [vmem:[%s6 + $0x28] sm:$0xff]
    %v2733 = vld [vmem:[%s6 + $0x30] sm:$0xff]
    %v2734 = vld [vmem:[%s6 + $0x38] sm:$0xff]
    %v2735 = vld [vmem:[%s6 + $0x40] sm:$0xff]
    %v2736 = vld [vmem:[%s6 + $0x48] sm:$0xff]
    %v2737 = vld [vmem:[%s6 + $0x50] sm:$0xff]
    %v2738 = vld [vmem:[%s6 + $0x58] sm:$0xff]
    %v2739 = vld [vmem:[%s6 + $0x60] sm:$0xff]
    %v2740 = vld [vmem:[%s6 + $0x68] sm:$0xff]
    %v2741 = vld [vmem:[%s6 + $0x70] sm:$0xff]
    %v2742 = vld [vmem:[%s6 + $0x78] sm:$0xff]
    %v2743 = vld [vmem:[%s6 + $0x80] sm:$0xff]
    %v2744 = vld [vmem:[%s6 + $0x88] sm:$0xff]
    %v2745 = vld [vmem:[%s6 + $0x90] sm:$0xff]
    %v2746 = vld [vmem:[%s6 + $0x98] sm:$0xff]
    %v2747 = vld [vmem:[%s6 + $0xa0] sm:$0xff]
    %v2748 = vld [vmem:[%s6 + $0xa8] sm:$0xff]
    %v2749 = vld [vmem:[%s6 + $0xb0] sm:$0xff]
    %v2750 = vld [vmem:[%s6 + $0xb8] sm:$0xff]
    %v2751 = vld [vmem:[%s6 + $0xc0] sm:$0xff]
    %v2752 = vld [vmem:[%s6 + $0xc8] sm:$0xff]
    %v2753 = vld [vmem:[%s6 + $0xd0] sm:$0xff]
    %v2754 = vld [vmem:[%s6 + $0xd8] sm:$0xff]
    %v2755 = vld [vmem:[%s6 + $0xe0] sm:$0xff]
    %v2756 = vld [vmem:[%s6 + $0xe8] sm:$0xff]
    %v2757 = vld [vmem:[%s6 + $0xf0] sm:$0xff]
    %v2758 = vld [vmem:[%s6 + $0xf8] sm:$0xff]
    %v2759 = vld [vmem:[%s6 + $0x100] sm:$0xff]
    %v2760 = vld [vmem:[%s6 + $0x108] sm:$0xff]
    %v2761 = vld [vmem:[%s6 + $0x110] sm:$0xff]
    %v2762 = vld [vmem:[%s6 + $0x118] sm:$0xff]
    %v2763 = vld [vmem:[%s6 + $0x120] sm:$0xff]
    %v2764 = vld [vmem:[%s6 + $0x128] sm:$0xff]
    %v2765 = vld [vmem:[%s6 + $0x130] sm:$0xff]
    %v2766 = vld [vmem:[%s6 + $0x138] sm:$0xff]
    %v2767 = vld [vmem:[%s6 + $0x140] sm:$0xff]
    %v2768 = vld [vmem:[%s6 + $0x148] sm:$0xff]
    %v2769 = vld [vmem:[%s6 + $0x150] sm:$0xff]
    %v2770 = vld [vmem:[%s6 + $0x158] sm:$0xff]
    %v2771 = vld [vmem:[%s6 + $0x160] sm:$0xff]
    %v2772 = vld [vmem:[%s6 + $0x168] sm:$0xff]
    %v2773 = vld [vmem:[%s6 + $0x170] sm:$0xff]
    %v2774 = vld [vmem:[%s6 + $0x178] sm:$0xff]
    %v2775 = vld [vmem:[%s6 + $0x180] sm:$0xff]
    %v2776 = vld [vmem:[%s6 + $0x188] sm:$0xff]
    %v2777 = vld [vmem:[%s6 + $0x190] sm:$0xff]
    %v2778 = vld [vmem:[%s6 + $0x198] sm:$0xff]
    %v2779 = vld [vmem:[%s6 + $0x1a0] sm:$0xff]
    %v2780 = vld [vmem:[%s6 + $0x1a8] sm:$0xff]
    %v2781 = vld [vmem:[%s6 + $0x1b0] sm:$0xff]
    %v2782 = vld [vmem:[%s6 + $0x1b8] sm:$0xff]
    %v2783 = vld [vmem:[%s6 + $0x1c0] sm:$0xff]
    %v2784 = vld [vmem:[%s6 + $0x1c8] sm:$0xff]
    %v2785 = vld [vmem:[%s6 + $0x1d0] sm:$0xff]
    %v2786 = vld [vmem:[%s6 + $0x1d8] sm:$0xff]
    %v2787 = vld [vmem:[%s6 + $0x1e0] sm:$0xff]
    %v2788 = vld [vmem:[%s6 + $0x1e8] sm:$0xff]
    %v2789 = vld [vmem:[%s6 + $0x1f0] sm:$0xff]
    %v2790 = vld [vmem:[%s6 + $0x1f8] sm:$0xff]
    %v2791 = vld [vmem:[%s6 + $0x200] sm:$0xff]
    %v2792 = vld [vmem:[%s6 + $0x208] sm:$0xff]
    %v2793 = vld [vmem:[%s6 + $0x210] sm:$0xff]
    %v2794 = vld [vmem:[%s6 + $0x218] sm:$0xff]
    %v2795 = vld [vmem:[%s6 + $0x220] sm:$0xff]
    %v2796 = vld [vmem:[%s6 + $0x228] sm:$0xff]
    %v2797 = vld [vmem:[%s6 + $0x230] sm:$0xff]
    %v2798 = vld [vmem:[%s6 + $0x238] sm:$0xff]
    %v2799 = vld [vmem:[%s6 + $0x240] sm:$0xff]
    %v2800 = vld [vmem:[%s6 + $0x248] sm:$0xff]
    %v2801 = vld [vmem:[%s6 + $0x250] sm:$0xff]
    %v2802 = vld [vmem:[%s6 + $0x258] sm:$0xff]
    %v2803 = vld [vmem:[%s6 + $0x260] sm:$0xff]
    %v2804 = vld [vmem:[%s6 + $0x268] sm:$0xff]
    %v2805 = vld [vmem:[%s6 + $0x270] sm:$0xff]
    %v2806 = vld [vmem:[%s6 + $0x278] sm:$0xff]
    %v2807 = vld [vmem:[%s6 + $0x280] sm:$0xff]
    %v2808 = vld [vmem:[%s6 + $0x288] sm:$0xff]
    %v2809 = vld [vmem:[%s6 + $0x290] sm:$0xff]
    %v2810 = vld [vmem:[%s6 + $0x298] sm:$0xff]
    %v2811 = vld [vmem:[%s6 + $0x2a0] sm:$0xff]
    %v2812 = vld [vmem:[%s6 + $0x2a8] sm:$0xff]
    %v2813 = vld [vmem:[%s6 + $0x2b0] sm:$0xff]
    %v2814 = vld [vmem:[%s6 + $0x2b8] sm:$0xff]
    %v2815 = vld [vmem:[%s6 + $0x2c0] sm:$0xff]
    %v2816 = vld [vmem:[%s6 + $0x2c8] sm:$0xff]
    %v2817 = vld [vmem:[%s6 + $0x2d0] sm:$0xff]
    %v2818 = vld [vmem:[%s6 + $0x2d8] sm:$0xff]
    %v2819 = vld [vmem:[%s6 + $0x2e0] sm:$0xff]
    %v2820 = vld [vmem:[%s6 + $0x2e8] sm:$0xff]
    %v2821 = vld [vmem:[%s6 + $0x2f0] sm:$0xff]
    %v2822 = vld [vmem:[%s6 + $0x2f8] sm:$0xff]
    %v2823 = vld [vmem:[%s6 + $0x300] sm:$0xff]
    %v2824 = vld [vmem:[%s6 + $0x308] sm:$0xff]
    %v2825 = vld [vmem:[%s6 + $0x310] sm:$0xff]
    %v2826 = vld [vmem:[%s6 + $0x318] sm:$0xff]
    %v2827 = vld [vmem:[%s6 + $0x320] sm:$0xff]
    %v2828 = vld [vmem:[%s6 + $0x328] sm:$0xff]
    %v2829 = vld [vmem:[%s6 + $0x330] sm:$0xff]
    %v2830 = vld [vmem:[%s6 + $0x338] sm:$0xff]
    %v2831 = vld [vmem:[%s6 + $0x340] sm:$0xff]
    %v2832 = vld [vmem:[%s6 + $0x348] sm:$0xff]
    %v2833 = vld [vmem:[%s6 + $0x350] sm:$0xff]
    %v2834 = vld [vmem:[%s6 + $0x358] sm:$0xff]
    %v2835 = vld [vmem:[%s6 + $0x360] sm:$0xff]
    %v2836 = vld [vmem:[%s6 + $0x368] sm:$0xff]
    %v2837 = vld [vmem:[%s6 + $0x370] sm:$0xff]
    %v2838 = vld [vmem:[%s6 + $0x378] sm:$0xff]
    %v2839 = vld [vmem:[%s6 + $0x380] sm:$0xff]
    %v2840 = vld [vmem:[%s6 + $0x388] sm:$0xff]
    %v2841 = vld [vmem:[%s6 + $0x390] sm:$0xff]
    %v2842 = vld [vmem:[%s6 + $0x398] sm:$0xff]
    %v2843 = vld [vmem:[%s6 + $0x3a0] sm:$0xff]
    %v2844 = vld [vmem:[%s6 + $0x3a8] sm:$0xff]
    %v2845 = vld [vmem:[%s6 + $0x3b0] sm:$0xff]
    %v2846 = vld [vmem:[%s6 + $0x3b8] sm:$0xff]
    %v2847 = vld [vmem:[%s6 + $0x3c0] sm:$0xff]
    %v2848 = vld [vmem:[%s6 + $0x3c8] sm:$0xff]
    %v2849 = vld [vmem:[%s6 + $0x3d0] sm:$0xff]
    %v2850 = vld [vmem:[%s6 + $0x3d8] sm:$0xff]
    %v2851 = vld [vmem:[%s6 + $0x3e0] sm:$0xff]
    %v2852 = vld [vmem:[%s6 + $0x3e8] sm:$0xff]
    %v2853 = vld [vmem:[%s6 + $0x3f0] sm:$0xff]
    %v2854 = vld [vmem:[%s6 + $0x3f8] sm:$0xff]
    %v2855 = vld [vmem:[%s6 + $0x400] sm:$0xff]
    %v2856 = vld [vmem:[%s6 + $0x408] sm:$0xff]
    %v2857 = vld [vmem:[%s6 + $0x410] sm:$0xff]
    %v2858 = vld [vmem:[%s6 + $0x418] sm:$0xff]
    %v2859 = vld [vmem:[%s6 + $0x420] sm:$0xff]
    %v2860 = vld [vmem:[%s6 + $0x428] sm:$0xff]
    %v2861 = vld [vmem:[%s6 + $0x430] sm:$0xff]
    %v2862 = vld [vmem:[%s6 + $0x438] sm:$0xff]
    %v2863 = vld [vmem:[%s6 + $0x440] sm:$0xff]
    %v2864 = vld [vmem:[%s6 + $0x448] sm:$0xff]
    %v2865 = vld [vmem:[%s6 + $0x450] sm:$0xff]
    %v2866 = vld [vmem:[%s6 + $0x458] sm:$0xff]
    %v2867 = vld [vmem:[%s6 + $0x460] sm:$0xff]
    %v2868 = vld [vmem:[%s6 + $0x468] sm:$0xff]
    %v2869 = vld [vmem:[%s6 + $0x470] sm:$0xff]
    %v2870 = vld [vmem:[%s6 + $0x478] sm:$0xff]
    %2871 = vmatprep.subr.mxu0 %v2728
    %2872 = vmatpush1.msra.mxu0 %v2727
    %2873 = vmatprep.subr.mxu0 %v2737
    %2874 = vmatpush1.msra.mxu0 %v2736
    %2875 = vmatprep.subr.mxu0 %v2746
    %2876 = vmatpush1.msra.mxu0 %v2745
    %2877 = vmatprep.subr.mxu0 %v2755
    %2878 = vmatpush1.msra.mxu0 %v2754
    %2879 = vmatprep.subr.mxu0 %v2764
    %2880 = vmatpush1.msra.mxu0 %v2763
    %2881 = vmatprep.subr.mxu0 %v2773
    %2882 = vmatpush1.msra.mxu0 %v2772
    %2883 = vmatprep.subr.mxu0 %v2782
    %2884 = vmatpush1.msra.mxu0 %v2781
    %2885 = vmatprep.subr.mxu0 %v2791
    %2886 = vmatpush1.msra.mxu0 %v2790
    %2887 = vmatprep.subr.mxu0 %v2800
    %2888 = vmatpush1.msra.mxu0 %v2799
    %2889 = vmatprep.subr.mxu0 %v2809
    %2890 = vmatpush1.msra.mxu0 %v2808
    %2891 = vmatprep.subr.mxu0 %v2818
    %2892 = vmatpush1.msra.mxu0 %v2817
    %2893 = vmatprep.subr.mxu0 %v2827
    %2894 = vmatpush1.msra.mxu0 %v2826
    %2895 = vmatprep.subr.mxu0 %v2836
    %2896 = vmatpush1.msra.mxu0 %v2835
    %2897 = vmatprep.subr.mxu0 %v2845
    %2898 = vmatpush1.msra.mxu0 %v2844
    %2899 = vmatprep.subr.mxu0 %v2854
    %2900 = vmatpush1.msra.mxu0 %v2853
    %2901 = vmatprep.subr.mxu0 %v2863
    %2902 = vmatpush1.msra.mxu0 %v2862
    %2903 = vmatprep.subr.mxu0 0.0
    %2904 = vmatpush1.msra.mxu0 0.0
    %2905 = vmatprep.subr.mxu0 0.0
    %2906 = vmatpush1.msra.mxu0 0.0
    %2907 = vmatprep.subr.mxu0 0.0
    %2908 = vmatpush1.msra.mxu0 0.0
    %2909 = vmatprep.subr.mxu0 0.0
    %2910 = vmatpush1.msra.mxu0 0.0
    %2911 = vmatprep.subr.mxu0 0.0
    %2912 = vmatpush1.msra.mxu0 0.0
    %2913 = vmatprep.subr.mxu0 0.0
    %2914 = vmatpush1.msra.mxu0 0.0
    %2915 = vmatprep.subr.mxu0 0.0
    %2916 = vmatpush1.msra.mxu0 0.0
    %2917 = vmatprep.subr.mxu0 0.0
    %2918 = vmatpush1.msra.mxu0 0.0
    %2919 = vmatprep.subr.mxu0 0.0
    %2920 = vmatpush1.msra.mxu0 0.0
    %2921 = vmatprep.subr.mxu0 0.0
    %2922 = vmatpush1.msra.mxu0 0.0
    %2923 = vmatprep.subr.mxu0 0.0
    %2924 = vmatpush1.msra.mxu0 0.0
    %2925 = vmatprep.subr.mxu0 0.0
    %2926 = vmatpush1.msra.mxu0 0.0
    %2927 = vmatprep.subr.mxu0 0.0
    %2928 = vmatpush1.msra.mxu0 0.0
    %2929 = vmatprep.subr.mxu0 0.0
    %2930 = vmatpush1.msra.mxu0 0.0
    %2931 = vmatprep.subr.mxu0 0.0
    %2932 = vmatpush1.msra.mxu0 0.0
    %2933 = vmatprep.subr.mxu0 0.0
    %2934 = vmatpush1.msra.mxu0 0.0
    %2935 = vmatprep.mubr.f32.mxu0 0.0
    %2936 = vmatmul.mubr.f32.gmra.mrb[0].mxu0 %v1511
    %v2937 = vpop.f32.mrb[0].mxu0
    %v2938 = vadd.f32 0.0, %v2937
    %v2939 = vpop.f32.mrb[0].mxu0
    %v2940 = vadd.f32 0.0, %v2939
    %2941 = vmatprep.mubr.f32.mxu0 0.0
    %2942 = vmatmul.mubr.f32.gmra.mrb[0].mxu0 %v1512
    %v2943 = vpop.f32.mrb[0].mxu0
    %v2944 = vadd.f32 0.0, %v2943
    %v2945 = vpop.f32.mrb[0].mxu0
    %v2946 = vadd.f32 0.0, %v2945
    %2947 = vmatprep.mubr.f32.mxu0 0.0
    %2948 = vmatmul.mubr.f32.gmra.mrb[0].mxu0 %v1513
    %v2949 = vpop.f32.mrb[0].mxu0
    %v2950 = vadd.f32 0.0, %v2949
    %v2951 = vpop.f32.mrb[0].mxu0
    %v2952 = vadd.f32 0.0, %v2951
    %2953 = vmatprep.mubr.f32.mxu0 0.0
    %2954 = vmatmul.mubr.f32.gmra.mrb[0].mxu0 %v1514
    %v2955 = vpop.f32.mrb[0].mxu0
    %v2956 = vadd.f32 0.0, %v2955
    %v2957 = vpop.f32.mrb[0].mxu0
    %v2958 = vadd.f32 0.0, %v2957
    %2959 = vmatprep.mubr.f32.mxu0 0.0
    %2960 = vmatmul.mubr.f32.gmra.mrb[0].mxu0 %v1515
    %v2961 = vpop.f32.mrb[0].mxu0
    %v2962 = vadd.f32 0.0, %v2961
    %v2963 = vpop.f32.mrb[0].mxu0
    %v2964 = vadd.f32 0.0, %v2963
    %2965 = vmatprep.mubr.f32.mxu0 0.0
    %2966 = vmatmul.mubr.f32.gmra.mrb[0].mxu0 %v1516
    %v2967 = vpop.f32.mrb[0].mxu0
    %v2968 = vadd.f32 0.0, %v2967
    %v2969 = vpop.f32.mrb[0].mxu0
    %v2970 = vadd.f32 0.0, %v2969
    %2971 = vmatprep.mubr.f32.mxu0 0.0
    %2972 = vmatmul.mubr.f32.gmra.mrb[0].mxu0 %v1517
    %v2973 = vpop.f32.mrb[0].mxu0
    %v2974 = vadd.f32 0.0, %v2973
    %v2975 = vpop.f32.mrb[0].mxu0
    %v2976 = vadd.f32 0.0, %v2975
    %2977 = vmatprep.mubr.f32.mxu0 0.0
    %2978 = vmatmul.mubr.f32.gmra.mrb[0].mxu0 %v1518
    %v2979 = vpop.f32.mrb[0].mxu0
    %v2980 = vadd.f32 0.0, %v2979
    %v2981 = vpop.f32.mrb[0].mxu0
    %v2982 = vadd.f32 0.0, %v2981
    %2983 = vmatprep.mubr.f32.mxu0 0.0
    %2984 = vmatmul.mubr.f32.gmra.mrb[0].mxu0 %v1519
    %v2985 = vpop.f32.mrb[0].mxu0
    %v2986 = vadd.f32 0.0, %v2985
    %v2987 = vpop.f32.mrb[0].mxu0
    %v2988 = vadd.f32 0.0, %v2987
    %2989 = vmatprep.mubr.f32.mxu0 0.0
    %2990 = vmatmul.mubr.f32.gmra.mrb[0].mxu0 %v1520
    %v2991 = vpop.f32.mrb[0].mxu0
    %v2992 = vadd.f32 0.0, %v2991
    %v2993 = vpop.f32.mrb[0].mxu0
    %v2994 = vadd.f32 0.0, %v2993
    %2995 = vmatprep.mubr.f32.mxu0 0.0
    %2996 = vmatmul.mubr.f32.gmra.mrb[0].mxu0 %v1521
    %v2997 = vpop.f32.mrb[0].mxu0
    %v2998 = vadd.f32 0.0, %v2997
    %v2999 = vpop.f32.mrb[0].mxu0
    %v3000 = vadd.f32 0.0, %v2999
    %3001 = vmatprep.mubr.f32.mxu0 0.0
    %3002 = vmatmul.mubr.f32.gmra.mrb[0].mxu0 %v1522
    %v3003 = vpop.f32.mrb[0].mxu0
    %v3004 = vadd.f32 0.0, %v3003
    %v3005 = vpop.f32.mrb[0].mxu0
    %v3006 = vadd.f32 0.0, %v3005
    %3007 = vmatprep.mubr.f32.mxu0 0.0
    %3008 = vmatmul.mubr.f32.gmra.mrb[0].mxu0 %v1523
    %v3009 = vpop.f32.mrb[0].mxu0
    %v3010 = vadd.f32 0.0, %v3009
    %v3011 = vpop.f32.mrb[0].mxu0
    %v3012 = vadd.f32 0.0, %v3011
    %3013 = vmatprep.mubr.f32.mxu0 0.0
    %3014 = vmatmul.mubr.f32.gmra.mrb[0].mxu0 %v1524
    %v3015 = vpop.f32.mrb[0].mxu0
    %v3016 = vadd.f32 0.0, %v3015
    %v3017 = vpop.f32.mrb[0].mxu0
    %v3018 = vadd.f32 0.0, %v3017
    %3019 = vmatprep.mubr.f32.mxu0 0.0
    %3020 = vmatmul.mubr.f32.gmra.mrb[0].mxu0 %v1525
    %v3021 = vpop.f32.mrb[0].mxu0
    %v3022 = vadd.f32 0.0, %v3021
    %v3023 = vpop.f32.mrb[0].mxu0
    %v3024 = vadd.f32 0.0, %v3023
    %3025 = vmatprep.mubr.f32.mxu0 0.0
    %3026 = vmatmul.mubr.f32.gmra.mrb[0].mxu0 %v1526
    %v3027 = vpop.f32.mrb[0].mxu0
    %v3028 = vadd.f32 0.0, %v3027
    %v3029 = vpop.f32.mrb[0].mxu0
    %v3030 = vadd.f32 0.0, %v3029
    %3031 = vmatprep.mubr.f32.mxu0 0.0
    %3032 = vmatmul.mubr.f32.gmra.mrb[0].mxu0 %v1527
    %v3033 = vpop.f32.mrb[0].mxu0
    %v3034 = vadd.f32 0.0, %v3033
    %v3035 = vpop.f32.mrb[0].mxu0
    %v3036 = vadd.f32 0.0, %v3035
    %3037 = vmatprep.mubr.f32.mxu0 0.0
    %3038 = vmatmul.mubr.f32.gmra.mrb[0].mxu0 %v1528
    %v3039 = vpop.f32.mrb[0].mxu0
    %v3040 = vadd.f32 0.0, %v3039
    %v3041 = vpop.f32.mrb[0].mxu0
    %v3042 = vadd.f32 0.0, %v3041
    %3043 = vmatprep.mubr.f32.mxu0 0.0
    %3044 = vmatmul.mubr.f32.gmra.mrb[0].mxu0 %v1529
    %v3045 = vpop.f32.mrb[0].mxu0
    %v3046 = vadd.f32 0.0, %v3045
    %v3047 = vpop.f32.mrb[0].mxu0
    %v3048 = vadd.f32 0.0, %v3047
    %3049 = vmatprep.mubr.f32.mxu0 0.0
    %3050 = vmatmul.mubr.f32.gmra.mrb[0].mxu0 %v1530
    %v3051 = vpop.f32.mrb[0].mxu0
    %v3052 = vadd.f32 0.0, %v3051
    %v3053 = vpop.f32.mrb[0].mxu0
    %v3054 = vadd.f32 0.0, %v3053
    %3055 = vmatprep.mubr.f32.mxu0 0.0
    %3056 = vmatmul.mubr.f32.gmra.mrb[0].mxu0 %v1531
    %v3057 = vpop.f32.mrb[0].mxu0
    %v3058 = vadd.f32 0.0, %v3057
    %v3059 = vpop.f32.mrb[0].mxu0
    %v3060 = vadd.f32 0.0, %v3059
    %3061 = vmatprep.mubr.f32.mxu0 0.0
    %3062 = vmatmul.mubr.f32.gmra.mrb[0].mxu0 %v1532
    %v3063 = vpop.f32.mrb[0].mxu0
    %v3064 = vadd.f32 0.0, %v3063
    %v3065 = vpop.f32.mrb[0].mxu0
    %v3066 = vadd.f32 0.0, %v3065
    %3067 = vmatprep.mubr.f32.mxu0 0.0
    %3068 = vmatmul.mubr.f32.gmra.mrb[0].mxu0 %v1533
    %v3069 = vpop.f32.mrb[0].mxu0
    %v3070 = vadd.f32 0.0, %v3069
    %v3071 = vpop.f32.mrb[0].mxu0
    %v3072 = vadd.f32 0.0, %v3071
    %3073 = vmatprep.mubr.f32.mxu0 0.0
    %3074 = vmatmul.mubr.f32.gmra.mrb[0].mxu0 %v1534
    %v3075 = vpop.f32.mrb[0].mxu0
    %v3076 = vadd.f32 0.0, %v3075
    %v3077 = vpop.f32.mrb[0].mxu0
    %v3078 = vadd.f32 0.0, %v3077
    %3079 = vmatprep.mubr.f32.mxu0 0.0
    %3080 = vmatmul.mubr.f32.gmra.mrb[0].mxu0 %v1535
    %v3081 = vpop.f32.mrb[0].mxu0
    %v3082 = vadd.f32 0.0, %v3081
    %v3083 = vpop.f32.mrb[0].mxu0
    %v3084 = vadd.f32 0.0, %v3083
    %3085 = vmatprep.mubr.f32.mxu0 0.0
    %3086 = vmatmul.mubr.f32.gmra.mrb[0].mxu0 %v1536
    %v3087 = vpop.f32.mrb[0].mxu0
    %v3088 = vadd.f32 0.0, %v3087
    %v3089 = vpop.f32.mrb[0].mxu0
    %v3090 = vadd.f32 0.0, %v3089
    %3091 = vmatprep.mubr.f32.mxu0 0.0
    %3092 = vmatmul.mubr.f32.gmra.mrb[0].mxu0 %v1537
    %v3093 = vpop.f32.mrb[0].mxu0
    %v3094 = vadd.f32 0.0, %v3093
    %v3095 = vpop.f32.mrb[0].mxu0
    %v3096 = vadd.f32 0.0, %v3095
    %3097 = vmatprep.mubr.f32.mxu0 0.0
    %3098 = vmatmul.mubr.f32.gmra.mrb[0].mxu0 %v1538
    %v3099 = vpop.f32.mrb[0].mxu0
    %v3100 = vadd.f32 0.0, %v3099
    %v3101 = vpop.f32.mrb[0].mxu0
    %v3102 = vadd.f32 0.0, %v3101
    %3103 = vmatprep.mubr.f32.mxu0 0.0
    %3104 = vmatmul.mubr.f32.gmra.mrb[0].mxu0 %v1539
    %v3105 = vpop.f32.mrb[0].mxu0
    %v3106 = vadd.f32 0.0, %v3105
    %v3107 = vpop.f32.mrb[0].mxu0
    %v3108 = vadd.f32 0.0, %v3107
    %3109 = vmatprep.mubr.f32.mxu0 0.0
    %3110 = vmatmul.mubr.f32.gmra.mrb[0].mxu0 %v1540
    %v3111 = vpop.f32.mrb[0].mxu0
    %v3112 = vadd.f32 0.0, %v3111
    %v3113 = vpop.f32.mrb[0].mxu0
    %v3114 = vadd.f32 0.0, %v3113
    %3115 = vmatprep.mubr.f32.mxu0 0.0
    %3116 = vmatmul.mubr.f32.gmra.mrb[0].mxu0 %v1541
    %v3117 = vpop.f32.mrb[0].mxu0
    %v3118 = vadd.f32 0.0, %v3117
    %v3119 = vpop.f32.mrb[0].mxu0
    %v3120 = vadd.f32 0.0, %v3119
    %3121 = vmatprep.mubr.f32.mxu0 0.0
    %3122 = vmatmul.mubr.f32.gmra.mrb[0].mxu0 %v1542
    %v3123 = vpop.f32.mrb[0].mxu0
    %v3124 = vadd.f32 0.0, %v3123
    %v3125 = vpop.f32.mrb[0].mxu0
    %v3126 = vadd.f32 0.0, %v3125
    %3127 = vmatprep.mubr.f32.mxu0 0.0
    %3128 = vmatmul.mubr.f32.gmra.mrb[0].mxu0 %v1543
    %v3129 = vpop.f32.mrb[0].mxu0
    %v3130 = vadd.f32 0.0, %v3129
    %v3131 = vpop.f32.mrb[0].mxu0
    %v3132 = vadd.f32 0.0, %v3131
    %3133 = vmatprep.mubr.f32.mxu0 0.0
    %3134 = vmatmul.mubr.f32.gmra.mrb[0].mxu0 %v1544
    %v3135 = vpop.f32.mrb[0].mxu0
    %v3136 = vadd.f32 0.0, %v3135
    %v3137 = vpop.f32.mrb[0].mxu0
    %v3138 = vadd.f32 0.0, %v3137
    %3139 = vmatprep.mubr.f32.mxu0 0.0
    %3140 = vmatmul.mubr.f32.gmra.mrb[0].mxu0 %v1545
    %v3141 = vpop.f32.mrb[0].mxu0
    %v3142 = vadd.f32 0.0, %v3141
    %v3143 = vpop.f32.mrb[0].mxu0
    %v3144 = vadd.f32 0.0, %v3143
    %3145 = vmatprep.mubr.f32.mxu0 0.0
    %3146 = vmatmul.mubr.f32.gmra.mrb[0].mxu0 %v1546
    %v3147 = vpop.f32.mrb[0].mxu0
    %v3148 = vadd.f32 0.0, %v3147
    %v3149 = vpop.f32.mrb[0].mxu0
    %v3150 = vadd.f32 0.0, %v3149
    %3151 = vmatprep.mubr.f32.mxu0 0.0
    %3152 = vmatmul.mubr.f32.gmra.mrb[0].mxu0 %v1547
    %v3153 = vpop.f32.mrb[0].mxu0
    %v3154 = vadd.f32 0.0, %v3153
    %v3155 = vpop.f32.mrb[0].mxu0
    %v3156 = vadd.f32 0.0, %v3155
    %3157 = vmatprep.mubr.f32.mxu0 0.0
    %3158 = vmatmul.mubr.f32.gmra.mrb[0].mxu0 %v1548
    %v3159 = vpop.f32.mrb[0].mxu0
    %v3160 = vadd.f32 0.0, %v3159
    %v3161 = vpop.f32.mrb[0].mxu0
    %v3162 = vadd.f32 0.0, %v3161
    %3163 = vmatprep.mubr.f32.mxu0 0.0
    %3164 = vmatmul.mubr.f32.gmra.mrb[0].mxu0 %v1549
    %v3165 = vpop.f32.mrb[0].mxu0
    %v3166 = vadd.f32 0.0, %v3165
    %v3167 = vpop.f32.mrb[0].mxu0
    %v3168 = vadd.f32 0.0, %v3167
    %3169 = vmatprep.mubr.f32.mxu0 0.0
    %3170 = vmatmul.mubr.f32.gmra.mrb[0].mxu0 %v1550
    %v3171 = vpop.f32.mrb[0].mxu0
    %v3172 = vadd.f32 0.0, %v3171
    %v3173 = vpop.f32.mrb[0].mxu0
    %v3174 = vadd.f32 0.0, %v3173
    %3175 = vmatprep.mubr.f32.mxu0 0.0
    %3176 = vmatmul.mubr.f32.gmra.mrb[0].mxu0 %v1551
    %v3177 = vpop.f32.mrb[0].mxu0
    %v3178 = vadd.f32 0.0, %v3177
    %v3179 = vpop.f32.mrb[0].mxu0
    %v3180 = vadd.f32 0.0, %v3179
    %3181 = vmatprep.mubr.f32.mxu0 0.0
    %3182 = vmatmul.mubr.f32.gmra.mrb[0].mxu0 %v1552
    %v3183 = vpop.f32.mrb[0].mxu0
    %v3184 = vadd.f32 0.0, %v3183
    %v3185 = vpop.f32.mrb[0].mxu0
    %v3186 = vadd.f32 0.0, %v3185
    %3187 = vmatprep.mubr.f32.mxu0 0.0
    %3188 = vmatmul.mubr.f32.gmra.mrb[0].mxu0 %v1553
    %v3189 = vpop.f32.mrb[0].mxu0
    %v3190 = vadd.f32 0.0, %v3189
    %v3191 = vpop.f32.mrb[0].mxu0
    %v3192 = vadd.f32 0.0, %v3191
    %3193 = vmatprep.mubr.f32.mxu0 0.0
    %3194 = vmatmul.mubr.f32.gmra.mrb[0].mxu0 %v1554
    %v3195 = vpop.f32.mrb[0].mxu0
    %v3196 = vadd.f32 0.0, %v3195
    %v3197 = vpop.f32.mrb[0].mxu0
    %v3198 = vadd.f32 0.0, %v3197
    %3199 = vmatprep.mubr.f32.mxu0 0.0
    %3200 = vmatmul.mubr.f32.gmra.mrb[0].mxu0 %v1555
    %v3201 = vpop.f32.mrb[0].mxu0
    %v3202 = vadd.f32 0.0, %v3201
    %v3203 = vpop.f32.mrb[0].mxu0
    %v3204 = vadd.f32 0.0, %v3203
    %3205 = vmatprep.mubr.f32.mxu0 0.0
    %3206 = vmatmul.mubr.f32.gmra.mrb[0].mxu0 %v1556
    %v3207 = vpop.f32.mrb[0].mxu0
    %v3208 = vadd.f32 0.0, %v3207
    %v3209 = vpop.f32.mrb[0].mxu0
    %v3210 = vadd.f32 0.0, %v3209
    %3211 = vmatprep.mubr.f32.mxu0 0.0
    %3212 = vmatmul.mubr.f32.gmra.mrb[0].mxu0 %v1557
    %v3213 = vpop.f32.mrb[0].mxu0
    %v3214 = vadd.f32 0.0, %v3213
    %v3215 = vpop.f32.mrb[0].mxu0
    %v3216 = vadd.f32 0.0, %v3215
    %3217 = vmatprep.mubr.f32.mxu0 0.0
    %3218 = vmatmul.mubr.f32.gmra.mrb[0].mxu0 %v1558
    %v3219 = vpop.f32.mrb[0].mxu0
    %v3220 = vadd.f32 0.0, %v3219
    %v3221 = vpop.f32.mrb[0].mxu0
    %v3222 = vadd.f32 0.0, %v3221
    %3223 = vmatprep.mubr.f32.mxu0 0.0
    %3224 = vmatmul.mubr.f32.gmra.mrb[0].mxu0 %v1559
    %v3225 = vpop.f32.mrb[0].mxu0
    %v3226 = vadd.f32 0.0, %v3225
    %v3227 = vpop.f32.mrb[0].mxu0
    %v3228 = vadd.f32 0.0, %v3227
    %3229 = vmatprep.mubr.f32.mxu0 0.0
    %3230 = vmatmul.mubr.f32.gmra.mrb[0].mxu0 %v1560
    %v3231 = vpop.f32.mrb[0].mxu0
    %v3232 = vadd.f32 0.0, %v3231
    %v3233 = vpop.f32.mrb[0].mxu0
    %v3234 = vadd.f32 0.0, %v3233
    %3235 = vmatprep.mubr.f32.mxu0 0.0
    %3236 = vmatmul.mubr.f32.gmra.mrb[0].mxu0 %v1561
    %v3237 = vpop.f32.mrb[0].mxu0
    %v3238 = vadd.f32 0.0, %v3237
    %v3239 = vpop.f32.mrb[0].mxu0
    %v3240 = vadd.f32 0.0, %v3239
    %3241 = vmatprep.mubr.f32.mxu0 0.0
    %3242 = vmatmul.mubr.f32.gmra.mrb[0].mxu0 %v1562
    %v3243 = vpop.f32.mrb[0].mxu0
    %v3244 = vadd.f32 0.0, %v3243
    %v3245 = vpop.f32.mrb[0].mxu0
    %v3246 = vadd.f32 0.0, %v3245
    %3247 = vmatprep.mubr.f32.mxu0 0.0
    %3248 = vmatmul.mubr.f32.gmra.mrb[0].mxu0 %v1563
    %v3249 = vpop.f32.mrb[0].mxu0
    %v3250 = vadd.f32 0.0, %v3249
    %v3251 = vpop.f32.mrb[0].mxu0
    %v3252 = vadd.f32 0.0, %v3251
    %3253 = vmatprep.mubr.f32.mxu0 0.0
    %3254 = vmatmul.mubr.f32.gmra.mrb[0].mxu0 %v1564
    %v3255 = vpop.f32.mrb[0].mxu0
    %v3256 = vadd.f32 0.0, %v3255
    %v3257 = vpop.f32.mrb[0].mxu0
    %v3258 = vadd.f32 0.0, %v3257
    %3259 = vmatprep.mubr.f32.mxu0 0.0
    %3260 = vmatmul.mubr.f32.gmra.mrb[0].mxu0 %v1565
    %v3261 = vpop.f32.mrb[0].mxu0
    %v3262 = vadd.f32 0.0, %v3261
    %v3263 = vpop.f32.mrb[0].mxu0
    %v3264 = vadd.f32 0.0, %v3263
    %3265 = vmatprep.mubr.f32.mxu0 0.0
    %3266 = vmatmul.mubr.f32.gmra.mrb[0].mxu0 %v1566
    %v3267 = vpop.f32.mrb[0].mxu0
    %v3268 = vadd.f32 0.0, %v3267
    %v3269 = vpop.f32.mrb[0].mxu0
    %v3270 = vadd.f32 0.0, %v3269
    %3271 = vmatprep.mubr.f32.mxu0 0.0
    %3272 = vmatmul.mubr.f32.gmra.mrb[0].mxu0 %v1567
    %v3273 = vpop.f32.mrb[0].mxu0
    %v3274 = vadd.f32 0.0, %v3273
    %v3275 = vpop.f32.mrb[0].mxu0
    %v3276 = vadd.f32 0.0, %v3275
    %3277 = vmatprep.mubr.f32.mxu0 0.0
    %3278 = vmatmul.mubr.f32.gmra.mrb[0].mxu0 %v1568
    %v3279 = vpop.f32.mrb[0].mxu0
    %v3280 = vadd.f32 0.0, %v3279
    %v3281 = vpop.f32.mrb[0].mxu0
    %v3282 = vadd.f32 0.0, %v3281
    %3283 = vmatprep.mubr.f32.mxu0 0.0
    %3284 = vmatmul.mubr.f32.gmra.mrb[0].mxu0 %v1569
    %v3285 = vpop.f32.mrb[0].mxu0
    %v3286 = vadd.f32 0.0, %v3285
    %v3287 = vpop.f32.mrb[0].mxu0
    %v3288 = vadd.f32 0.0, %v3287
    %3289 = vmatprep.mubr.f32.mxu0 0.0
    %3290 = vmatmul.mubr.f32.gmra.mrb[0].mxu0 %v1570
    %v3291 = vpop.f32.mrb[0].mxu0
    %v3292 = vadd.f32 0.0, %v3291
    %v3293 = vpop.f32.mrb[0].mxu0
    %v3294 = vadd.f32 0.0, %v3293
    %3295 = vmatprep.mubr.f32.mxu0 0.0
    %3296 = vmatmul.mubr.f32.gmra.mrb[0].mxu0 %v1571
    %v3297 = vpop.f32.mrb[0].mxu0
    %v3298 = vadd.f32 0.0, %v3297
    %v3299 = vpop.f32.mrb[0].mxu0
    %v3300 = vadd.f32 0.0, %v3299
    %3301 = vmatprep.mubr.f32.mxu0 0.0
    %3302 = vmatmul.mubr.f32.gmra.mrb[0].mxu0 %v1572
    %v3303 = vpop.f32.mrb[0].mxu0
    %v3304 = vadd.f32 0.0, %v3303
    %v3305 = vpop.f32.mrb[0].mxu0
    %v3306 = vadd.f32 0.0, %v3305
    %3307 = vmatprep.mubr.f32.mxu0 0.0
    %3308 = vmatmul.mubr.f32.gmra.mrb[0].mxu0 %v1573
    %v3309 = vpop.f32.mrb[0].mxu0
    %v3310 = vadd.f32 0.0, %v3309
    %v3311 = vpop.f32.mrb[0].mxu0
    %v3312 = vadd.f32 0.0, %v3311
    %3313 = vmatprep.mubr.f32.mxu0 0.0
    %3314 = vmatmul.mubr.f32.gmra.mrb[0].mxu0 %v1574
    %v3315 = vpop.f32.mrb[0].mxu0
    %v3316 = vadd.f32 0.0, %v3315
    %v3317 = vpop.f32.mrb[0].mxu0
    %v3318 = vadd.f32 0.0, %v3317
    %3319 = vdwg.mxu0
    %3320 = vmatprep.subr.mxu0 %v2730
    %3321 = vmatpush1.msra.mxu0 %v2729
    %3322 = vmatprep.subr.mxu0 %v2739
    %3323 = vmatpush1.msra.mxu0 %v2738
    %3324 = vmatprep.subr.mxu0 %v2748
    %3325 = vmatpush1.msra.mxu0 %v2747
    %3326 = vmatprep.subr.mxu0 %v2757
    %3327 = vmatpush1.msra.mxu0 %v2756
    %3328 = vmatprep.subr.mxu0 %v2766
    %3329 = vmatpush1.msra.mxu0 %v2765
    %3330 = vmatprep.subr.mxu0 %v2775
    %3331 = vmatpush1.msra.mxu0 %v2774
    %3332 = vmatprep.subr.mxu0 %v2784
    %3333 = vmatpush1.msra.mxu0 %v2783
    %3334 = vmatprep.subr.mxu0 %v2793
    %3335 = vmatpush1.msra.mxu0 %v2792
    %3336 = vmatprep.subr.mxu0 %v2802
    %3337 = vmatpush1.msra.mxu0 %v2801
    %3338 = vmatprep.subr.mxu0 %v2811
    %3339 = vmatpush1.msra.mxu0 %v2810
    %3340 = vmatprep.subr.mxu0 %v2820
    %3341 = vmatpush1.msra.mxu0 %v2819
    %3342 = vmatprep.subr.mxu0 %v2829
    %3343 = vmatpush1.msra.mxu0 %v2828
    %3344 = vmatprep.subr.mxu0 %v2838
    %3345 = vmatpush1.msra.mxu0 %v2837
    %3346 = vmatprep.subr.mxu0 %v2847
    %3347 = vmatpush1.msra.mxu0 %v2846
    %3348 = vmatprep.subr.mxu0 %v2856
    %3349 = vmatpush1.msra.mxu0 %v2855
    %3350 = vmatprep.subr.mxu0 %v2865
    %3351 = vmatpush1.msra.mxu0 %v2864
    %3352 = vmatprep.subr.mxu0 0.0
    %3353 = vmatpush1.msra.mxu0 0.0
    %3354 = vmatprep.subr.mxu0 0.0
    %3355 = vmatpush1.msra.mxu0 0.0
    %3356 = vmatprep.subr.mxu0 0.0
    %3357 = vmatpush1.msra.mxu0 0.0
    %3358 = vmatprep.subr.mxu0 0.0
    %3359 = vmatpush1.msra.mxu0 0.0
    %3360 = vmatprep.subr.mxu0 0.0
    %3361 = vmatpush1.msra.mxu0 0.0
    %3362 = vmatprep.subr.mxu0 0.0
    %3363 = vmatpush1.msra.mxu0 0.0
    %3364 = vmatprep.subr.mxu0 0.0
    %3365 = vmatpush1.msra.mxu0 0.0
    %3366 = vmatprep.subr.mxu0 0.0
    %3367 = vmatpush1.msra.mxu0 0.0
    %3368 = vmatprep.subr.mxu0 0.0
    %3369 = vmatpush1.msra.mxu0 0.0
    %3370 = vmatprep.subr.mxu0 0.0
    %3371 = vmatpush1.msra.mxu0 0.0
    %3372 = vmatprep.subr.mxu0 0.0
    %3373 = vmatpush1.msra.mxu0 0.0
    %3374 = vmatprep.subr.mxu0 0.0
    %3375 = vmatpush1.msra.mxu0 0.0
    %3376 = vmatprep.subr.mxu0 0.0
    %3377 = vmatpush1.msra.mxu0 0.0
    %3378 = vmatprep.subr.mxu0 0.0
    %3379 = vmatpush1.msra.mxu0 0.0
    %3380 = vmatprep.subr.mxu0 0.0
    %3381 = vmatpush1.msra.mxu0 0.0
    %3382 = vmatprep.subr.mxu0 0.0
    %3383 = vmatpush1.msra.mxu0 0.0
    %3384 = vmatprep.mubr.f32.mxu0 0.0
    %3385 = vmatmul.mubr.f32.gmra.mrb[0].mxu0 %v1511
    %v3386 = vpop.f32.mrb[0].mxu0
    %v3387 = vadd.f32 0.0, %v3386
    %v3388 = vpop.f32.mrb[0].mxu0
    %v3389 = vadd.f32 0.0, %v3388
    %3390 = vmatprep.mubr.f32.mxu0 0.0
    %3391 = vmatmul.mubr.f32.gmra.mrb[0].mxu0 %v1512
    %v3392 = vpop.f32.mrb[0].mxu0
    %v3393 = vadd.f32 0.0, %v3392
    %v3394 = vpop.f32.mrb[0].mxu0
    %v3395 = vadd.f32 0.0, %v3394
    %3396 = vmatprep.mubr.f32.mxu0 0.0
    %3397 = vmatmul.mubr.f32.gmra.mrb[0].mxu0 %v1513
    %v3398 = vpop.f32.mrb[0].mxu0
    %v3399 = vadd.f32 0.0, %v3398
    %v3400 = vpop.f32.mrb[0].mxu0
    %v3401 = vadd.f32 0.0, %v3400
    %3402 = vmatprep.mubr.f32.mxu0 0.0
    %3403 = vmatmul.mubr.f32.gmra.mrb[0].mxu0 %v1514
    %v3404 = vpop.f32.mrb[0].mxu0
    %v3405 = vadd.f32 0.0, %v3404
    %v3406 = vpop.f32.mrb[0].mxu0
    %v3407 = vadd.f32 0.0, %v3406
    %3408 = vmatprep.mubr.f32.mxu0 0.0
    %3409 = vmatmul.mubr.f32.gmra.mrb[0].mxu0 %v1515
    %v3410 = vpop.f32.mrb[0].mxu0
    %v3411 = vadd.f32 0.0, %v3410
    %v3412 = vpop.f32.mrb[0].mxu0
    %v3413 = vadd.f32 0.0, %v3412
    %3414 = vmatprep.mubr.f32.mxu0 0.0
    %3415 = vmatmul.mubr.f32.gmra.mrb[0].mxu0 %v1516
    %v3416 = vpop.f32.mrb[0].mxu0
    %v3417 = vadd.f32 0.0, %v3416
    %v3418 = vpop.f32.mrb[0].mxu0
    %v3419 = vadd.f32 0.0, %v3418
    %3420 = vmatprep.mubr.f32.mxu0 0.0
    %3421 = vmatmul.mubr.f32.gmra.mrb[0].mxu0 %v1517
    %v3422 = vpop.f32.mrb[0].mxu0
    %v3423 = vadd.f32 0.0, %v3422
    %v3424 = vpop.f32.mrb[0].mxu0
    %v3425 = vadd.f32 0.0, %v3424
    %3426 = vmatprep.mubr.f32.mxu0 0.0
    %3427 = vmatmul.mubr.f32.gmra.mrb[0].mxu0 %v1518
    %v3428 = vpop.f32.mrb[0].mxu0
    %v3429 = vadd.f32 0.0, %v3428
    %v3430 = vpop.f32.mrb[0].mxu0
    %v3431 = vadd.f32 0.0, %v3430
    %3432 = vmatprep.mubr.f32.mxu0 0.0
    %3433 = vmatmul.mubr.f32.gmra.mrb[0].mxu0 %v1519
    %v3434 = vpop.f32.mrb[0].mxu0
    %v3435 = vadd.f32 0.0, %v3434
    %v3436 = vpop.f32.mrb[0].mxu0
    %v3437 = vadd.f32 0.0, %v3436
    %3438 = vmatprep.mubr.f32.mxu0 0.0
    %3439 = vmatmul.mubr.f32.gmra.mrb[0].mxu0 %v1520
    %v3440 = vpop.f32.mrb[0].mxu0
    %v3441 = vadd.f32 0.0, %v3440
    %v3442 = vpop.f32.mrb[0].mxu0
    %v3443 = vadd.f32 0.0, %v3442
    %3444 = vmatprep.mubr.f32.mxu0 0.0
    %3445 = vmatmul.mubr.f32.gmra.mrb[0].mxu0 %v1521
    %v3446 = vpop.f32.mrb[0].mxu0
    %v3447 = vadd.f32 0.0, %v3446
    %v3448 = vpop.f32.mrb[0].mxu0
    %v3449 = vadd.f32 0.0, %v3448
    %3450 = vmatprep.mubr.f32.mxu0 0.0
    %3451 = vmatmul.mubr.f32.gmra.mrb[0].mxu0 %v1522
    %v3452 = vpop.f32.mrb[0].mxu0
    %v3453 = vadd.f32 0.0, %v3452
    %v3454 = vpop.f32.mrb[0].mxu0
    %v3455 = vadd.f32 0.0, %v3454
    %3456 = vmatprep.mubr.f32.mxu0 0.0
    %3457 = vmatmul.mubr.f32.gmra.mrb[0].mxu0 %v1523
    %v3458 = vpop.f32.mrb[0].mxu0
    %v3459 = vadd.f32 0.0, %v3458
    %v3460 = vpop.f32.mrb[0].mxu0
    %v3461 = vadd.f32 0.0, %v3460
    %3462 = vmatprep.mubr.f32.mxu0 0.0
    %3463 = vmatmul.mubr.f32.gmra.mrb[0].mxu0 %v1524
    %v3464 = vpop.f32.mrb[0].mxu0
    %v3465 = vadd.f32 0.0, %v3464
    %v3466 = vpop.f32.mrb[0].mxu0
    %v3467 = vadd.f32 0.0, %v3466
    %3468 = vmatprep.mubr.f32.mxu0 0.0
    %3469 = vmatmul.mubr.f32.gmra.mrb[0].mxu0 %v1525
    %v3470 = vpop.f32.mrb[0].mxu0
    %v3471 = vadd.f32 0.0, %v3470
    %v3472 = vpop.f32.mrb[0].mxu0
    %v3473 = vadd.f32 0.0, %v3472
    %3474 = vmatprep.mubr.f32.mxu0 0.0
    %3475 = vmatmul.mubr.f32.gmra.mrb[0].mxu0 %v1526
    %v3476 = vpop.f32.mrb[0].mxu0
    %v3477 = vadd.f32 0.0, %v3476
    %v3478 = vpop.f32.mrb[0].mxu0
    %v3479 = vadd.f32 0.0, %v3478
    %3480 = vmatprep.mubr.f32.mxu0 0.0
    %3481 = vmatmul.mubr.f32.gmra.mrb[0].mxu0 %v1527
    %v3482 = vpop.f32.mrb[0].mxu0
    %v3483 = vadd.f32 0.0, %v3482
    %v3484 = vpop.f32.mrb[0].mxu0
    %v3485 = vadd.f32 0.0, %v3484
    %3486 = vmatprep.mubr.f32.mxu0 0.0
    %3487 = vmatmul.mubr.f32.gmra.mrb[0].mxu0 %v1528
    %v3488 = vpop.f32.mrb[0].mxu0
    %v3489 = vadd.f32 0.0, %v3488
    %v3490 = vpop.f32.mrb[0].mxu0
    %v3491 = vadd.f32 0.0, %v3490
    %3492 = vmatprep.mubr.f32.mxu0 0.0
    %3493 = vmatmul.mubr.f32.gmra.mrb[0].mxu0 %v1529
    %v3494 = vpop.f32.mrb[0].mxu0
    %v3495 = vadd.f32 0.0, %v3494
    %v3496 = vpop.f32.mrb[0].mxu0
    %v3497 = vadd.f32 0.0, %v3496
    %3498 = vmatprep.mubr.f32.mxu0 0.0
    %3499 = vmatmul.mubr.f32.gmra.mrb[0].mxu0 %v1530
    %v3500 = vpop.f32.mrb[0].mxu0
    %v3501 = vadd.f32 0.0, %v3500
    %v3502 = vpop.f32.mrb[0].mxu0
    %v3503 = vadd.f32 0.0, %v3502
    %3504 = vmatprep.mubr.f32.mxu0 0.0
    %3505 = vmatmul.mubr.f32.gmra.mrb[0].mxu0 %v1531
    %v3506 = vpop.f32.mrb[0].mxu0
    %v3507 = vadd.f32 0.0, %v3506
    %v3508 = vpop.f32.mrb[0].mxu0
    %v3509 = vadd.f32 0.0, %v3508
    %3510 = vmatprep.mubr.f32.mxu0 0.0
    %3511 = vmatmul.mubr.f32.gmra.mrb[0].mxu0 %v1532
    %v3512 = vpop.f32.mrb[0].mxu0
    %v3513 = vadd.f32 0.0, %v3512
    %v3514 = vpop.f32.mrb[0].mxu0
    %v3515 = vadd.f32 0.0, %v3514
    %3516 = vmatprep.mubr.f32.mxu0 0.0
    %3517 = vmatmul.mubr.f32.gmra.mrb[0].mxu0 %v1533
    %v3518 = vpop.f32.mrb[0].mxu0
    %v3519 = vadd.f32 0.0, %v3518
    %v3520 = vpop.f32.mrb[0].mxu0
    %v3521 = vadd.f32 0.0, %v3520
    %3522 = vmatprep.mubr.f32.mxu0 0.0
    %3523 = vmatmul.mubr.f32.gmra.mrb[0].mxu0 %v1534
    %v3524 = vpop.f32.mrb[0].mxu0
    %v3525 = vadd.f32 0.0, %v3524
    %v3526 = vpop.f32.mrb[0].mxu0
    %v3527 = vadd.f32 0.0, %v3526
    %3528 = vmatprep.mubr.f32.mxu0 0.0
    %3529 = vmatmul.mubr.f32.gmra.mrb[0].mxu0 %v1535
    %v3530 = vpop.f32.mrb[0].mxu0
    %v3531 = vadd.f32 0.0, %v3530
    %v3532 = vpop.f32.mrb[0].mxu0
    %v3533 = vadd.f32 0.0, %v3532
    %3534 = vmatprep.mubr.f32.mxu0 0.0
    %3535 = vmatmul.mubr.f32.gmra.mrb[0].mxu0 %v1536
    %v3536 = vpop.f32.mrb[0].mxu0
    %v3537 = vadd.f32 0.0, %v3536
    %v3538 = vpop.f32.mrb[0].mxu0
    %v3539 = vadd.f32 0.0, %v3538
    %3540 = vmatprep.mubr.f32.mxu0 0.0
    %3541 = vmatmul.mubr.f32.gmra.mrb[0].mxu0 %v1537
    %v3542 = vpop.f32.mrb[0].mxu0
    %v3543 = vadd.f32 0.0, %v3542
    %v3544 = vpop.f32.mrb[0].mxu0
    %v3545 = vadd.f32 0.0, %v3544
    %3546 = vmatprep.mubr.f32.mxu0 0.0
    %3547 = vmatmul.mubr.f32.gmra.mrb[0].mxu0 %v1538
    %v3548 = vpop.f32.mrb[0].mxu0
    %v3549 = vadd.f32 0.0, %v3548
    %v3550 = vpop.f32.mrb[0].mxu0
    %v3551 = vadd.f32 0.0, %v3550
    %3552 = vmatprep.mubr.f32.mxu0 0.0
    %3553 = vmatmul.mubr.f32.gmra.mrb[0].mxu0 %v1539
    %v3554 = vpop.f32.mrb[0].mxu0
    %v3555 = vadd.f32 0.0, %v3554
    %v3556 = vpop.f32.mrb[0].mxu0
    %v3557 = vadd.f32 0.0, %v3556
    %3558 = vmatprep.mubr.f32.mxu0 0.0
    %3559 = vmatmul.mubr.f32.gmra.mrb[0].mxu0 %v1540
    %v3560 = vpop.f32.mrb[0].mxu0
    %v3561 = vadd.f32 0.0, %v3560
    %v3562 = vpop.f32.mrb[0].mxu0
    %v3563 = vadd.f32 0.0, %v3562
    %3564 = vmatprep.mubr.f32.mxu0 0.0
    %3565 = vmatmul.mubr.f32.gmra.mrb[0].mxu0 %v1541
    %v3566 = vpop.f32.mrb[0].mxu0
    %v3567 = vadd.f32 0.0, %v3566
    %v3568 = vpop.f32.mrb[0].mxu0
    %v3569 = vadd.f32 0.0, %v3568
    %3570 = vmatprep.mubr.f32.mxu0 0.0
    %3571 = vmatmul.mubr.f32.gmra.mrb[0].mxu0 %v1542
    %v3572 = vpop.f32.mrb[0].mxu0
    %v3573 = vadd.f32 0.0, %v3572
    %v3574 = vpop.f32.mrb[0].mxu0
    %v3575 = vadd.f32 0.0, %v3574
    %3576 = vmatprep.mubr.f32.mxu0 0.0
    %3577 = vmatmul.mubr.f32.gmra.mrb[0].mxu0 %v1543
    %v3578 = vpop.f32.mrb[0].mxu0
    %v3579 = vadd.f32 0.0, %v3578
    %v3580 = vpop.f32.mrb[0].mxu0
    %v3581 = vadd.f32 0.0, %v3580
    %3582 = vmatprep.mubr.f32.mxu0 0.0
    %3583 = vmatmul.mubr.f32.gmra.mrb[0].mxu0 %v1544
    %v3584 = vpop.f32.mrb[0].mxu0
    %v3585 = vadd.f32 0.0, %v3584
    %v3586 = vpop.f32.mrb[0].mxu0
    %v3587 = vadd.f32 0.0, %v3586
    %3588 = vmatprep.mubr.f32.mxu0 0.0
    %3589 = vmatmul.mubr.f32.gmra.mrb[0].mxu0 %v1545
    %v3590 = vpop.f32.mrb[0].mxu0
    %v3591 = vadd.f32 0.0, %v3590
    %v3592 = vpop.f32.mrb[0].mxu0
    %v3593 = vadd.f32 0.0, %v3592
    %3594 = vmatprep.mubr.f32.mxu0 0.0
    %3595 = vmatmul.mubr.f32.gmra.mrb[0].mxu0 %v1546
    %v3596 = vpop.f32.mrb[0].mxu0
    %v3597 = vadd.f32 0.0, %v3596
    %v3598 = vpop.f32.mrb[0].mxu0
    %v3599 = vadd.f32 0.0, %v3598
    %3600 = vmatprep.mubr.f32.mxu0 0.0
    %3601 = vmatmul.mubr.f32.gmra.mrb[0].mxu0 %v1547
    %v3602 = vpop.f32.mrb[0].mxu0
    %v3603 = vadd.f32 0.0, %v3602
    %v3604 = vpop.f32.mrb[0].mxu0
    %v3605 = vadd.f32 0.0, %v3604
    %3606 = vmatprep.mubr.f32.mxu0 0.0
    %3607 = vmatmul.mubr.f32.gmra.mrb[0].mxu0 %v1548
    %v3608 = vpop.f32.mrb[0].mxu0
    %v3609 = vadd.f32 0.0, %v3608
    %v3610 = vpop.f32.mrb[0].mxu0
    %v3611 = vadd.f32 0.0, %v3610
    %3612 = vmatprep.mubr.f32.mxu0 0.0
    %3613 = vmatmul.mubr.f32.gmra.mrb[0].mxu0 %v1549
    %v3614 = vpop.f32.mrb[0].mxu0
    %v3615 = vadd.f32 0.0, %v3614
    %v3616 = vpop.f32.mrb[0].mxu0
    %v3617 = vadd.f32 0.0, %v3616
    %3618 = vmatprep.mubr.f32.mxu0 0.0
    %3619 = vmatmul.mubr.f32.gmra.mrb[0].mxu0 %v1550
    %v3620 = vpop.f32.mrb[0].mxu0
    %v3621 = vadd.f32 0.0, %v3620
    %v3622 = vpop.f32.mrb[0].mxu0
    %v3623 = vadd.f32 0.0, %v3622
    %3624 = vmatprep.mubr.f32.mxu0 0.0
    %3625 = vmatmul.mubr.f32.gmra.mrb[0].mxu0 %v1551
    %v3626 = vpop.f32.mrb[0].mxu0
    %v3627 = vadd.f32 0.0, %v3626
    %v3628 = vpop.f32.mrb[0].mxu0
    %v3629 = vadd.f32 0.0, %v3628
    %3630 = vmatprep.mubr.f32.mxu0 0.0
    %3631 = vmatmul.mubr.f32.gmra.mrb[0].mxu0 %v1552
    %v3632 = vpop.f32.mrb[0].mxu0
    %v3633 = vadd.f32 0.0, %v3632
    %v3634 = vpop.f32.mrb[0].mxu0
    %v3635 = vadd.f32 0.0, %v3634
    %3636 = vmatprep.mubr.f32.mxu0 0.0
    %3637 = vmatmul.mubr.f32.gmra.mrb[0].mxu0 %v1553
    %v3638 = vpop.f32.mrb[0].mxu0
    %v3639 = vadd.f32 0.0, %v3638
    %v3640 = vpop.f32.mrb[0].mxu0
    %v3641 = vadd.f32 0.0, %v3640
    %3642 = vmatprep.mubr.f32.mxu0 0.0
    %3643 = vmatmul.mubr.f32.gmra.mrb[0].mxu0 %v1554
    %v3644 = vpop.f32.mrb[0].mxu0
    %v3645 = vadd.f32 0.0, %v3644
    %v3646 = vpop.f32.mrb[0].mxu0
    %v3647 = vadd.f32 0.0, %v3646
    %3648 = vmatprep.mubr.f32.mxu0 0.0
    %3649 = vmatmul.mubr.f32.gmra.mrb[0].mxu0 %v1555
    %v3650 = vpop.f32.mrb[0].mxu0
    %v3651 = vadd.f32 0.0, %v3650
    %v3652 = vpop.f32.mrb[0].mxu0
    %v3653 = vadd.f32 0.0, %v3652
    %3654 = vmatprep.mubr.f32.mxu0 0.0
    %3655 = vmatmul.mubr.f32.gmra.mrb[0].mxu0 %v1556
    %v3656 = vpop.f32.mrb[0].mxu0
    %v3657 = vadd.f32 0.0, %v3656
    %v3658 = vpop.f32.mrb[0].mxu0
    %v3659 = vadd.f32 0.0, %v3658
    %3660 = vmatprep.mubr.f32.mxu0 0.0
    %3661 = vmatmul.mubr.f32.gmra.mrb[0].mxu0 %v1557
    %v3662 = vpop.f32.mrb[0].mxu0
    %v3663 = vadd.f32 0.0, %v3662
    %v3664 = vpop.f32.mrb[0].mxu0
    %v3665 = vadd.f32 0.0, %v3664
    %3666 = vmatprep.mubr.f32.mxu0 0.0
    %3667 = vmatmul.mubr.f32.gmra.mrb[0].mxu0 %v1558
    %v3668 = vpop.f32.mrb[0].mxu0
    %v3669 = vadd.f32 0.0, %v3668
    %v3670 = vpop.f32.mrb[0].mxu0
    %v3671 = vadd.f32 0.0, %v3670
    %3672 = vmatprep.mubr.f32.mxu0 0.0
    %3673 = vmatmul.mubr.f32.gmra.mrb[0].mxu0 %v1559
    %v3674 = vpop.f32.mrb[0].mxu0
    %v3675 = vadd.f32 0.0, %v3674
    %v3676 = vpop.f32.mrb[0].mxu0
    %v3677 = vadd.f32 0.0, %v3676
    %3678 = vmatprep.mubr.f32.mxu0 0.0
    %3679 = vmatmul.mubr.f32.gmra.mrb[0].mxu0 %v1560
    %v3680 = vpop.f32.mrb[0].mxu0
    %v3681 = vadd.f32 0.0, %v3680
    %v3682 = vpop.f32.mrb[0].mxu0
    %v3683 = vadd.f32 0.0, %v3682
    %3684 = vmatprep.mubr.f32.mxu0 0.0
    %3685 = vmatmul.mubr.f32.gmra.mrb[0].mxu0 %v1561
    %v3686 = vpop.f32.mrb[0].mxu0
    %v3687 = vadd.f32 0.0, %v3686
    %v3688 = vpop.f32.mrb[0].mxu0
    %v3689 = vadd.f32 0.0, %v3688
    %3690 = vmatprep.mubr.f32.mxu0 0.0
    %3691 = vmatmul.mubr.f32.gmra.mrb[0].mxu0 %v1562
    %v3692 = vpop.f32.mrb[0].mxu0
    %v3693 = vadd.f32 0.0, %v3692
    %v3694 = vpop.f32.mrb[0].mxu0
    %v3695 = vadd.f32 0.0, %v3694
    %3696 = vmatprep.mubr.f32.mxu0 0.0
    %3697 = vmatmul.mubr.f32.gmra.mrb[0].mxu0 %v1563
    %v3698 = vpop.f32.mrb[0].mxu0
    %v3699 = vadd.f32 0.0, %v3698
    %v3700 = vpop.f32.mrb[0].mxu0
    %v3701 = vadd.f32 0.0, %v3700
    %3702 = vmatprep.mubr.f32.mxu0 0.0
    %3703 = vmatmul.mubr.f32.gmra.mrb[0].mxu0 %v1564
    %v3704 = vpop.f32.mrb[0].mxu0
    %v3705 = vadd.f32 0.0, %v3704
    %v3706 = vpop.f32.mrb[0].mxu0
    %v3707 = vadd.f32 0.0, %v3706
    %3708 = vmatprep.mubr.f32.mxu0 0.0
    %3709 = vmatmul.mubr.f32.gmra.mrb[0].mxu0 %v1565
    %v3710 = vpop.f32.mrb[0].mxu0
    %v3711 = vadd.f32 0.0, %v3710
    %v3712 = vpop.f32.mrb[0].mxu0
    %v3713 = vadd.f32 0.0, %v3712
    %3714 = vmatprep.mubr.f32.mxu0 0.0
    %3715 = vmatmul.mubr.f32.gmra.mrb[0].mxu0 %v1566
    %v3716 = vpop.f32.mrb[0].mxu0
    %v3717 = vadd.f32 0.0, %v3716
    %v3718 = vpop.f32.mrb[0].mxu0
    %v3719 = vadd.f32 0.0, %v3718
    %3720 = vmatprep.mubr.f32.mxu0 0.0
    %3721 = vmatmul.mubr.f32.gmra.mrb[0].mxu0 %v1567
    %v3722 = vpop.f32.mrb[0].mxu0
    %v3723 = vadd.f32 0.0, %v3722
    %v3724 = vpop.f32.mrb[0].mxu0
    %v3725 = vadd.f32 0.0, %v3724
    %3726 = vmatprep.mubr.f32.mxu0 0.0
    %3727 = vmatmul.mubr.f32.gmra.mrb[0].mxu0 %v1568
    %v3728 = vpop.f32.mrb[0].mxu0
    %v3729 = vadd.f32 0.0, %v3728
    %v3730 = vpop.f32.mrb[0].mxu0
    %v3731 = vadd.f32 0.0, %v3730
    %3732 = vmatprep.mubr.f32.mxu0 0.0
    %3733 = vmatmul.mubr.f32.gmra.mrb[0].mxu0 %v1569
    %v3734 = vpop.f32.mrb[0].mxu0
    %v3735 = vadd.f32 0.0, %v3734
    %v3736 = vpop.f32.mrb[0].mxu0
    %v3737 = vadd.f32 0.0, %v3736
    %3738 = vmatprep.mubr.f32.mxu0 0.0
    %3739 = vmatmul.mubr.f32.gmra.mrb[0].mxu0 %v1570
    %v3740 = vpop.f32.mrb[0].mxu0
    %v3741 = vadd.f32 0.0, %v3740
    %v3742 = vpop.f32.mrb[0].mxu0
    %v3743 = vadd.f32 0.0, %v3742
    %3744 = vmatprep.mubr.f32.mxu0 0.0
    %3745 = vmatmul.mubr.f32.gmra.mrb[0].mxu0 %v1571
    %v3746 = vpop.f32.mrb[0].mxu0
    %v3747 = vadd.f32 0.0, %v3746
    %v3748 = vpop.f32.mrb[0].mxu0
    %v3749 = vadd.f32 0.0, %v3748
    %3750 = vmatprep.mubr.f32.mxu0 0.0
    %3751 = vmatmul.mubr.f32.gmra.mrb[0].mxu0 %v1572
    %v3752 = vpop.f32.mrb[0].mxu0
    %v3753 = vadd.f32 0.0, %v3752
    %v3754 = vpop.f32.mrb[0].mxu0
    %v3755 = vadd.f32 0.0, %v3754
    %3756 = vmatprep.mubr.f32.mxu0 0.0
    %3757 = vmatmul.mubr.f32.gmra.mrb[0].mxu0 %v1573
    %v3758 = vpop.f32.mrb[0].mxu0
    %v3759 = vadd.f32 0.0, %v3758
    %v3760 = vpop.f32.mrb[0].mxu0
    %v3761 = vadd.f32 0.0, %v3760
    %3762 = vmatprep.mubr.f32.mxu0 0.0
    %3763 = vmatmul.mubr.f32.gmra.mrb[0].mxu0 %v1574
    %v3764 = vpop.f32.mrb[0].mxu0
    %v3765 = vadd.f32 0.0, %v3764
    %v3766 = vpop.f32.mrb[0].mxu0
    %v3767 = vadd.f32 0.0, %v3766
    %3768 = vdwg.mxu0
    %3769 = vmatprep.subr.mxu0 %v2732
    %3770 = vmatpush1.msra.mxu0 %v2731
    %3771 = vmatprep.subr.mxu0 %v2741
    %3772 = vmatpush1.msra.mxu0 %v2740
    %3773 = vmatprep.subr.mxu0 %v2750
    %3774 = vmatpush1.msra.mxu0 %v2749
    %3775 = vmatprep.subr.mxu0 %v2759
    %3776 = vmatpush1.msra.mxu0 %v2758
    %3777 = vmatprep.subr.mxu0 %v2768
    %3778 = vmatpush1.msra.mxu0 %v2767
    %3779 = vmatprep.subr.mxu0 %v2777
    %3780 = vmatpush1.msra.mxu0 %v2776
    %3781 = vmatprep.subr.mxu0 %v2786
    %3782 = vmatpush1.msra.mxu0 %v2785
    %3783 = vmatprep.subr.mxu0 %v2795
    %3784 = vmatpush1.msra.mxu0 %v2794
    %3785 = vmatprep.subr.mxu0 %v2804
    %3786 = vmatpush1.msra.mxu0 %v2803
    %3787 = vmatprep.subr.mxu0 %v2813
    %3788 = vmatpush1.msra.mxu0 %v2812
    %3789 = vmatprep.subr.mxu0 %v2822
    %3790 = vmatpush1.msra.mxu0 %v2821
    %3791 = vmatprep.subr.mxu0 %v2831
    %3792 = vmatpush1.msra.mxu0 %v2830
    %3793 = vmatprep.subr.mxu0 %v2840
    %3794 = vmatpush1.msra.mxu0 %v2839
    %3795 = vmatprep.subr.mxu0 %v2849
    %3796 = vmatpush1.msra.mxu0 %v2848
    %3797 = vmatprep.subr.mxu0 %v2858
    %3798 = vmatpush1.msra.mxu0 %v2857
    %3799 = vmatprep.subr.mxu0 %v2867
    %3800 = vmatpush1.msra.mxu0 %v2866
    %3801 = vmatprep.subr.mxu0 0.0
    %3802 = vmatpush1.msra.mxu0 0.0
    %3803 = vmatprep.subr.mxu0 0.0
    %3804 = vmatpush1.msra.mxu0 0.0
    %3805 = vmatprep.subr.mxu0 0.0
    %3806 = vmatpush1.msra.mxu0 0.0
    %3807 = vmatprep.subr.mxu0 0.0
    %3808 = vmatpush1.msra.mxu0 0.0
    %3809 = vmatprep.subr.mxu0 0.0
    %3810 = vmatpush1.msra.mxu0 0.0
    %3811 = vmatprep.subr.mxu0 0.0
    %3812 = vmatpush1.msra.mxu0 0.0
    %3813 = vmatprep.subr.mxu0 0.0
    %3814 = vmatpush1.msra.mxu0 0.0
    %3815 = vmatprep.subr.mxu0 0.0
    %3816 = vmatpush1.msra.mxu0 0.0
    %3817 = vmatprep.subr.mxu0 0.0
    %3818 = vmatpush1.msra.mxu0 0.0
    %3819 = vmatprep.subr.mxu0 0.0
    %3820 = vmatpush1.msra.mxu0 0.0
    %3821 = vmatprep.subr.mxu0 0.0
    %3822 = vmatpush1.msra.mxu0 0.0
    %3823 = vmatprep.subr.mxu0 0.0
    %3824 = vmatpush1.msra.mxu0 0.0
    %3825 = vmatprep.subr.mxu0 0.0
    %3826 = vmatpush1.msra.mxu0 0.0
    %3827 = vmatprep.subr.mxu0 0.0
    %3828 = vmatpush1.msra.mxu0 0.0
    %3829 = vmatprep.subr.mxu0 0.0
    %3830 = vmatpush1.msra.mxu0 0.0
    %3831 = vmatprep.subr.mxu0 0.0
    %3832 = vmatpush1.msra.mxu0 0.0
    %3833 = vmatprep.mubr.f32.mxu0 0.0
    %3834 = vmatmul.mubr.f32.gmra.mrb[0].mxu0 %v1511
    %v3835 = vpop.f32.mrb[0].mxu0
    %v3836 = vadd.f32 0.0, %v3835
    %v3837 = vpop.f32.mrb[0].mxu0
    %v3838 = vadd.f32 0.0, %v3837
    %3839 = vmatprep.mubr.f32.mxu0 0.0
    %3840 = vmatmul.mubr.f32.gmra.mrb[0].mxu0 %v1512
    %v3841 = vpop.f32.mrb[0].mxu0
    %v3842 = vadd.f32 0.0, %v3841
    %v3843 = vpop.f32.mrb[0].mxu0
    %v3844 = vadd.f32 0.0, %v3843
    %3845 = vmatprep.mubr.f32.mxu0 0.0
    %3846 = vmatmul.mubr.f32.gmra.mrb[0].mxu0 %v1513
    %v3847 = vpop.f32.mrb[0].mxu0
    %v3848 = vadd.f32 0.0, %v3847
    %v3849 = vpop.f32.mrb[0].mxu0
    %v3850 = vadd.f32 0.0, %v3849
    %3851 = vmatprep.mubr.f32.mxu0 0.0
    %3852 = vmatmul.mubr.f32.gmra.mrb[0].mxu0 %v1514
    %v3853 = vpop.f32.mrb[0].mxu0
    %v3854 = vadd.f32 0.0, %v3853
    %v3855 = vpop.f32.mrb[0].mxu0
    %v3856 = vadd.f32 0.0, %v3855
    %3857 = vmatprep.mubr.f32.mxu0 0.0
    %3858 = vmatmul.mubr.f32.gmra.mrb[0].mxu0 %v1515
    %v3859 = vpop.f32.mrb[0].mxu0
    %v3860 = vadd.f32 0.0, %v3859
    %v3861 = vpop.f32.mrb[0].mxu0
    %v3862 = vadd.f32 0.0, %v3861
    %3863 = vmatprep.mubr.f32.mxu0 0.0
    %3864 = vmatmul.mubr.f32.gmra.mrb[0].mxu0 %v1516
    %v3865 = vpop.f32.mrb[0].mxu0
    %v3866 = vadd.f32 0.0, %v3865
    %v3867 = vpop.f32.mrb[0].mxu0
    %v3868 = vadd.f32 0.0, %v3867
    %3869 = vmatprep.mubr.f32.mxu0 0.0
    %3870 = vmatmul.mubr.f32.gmra.mrb[0].mxu0 %v1517
    %v3871 = vpop.f32.mrb[0].mxu0
    %v3872 = vadd.f32 0.0, %v3871
    %v3873 = vpop.f32.mrb[0].mxu0
    %v3874 = vadd.f32 0.0, %v3873
    %3875 = vmatprep.mubr.f32.mxu0 0.0
    %3876 = vmatmul.mubr.f32.gmra.mrb[0].mxu0 %v1518
    %v3877 = vpop.f32.mrb[0].mxu0
    %v3878 = vadd.f32 0.0, %v3877
    %v3879 = vpop.f32.mrb[0].mxu0
    %v3880 = vadd.f32 0.0, %v3879
    %3881 = vmatprep.mubr.f32.mxu0 0.0
    %3882 = vmatmul.mubr.f32.gmra.mrb[0].mxu0 %v1519
    %v3883 = vpop.f32.mrb[0].mxu0
    %v3884 = vadd.f32 0.0, %v3883
    %v3885 = vpop.f32.mrb[0].mxu0
    %v3886 = vadd.f32 0.0, %v3885
    %3887 = vmatprep.mubr.f32.mxu0 0.0
    %3888 = vmatmul.mubr.f32.gmra.mrb[0].mxu0 %v1520
    %v3889 = vpop.f32.mrb[0].mxu0
    %v3890 = vadd.f32 0.0, %v3889
    %v3891 = vpop.f32.mrb[0].mxu0
    %v3892 = vadd.f32 0.0, %v3891
    %3893 = vmatprep.mubr.f32.mxu0 0.0
    %3894 = vmatmul.mubr.f32.gmra.mrb[0].mxu0 %v1521
    %v3895 = vpop.f32.mrb[0].mxu0
    %v3896 = vadd.f32 0.0, %v3895
    %v3897 = vpop.f32.mrb[0].mxu0
    %v3898 = vadd.f32 0.0, %v3897
    %3899 = vmatprep.mubr.f32.mxu0 0.0
    %3900 = vmatmul.mubr.f32.gmra.mrb[0].mxu0 %v1522
    %v3901 = vpop.f32.mrb[0].mxu0
    %v3902 = vadd.f32 0.0, %v3901
    %v3903 = vpop.f32.mrb[0].mxu0
    %v3904 = vadd.f32 0.0, %v3903
    %3905 = vmatprep.mubr.f32.mxu0 0.0
    %3906 = vmatmul.mubr.f32.gmra.mrb[0].mxu0 %v1523
    %v3907 = vpop.f32.mrb[0].mxu0
    %v3908 = vadd.f32 0.0, %v3907
    %v3909 = vpop.f32.mrb[0].mxu0
    %v3910 = vadd.f32 0.0, %v3909
    %3911 = vmatprep.mubr.f32.mxu0 0.0
    %3912 = vmatmul.mubr.f32.gmra.mrb[0].mxu0 %v1524
    %v3913 = vpop.f32.mrb[0].mxu0
    %v3914 = vadd.f32 0.0, %v3913
    %v3915 = vpop.f32.mrb[0].mxu0
    %v3916 = vadd.f32 0.0, %v3915
    %3917 = vmatprep.mubr.f32.mxu0 0.0
    %3918 = vmatmul.mubr.f32.gmra.mrb[0].mxu0 %v1525
    %v3919 = vpop.f32.mrb[0].mxu0
    %v3920 = vadd.f32 0.0, %v3919
    %v3921 = vpop.f32.mrb[0].mxu0
    %v3922 = vadd.f32 0.0, %v3921
    %3923 = vmatprep.mubr.f32.mxu0 0.0
    %3924 = vmatmul.mubr.f32.gmra.mrb[0].mxu0 %v1526
    %v3925 = vpop.f32.mrb[0].mxu0
    %v3926 = vadd.f32 0.0, %v3925
    %v3927 = vpop.f32.mrb[0].mxu0
    %v3928 = vadd.f32 0.0, %v3927
    %3929 = vmatprep.mubr.f32.mxu0 0.0
    %3930 = vmatmul.mubr.f32.gmra.mrb[0].mxu0 %v1527
    %v3931 = vpop.f32.mrb[0].mxu0
    %v3932 = vadd.f32 0.0, %v3931
    %v3933 = vpop.f32.mrb[0].mxu0
    %v3934 = vadd.f32 0.0, %v3933
    %3935 = vmatprep.mubr.f32.mxu0 0.0
    %3936 = vmatmul.mubr.f32.gmra.mrb[0].mxu0 %v1528
    %v3937 = vpop.f32.mrb[0].mxu0
    %v3938 = vadd.f32 0.0, %v3937
    %v3939 = vpop.f32.mrb[0].mxu0
    %v3940 = vadd.f32 0.0, %v3939
    %3941 = vmatprep.mubr.f32.mxu0 0.0
    %3942 = vmatmul.mubr.f32.gmra.mrb[0].mxu0 %v1529
    %v3943 = vpop.f32.mrb[0].mxu0
    %v3944 = vadd.f32 0.0, %v3943
    %v3945 = vpop.f32.mrb[0].mxu0
    %v3946 = vadd.f32 0.0, %v3945
    %3947 = vmatprep.mubr.f32.mxu0 0.0
    %3948 = vmatmul.mubr.f32.gmra.mrb[0].mxu0 %v1530
    %v3949 = vpop.f32.mrb[0].mxu0
    %v3950 = vadd.f32 0.0, %v3949
    %v3951 = vpop.f32.mrb[0].mxu0
    %v3952 = vadd.f32 0.0, %v3951
    %3953 = vmatprep.mubr.f32.mxu0 0.0
    %3954 = vmatmul.mubr.f32.gmra.mrb[0].mxu0 %v1531
    %v3955 = vpop.f32.mrb[0].mxu0
    %v3956 = vadd.f32 0.0, %v3955
    %v3957 = vpop.f32.mrb[0].mxu0
    %v3958 = vadd.f32 0.0, %v3957
    %3959 = vmatprep.mubr.f32.mxu0 0.0
    %3960 = vmatmul.mubr.f32.gmra.mrb[0].mxu0 %v1532
    %v3961 = vpop.f32.mrb[0].mxu0
    %v3962 = vadd.f32 0.0, %v3961
    %v3963 = vpop.f32.mrb[0].mxu0
    %v3964 = vadd.f32 0.0, %v3963
    %3965 = vmatprep.mubr.f32.mxu0 0.0
    %3966 = vmatmul.mubr.f32.gmra.mrb[0].mxu0 %v1533
    %v3967 = vpop.f32.mrb[0].mxu0
    %v3968 = vadd.f32 0.0, %v3967
    %v3969 = vpop.f32.mrb[0].mxu0
    %v3970 = vadd.f32 0.0, %v3969
    %3971 = vmatprep.mubr.f32.mxu0 0.0
    %3972 = vmatmul.mubr.f32.gmra.mrb[0].mxu0 %v1534
    %v3973 = vpop.f32.mrb[0].mxu0
    %v3974 = vadd.f32 0.0, %v3973
    %v3975 = vpop.f32.mrb[0].mxu0
    %v3976 = vadd.f32 0.0, %v3975
    %3977 = vmatprep.mubr.f32.mxu0 0.0
    %3978 = vmatmul.mubr.f32.gmra.mrb[0].mxu0 %v1535
    %v3979 = vpop.f32.mrb[0].mxu0
    %v3980 = vadd.f32 0.0, %v3979
    %v3981 = vpop.f32.mrb[0].mxu0
    %v3982 = vadd.f32 0.0, %v3981
    %3983 = vmatprep.mubr.f32.mxu0 0.0
    %3984 = vmatmul.mubr.f32.gmra.mrb[0].mxu0 %v1536
    %v3985 = vpop.f32.mrb[0].mxu0
    %v3986 = vadd.f32 0.0, %v3985
    %v3987 = vpop.f32.mrb[0].mxu0
    %v3988 = vadd.f32 0.0, %v3987
    %3989 = vmatprep.mubr.f32.mxu0 0.0
    %3990 = vmatmul.mubr.f32.gmra.mrb[0].mxu0 %v1537
    %v3991 = vpop.f32.mrb[0].mxu0
    %v3992 = vadd.f32 0.0, %v3991
    %v3993 = vpop.f32.mrb[0].mxu0
    %v3994 = vadd.f32 0.0, %v3993
    %3995 = vmatprep.mubr.f32.mxu0 0.0
    %3996 = vmatmul.mubr.f32.gmra.mrb[0].mxu0 %v1538
    %v3997 = vpop.f32.mrb[0].mxu0
    %v3998 = vadd.f32 0.0, %v3997
    %v3999 = vpop.f32.mrb[0].mxu0
    %v4000 = vadd.f32 0.0, %v3999
    %4001 = vmatprep.mubr.f32.mxu0 0.0
    %4002 = vmatmul.mubr.f32.gmra.mrb[0].mxu0 %v1539
    %v4003 = vpop.f32.mrb[0].mxu0
    %v4004 = vadd.f32 0.0, %v4003
    %v4005 = vpop.f32.mrb[0].mxu0
    %v4006 = vadd.f32 0.0, %v4005
    %4007 = vmatprep.mubr.f32.mxu0 0.0
    %4008 = vmatmul.mubr.f32.gmra.mrb[0].mxu0 %v1540
    %v4009 = vpop.f32.mrb[0].mxu0
    %v4010 = vadd.f32 0.0, %v4009
    %v4011 = vpop.f32.mrb[0].mxu0
    %v4012 = vadd.f32 0.0, %v4011
    %4013 = vmatprep.mubr.f32.mxu0 0.0
    %4014 = vmatmul.mubr.f32.gmra.mrb[0].mxu0 %v1541
    %v4015 = vpop.f32.mrb[0].mxu0
    %v4016 = vadd.f32 0.0, %v4015
    %v4017 = vpop.f32.mrb[0].mxu0
    %v4018 = vadd.f32 0.0, %v4017
    %4019 = vmatprep.mubr.f32.mxu0 0.0
    %4020 = vmatmul.mubr.f32.gmra.mrb[0].mxu0 %v1542
    %v4021 = vpop.f32.mrb[0].mxu0
    %v4022 = vadd.f32 0.0, %v4021
    %v4023 = vpop.f32.mrb[0].mxu0
    %v4024 = vadd.f32 0.0, %v4023
    %4025 = vmatprep.mubr.f32.mxu0 0.0
    %4026 = vmatmul.mubr.f32.gmra.mrb[0].mxu0 %v1543
    %v4027 = vpop.f32.mrb[0].mxu0
    %v4028 = vadd.f32 0.0, %v4027
    %v4029 = vpop.f32.mrb[0].mxu0
    %v4030 = vadd.f32 0.0, %v4029
    %4031 = vmatprep.mubr.f32.mxu0 0.0
    %4032 = vmatmul.mubr.f32.gmra.mrb[0].mxu0 %v1544
    %v4033 = vpop.f32.mrb[0].mxu0
    %v4034 = vadd.f32 0.0, %v4033
    %v4035 = vpop.f32.mrb[0].mxu0
    %v4036 = vadd.f32 0.0, %v4035
    %4037 = vmatprep.mubr.f32.mxu0 0.0
    %4038 = vmatmul.mubr.f32.gmra.mrb[0].mxu0 %v1545
    %v4039 = vpop.f32.mrb[0].mxu0
    %v4040 = vadd.f32 0.0, %v4039
    %v4041 = vpop.f32.mrb[0].mxu0
    %v4042 = vadd.f32 0.0, %v4041
    %4043 = vmatprep.mubr.f32.mxu0 0.0
    %4044 = vmatmul.mubr.f32.gmra.mrb[0].mxu0 %v1546
    %v4045 = vpop.f32.mrb[0].mxu0
    %v4046 = vadd.f32 0.0, %v4045
    %v4047 = vpop.f32.mrb[0].mxu0
    %v4048 = vadd.f32 0.0, %v4047
    %4049 = vmatprep.mubr.f32.mxu0 0.0
    %4050 = vmatmul.mubr.f32.gmra.mrb[0].mxu0 %v1547
    %v4051 = vpop.f32.mrb[0].mxu0
    %v4052 = vadd.f32 0.0, %v4051
    %v4053 = vpop.f32.mrb[0].mxu0
    %v4054 = vadd.f32 0.0, %v4053
    %4055 = vmatprep.mubr.f32.mxu0 0.0
    %4056 = vmatmul.mubr.f32.gmra.mrb[0].mxu0 %v1548
    %v4057 = vpop.f32.mrb[0].mxu0
    %v4058 = vadd.f32 0.0, %v4057
    %v4059 = vpop.f32.mrb[0].mxu0
    %v4060 = vadd.f32 0.0, %v4059
    %4061 = vmatprep.mubr.f32.mxu0 0.0
    %4062 = vmatmul.mubr.f32.gmra.mrb[0].mxu0 %v1549
    %v4063 = vpop.f32.mrb[0].mxu0
    %v4064 = vadd.f32 0.0, %v4063
    %v4065 = vpop.f32.mrb[0].mxu0
    %v4066 = vadd.f32 0.0, %v4065
    %4067 = vmatprep.mubr.f32.mxu0 0.0
    %4068 = vmatmul.mubr.f32.gmra.mrb[0].mxu0 %v1550
    %v4069 = vpop.f32.mrb[0].mxu0
    %v4070 = vadd.f32 0.0, %v4069
    %v4071 = vpop.f32.mrb[0].mxu0
    %v4072 = vadd.f32 0.0, %v4071
    %4073 = vmatprep.mubr.f32.mxu0 0.0
    %4074 = vmatmul.mubr.f32.gmra.mrb[0].mxu0 %v1551
    %v4075 = vpop.f32.mrb[0].mxu0
    %v4076 = vadd.f32 0.0, %v4075
    %v4077 = vpop.f32.mrb[0].mxu0
    %v4078 = vadd.f32 0.0, %v4077
    %4079 = vmatprep.mubr.f32.mxu0 0.0
    %4080 = vmatmul.mubr.f32.gmra.mrb[0].mxu0 %v1552
    %v4081 = vpop.f32.mrb[0].mxu0
    %v4082 = vadd.f32 0.0, %v4081
    %v4083 = vpop.f32.mrb[0].mxu0
    %v4084 = vadd.f32 0.0, %v4083
    %4085 = vmatprep.mubr.f32.mxu0 0.0
    %4086 = vmatmul.mubr.f32.gmra.mrb[0].mxu0 %v1553
    %v4087 = vpop.f32.mrb[0].mxu0
    %v4088 = vadd.f32 0.0, %v4087
    %v4089 = vpop.f32.mrb[0].mxu0
    %v4090 = vadd.f32 0.0, %v4089
    %4091 = vmatprep.mubr.f32.mxu0 0.0
    %4092 = vmatmul.mubr.f32.gmra.mrb[0].mxu0 %v1554
    %v4093 = vpop.f32.mrb[0].mxu0
    %v4094 = vadd.f32 0.0, %v4093
    %v4095 = vpop.f32.mrb[0].mxu0
    %v4096 = vadd.f32 0.0, %v4095
    %4097 = vmatprep.mubr.f32.mxu0 0.0
    %4098 = vmatmul.mubr.f32.gmra.mrb[0].mxu0 %v1555
    %v4099 = vpop.f32.mrb[0].mxu0
    %v4100 = vadd.f32 0.0, %v4099
    %v4101 = vpop.f32.mrb[0].mxu0
    %v4102 = vadd.f32 0.0, %v4101
    %4103 = vmatprep.mubr.f32.mxu0 0.0
    %4104 = vmatmul.mubr.f32.gmra.mrb[0].mxu0 %v1556
    %v4105 = vpop.f32.mrb[0].mxu0
    %v4106 = vadd.f32 0.0, %v4105
    %v4107 = vpop.f32.mrb[0].mxu0
    %v4108 = vadd.f32 0.0, %v4107
    %4109 = vmatprep.mubr.f32.mxu0 0.0
    %4110 = vmatmul.mubr.f32.gmra.mrb[0].mxu0 %v1557
    %v4111 = vpop.f32.mrb[0].mxu0
    %v4112 = vadd.f32 0.0, %v4111
    %v4113 = vpop.f32.mrb[0].mxu0
    %v4114 = vadd.f32 0.0, %v4113
    %4115 = vmatprep.mubr.f32.mxu0 0.0
    %4116 = vmatmul.mubr.f32.gmra.mrb[0].mxu0 %v1558
    %v4117 = vpop.f32.mrb[0].mxu0
    %v4118 = vadd.f32 0.0, %v4117
    %v4119 = vpop.f32.mrb[0].mxu0
    %v4120 = vadd.f32 0.0, %v4119
    %4121 = vmatprep.mubr.f32.mxu0 0.0
    %4122 = vmatmul.mubr.f32.gmra.mrb[0].mxu0 %v1559
    %v4123 = vpop.f32.mrb[0].mxu0
    %v4124 = vadd.f32 0.0, %v4123
    %v4125 = vpop.f32.mrb[0].mxu0
    %v4126 = vadd.f32 0.0, %v4125
    %4127 = vmatprep.mubr.f32.mxu0 0.0
    %4128 = vmatmul.mubr.f32.gmra.mrb[0].mxu0 %v1560
    %v4129 = vpop.f32.mrb[0].mxu0
    %v4130 = vadd.f32 0.0, %v4129
    %v4131 = vpop.f32.mrb[0].mxu0
    %v4132 = vadd.f32 0.0, %v4131
    %4133 = vmatprep.mubr.f32.mxu0 0.0
    %4134 = vmatmul.mubr.f32.gmra.mrb[0].mxu0 %v1561
    %v4135 = vpop.f32.mrb[0].mxu0
    %v4136 = vadd.f32 0.0, %v4135
    %v4137 = vpop.f32.mrb[0].mxu0
    %v4138 = vadd.f32 0.0, %v4137
    %4139 = vmatprep.mubr.f32.mxu0 0.0
    %4140 = vmatmul.mubr.f32.gmra.mrb[0].mxu0 %v1562
    %v4141 = vpop.f32.mrb[0].mxu0
    %v4142 = vadd.f32 0.0, %v4141
    %v4143 = vpop.f32.mrb[0].mxu0
    %v4144 = vadd.f32 0.0, %v4143
    %4145 = vmatprep.mubr.f32.mxu0 0.0
    %4146 = vmatmul.mubr.f32.gmra.mrb[0].mxu0 %v1563
    %v4147 = vpop.f32.mrb[0].mxu0
    %v4148 = vadd.f32 0.0, %v4147
    %v4149 = vpop.f32.mrb[0].mxu0
    %v4150 = vadd.f32 0.0, %v4149
    %4151 = vmatprep.mubr.f32.mxu0 0.0
    %4152 = vmatmul.mubr.f32.gmra.mrb[0].mxu0 %v1564
    %v4153 = vpop.f32.mrb[0].mxu0
    %v4154 = vadd.f32 0.0, %v4153
    %v4155 = vpop.f32.mrb[0].mxu0
    %v4156 = vadd.f32 0.0, %v4155
    %4157 = vmatprep.mubr.f32.mxu0 0.0
    %4158 = vmatmul.mubr.f32.gmra.mrb[0].mxu0 %v1565
    %v4159 = vpop.f32.mrb[0].mxu0
    %v4160 = vadd.f32 0.0, %v4159
    %v4161 = vpop.f32.mrb[0].mxu0
    %v4162 = vadd.f32 0.0, %v4161
    %4163 = vmatprep.mubr.f32.mxu0 0.0
    %4164 = vmatmul.mubr.f32.gmra.mrb[0].mxu0 %v1566
    %v4165 = vpop.f32.mrb[0].mxu0
    %v4166 = vadd.f32 0.0, %v4165
    %v4167 = vpop.f32.mrb[0].mxu0
    %v4168 = vadd.f32 0.0, %v4167
    %4169 = vmatprep.mubr.f32.mxu0 0.0
    %4170 = vmatmul.mubr.f32.gmra.mrb[0].mxu0 %v1567
    %v4171 = vpop.f32.mrb[0].mxu0
    %v4172 = vadd.f32 0.0, %v4171
    %v4173 = vpop.f32.mrb[0].mxu0
    %v4174 = vadd.f32 0.0, %v4173
    %4175 = vmatprep.mubr.f32.mxu0 0.0
    %4176 = vmatmul.mubr.f32.gmra.mrb[0].mxu0 %v1568
    %v4177 = vpop.f32.mrb[0].mxu0
    %v4178 = vadd.f32 0.0, %v4177
    %v4179 = vpop.f32.mrb[0].mxu0
    %v4180 = vadd.f32 0.0, %v4179
    %4181 = vmatprep.mubr.f32.mxu0 0.0
    %4182 = vmatmul.mubr.f32.gmra.mrb[0].mxu0 %v1569
    %v4183 = vpop.f32.mrb[0].mxu0
    %v4184 = vadd.f32 0.0, %v4183
    %v4185 = vpop.f32.mrb[0].mxu0
    %v4186 = vadd.f32 0.0, %v4185
    %4187 = vmatprep.mubr.f32.mxu0 0.0
    %4188 = vmatmul.mubr.f32.gmra.mrb[0].mxu0 %v1570
    %v4189 = vpop.f32.mrb[0].mxu0
    %v4190 = vadd.f32 0.0, %v4189
    %v4191 = vpop.f32.mrb[0].mxu0
    %v4192 = vadd.f32 0.0, %v4191
    %4193 = vmatprep.mubr.f32.mxu0 0.0
    %4194 = vmatmul.mubr.f32.gmra.mrb[0].mxu0 %v1571
    %v4195 = vpop.f32.mrb[0].mxu0
    %v4196 = vadd.f32 0.0, %v4195
    %v4197 = vpop.f32.mrb[0].mxu0
    %v4198 = vadd.f32 0.0, %v4197
    %4199 = vmatprep.mubr.f32.mxu0 0.0
    %4200 = vmatmul.mubr.f32.gmra.mrb[0].mxu0 %v1572
    %v4201 = vpop.f32.mrb[0].mxu0
    %v4202 = vadd.f32 0.0, %v4201
    %v4203 = vpop.f32.mrb[0].mxu0
    %v4204 = vadd.f32 0.0, %v4203
    %4205 = vmatprep.mubr.f32.mxu0 0.0
    %4206 = vmatmul.mubr.f32.gmra.mrb[0].mxu0 %v1573
    %v4207 = vpop.f32.mrb[0].mxu0
    %v4208 = vadd.f32 0.0, %v4207
    %v4209 = vpop.f32.mrb[0].mxu0
    %v4210 = vadd.f32 0.0, %v4209
    %4211 = vmatprep.mubr.f32.mxu0 0.0
    %4212 = vmatmul.mubr.f32.gmra.mrb[0].mxu0 %v1574
    %v4213 = vpop.f32.mrb[0].mxu0
    %v4214 = vadd.f32 0.0, %v4213
    %v4215 = vpop.f32.mrb[0].mxu0
    %v4216 = vadd.f32 0.0, %v4215
    %4217 = vdwg.mxu0
    %4218 = vmatprep.subr.mxu0 %v2734
    %4219 = vmatpush1.msra.mxu0 %v2733
    %4220 = vmatprep.subr.mxu0 %v2743
    %4221 = vmatpush1.msra.mxu0 %v2742
    %4222 = vmatprep.subr.mxu0 %v2752
    %4223 = vmatpush1.msra.mxu0 %v2751
    %4224 = vmatprep.subr.mxu0 %v2761
    %4225 = vmatpush1.msra.mxu0 %v2760
    %4226 = vmatprep.subr.mxu0 %v2770
    %4227 = vmatpush1.msra.mxu0 %v2769
    %4228 = vmatprep.subr.mxu0 %v2779
    %4229 = vmatpush1.msra.mxu0 %v2778
    %4230 = vmatprep.subr.mxu0 %v2788
    %4231 = vmatpush1.msra.mxu0 %v2787
    %4232 = vmatprep.subr.mxu0 %v2797
    %4233 = vmatpush1.msra.mxu0 %v2796
    %4234 = vmatprep.subr.mxu0 %v2806
    %4235 = vmatpush1.msra.mxu0 %v2805
    %4236 = vmatprep.subr.mxu0 %v2815
    %4237 = vmatpush1.msra.mxu0 %v2814
    %4238 = vmatprep.subr.mxu0 %v2824
    %4239 = vmatpush1.msra.mxu0 %v2823
    %4240 = vmatprep.subr.mxu0 %v2833
    %4241 = vmatpush1.msra.mxu0 %v2832
    %4242 = vmatprep.subr.mxu0 %v2842
    %4243 = vmatpush1.msra.mxu0 %v2841
    %4244 = vmatprep.subr.mxu0 %v2851
    %4245 = vmatpush1.msra.mxu0 %v2850
    %4246 = vmatprep.subr.mxu0 %v2860
    %4247 = vmatpush1.msra.mxu0 %v2859
    %4248 = vmatprep.subr.mxu0 %v2869
    %4249 = vmatpush1.msra.mxu0 %v2868
    %4250 = vmatprep.subr.mxu0 0.0
    %4251 = vmatpush1.msra.mxu0 0.0
    %4252 = vmatprep.subr.mxu0 0.0
    %4253 = vmatpush1.msra.mxu0 0.0
    %4254 = vmatprep.subr.mxu0 0.0
    %4255 = vmatpush1.msra.mxu0 0.0
    %4256 = vmatprep.subr.mxu0 0.0
    %4257 = vmatpush1.msra.mxu0 0.0
    %4258 = vmatprep.subr.mxu0 0.0
    %4259 = vmatpush1.msra.mxu0 0.0
    %4260 = vmatprep.subr.mxu0 0.0
    %4261 = vmatpush1.msra.mxu0 0.0
    %4262 = vmatprep.subr.mxu0 0.0
    %4263 = vmatpush1.msra.mxu0 0.0
    %4264 = vmatprep.subr.mxu0 0.0
    %4265 = vmatpush1.msra.mxu0 0.0
    %4266 = vmatprep.subr.mxu0 0.0
    %4267 = vmatpush1.msra.mxu0 0.0
    %4268 = vmatprep.subr.mxu0 0.0
    %4269 = vmatpush1.msra.mxu0 0.0
    %4270 = vmatprep.subr.mxu0 0.0
    %4271 = vmatpush1.msra.mxu0 0.0
    %4272 = vmatprep.subr.mxu0 0.0
    %4273 = vmatpush1.msra.mxu0 0.0
    %4274 = vmatprep.subr.mxu0 0.0
    %4275 = vmatpush1.msra.mxu0 0.0
    %4276 = vmatprep.subr.mxu0 0.0
    %4277 = vmatpush1.msra.mxu0 0.0
    %4278 = vmatprep.subr.mxu0 0.0
    %4279 = vmatpush1.msra.mxu0 0.0
    %4280 = vmatprep.subr.mxu0 0.0
    %4281 = vmatpush1.msra.mxu0 0.0
    %4282 = vmatprep.mubr.f32.mxu0 0.0
    %4283 = vmatmul.mubr.f32.gmra.mrb[0].mxu0 %v1511
    %v4284 = vpop.f32.mrb[0].mxu0
    %v4285 = vadd.f32 0.0, %v4284
    %v4286 = vpop.f32.mrb[0].mxu0
    %v4287 = vadd.f32 0.0, %v4286
    %4288 = vmatprep.mubr.f32.mxu0 0.0
    %4289 = vmatmul.mubr.f32.gmra.mrb[0].mxu0 %v1512
    %v4290 = vpop.f32.mrb[0].mxu0
    %v4291 = vadd.f32 0.0, %v4290
    %v4292 = vpop.f32.mrb[0].mxu0
    %v4293 = vadd.f32 0.0, %v4292
    %4294 = vmatprep.mubr.f32.mxu0 0.0
    %4295 = vmatmul.mubr.f32.gmra.mrb[0].mxu0 %v1513
    %v4296 = vpop.f32.mrb[0].mxu0
    %v4297 = vadd.f32 0.0, %v4296
    %v4298 = vpop.f32.mrb[0].mxu0
    %v4299 = vadd.f32 0.0, %v4298
    %4300 = vmatprep.mubr.f32.mxu0 0.0
    %4301 = vmatmul.mubr.f32.gmra.mrb[0].mxu0 %v1514
    %v4302 = vpop.f32.mrb[0].mxu0
    %v4303 = vadd.f32 0.0, %v4302
    %v4304 = vpop.f32.mrb[0].mxu0
    %v4305 = vadd.f32 0.0, %v4304
    %4306 = vmatprep.mubr.f32.mxu0 0.0
    %4307 = vmatmul.mubr.f32.gmra.mrb[0].mxu0 %v1515
    %v4308 = vpop.f32.mrb[0].mxu0
    %v4309 = vadd.f32 0.0, %v4308
    %v4310 = vpop.f32.mrb[0].mxu0
    %v4311 = vadd.f32 0.0, %v4310
    %4312 = vmatprep.mubr.f32.mxu0 0.0
    %4313 = vmatmul.mubr.f32.gmra.mrb[0].mxu0 %v1516
    %v4314 = vpop.f32.mrb[0].mxu0
    %v4315 = vadd.f32 0.0, %v4314
    %v4316 = vpop.f32.mrb[0].mxu0
    %v4317 = vadd.f32 0.0, %v4316
    %4318 = vmatprep.mubr.f32.mxu0 0.0
    %4319 = vmatmul.mubr.f32.gmra.mrb[0].mxu0 %v1517
    %v4320 = vpop.f32.mrb[0].mxu0
    %v4321 = vadd.f32 0.0, %v4320
    %v4322 = vpop.f32.mrb[0].mxu0
    %v4323 = vadd.f32 0.0, %v4322
    %4324 = vmatprep.mubr.f32.mxu0 0.0
    %4325 = vmatmul.mubr.f32.gmra.mrb[0].mxu0 %v1518
    %v4326 = vpop.f32.mrb[0].mxu0
    %v4327 = vadd.f32 0.0, %v4326
    %v4328 = vpop.f32.mrb[0].mxu0
    %v4329 = vadd.f32 0.0, %v4328
    %4330 = vmatprep.mubr.f32.mxu0 0.0
    %4331 = vmatmul.mubr.f32.gmra.mrb[0].mxu0 %v1519
    %v4332 = vpop.f32.mrb[0].mxu0
    %v4333 = vadd.f32 0.0, %v4332
    %v4334 = vpop.f32.mrb[0].mxu0
    %v4335 = vadd.f32 0.0, %v4334
    %4336 = vmatprep.mubr.f32.mxu0 0.0
    %4337 = vmatmul.mubr.f32.gmra.mrb[0].mxu0 %v1520
    %v4338 = vpop.f32.mrb[0].mxu0
    %v4339 = vadd.f32 0.0, %v4338
    %v4340 = vpop.f32.mrb[0].mxu0
    %v4341 = vadd.f32 0.0, %v4340
    %4342 = vmatprep.mubr.f32.mxu0 0.0
    %4343 = vmatmul.mubr.f32.gmra.mrb[0].mxu0 %v1521
    %v4344 = vpop.f32.mrb[0].mxu0
    %v4345 = vadd.f32 0.0, %v4344
    %v4346 = vpop.f32.mrb[0].mxu0
    %v4347 = vadd.f32 0.0, %v4346
    %4348 = vmatprep.mubr.f32.mxu0 0.0
    %4349 = vmatmul.mubr.f32.gmra.mrb[0].mxu0 %v1522
    %v4350 = vpop.f32.mrb[0].mxu0
    %v4351 = vadd.f32 0.0, %v4350
    %v4352 = vpop.f32.mrb[0].mxu0
    %v4353 = vadd.f32 0.0, %v4352
    %4354 = vmatprep.mubr.f32.mxu0 0.0
    %4355 = vmatmul.mubr.f32.gmra.mrb[0].mxu0 %v1523
    %v4356 = vpop.f32.mrb[0].mxu0
    %v4357 = vadd.f32 0.0, %v4356
    %v4358 = vpop.f32.mrb[0].mxu0
    %v4359 = vadd.f32 0.0, %v4358
    %4360 = vmatprep.mubr.f32.mxu0 0.0
    %4361 = vmatmul.mubr.f32.gmra.mrb[0].mxu0 %v1524
    %v4362 = vpop.f32.mrb[0].mxu0
    %v4363 = vadd.f32 0.0, %v4362
    %v4364 = vpop.f32.mrb[0].mxu0
    %v4365 = vadd.f32 0.0, %v4364
    %4366 = vmatprep.mubr.f32.mxu0 0.0
    %4367 = vmatmul.mubr.f32.gmra.mrb[0].mxu0 %v1525
    %v4368 = vpop.f32.mrb[0].mxu0
    %v4369 = vadd.f32 0.0, %v4368
    %v4370 = vpop.f32.mrb[0].mxu0
    %v4371 = vadd.f32 0.0, %v4370
    %4372 = vmatprep.mubr.f32.mxu0 0.0
    %4373 = vmatmul.mubr.f32.gmra.mrb[0].mxu0 %v1526
    %v4374 = vpop.f32.mrb[0].mxu0
    %v4375 = vadd.f32 0.0, %v4374
    %v4376 = vpop.f32.mrb[0].mxu0
    %v4377 = vadd.f32 0.0, %v4376
    %4378 = vmatprep.mubr.f32.mxu0 0.0
    %4379 = vmatmul.mubr.f32.gmra.mrb[0].mxu0 %v1527
    %v4380 = vpop.f32.mrb[0].mxu0
    %v4381 = vadd.f32 0.0, %v4380
    %v4382 = vpop.f32.mrb[0].mxu0
    %v4383 = vadd.f32 0.0, %v4382
    %4384 = vmatprep.mubr.f32.mxu0 0.0
    %4385 = vmatmul.mubr.f32.gmra.mrb[0].mxu0 %v1528
    %v4386 = vpop.f32.mrb[0].mxu0
    %v4387 = vadd.f32 0.0, %v4386
    %v4388 = vpop.f32.mrb[0].mxu0
    %v4389 = vadd.f32 0.0, %v4388
    %4390 = vmatprep.mubr.f32.mxu0 0.0
    %4391 = vmatmul.mubr.f32.gmra.mrb[0].mxu0 %v1529
    %v4392 = vpop.f32.mrb[0].mxu0
    %v4393 = vadd.f32 0.0, %v4392
    %v4394 = vpop.f32.mrb[0].mxu0
    %v4395 = vadd.f32 0.0, %v4394
    %4396 = vmatprep.mubr.f32.mxu0 0.0
    %4397 = vmatmul.mubr.f32.gmra.mrb[0].mxu0 %v1530
    %v4398 = vpop.f32.mrb[0].mxu0
    %v4399 = vadd.f32 0.0, %v4398
    %v4400 = vpop.f32.mrb[0].mxu0
    %v4401 = vadd.f32 0.0, %v4400
    %4402 = vmatprep.mubr.f32.mxu0 0.0
    %4403 = vmatmul.mubr.f32.gmra.mrb[0].mxu0 %v1531
    %v4404 = vpop.f32.mrb[0].mxu0
    %v4405 = vadd.f32 0.0, %v4404
    %v4406 = vpop.f32.mrb[0].mxu0
    %v4407 = vadd.f32 0.0, %v4406
    %4408 = vmatprep.mubr.f32.mxu0 0.0
    %4409 = vmatmul.mubr.f32.gmra.mrb[0].mxu0 %v1532
    %v4410 = vpop.f32.mrb[0].mxu0
    %v4411 = vadd.f32 0.0, %v4410
    %v4412 = vpop.f32.mrb[0].mxu0
    %v4413 = vadd.f32 0.0, %v4412
    %4414 = vmatprep.mubr.f32.mxu0 0.0
    %4415 = vmatmul.mubr.f32.gmra.mrb[0].mxu0 %v1533
    %v4416 = vpop.f32.mrb[0].mxu0
    %v4417 = vadd.f32 0.0, %v4416
    %v4418 = vpop.f32.mrb[0].mxu0
    %v4419 = vadd.f32 0.0, %v4418
    %4420 = vmatprep.mubr.f32.mxu0 0.0
    %4421 = vmatmul.mubr.f32.gmra.mrb[0].mxu0 %v1534
    %v4422 = vpop.f32.mrb[0].mxu0
    %v4423 = vadd.f32 0.0, %v4422
    %v4424 = vpop.f32.mrb[0].mxu0
    %v4425 = vadd.f32 0.0, %v4424
    %4426 = vmatprep.mubr.f32.mxu0 0.0
    %4427 = vmatmul.mubr.f32.gmra.mrb[0].mxu0 %v1535
    %v4428 = vpop.f32.mrb[0].mxu0
    %v4429 = vadd.f32 0.0, %v4428
    %v4430 = vpop.f32.mrb[0].mxu0
    %v4431 = vadd.f32 0.0, %v4430
    %4432 = vmatprep.mubr.f32.mxu0 0.0
    %4433 = vmatmul.mubr.f32.gmra.mrb[0].mxu0 %v1536
    %v4434 = vpop.f32.mrb[0].mxu0
    %v4435 = vadd.f32 0.0, %v4434
    %v4436 = vpop.f32.mrb[0].mxu0
    %v4437 = vadd.f32 0.0, %v4436
    %4438 = vmatprep.mubr.f32.mxu0 0.0
    %4439 = vmatmul.mubr.f32.gmra.mrb[0].mxu0 %v1537
    %v4440 = vpop.f32.mrb[0].mxu0
    %v4441 = vadd.f32 0.0, %v4440
    %v4442 = vpop.f32.mrb[0].mxu0
    %v4443 = vadd.f32 0.0, %v4442
    %4444 = vmatprep.mubr.f32.mxu0 0.0
    %4445 = vmatmul.mubr.f32.gmra.mrb[0].mxu0 %v1538
    %v4446 = vpop.f32.mrb[0].mxu0
    %v4447 = vadd.f32 0.0, %v4446
    %v4448 = vpop.f32.mrb[0].mxu0
    %v4449 = vadd.f32 0.0, %v4448
    %4450 = vmatprep.mubr.f32.mxu0 0.0
    %4451 = vmatmul.mubr.f32.gmra.mrb[0].mxu0 %v1539
    %v4452 = vpop.f32.mrb[0].mxu0
    %v4453 = vadd.f32 0.0, %v4452
    %v4454 = vpop.f32.mrb[0].mxu0
    %v4455 = vadd.f32 0.0, %v4454
    %4456 = vmatprep.mubr.f32.mxu0 0.0
    %4457 = vmatmul.mubr.f32.gmra.mrb[0].mxu0 %v1540
    %v4458 = vpop.f32.mrb[0].mxu0
    %v4459 = vadd.f32 0.0, %v4458
    %v4460 = vpop.f32.mrb[0].mxu0
    %v4461 = vadd.f32 0.0, %v4460
    %4462 = vmatprep.mubr.f32.mxu0 0.0
    %4463 = vmatmul.mubr.f32.gmra.mrb[0].mxu0 %v1541
    %v4464 = vpop.f32.mrb[0].mxu0
    %v4465 = vadd.f32 0.0, %v4464
    %v4466 = vpop.f32.mrb[0].mxu0
    %v4467 = vadd.f32 0.0, %v4466
    %4468 = vmatprep.mubr.f32.mxu0 0.0
    %4469 = vmatmul.mubr.f32.gmra.mrb[0].mxu0 %v1542
    %v4470 = vpop.f32.mrb[0].mxu0
    %v4471 = vadd.f32 0.0, %v4470
    %v4472 = vpop.f32.mrb[0].mxu0
    %v4473 = vadd.f32 0.0, %v4472
    %4474 = vmatprep.mubr.f32.mxu0 0.0
    %4475 = vmatmul.mubr.f32.gmra.mrb[0].mxu0 %v1543
    %v4476 = vpop.f32.mrb[0].mxu0
    %v4477 = vadd.f32 0.0, %v4476
    %v4478 = vpop.f32.mrb[0].mxu0
    %v4479 = vadd.f32 0.0, %v4478
    %4480 = vmatprep.mubr.f32.mxu0 0.0
    %4481 = vmatmul.mubr.f32.gmra.mrb[0].mxu0 %v1544
    %v4482 = vpop.f32.mrb[0].mxu0
    %v4483 = vadd.f32 0.0, %v4482
    %v4484 = vpop.f32.mrb[0].mxu0
    %v4485 = vadd.f32 0.0, %v4484
    %4486 = vmatprep.mubr.f32.mxu0 0.0
    %4487 = vmatmul.mubr.f32.gmra.mrb[0].mxu0 %v1545
    %v4488 = vpop.f32.mrb[0].mxu0
    %v4489 = vadd.f32 0.0, %v4488
    %v4490 = vpop.f32.mrb[0].mxu0
    %v4491 = vadd.f32 0.0, %v4490
    %4492 = vmatprep.mubr.f32.mxu0 0.0
    %4493 = vmatmul.mubr.f32.gmra.mrb[0].mxu0 %v1546
    %v4494 = vpop.f32.mrb[0].mxu0
    %v4495 = vadd.f32 0.0, %v4494
    %v4496 = vpop.f32.mrb[0].mxu0
    %v4497 = vadd.f32 0.0, %v4496
    %4498 = vmatprep.mubr.f32.mxu0 0.0
    %4499 = vmatmul.mubr.f32.gmra.mrb[0].mxu0 %v1547
    %v4500 = vpop.f32.mrb[0].mxu0
    %v4501 = vadd.f32 0.0, %v4500
    %v4502 = vpop.f32.mrb[0].mxu0
    %v4503 = vadd.f32 0.0, %v4502
    %4504 = vmatprep.mubr.f32.mxu0 0.0
    %4505 = vmatmul.mubr.f32.gmra.mrb[0].mxu0 %v1548
    %v4506 = vpop.f32.mrb[0].mxu0
    %v4507 = vadd.f32 0.0, %v4506
    %v4508 = vpop.f32.mrb[0].mxu0
    %v4509 = vadd.f32 0.0, %v4508
    %4510 = vmatprep.mubr.f32.mxu0 0.0
    %4511 = vmatmul.mubr.f32.gmra.mrb[0].mxu0 %v1549
    %v4512 = vpop.f32.mrb[0].mxu0
    %v4513 = vadd.f32 0.0, %v4512
    %v4514 = vpop.f32.mrb[0].mxu0
    %v4515 = vadd.f32 0.0, %v4514
    %4516 = vmatprep.mubr.f32.mxu0 0.0
    %4517 = vmatmul.mubr.f32.gmra.mrb[0].mxu0 %v1550
    %v4518 = vpop.f32.mrb[0].mxu0
    %v4519 = vadd.f32 0.0, %v4518
    %v4520 = vpop.f32.mrb[0].mxu0
    %v4521 = vadd.f32 0.0, %v4520
    %4522 = vmatprep.mubr.f32.mxu0 0.0
    %4523 = vmatmul.mubr.f32.gmra.mrb[0].mxu0 %v1551
    %v4524 = vpop.f32.mrb[0].mxu0
    %v4525 = vadd.f32 0.0, %v4524
    %v4526 = vpop.f32.mrb[0].mxu0
    %v4527 = vadd.f32 0.0, %v4526
    %4528 = vmatprep.mubr.f32.mxu0 0.0
    %4529 = vmatmul.mubr.f32.gmra.mrb[0].mxu0 %v1552
    %v4530 = vpop.f32.mrb[0].mxu0
    %v4531 = vadd.f32 0.0, %v4530
    %v4532 = vpop.f32.mrb[0].mxu0
    %v4533 = vadd.f32 0.0, %v4532
    %4534 = vmatprep.mubr.f32.mxu0 0.0
    %4535 = vmatmul.mubr.f32.gmra.mrb[0].mxu0 %v1553
    %v4536 = vpop.f32.mrb[0].mxu0
    %v4537 = vadd.f32 0.0, %v4536
    %v4538 = vpop.f32.mrb[0].mxu0
    %v4539 = vadd.f32 0.0, %v4538
    %4540 = vmatprep.mubr.f32.mxu0 0.0
    %4541 = vmatmul.mubr.f32.gmra.mrb[0].mxu0 %v1554
    %v4542 = vpop.f32.mrb[0].mxu0
    %v4543 = vadd.f32 0.0, %v4542
    %v4544 = vpop.f32.mrb[0].mxu0
    %v4545 = vadd.f32 0.0, %v4544
    %4546 = vmatprep.mubr.f32.mxu0 0.0
    %4547 = vmatmul.mubr.f32.gmra.mrb[0].mxu0 %v1555
    %v4548 = vpop.f32.mrb[0].mxu0
    %v4549 = vadd.f32 0.0, %v4548
    %v4550 = vpop.f32.mrb[0].mxu0
    %v4551 = vadd.f32 0.0, %v4550
    %4552 = vmatprep.mubr.f32.mxu0 0.0
    %4553 = vmatmul.mubr.f32.gmra.mrb[0].mxu0 %v1556
    %v4554 = vpop.f32.mrb[0].mxu0
    %v4555 = vadd.f32 0.0, %v4554
    %v4556 = vpop.f32.mrb[0].mxu0
    %v4557 = vadd.f32 0.0, %v4556
    %4558 = vmatprep.mubr.f32.mxu0 0.0
    %4559 = vmatmul.mubr.f32.gmra.mrb[0].mxu0 %v1557
    %v4560 = vpop.f32.mrb[0].mxu0
    %v4561 = vadd.f32 0.0, %v4560
    %v4562 = vpop.f32.mrb[0].mxu0
    %v4563 = vadd.f32 0.0, %v4562
    %4564 = vmatprep.mubr.f32.mxu0 0.0
    %4565 = vmatmul.mubr.f32.gmra.mrb[0].mxu0 %v1558
    %v4566 = vpop.f32.mrb[0].mxu0
    %v4567 = vadd.f32 0.0, %v4566
    %v4568 = vpop.f32.mrb[0].mxu0
    %v4569 = vadd.f32 0.0, %v4568
    %4570 = vmatprep.mubr.f32.mxu0 0.0
    %4571 = vmatmul.mubr.f32.gmra.mrb[0].mxu0 %v1559
    %v4572 = vpop.f32.mrb[0].mxu0
    %v4573 = vadd.f32 0.0, %v4572
    %v4574 = vpop.f32.mrb[0].mxu0
    %v4575 = vadd.f32 0.0, %v4574
    %4576 = vmatprep.mubr.f32.mxu0 0.0
    %4577 = vmatmul.mubr.f32.gmra.mrb[0].mxu0 %v1560
    %v4578 = vpop.f32.mrb[0].mxu0
    %v4579 = vadd.f32 0.0, %v4578
    %v4580 = vpop.f32.mrb[0].mxu0
    %v4581 = vadd.f32 0.0, %v4580
    %4582 = vmatprep.mubr.f32.mxu0 0.0
    %4583 = vmatmul.mubr.f32.gmra.mrb[0].mxu0 %v1561
    %v4584 = vpop.f32.mrb[0].mxu0
    %v4585 = vadd.f32 0.0, %v4584
    %v4586 = vpop.f32.mrb[0].mxu0
    %v4587 = vadd.f32 0.0, %v4586
    %4588 = vmatprep.mubr.f32.mxu0 0.0
    %4589 = vmatmul.mubr.f32.gmra.mrb[0].mxu0 %v1562
    %v4590 = vpop.f32.mrb[0].mxu0
    %v4591 = vadd.f32 0.0, %v4590
    %v4592 = vpop.f32.mrb[0].mxu0
    %v4593 = vadd.f32 0.0, %v4592
    %4594 = vmatprep.mubr.f32.mxu0 0.0
    %4595 = vmatmul.mubr.f32.gmra.mrb[0].mxu0 %v1563
    %v4596 = vpop.f32.mrb[0].mxu0
    %v4597 = vadd.f32 0.0, %v4596
    %v4598 = vpop.f32.mrb[0].mxu0
    %v4599 = vadd.f32 0.0, %v4598
    %4600 = vmatprep.mubr.f32.mxu0 0.0
    %4601 = vmatmul.mubr.f32.gmra.mrb[0].mxu0 %v1564
    %v4602 = vpop.f32.mrb[0].mxu0
    %v4603 = vadd.f32 0.0, %v4602
    %v4604 = vpop.f32.mrb[0].mxu0
    %v4605 = vadd.f32 0.0, %v4604
    %4606 = vmatprep.mubr.f32.mxu0 0.0
    %4607 = vmatmul.mubr.f32.gmra.mrb[0].mxu0 %v1565
    %v4608 = vpop.f32.mrb[0].mxu0
    %v4609 = vadd.f32 0.0, %v4608
    %v4610 = vpop.f32.mrb[0].mxu0
    %v4611 = vadd.f32 0.0, %v4610
    %4612 = vmatprep.mubr.f32.mxu0 0.0
    %4613 = vmatmul.mubr.f32.gmra.mrb[0].mxu0 %v1566
    %v4614 = vpop.f32.mrb[0].mxu0
    %v4615 = vadd.f32 0.0, %v4614
    %v4616 = vpop.f32.mrb[0].mxu0
    %v4617 = vadd.f32 0.0, %v4616
    %4618 = vmatprep.mubr.f32.mxu0 0.0
    %4619 = vmatmul.mubr.f32.gmra.mrb[0].mxu0 %v1567
    %v4620 = vpop.f32.mrb[0].mxu0
    %v4621 = vadd.f32 0.0, %v4620
    %v4622 = vpop.f32.mrb[0].mxu0
    %v4623 = vadd.f32 0.0, %v4622
    %4624 = vmatprep.mubr.f32.mxu0 0.0
    %4625 = vmatmul.mubr.f32.gmra.mrb[0].mxu0 %v1568
    %v4626 = vpop.f32.mrb[0].mxu0
    %v4627 = vadd.f32 0.0, %v4626
    %v4628 = vpop.f32.mrb[0].mxu0
    %v4629 = vadd.f32 0.0, %v4628
    %4630 = vmatprep.mubr.f32.mxu0 0.0
    %4631 = vmatmul.mubr.f32.gmra.mrb[0].mxu0 %v1569
    %v4632 = vpop.f32.mrb[0].mxu0
    %v4633 = vadd.f32 0.0, %v4632
    %v4634 = vpop.f32.mrb[0].mxu0
    %v4635 = vadd.f32 0.0, %v4634
    %4636 = vmatprep.mubr.f32.mxu0 0.0
    %4637 = vmatmul.mubr.f32.gmra.mrb[0].mxu0 %v1570
    %v4638 = vpop.f32.mrb[0].mxu0
    %v4639 = vadd.f32 0.0, %v4638
    %v4640 = vpop.f32.mrb[0].mxu0
    %v4641 = vadd.f32 0.0, %v4640
    %4642 = vmatprep.mubr.f32.mxu0 0.0
    %4643 = vmatmul.mubr.f32.gmra.mrb[0].mxu0 %v1571
    %v4644 = vpop.f32.mrb[0].mxu0
    %v4645 = vadd.f32 0.0, %v4644
    %v4646 = vpop.f32.mrb[0].mxu0
    %v4647 = vadd.f32 0.0, %v4646
    %4648 = vmatprep.mubr.f32.mxu0 0.0
    %4649 = vmatmul.mubr.f32.gmra.mrb[0].mxu0 %v1572
    %v4650 = vpop.f32.mrb[0].mxu0
    %v4651 = vadd.f32 0.0, %v4650
    %v4652 = vpop.f32.mrb[0].mxu0
    %v4653 = vadd.f32 0.0, %v4652
    %4654 = vmatprep.mubr.f32.mxu0 0.0
    %4655 = vmatmul.mubr.f32.gmra.mrb[0].mxu0 %v1573
    %v4656 = vpop.f32.mrb[0].mxu0
    %v4657 = vadd.f32 0.0, %v4656
    %v4658 = vpop.f32.mrb[0].mxu0
    %v4659 = vadd.f32 0.0, %v4658
    %4660 = vmatprep.mubr.f32.mxu0 0.0
    %4661 = vmatmul.mubr.f32.gmra.mrb[0].mxu0 %v1574
    %v4662 = vpop.f32.mrb[0].mxu0
    %v4663 = vadd.f32 0.0, %v4662
    %v4664 = vpop.f32.mrb[0].mxu0
    %v4665 = vadd.f32 0.0, %v4664
    %4666 = vdwg.mxu0
    %4667 = vmatprep.subr.mxu0 0.0
    %4668 = vmatpush1.msra.mxu0 %v2735
    %4669 = vmatprep.subr.mxu0 0.0
    %4670 = vmatpush1.msra.mxu0 %v2744
    %4671 = vmatprep.subr.mxu0 0.0
    %4672 = vmatpush1.msra.mxu0 %v2753
    %4673 = vmatprep.subr.mxu0 0.0
    %4674 = vmatpush1.msra.mxu0 %v2762
    %4675 = vmatprep.subr.mxu0 0.0
    %4676 = vmatpush1.msra.mxu0 %v2771
    %4677 = vmatprep.subr.mxu0 0.0
    %4678 = vmatpush1.msra.mxu0 %v2780
    %4679 = vmatprep.subr.mxu0 0.0
    %4680 = vmatpush1.msra.mxu0 %v2789
    %4681 = vmatprep.subr.mxu0 0.0
    %4682 = vmatpush1.msra.mxu0 %v2798
    %4683 = vmatprep.subr.mxu0 0.0
    %4684 = vmatpush1.msra.mxu0 %v2807
    %4685 = vmatprep.subr.mxu0 0.0
    %4686 = vmatpush1.msra.mxu0 %v2816
    %4687 = vmatprep.subr.mxu0 0.0
    %4688 = vmatpush1.msra.mxu0 %v2825
    %4689 = vmatprep.subr.mxu0 0.0
    %4690 = vmatpush1.msra.mxu0 %v2834
    %4691 = vmatprep.subr.mxu0 0.0
    %4692 = vmatpush1.msra.mxu0 %v2843
    %4693 = vmatprep.subr.mxu0 0.0
    %4694 = vmatpush1.msra.mxu0 %v2852
    %4695 = vmatprep.subr.mxu0 0.0
    %4696 = vmatpush1.msra.mxu0 %v2861
    %4697 = vmatprep.subr.mxu0 0.0
    %4698 = vmatpush1.msra.mxu0 %v2870
    %4699 = vmatprep.subr.mxu0 0.0
    %4700 = vmatpush1.msra.mxu0 0.0
    %4701 = vmatprep.subr.mxu0 0.0
    %4702 = vmatpush1.msra.mxu0 0.0
    %4703 = vmatprep.subr.mxu0 0.0
    %4704 = vmatpush1.msra.mxu0 0.0
    %4705 = vmatprep.subr.mxu0 0.0
    %4706 = vmatpush1.msra.mxu0 0.0
    %4707 = vmatprep.subr.mxu0 0.0
    %4708 = vmatpush1.msra.mxu0 0.0
    %4709 = vmatprep.subr.mxu0 0.0
    %4710 = vmatpush1.msra.mxu0 0.0
    %4711 = vmatprep.subr.mxu0 0.0
    %4712 = vmatpush1.msra.mxu0 0.0
    %4713 = vmatprep.subr.mxu0 0.0
    %4714 = vmatpush1.msra.mxu0 0.0
    %4715 = vmatprep.subr.mxu0 0.0
    %4716 = vmatpush1.msra.mxu0 0.0
    %4717 = vmatprep.subr.mxu0 0.0
    %4718 = vmatpush1.msra.mxu0 0.0
    %4719 = vmatprep.subr.mxu0 0.0
    %4720 = vmatpush1.msra.mxu0 0.0
    %4721 = vmatprep.subr.mxu0 0.0
    %4722 = vmatpush1.msra.mxu0 0.0
    %4723 = vmatprep.subr.mxu0 0.0
    %4724 = vmatpush1.msra.mxu0 0.0
    %4725 = vmatprep.subr.mxu0 0.0
    %4726 = vmatpush1.msra.mxu0 0.0
    %4727 = vmatprep.subr.mxu0 0.0
    %4728 = vmatpush1.msra.mxu0 0.0
    %4729 = vmatprep.subr.mxu0 0.0
    %4730 = vmatpush1.msra.mxu0 0.0
    %4731 = vmatprep.mubr.f32.mxu0 0.0
    %4732 = vmatmul.mubr.f32.gmra.mrb[0].mxu0 %v1511
    %v4733 = vpop.f32.mrb[0].mxu0
    %v4734 = vadd.f32 0.0, %v4733
    %v4735 = vpop.f32.mrb[0].mxu0
    %4736 = vmatprep.mubr.f32.mxu0 0.0
    %4737 = vmatmul.mubr.f32.gmra.mrb[0].mxu0 %v1512
    %v4738 = vpop.f32.mrb[0].mxu0
    %v4739 = vadd.f32 0.0, %v4738
    %v4740 = vpop.f32.mrb[0].mxu0
    %4741 = vmatprep.mubr.f32.mxu0 0.0
    %4742 = vmatmul.mubr.f32.gmra.mrb[0].mxu0 %v1513
    %v4743 = vpop.f32.mrb[0].mxu0
    %v4744 = vadd.f32 0.0, %v4743
    %v4745 = vpop.f32.mrb[0].mxu0
    %4746 = vmatprep.mubr.f32.mxu0 0.0
    %4747 = vmatmul.mubr.f32.gmra.mrb[0].mxu0 %v1514
    %v4748 = vpop.f32.mrb[0].mxu0
    %v4749 = vadd.f32 0.0, %v4748
    %v4750 = vpop.f32.mrb[0].mxu0
    %4751 = vmatprep.mubr.f32.mxu0 0.0
    %4752 = vmatmul.mubr.f32.gmra.mrb[0].mxu0 %v1515
    %v4753 = vpop.f32.mrb[0].mxu0
    %v4754 = vadd.f32 0.0, %v4753
    %v4755 = vpop.f32.mrb[0].mxu0
    %4756 = vmatprep.mubr.f32.mxu0 0.0
    %4757 = vmatmul.mubr.f32.gmra.mrb[0].mxu0 %v1516
    %v4758 = vpop.f32.mrb[0].mxu0
    %v4759 = vadd.f32 0.0, %v4758
    %v4760 = vpop.f32.mrb[0].mxu0
    %4761 = vmatprep.mubr.f32.mxu0 0.0
    %4762 = vmatmul.mubr.f32.gmra.mrb[0].mxu0 %v1517
    %v4763 = vpop.f32.mrb[0].mxu0
    %v4764 = vadd.f32 0.0, %v4763
    %v4765 = vpop.f32.mrb[0].mxu0
    %4766 = vmatprep.mubr.f32.mxu0 0.0
    %4767 = vmatmul.mubr.f32.gmra.mrb[0].mxu0 %v1518
    %v4768 = vpop.f32.mrb[0].mxu0
    %v4769 = vadd.f32 0.0, %v4768
    %v4770 = vpop.f32.mrb[0].mxu0
    %4771 = vmatprep.mubr.f32.mxu0 0.0
    %4772 = vmatmul.mubr.f32.gmra.mrb[0].mxu0 %v1519
    %v4773 = vpop.f32.mrb[0].mxu0
    %v4774 = vadd.f32 0.0, %v4773
    %v4775 = vpop.f32.mrb[0].mxu0
    %4776 = vmatprep.mubr.f32.mxu0 0.0
    %4777 = vmatmul.mubr.f32.gmra.mrb[0].mxu0 %v1520
    %v4778 = vpop.f32.mrb[0].mxu0
    %v4779 = vadd.f32 0.0, %v4778
    %v4780 = vpop.f32.mrb[0].mxu0
    %4781 = vmatprep.mubr.f32.mxu0 0.0
    %4782 = vmatmul.mubr.f32.gmra.mrb[0].mxu0 %v1521
    %v4783 = vpop.f32.mrb[0].mxu0
    %v4784 = vadd.f32 0.0, %v4783
    %v4785 = vpop.f32.mrb[0].mxu0
    %4786 = vmatprep.mubr.f32.mxu0 0.0
    %4787 = vmatmul.mubr.f32.gmra.mrb[0].mxu0 %v1522
    %v4788 = vpop.f32.mrb[0].mxu0
    %v4789 = vadd.f32 0.0, %v4788
    %v4790 = vpop.f32.mrb[0].mxu0
    %4791 = vmatprep.mubr.f32.mxu0 0.0
    %4792 = vmatmul.mubr.f32.gmra.mrb[0].mxu0 %v1523
    %v4793 = vpop.f32.mrb[0].mxu0
    %v4794 = vadd.f32 0.0, %v4793
    %v4795 = vpop.f32.mrb[0].mxu0
    %4796 = vmatprep.mubr.f32.mxu0 0.0
    %4797 = vmatmul.mubr.f32.gmra.mrb[0].mxu0 %v1524
    %v4798 = vpop.f32.mrb[0].mxu0
    %v4799 = vadd.f32 0.0, %v4798
    %v4800 = vpop.f32.mrb[0].mxu0
    %4801 = vmatprep.mubr.f32.mxu0 0.0
    %4802 = vmatmul.mubr.f32.gmra.mrb[0].mxu0 %v1525
    %v4803 = vpop.f32.mrb[0].mxu0
    %v4804 = vadd.f32 0.0, %v4803
    %v4805 = vpop.f32.mrb[0].mxu0
    %4806 = vmatprep.mubr.f32.mxu0 0.0
    %4807 = vmatmul.mubr.f32.gmra.mrb[0].mxu0 %v1526
    %v4808 = vpop.f32.mrb[0].mxu0
    %v4809 = vadd.f32 0.0, %v4808
    %v4810 = vpop.f32.mrb[0].mxu0
    %4811 = vmatprep.mubr.f32.mxu0 0.0
    %4812 = vmatmul.mubr.f32.gmra.mrb[0].mxu0 %v1527
    %v4813 = vpop.f32.mrb[0].mxu0
    %v4814 = vadd.f32 0.0, %v4813
    %v4815 = vpop.f32.mrb[0].mxu0
    %4816 = vmatprep.mubr.f32.mxu0 0.0
    %4817 = vmatmul.mubr.f32.gmra.mrb[0].mxu0 %v1528
    %v4818 = vpop.f32.mrb[0].mxu0
    %v4819 = vadd.f32 0.0, %v4818
    %v4820 = vpop.f32.mrb[0].mxu0
    %4821 = vmatprep.mubr.f32.mxu0 0.0
    %4822 = vmatmul.mubr.f32.gmra.mrb[0].mxu0 %v1529
    %v4823 = vpop.f32.mrb[0].mxu0
    %v4824 = vadd.f32 0.0, %v4823
    %v4825 = vpop.f32.mrb[0].mxu0
    %4826 = vmatprep.mubr.f32.mxu0 0.0
    %4827 = vmatmul.mubr.f32.gmra.mrb[0].mxu0 %v1530
    %v4828 = vpop.f32.mrb[0].mxu0
    %v4829 = vadd.f32 0.0, %v4828
    %v4830 = vpop.f32.mrb[0].mxu0
    %4831 = vmatprep.mubr.f32.mxu0 0.0
    %4832 = vmatmul.mubr.f32.gmra.mrb[0].mxu0 %v1531
    %v4833 = vpop.f32.mrb[0].mxu0
    %v4834 = vadd.f32 0.0, %v4833
    %v4835 = vpop.f32.mrb[0].mxu0
    %4836 = vmatprep.mubr.f32.mxu0 0.0
    %4837 = vmatmul.mubr.f32.gmra.mrb[0].mxu0 %v1532
    %v4838 = vpop.f32.mrb[0].mxu0
    %v4839 = vadd.f32 0.0, %v4838
    %v4840 = vpop.f32.mrb[0].mxu0
    %4841 = vmatprep.mubr.f32.mxu0 0.0
    %4842 = vmatmul.mubr.f32.gmra.mrb[0].mxu0 %v1533
    %v4843 = vpop.f32.mrb[0].mxu0
    %v4844 = vadd.f32 0.0, %v4843
    %v4845 = vpop.f32.mrb[0].mxu0
    %4846 = vmatprep.mubr.f32.mxu0 0.0
    %4847 = vmatmul.mubr.f32.gmra.mrb[0].mxu0 %v1534
    %v4848 = vpop.f32.mrb[0].mxu0
    %v4849 = vadd.f32 0.0, %v4848
    %v4850 = vpop.f32.mrb[0].mxu0
    %4851 = vmatprep.mubr.f32.mxu0 0.0
    %4852 = vmatmul.mubr.f32.gmra.mrb[0].mxu0 %v1535
    %v4853 = vpop.f32.mrb[0].mxu0
    %v4854 = vadd.f32 0.0, %v4853
    %v4855 = vpop.f32.mrb[0].mxu0
    %4856 = vmatprep.mubr.f32.mxu0 0.0
    %4857 = vmatmul.mubr.f32.gmra.mrb[0].mxu0 %v1536
    %v4858 = vpop.f32.mrb[0].mxu0
    %v4859 = vadd.f32 0.0, %v4858
    %v4860 = vpop.f32.mrb[0].mxu0
    %4861 = vmatprep.mubr.f32.mxu0 0.0
    %4862 = vmatmul.mubr.f32.gmra.mrb[0].mxu0 %v1537
    %v4863 = vpop.f32.mrb[0].mxu0
    %v4864 = vadd.f32 0.0, %v4863
    %v4865 = vpop.f32.mrb[0].mxu0
    %4866 = vmatprep.mubr.f32.mxu0 0.0
    %4867 = vmatmul.mubr.f32.gmra.mrb[0].mxu0 %v1538
    %v4868 = vpop.f32.mrb[0].mxu0
    %v4869 = vadd.f32 0.0, %v4868
    %v4870 = vpop.f32.mrb[0].mxu0
    %4871 = vmatprep.mubr.f32.mxu0 0.0
    %4872 = vmatmul.mubr.f32.gmra.mrb[0].mxu0 %v1539
    %v4873 = vpop.f32.mrb[0].mxu0
    %v4874 = vadd.f32 0.0, %v4873
    %v4875 = vpop.f32.mrb[0].mxu0
    %4876 = vmatprep.mubr.f32.mxu0 0.0
    %4877 = vmatmul.mubr.f32.gmra.mrb[0].mxu0 %v1540
    %v4878 = vpop.f32.mrb[0].mxu0
    %v4879 = vadd.f32 0.0, %v4878
    %v4880 = vpop.f32.mrb[0].mxu0
    %4881 = vmatprep.mubr.f32.mxu0 0.0
    %4882 = vmatmul.mubr.f32.gmra.mrb[0].mxu0 %v1541
    %v4883 = vpop.f32.mrb[0].mxu0
    %v4884 = vadd.f32 0.0, %v4883
    %v4885 = vpop.f32.mrb[0].mxu0
    %4886 = vmatprep.mubr.f32.mxu0 0.0
    %4887 = vmatmul.mubr.f32.gmra.mrb[0].mxu0 %v1542
    %v4888 = vpop.f32.mrb[0].mxu0
    %v4889 = vadd.f32 0.0, %v4888
    %v4890 = vpop.f32.mrb[0].mxu0
    %4891 = vmatprep.mubr.f32.mxu0 0.0
    %4892 = vmatmul.mubr.f32.gmra.mrb[0].mxu0 %v1543
    %v4893 = vpop.f32.mrb[0].mxu0
    %v4894 = vadd.f32 0.0, %v4893
    %v4895 = vpop.f32.mrb[0].mxu0
    %4896 = vmatprep.mubr.f32.mxu0 0.0
    %4897 = vmatmul.mubr.f32.gmra.mrb[0].mxu0 %v1544
    %v4898 = vpop.f32.mrb[0].mxu0
    %v4899 = vadd.f32 0.0, %v4898
    %v4900 = vpop.f32.mrb[0].mxu0
    %4901 = vmatprep.mubr.f32.mxu0 0.0
    %4902 = vmatmul.mubr.f32.gmra.mrb[0].mxu0 %v1545
    %v4903 = vpop.f32.mrb[0].mxu0
    %v4904 = vadd.f32 0.0, %v4903
    %v4905 = vpop.f32.mrb[0].mxu0
    %4906 = vmatprep.mubr.f32.mxu0 0.0
    %4907 = vmatmul.mubr.f32.gmra.mrb[0].mxu0 %v1546
    %v4908 = vpop.f32.mrb[0].mxu0
    %v4909 = vadd.f32 0.0, %v4908
    %v4910 = vpop.f32.mrb[0].mxu0
    %4911 = vmatprep.mubr.f32.mxu0 0.0
    %4912 = vmatmul.mubr.f32.gmra.mrb[0].mxu0 %v1547
    %v4913 = vpop.f32.mrb[0].mxu0
    %v4914 = vadd.f32 0.0, %v4913
    %v4915 = vpop.f32.mrb[0].mxu0
    %4916 = vmatprep.mubr.f32.mxu0 0.0
    %4917 = vmatmul.mubr.f32.gmra.mrb[0].mxu0 %v1548
    %v4918 = vpop.f32.mrb[0].mxu0
    %v4919 = vadd.f32 0.0, %v4918
    %v4920 = vpop.f32.mrb[0].mxu0
    %4921 = vmatprep.mubr.f32.mxu0 0.0
    %4922 = vmatmul.mubr.f32.gmra.mrb[0].mxu0 %v1549
    %v4923 = vpop.f32.mrb[0].mxu0
    %v4924 = vadd.f32 0.0, %v4923
    %v4925 = vpop.f32.mrb[0].mxu0
    %4926 = vmatprep.mubr.f32.mxu0 0.0
    %4927 = vmatmul.mubr.f32.gmra.mrb[0].mxu0 %v1550
    %v4928 = vpop.f32.mrb[0].mxu0
    %v4929 = vadd.f32 0.0, %v4928
    %v4930 = vpop.f32.mrb[0].mxu0
    %4931 = vmatprep.mubr.f32.mxu0 0.0
    %4932 = vmatmul.mubr.f32.gmra.mrb[0].mxu0 %v1551
    %v4933 = vpop.f32.mrb[0].mxu0
    %v4934 = vadd.f32 0.0, %v4933
    %v4935 = vpop.f32.mrb[0].mxu0
    %4936 = vmatprep.mubr.f32.mxu0 0.0
    %4937 = vmatmul.mubr.f32.gmra.mrb[0].mxu0 %v1552
    %v4938 = vpop.f32.mrb[0].mxu0
    %v4939 = vadd.f32 0.0, %v4938
    %v4940 = vpop.f32.mrb[0].mxu0
    %4941 = vmatprep.mubr.f32.mxu0 0.0
    %4942 = vmatmul.mubr.f32.gmra.mrb[0].mxu0 %v1553
    %v4943 = vpop.f32.mrb[0].mxu0
    %v4944 = vadd.f32 0.0, %v4943
    %v4945 = vpop.f32.mrb[0].mxu0
    %4946 = vmatprep.mubr.f32.mxu0 0.0
    %4947 = vmatmul.mubr.f32.gmra.mrb[0].mxu0 %v1554
    %v4948 = vpop.f32.mrb[0].mxu0
    %v4949 = vadd.f32 0.0, %v4948
    %v4950 = vpop.f32.mrb[0].mxu0
    %4951 = vmatprep.mubr.f32.mxu0 0.0
    %4952 = vmatmul.mubr.f32.gmra.mrb[0].mxu0 %v1555
    %v4953 = vpop.f32.mrb[0].mxu0
    %v4954 = vadd.f32 0.0, %v4953
    %v4955 = vpop.f32.mrb[0].mxu0
    %4956 = vmatprep.mubr.f32.mxu0 0.0
    %4957 = vmatmul.mubr.f32.gmra.mrb[0].mxu0 %v1556
    %v4958 = vpop.f32.mrb[0].mxu0
    %v4959 = vadd.f32 0.0, %v4958
    %v4960 = vpop.f32.mrb[0].mxu0
    %4961 = vmatprep.mubr.f32.mxu0 0.0
    %4962 = vmatmul.mubr.f32.gmra.mrb[0].mxu0 %v1557
    %v4963 = vpop.f32.mrb[0].mxu0
    %v4964 = vadd.f32 0.0, %v4963
    %v4965 = vpop.f32.mrb[0].mxu0
    %4966 = vmatprep.mubr.f32.mxu0 0.0
    %4967 = vmatmul.mubr.f32.gmra.mrb[0].mxu0 %v1558
    %v4968 = vpop.f32.mrb[0].mxu0
    %v4969 = vadd.f32 0.0, %v4968
    %v4970 = vpop.f32.mrb[0].mxu0
    %4971 = vmatprep.mubr.f32.mxu0 0.0
    %4972 = vmatmul.mubr.f32.gmra.mrb[0].mxu0 %v1559
    %v4973 = vpop.f32.mrb[0].mxu0
    %v4974 = vadd.f32 0.0, %v4973
    %v4975 = vpop.f32.mrb[0].mxu0
    %4976 = vmatprep.mubr.f32.mxu0 0.0
    %4977 = vmatmul.mubr.f32.gmra.mrb[0].mxu0 %v1560
    %v4978 = vpop.f32.mrb[0].mxu0
    %v4979 = vadd.f32 0.0, %v4978
    %v4980 = vpop.f32.mrb[0].mxu0
    %4981 = vmatprep.mubr.f32.mxu0 0.0
    %4982 = vmatmul.mubr.f32.gmra.mrb[0].mxu0 %v1561
    %v4983 = vpop.f32.mrb[0].mxu0
    %v4984 = vadd.f32 0.0, %v4983
    %v4985 = vpop.f32.mrb[0].mxu0
    %4986 = vmatprep.mubr.f32.mxu0 0.0
    %4987 = vmatmul.mubr.f32.gmra.mrb[0].mxu0 %v1562
    %v4988 = vpop.f32.mrb[0].mxu0
    %v4989 = vadd.f32 0.0, %v4988
    %v4990 = vpop.f32.mrb[0].mxu0
    %4991 = vmatprep.mubr.f32.mxu0 0.0
    %4992 = vmatmul.mubr.f32.gmra.mrb[0].mxu0 %v1563
    %v4993 = vpop.f32.mrb[0].mxu0
    %v4994 = vadd.f32 0.0, %v4993
    %v4995 = vpop.f32.mrb[0].mxu0
    %4996 = vmatprep.mubr.f32.mxu0 0.0
    %4997 = vmatmul.mubr.f32.gmra.mrb[0].mxu0 %v1564
    %v4998 = vpop.f32.mrb[0].mxu0
    %v4999 = vadd.f32 0.0, %v4998
    %v5000 = vpop.f32.mrb[0].mxu0
    %5001 = vmatprep.mubr.f32.mxu0 0.0
    %5002 = vmatmul.mubr.f32.gmra.mrb[0].mxu0 %v1565
    %v5003 = vpop.f32.mrb[0].mxu0
    %v5004 = vadd.f32 0.0, %v5003
    %v5005 = vpop.f32.mrb[0].mxu0
    %5006 = vmatprep.mubr.f32.mxu0 0.0
    %5007 = vmatmul.mubr.f32.gmra.mrb[0].mxu0 %v1566
    %v5008 = vpop.f32.mrb[0].mxu0
    %v5009 = vadd.f32 0.0, %v5008
    %v5010 = vpop.f32.mrb[0].mxu0
    %5011 = vmatprep.mubr.f32.mxu0 0.0
    %5012 = vmatmul.mubr.f32.gmra.mrb[0].mxu0 %v1567
    %v5013 = vpop.f32.mrb[0].mxu0
    %v5014 = vadd.f32 0.0, %v5013
    %v5015 = vpop.f32.mrb[0].mxu0
    %5016 = vmatprep.mubr.f32.mxu0 0.0
    %5017 = vmatmul.mubr.f32.gmra.mrb[0].mxu0 %v1568
    %v5018 = vpop.f32.mrb[0].mxu0
    %v5019 = vadd.f32 0.0, %v5018
    %v5020 = vpop.f32.mrb[0].mxu0
    %5021 = vmatprep.mubr.f32.mxu0 0.0
    %5022 = vmatmul.mubr.f32.gmra.mrb[0].mxu0 %v1569
    %v5023 = vpop.f32.mrb[0].mxu0
    %v5024 = vadd.f32 0.0, %v5023
    %v5025 = vpop.f32.mrb[0].mxu0
    %5026 = vmatprep.mubr.f32.mxu0 0.0
    %5027 = vmatmul.mubr.f32.gmra.mrb[0].mxu0 %v1570
    %v5028 = vpop.f32.mrb[0].mxu0
    %v5029 = vadd.f32 0.0, %v5028
    %v5030 = vpop.f32.mrb[0].mxu0
    %5031 = vmatprep.mubr.f32.mxu0 0.0
    %5032 = vmatmul.mubr.f32.gmra.mrb[0].mxu0 %v1571
    %v5033 = vpop.f32.mrb[0].mxu0
    %v5034 = vadd.f32 0.0, %v5033
    %v5035 = vpop.f32.mrb[0].mxu0
    %5036 = vmatprep.mubr.f32.mxu0 0.0
    %5037 = vmatmul.mubr.f32.gmra.mrb[0].mxu0 %v1572
    %v5038 = vpop.f32.mrb[0].mxu0
    %v5039 = vadd.f32 0.0, %v5038
    %v5040 = vpop.f32.mrb[0].mxu0
    %5041 = vmatprep.mubr.f32.mxu0 0.0
    %5042 = vmatmul.mubr.f32.gmra.mrb[0].mxu0 %v1573
    %v5043 = vpop.f32.mrb[0].mxu0
    %v5044 = vadd.f32 0.0, %v5043
    %v5045 = vpop.f32.mrb[0].mxu0
    %5046 = vmatprep.mubr.f32.mxu0 0.0
    %5047 = vmatmul.mubr.f32.gmra.mrb[0].mxu0 %v1574
    %v5048 = vpop.f32.mrb[0].mxu0
    %v5049 = vadd.f32 0.0, %v5048
    %v5050 = vpop.f32.mrb[0].mxu0
    %5051 = vdwg.mxu0
    %v5052 = vsel %vm2151, %v2938, 0.0
    %v5053 = vsel %vm2152, %v2940, 0.0
    %v5054 = vsel %vm2153, %v3387, 0.0
    %v5055 = vsel %vm2154, %v3389, 0.0
    %v5056 = vsel %vm2155, %v3836, 0.0
    %v5057 = vsel %vm2156, %v3838, 0.0
    %v5058 = vsel %vm2157, %v4285, 0.0
    %v5059 = vsel %vm2158, %v4287, 0.0
    %v5060 = vsel %vm2159, %v4734, 0.0
    %v5061 = vsel %vm2160, %v2944, 0.0
    %v5062 = vsel %vm2161, %v2946, 0.0
    %v5063 = vsel %vm2162, %v3393, 0.0
    %v5064 = vsel %vm2163, %v3395, 0.0
    %v5065 = vsel %vm2164, %v3842, 0.0
    %v5066 = vsel %vm2165, %v3844, 0.0
    %v5067 = vsel %vm2166, %v4291, 0.0
    %v5068 = vsel %vm2167, %v4293, 0.0
    %v5069 = vsel %vm2168, %v4739, 0.0
    %v5070 = vsel %vm2169, %v2950, 0.0
    %v5071 = vsel %vm2170, %v2952, 0.0
    %v5072 = vsel %vm2171, %v3399, 0.0
    %v5073 = vsel %vm2172, %v3401, 0.0
    %v5074 = vsel %vm2173, %v3848, 0.0
    %v5075 = vsel %vm2174, %v3850, 0.0
    %v5076 = vsel %vm2175, %v4297, 0.0
    %v5077 = vsel %vm2176, %v4299, 0.0
    %v5078 = vsel %vm2177, %v4744, 0.0
    %v5079 = vsel %vm2178, %v2956, 0.0
    %v5080 = vsel %vm2179, %v2958, 0.0
    %v5081 = vsel %vm2180, %v3405, 0.0
    %v5082 = vsel %vm2181, %v3407, 0.0
    %v5083 = vsel %vm2182, %v3854, 0.0
    %v5084 = vsel %vm2183, %v3856, 0.0
    %v5085 = vsel %vm2184, %v4303, 0.0
    %v5086 = vsel %vm2185, %v4305, 0.0
    %v5087 = vsel %vm2186, %v4749, 0.0
    %v5088 = vsel %vm2187, %v2962, 0.0
    %v5089 = vsel %vm2188, %v2964, 0.0
    %v5090 = vsel %vm2189, %v3411, 0.0
    %v5091 = vsel %vm2190, %v3413, 0.0
    %v5092 = vsel %vm2191, %v3860, 0.0
    %v5093 = vsel %vm2192, %v3862, 0.0
    %v5094 = vsel %vm2193, %v4309, 0.0
    %v5095 = vsel %vm2194, %v4311, 0.0
    %v5096 = vsel %vm2195, %v4754, 0.0
    %v5097 = vsel %vm2196, %v2968, 0.0
    %v5098 = vsel %vm2197, %v2970, 0.0
    %v5099 = vsel %vm2198, %v3417, 0.0
    %v5100 = vsel %vm2199, %v3419, 0.0
    %v5101 = vsel %vm2200, %v3866, 0.0
    %v5102 = vsel %vm2201, %v3868, 0.0
    %v5103 = vsel %vm2202, %v4315, 0.0
    %v5104 = vsel %vm2203, %v4317, 0.0
    %v5105 = vsel %vm2204, %v4759, 0.0
    %v5106 = vsel %vm2205, %v2974, 0.0
    %v5107 = vsel %vm2206, %v2976, 0.0
    %v5108 = vsel %vm2207, %v3423, 0.0
    %v5109 = vsel %vm2208, %v3425, 0.0
    %v5110 = vsel %vm2209, %v3872, 0.0
    %v5111 = vsel %vm2210, %v3874, 0.0
    %v5112 = vsel %vm2211, %v4321, 0.0
    %v5113 = vsel %vm2212, %v4323, 0.0
    %v5114 = vsel %vm2213, %v4764, 0.0
    %v5115 = vsel %vm2214, %v2980, 0.0
    %v5116 = vsel %vm2215, %v2982, 0.0
    %v5117 = vsel %vm2216, %v3429, 0.0
    %v5118 = vsel %vm2217, %v3431, 0.0
    %v5119 = vsel %vm2218, %v3878, 0.0
    %v5120 = vsel %vm2219, %v3880, 0.0
    %v5121 = vsel %vm2220, %v4327, 0.0
    %v5122 = vsel %vm2221, %v4329, 0.0
    %v5123 = vsel %vm2222, %v4769, 0.0
    %v5124 = vsel %vm2223, %v2986, 0.0
    %v5125 = vsel %vm2224, %v2988, 0.0
    %v5126 = vsel %vm2225, %v3435, 0.0
    %v5127 = vsel %vm2226, %v3437, 0.0
    %v5128 = vsel %vm2227, %v3884, 0.0
    %v5129 = vsel %vm2228, %v3886, 0.0
    %v5130 = vsel %vm2229, %v4333, 0.0
    %v5131 = vsel %vm2230, %v4335, 0.0
    %v5132 = vsel %vm2231, %v4774, 0.0
    %v5133 = vsel %vm2232, %v2992, 0.0
    %v5134 = vsel %vm2233, %v2994, 0.0
    %v5135 = vsel %vm2234, %v3441, 0.0
    %v5136 = vsel %vm2235, %v3443, 0.0
    %v5137 = vsel %vm2236, %v3890, 0.0
    %v5138 = vsel %vm2237, %v3892, 0.0
    %v5139 = vsel %vm2238, %v4339, 0.0
    %v5140 = vsel %vm2239, %v4341, 0.0
    %v5141 = vsel %vm2240, %v4779, 0.0
    %v5142 = vsel %vm2241, %v2998, 0.0
    %v5143 = vsel %vm2242, %v3000, 0.0
    %v5144 = vsel %vm2243, %v3447, 0.0
    %v5145 = vsel %vm2244, %v3449, 0.0
    %v5146 = vsel %vm2245, %v3896, 0.0
    %v5147 = vsel %vm2246, %v3898, 0.0
    %v5148 = vsel %vm2247, %v4345, 0.0
    %v5149 = vsel %vm2248, %v4347, 0.0
    %v5150 = vsel %vm2249, %v4784, 0.0
    %v5151 = vsel %vm2250, %v3004, 0.0
    %v5152 = vsel %vm2251, %v3006, 0.0
    %v5153 = vsel %vm2252, %v3453, 0.0
    %v5154 = vsel %vm2253, %v3455, 0.0
    %v5155 = vsel %vm2254, %v3902, 0.0
    %v5156 = vsel %vm2255, %v3904, 0.0
    %v5157 = vsel %vm2256, %v4351, 0.0
    %v5158 = vsel %vm2257, %v4353, 0.0
    %v5159 = vsel %vm2258, %v4789, 0.0
    %v5160 = vsel %vm2259, %v3010, 0.0
    %v5161 = vsel %vm2260, %v3012, 0.0
    %v5162 = vsel %vm2261, %v3459, 0.0
    %v5163 = vsel %vm2262, %v3461, 0.0
    %v5164 = vsel %vm2263, %v3908, 0.0
    %v5165 = vsel %vm2264, %v3910, 0.0
    %v5166 = vsel %vm2265, %v4357, 0.0
    %v5167 = vsel %vm2266, %v4359, 0.0
    %v5168 = vsel %vm2267, %v4794, 0.0
    %v5169 = vsel %vm2268, %v3016, 0.0
    %v5170 = vsel %vm2269, %v3018, 0.0
    %v5171 = vsel %vm2270, %v3465, 0.0
    %v5172 = vsel %vm2271, %v3467, 0.0
    %v5173 = vsel %vm2272, %v3914, 0.0
    %v5174 = vsel %vm2273, %v3916, 0.0
    %v5175 = vsel %vm2274, %v4363, 0.0
    %v5176 = vsel %vm2275, %v4365, 0.0
    %v5177 = vsel %vm2276, %v4799, 0.0
    %v5178 = vsel %vm2277, %v3022, 0.0
    %v5179 = vsel %vm2278, %v3024, 0.0
    %v5180 = vsel %vm2279, %v3471, 0.0
    %v5181 = vsel %vm2280, %v3473, 0.0
    %v5182 = vsel %vm2281, %v3920, 0.0
    %v5183 = vsel %vm2282, %v3922, 0.0
    %v5184 = vsel %vm2283, %v4369, 0.0
    %v5185 = vsel %vm2284, %v4371, 0.0
    %v5186 = vsel %vm2285, %v4804, 0.0
    %v5187 = vsel %vm2286, %v3028, 0.0
    %v5188 = vsel %vm2287, %v3030, 0.0
    %v5189 = vsel %vm2288, %v3477, 0.0
    %v5190 = vsel %vm2289, %v3479, 0.0
    %v5191 = vsel %vm2290, %v3926, 0.0
    %v5192 = vsel %vm2291, %v3928, 0.0
    %v5193 = vsel %vm2292, %v4375, 0.0
    %v5194 = vsel %vm2293, %v4377, 0.0
    %v5195 = vsel %vm2294, %v4809, 0.0
    %v5196 = vsel %vm2295, %v3034, 0.0
    %v5197 = vsel %vm2296, %v3036, 0.0
    %v5198 = vsel %vm2297, %v3483, 0.0
    %v5199 = vsel %vm2298, %v3485, 0.0
    %v5200 = vsel %vm2299, %v3932, 0.0
    %v5201 = vsel %vm2300, %v3934, 0.0
    %v5202 = vsel %vm2301, %v4381, 0.0
    %v5203 = vsel %vm2302, %v4383, 0.0
    %v5204 = vsel %vm2303, %v4814, 0.0
    %v5205 = vsel %vm2304, %v3040, 0.0
    %v5206 = vsel %vm2305, %v3042, 0.0
    %v5207 = vsel %vm2306, %v3489, 0.0
    %v5208 = vsel %vm2307, %v3491, 0.0
    %v5209 = vsel %vm2308, %v3938, 0.0
    %v5210 = vsel %vm2309, %v3940, 0.0
    %v5211 = vsel %vm2310, %v4387, 0.0
    %v5212 = vsel %vm2311, %v4389, 0.0
    %v5213 = vsel %vm2312, %v4819, 0.0
    %v5214 = vsel %vm2313, %v3046, 0.0
    %v5215 = vsel %vm2314, %v3048, 0.0
    %v5216 = vsel %vm2315, %v3495, 0.0
    %v5217 = vsel %vm2316, %v3497, 0.0
    %v5218 = vsel %vm2317, %v3944, 0.0
    %v5219 = vsel %vm2318, %v3946, 0.0
    %v5220 = vsel %vm2319, %v4393, 0.0
    %v5221 = vsel %vm2320, %v4395, 0.0
    %v5222 = vsel %vm2321, %v4824, 0.0
    %v5223 = vsel %vm2322, %v3052, 0.0
    %v5224 = vsel %vm2323, %v3054, 0.0
    %v5225 = vsel %vm2324, %v3501, 0.0
    %v5226 = vsel %vm2325, %v3503, 0.0
    %v5227 = vsel %vm2326, %v3950, 0.0
    %v5228 = vsel %vm2327, %v3952, 0.0
    %v5229 = vsel %vm2328, %v4399, 0.0
    %v5230 = vsel %vm2329, %v4401, 0.0
    %v5231 = vsel %vm2330, %v4829, 0.0
    %v5232 = vsel %vm2331, %v3058, 0.0
    %v5233 = vsel %vm2332, %v3060, 0.0
    %v5234 = vsel %vm2333, %v3507, 0.0
    %v5235 = vsel %vm2334, %v3509, 0.0
    %v5236 = vsel %vm2335, %v3956, 0.0
    %v5237 = vsel %vm2336, %v3958, 0.0
    %v5238 = vsel %vm2337, %v4405, 0.0
    %v5239 = vsel %vm2338, %v4407, 0.0
    %v5240 = vsel %vm2339, %v4834, 0.0
    %v5241 = vsel %vm2340, %v3064, 0.0
    %v5242 = vsel %vm2341, %v3066, 0.0
    %v5243 = vsel %vm2342, %v3513, 0.0
    %v5244 = vsel %vm2343, %v3515, 0.0
    %v5245 = vsel %vm2344, %v3962, 0.0
    %v5246 = vsel %vm2345, %v3964, 0.0
    %v5247 = vsel %vm2346, %v4411, 0.0
    %v5248 = vsel %vm2347, %v4413, 0.0
    %v5249 = vsel %vm2348, %v4839, 0.0
    %v5250 = vsel %vm2349, %v3070, 0.0
    %v5251 = vsel %vm2350, %v3072, 0.0
    %v5252 = vsel %vm2351, %v3519, 0.0
    %v5253 = vsel %vm2352, %v3521, 0.0
    %v5254 = vsel %vm2353, %v3968, 0.0
    %v5255 = vsel %vm2354, %v3970, 0.0
    %v5256 = vsel %vm2355, %v4417, 0.0
    %v5257 = vsel %vm2356, %v4419, 0.0
    %v5258 = vsel %vm2357, %v4844, 0.0
    %v5259 = vsel %vm2358, %v3076, 0.0
    %v5260 = vsel %vm2359, %v3078, 0.0
    %v5261 = vsel %vm2360, %v3525, 0.0
    %v5262 = vsel %vm2361, %v3527, 0.0
    %v5263 = vsel %vm2362, %v3974, 0.0
    %v5264 = vsel %vm2363, %v3976, 0.0
    %v5265 = vsel %vm2364, %v4423, 0.0
    %v5266 = vsel %vm2365, %v4425, 0.0
    %v5267 = vsel %vm2366, %v4849, 0.0
    %v5268 = vsel %vm2367, %v3082, 0.0
    %v5269 = vsel %vm2368, %v3084, 0.0
    %v5270 = vsel %vm2369, %v3531, 0.0
    %v5271 = vsel %vm2370, %v3533, 0.0
    %v5272 = vsel %vm2371, %v3980, 0.0
    %v5273 = vsel %vm2372, %v3982, 0.0
    %v5274 = vsel %vm2373, %v4429, 0.0
    %v5275 = vsel %vm2374, %v4431, 0.0
    %v5276 = vsel %vm2375, %v4854, 0.0
    %v5277 = vsel %vm2376, %v3088, 0.0
    %v5278 = vsel %vm2377, %v3090, 0.0
    %v5279 = vsel %vm2378, %v3537, 0.0
    %v5280 = vsel %vm2379, %v3539, 0.0
    %v5281 = vsel %vm2380, %v3986, 0.0
    %v5282 = vsel %vm2381, %v3988, 0.0
    %v5283 = vsel %vm2382, %v4435, 0.0
    %v5284 = vsel %vm2383, %v4437, 0.0
    %v5285 = vsel %vm2384, %v4859, 0.0
    %v5286 = vsel %vm2385, %v3094, 0.0
    %v5287 = vsel %vm2386, %v3096, 0.0
    %v5288 = vsel %vm2387, %v3543, 0.0
    %v5289 = vsel %vm2388, %v3545, 0.0
    %v5290 = vsel %vm2389, %v3992, 0.0
    %v5291 = vsel %vm2390, %v3994, 0.0
    %v5292 = vsel %vm2391, %v4441, 0.0
    %v5293 = vsel %vm2392, %v4443, 0.0
    %v5294 = vsel %vm2393, %v4864, 0.0
    %v5295 = vsel %vm2394, %v3100, 0.0
    %v5296 = vsel %vm2395, %v3102, 0.0
    %v5297 = vsel %vm2396, %v3549, 0.0
    %v5298 = vsel %vm2397, %v3551, 0.0
    %v5299 = vsel %vm2398, %v3998, 0.0
    %v5300 = vsel %vm2399, %v4000, 0.0
    %v5301 = vsel %vm2400, %v4447, 0.0
    %v5302 = vsel %vm2401, %v4449, 0.0
    %v5303 = vsel %vm2402, %v4869, 0.0
    %v5304 = vsel %vm2403, %v3106, 0.0
    %v5305 = vsel %vm2404, %v3108, 0.0
    %v5306 = vsel %vm2405, %v3555, 0.0
    %v5307 = vsel %vm2406, %v3557, 0.0
    %v5308 = vsel %vm2407, %v4004, 0.0
    %v5309 = vsel %vm2408, %v4006, 0.0
    %v5310 = vsel %vm2409, %v4453, 0.0
    %v5311 = vsel %vm2410, %v4455, 0.0
    %v5312 = vsel %vm2411, %v4874, 0.0
    %v5313 = vsel %vm2412, %v3112, 0.0
    %v5314 = vsel %vm2413, %v3114, 0.0
    %v5315 = vsel %vm2414, %v3561, 0.0
    %v5316 = vsel %vm2415, %v3563, 0.0
    %v5317 = vsel %vm2416, %v4010, 0.0
    %v5318 = vsel %vm2417, %v4012, 0.0
    %v5319 = vsel %vm2418, %v4459, 0.0
    %v5320 = vsel %vm2419, %v4461, 0.0
    %v5321 = vsel %vm2420, %v4879, 0.0
    %v5322 = vsel %vm2421, %v3118, 0.0
    %v5323 = vsel %vm2422, %v3120, 0.0
    %v5324 = vsel %vm2423, %v3567, 0.0
    %v5325 = vsel %vm2424, %v3569, 0.0
    %v5326 = vsel %vm2425, %v4016, 0.0
    %v5327 = vsel %vm2426, %v4018, 0.0
    %v5328 = vsel %vm2427, %v4465, 0.0
    %v5329 = vsel %vm2428, %v4467, 0.0
    %v5330 = vsel %vm2429, %v4884, 0.0
    %v5331 = vsel %vm2430, %v3124, 0.0
    %v5332 = vsel %vm2431, %v3126, 0.0
    %v5333 = vsel %vm2432, %v3573, 0.0
    %v5334 = vsel %vm2433, %v3575, 0.0
    %v5335 = vsel %vm2434, %v4022, 0.0
    %v5336 = vsel %vm2435, %v4024, 0.0
    %v5337 = vsel %vm2436, %v4471, 0.0
    %v5338 = vsel %vm2437, %v4473, 0.0
    %v5339 = vsel %vm2438, %v4889, 0.0
    %v5340 = vsel %vm2439, %v3130, 0.0
    %v5341 = vsel %vm2440, %v3132, 0.0
    %v5342 = vsel %vm2441, %v3579, 0.0
    %v5343 = vsel %vm2442, %v3581, 0.0
    %v5344 = vsel %vm2443, %v4028, 0.0
    %v5345 = vsel %vm2444, %v4030, 0.0
    %v5346 = vsel %vm2445, %v4477, 0.0
    %v5347 = vsel %vm2446, %v4479, 0.0
    %v5348 = vsel %vm2447, %v4894, 0.0
    %v5349 = vsel %vm2448, %v3136, 0.0
    %v5350 = vsel %vm2449, %v3138, 0.0
    %v5351 = vsel %vm2450, %v3585, 0.0
    %v5352 = vsel %vm2451, %v3587, 0.0
    %v5353 = vsel %vm2452, %v4034, 0.0
    %v5354 = vsel %vm2453, %v4036, 0.0
    %v5355 = vsel %vm2454, %v4483, 0.0
    %v5356 = vsel %vm2455, %v4485, 0.0
    %v5357 = vsel %vm2456, %v4899, 0.0
    %v5358 = vsel %vm2457, %v3142, 0.0
    %v5359 = vsel %vm2458, %v3144, 0.0
    %v5360 = vsel %vm2459, %v3591, 0.0
    %v5361 = vsel %vm2460, %v3593, 0.0
    %v5362 = vsel %vm2461, %v4040, 0.0
    %v5363 = vsel %vm2462, %v4042, 0.0
    %v5364 = vsel %vm2463, %v4489, 0.0
    %v5365 = vsel %vm2464, %v4491, 0.0
    %v5366 = vsel %vm2465, %v4904, 0.0
    %v5367 = vsel %vm2466, %v3148, 0.0
    %v5368 = vsel %vm2467, %v3150, 0.0
    %v5369 = vsel %vm2468, %v3597, 0.0
    %v5370 = vsel %vm2469, %v3599, 0.0
    %v5371 = vsel %vm2470, %v4046, 0.0
    %v5372 = vsel %vm2471, %v4048, 0.0
    %v5373 = vsel %vm2472, %v4495, 0.0
    %v5374 = vsel %vm2473, %v4497, 0.0
    %v5375 = vsel %vm2474, %v4909, 0.0
    %v5376 = vsel %vm2475, %v3154, 0.0
    %v5377 = vsel %vm2476, %v3156, 0.0
    %v5378 = vsel %vm2477, %v3603, 0.0
    %v5379 = vsel %vm2478, %v3605, 0.0
    %v5380 = vsel %vm2479, %v4052, 0.0
    %v5381 = vsel %vm2480, %v4054, 0.0
    %v5382 = vsel %vm2481, %v4501, 0.0
    %v5383 = vsel %vm2482, %v4503, 0.0
    %v5384 = vsel %vm2483, %v4914, 0.0
    %v5385 = vsel %vm2484, %v3160, 0.0
    %v5386 = vsel %vm2485, %v3162, 0.0
    %v5387 = vsel %vm2486, %v3609, 0.0
    %v5388 = vsel %vm2487, %v3611, 0.0
    %v5389 = vsel %vm2488, %v4058, 0.0
    %v5390 = vsel %vm2489, %v4060, 0.0
    %v5391 = vsel %vm2490, %v4507, 0.0
    %v5392 = vsel %vm2491, %v4509, 0.0
    %v5393 = vsel %vm2492, %v4919, 0.0
    %v5394 = vsel %vm2493, %v3166, 0.0
    %v5395 = vsel %vm2494, %v3168, 0.0
    %v5396 = vsel %vm2495, %v3615, 0.0
    %v5397 = vsel %vm2496, %v3617, 0.0
    %v5398 = vsel %vm2497, %v4064, 0.0
    %v5399 = vsel %vm2498, %v4066, 0.0
    %v5400 = vsel %vm2499, %v4513, 0.0
    %v5401 = vsel %vm2500, %v4515, 0.0
    %v5402 = vsel %vm2501, %v4924, 0.0
    %v5403 = vsel %vm2502, %v3172, 0.0
    %v5404 = vsel %vm2503, %v3174, 0.0
    %v5405 = vsel %vm2504, %v3621, 0.0
    %v5406 = vsel %vm2505, %v3623, 0.0
    %v5407 = vsel %vm2506, %v4070, 0.0
    %v5408 = vsel %vm2507, %v4072, 0.0
    %v5409 = vsel %vm2508, %v4519, 0.0
    %v5410 = vsel %vm2509, %v4521, 0.0
    %v5411 = vsel %vm2510, %v4929, 0.0
    %v5412 = vsel %vm2511, %v3178, 0.0
    %v5413 = vsel %vm2512, %v3180, 0.0
    %v5414 = vsel %vm2513, %v3627, 0.0
    %v5415 = vsel %vm2514, %v3629, 0.0
    %v5416 = vsel %vm2515, %v4076, 0.0
    %v5417 = vsel %vm2516, %v4078, 0.0
    %v5418 = vsel %vm2517, %v4525, 0.0
    %v5419 = vsel %vm2518, %v4527, 0.0
    %v5420 = vsel %vm2519, %v4934, 0.0
    %v5421 = vsel %vm2520, %v3184, 0.0
    %v5422 = vsel %vm2521, %v3186, 0.0
    %v5423 = vsel %vm2522, %v3633, 0.0
    %v5424 = vsel %vm2523, %v3635, 0.0
    %v5425 = vsel %vm2524, %v4082, 0.0
    %v5426 = vsel %vm2525, %v4084, 0.0
    %v5427 = vsel %vm2526, %v4531, 0.0
    %v5428 = vsel %vm2527, %v4533, 0.0
    %v5429 = vsel %vm2528, %v4939, 0.0
    %v5430 = vsel %vm2529, %v3190, 0.0
    %v5431 = vsel %vm2530, %v3192, 0.0
    %v5432 = vsel %vm2531, %v3639, 0.0
    %v5433 = vsel %vm2532, %v3641, 0.0
    %v5434 = vsel %vm2533, %v4088, 0.0
    %v5435 = vsel %vm2534, %v4090, 0.0
    %v5436 = vsel %vm2535, %v4537, 0.0
    %v5437 = vsel %vm2536, %v4539, 0.0
    %v5438 = vsel %vm2537, %v4944, 0.0
    %v5439 = vsel %vm2538, %v3196, 0.0
    %v5440 = vsel %vm2539, %v3198, 0.0
    %v5441 = vsel %vm2540, %v3645, 0.0
    %v5442 = vsel %vm2541, %v3647, 0.0
    %v5443 = vsel %vm2542, %v4094, 0.0
    %v5444 = vsel %vm2543, %v4096, 0.0
    %v5445 = vsel %vm2544, %v4543, 0.0
    %v5446 = vsel %vm2545, %v4545, 0.0
    %v5447 = vsel %vm2546, %v4949, 0.0
    %v5448 = vsel %vm2547, %v3202, 0.0
    %v5449 = vsel %vm2548, %v3204, 0.0
    %v5450 = vsel %vm2549, %v3651, 0.0
    %v5451 = vsel %vm2550, %v3653, 0.0
    %v5452 = vsel %vm2551, %v4100, 0.0
    %v5453 = vsel %vm2552, %v4102, 0.0
    %v5454 = vsel %vm2553, %v4549, 0.0
    %v5455 = vsel %vm2554, %v4551, 0.0
    %v5456 = vsel %vm2555, %v4954, 0.0
    %v5457 = vsel %vm2556, %v3208, 0.0
    %v5458 = vsel %vm2557, %v3210, 0.0
    %v5459 = vsel %vm2558, %v3657, 0.0
    %v5460 = vsel %vm2559, %v3659, 0.0
    %v5461 = vsel %vm2560, %v4106, 0.0
    %v5462 = vsel %vm2561, %v4108, 0.0
    %v5463 = vsel %vm2562, %v4555, 0.0
    %v5464 = vsel %vm2563, %v4557, 0.0
    %v5465 = vsel %vm2564, %v4959, 0.0
    %v5466 = vsel %vm2565, %v3214, 0.0
    %v5467 = vsel %vm2566, %v3216, 0.0
    %v5468 = vsel %vm2567, %v3663, 0.0
    %v5469 = vsel %vm2568, %v3665, 0.0
    %v5470 = vsel %vm2569, %v4112, 0.0
    %v5471 = vsel %vm2570, %v4114, 0.0
    %v5472 = vsel %vm2571, %v4561, 0.0
    %v5473 = vsel %vm2572, %v4563, 0.0
    %v5474 = vsel %vm2573, %v4964, 0.0
    %v5475 = vsel %vm2574, %v3220, 0.0
    %v5476 = vsel %vm2575, %v3222, 0.0
    %v5477 = vsel %vm2576, %v3669, 0.0
    %v5478 = vsel %vm2577, %v3671, 0.0
    %v5479 = vsel %vm2578, %v4118, 0.0
    %v5480 = vsel %vm2579, %v4120, 0.0
    %v5481 = vsel %vm2580, %v4567, 0.0
    %v5482 = vsel %vm2581, %v4569, 0.0
    %v5483 = vsel %vm2582, %v4969, 0.0
    %v5484 = vsel %vm2583, %v3226, 0.0
    %v5485 = vsel %vm2584, %v3228, 0.0
    %v5486 = vsel %vm2585, %v3675, 0.0
    %v5487 = vsel %vm2586, %v3677, 0.0
    %v5488 = vsel %vm2587, %v4124, 0.0
    %v5489 = vsel %vm2588, %v4126, 0.0
    %v5490 = vsel %vm2589, %v4573, 0.0
    %v5491 = vsel %vm2590, %v4575, 0.0
    %v5492 = vsel %vm2591, %v4974, 0.0
    %v5493 = vsel %vm2592, %v3232, 0.0
    %v5494 = vsel %vm2593, %v3234, 0.0
    %v5495 = vsel %vm2594, %v3681, 0.0
    %v5496 = vsel %vm2595, %v3683, 0.0
    %v5497 = vsel %vm2596, %v4130, 0.0
    %v5498 = vsel %vm2597, %v4132, 0.0
    %v5499 = vsel %vm2598, %v4579, 0.0
    %v5500 = vsel %vm2599, %v4581, 0.0
    %v5501 = vsel %vm2600, %v4979, 0.0
    %v5502 = vsel %vm2601, %v3238, 0.0
    %v5503 = vsel %vm2602, %v3240, 0.0
    %v5504 = vsel %vm2603, %v3687, 0.0
    %v5505 = vsel %vm2604, %v3689, 0.0
    %v5506 = vsel %vm2605, %v4136, 0.0
    %v5507 = vsel %vm2606, %v4138, 0.0
    %v5508 = vsel %vm2607, %v4585, 0.0
    %v5509 = vsel %vm2608, %v4587, 0.0
    %v5510 = vsel %vm2609, %v4984, 0.0
    %v5511 = vsel %vm2610, %v3244, 0.0
    %v5512 = vsel %vm2611, %v3246, 0.0
    %v5513 = vsel %vm2612, %v3693, 0.0
    %v5514 = vsel %vm2613, %v3695, 0.0
    %v5515 = vsel %vm2614, %v4142, 0.0
    %v5516 = vsel %vm2615, %v4144, 0.0
    %v5517 = vsel %vm2616, %v4591, 0.0
    %v5518 = vsel %vm2617, %v4593, 0.0
    %v5519 = vsel %vm2618, %v4989, 0.0
    %v5520 = vsel %vm2619, %v3250, 0.0
    %v5521 = vsel %vm2620, %v3252, 0.0
    %v5522 = vsel %vm2621, %v3699, 0.0
    %v5523 = vsel %vm2622, %v3701, 0.0
    %v5524 = vsel %vm2623, %v4148, 0.0
    %v5525 = vsel %vm2624, %v4150, 0.0
    %v5526 = vsel %vm2625, %v4597, 0.0
    %v5527 = vsel %vm2626, %v4599, 0.0
    %v5528 = vsel %vm2627, %v4994, 0.0
    %v5529 = vsel %vm2628, %v3256, 0.0
    %v5530 = vsel %vm2629, %v3258, 0.0
    %v5531 = vsel %vm2630, %v3705, 0.0
    %v5532 = vsel %vm2631, %v3707, 0.0
    %v5533 = vsel %vm2632, %v4154, 0.0
    %v5534 = vsel %vm2633, %v4156, 0.0
    %v5535 = vsel %vm2634, %v4603, 0.0
    %v5536 = vsel %vm2635, %v4605, 0.0
    %v5537 = vsel %vm2636, %v4999, 0.0
    %v5538 = vsel %vm2637, %v3262, 0.0
    %v5539 = vsel %vm2638, %v3264, 0.0
    %v5540 = vsel %vm2639, %v3711, 0.0
    %v5541 = vsel %vm2640, %v3713, 0.0
    %v5542 = vsel %vm2641, %v4160, 0.0
    %v5543 = vsel %vm2642, %v4162, 0.0
    %v5544 = vsel %vm2643, %v4609, 0.0
    %v5545 = vsel %vm2644, %v4611, 0.0
    %v5546 = vsel %vm2645, %v5004, 0.0
    %v5547 = vsel %vm2646, %v3268, 0.0
    %v5548 = vsel %vm2647, %v3270, 0.0
    %v5549 = vsel %vm2648, %v3717, 0.0
    %v5550 = vsel %vm2649, %v3719, 0.0
    %v5551 = vsel %vm2650, %v4166, 0.0
    %v5552 = vsel %vm2651, %v4168, 0.0
    %v5553 = vsel %vm2652, %v4615, 0.0
    %v5554 = vsel %vm2653, %v4617, 0.0
    %v5555 = vsel %vm2654, %v5009, 0.0
    %v5556 = vsel %vm2655, %v3274, 0.0
    %v5557 = vsel %vm2656, %v3276, 0.0
    %v5558 = vsel %vm2657, %v3723, 0.0
    %v5559 = vsel %vm2658, %v3725, 0.0
    %v5560 = vsel %vm2659, %v4172, 0.0
    %v5561 = vsel %vm2660, %v4174, 0.0
    %v5562 = vsel %vm2661, %v4621, 0.0
    %v5563 = vsel %vm2662, %v4623, 0.0
    %v5564 = vsel %vm2663, %v5014, 0.0
    %v5565 = vsel %vm2664, %v3280, 0.0
    %v5566 = vsel %vm2665, %v3282, 0.0
    %v5567 = vsel %vm2666, %v3729, 0.0
    %v5568 = vsel %vm2667, %v3731, 0.0
    %v5569 = vsel %vm2668, %v4178, 0.0
    %v5570 = vsel %vm2669, %v4180, 0.0
    %v5571 = vsel %vm2670, %v4627, 0.0
    %v5572 = vsel %vm2671, %v4629, 0.0
    %v5573 = vsel %vm2672, %v5019, 0.0
    %v5574 = vsel %vm2673, %v3286, 0.0
    %v5575 = vsel %vm2674, %v3288, 0.0
    %v5576 = vsel %vm2675, %v3735, 0.0
    %v5577 = vsel %vm2676, %v3737, 0.0
    %v5578 = vsel %vm2677, %v4184, 0.0
    %v5579 = vsel %vm2678, %v4186, 0.0
    %v5580 = vsel %vm2679, %v4633, 0.0
    %v5581 = vsel %vm2680, %v4635, 0.0
    %v5582 = vsel %vm2681, %v5024, 0.0
    %v5583 = vsel %vm2682, %v3292, 0.0
    %v5584 = vsel %vm2683, %v3294, 0.0
    %v5585 = vsel %vm2684, %v3741, 0.0
    %v5586 = vsel %vm2685, %v3743, 0.0
    %v5587 = vsel %vm2686, %v4190, 0.0
    %v5588 = vsel %vm2687, %v4192, 0.0
    %v5589 = vsel %vm2688, %v4639, 0.0
    %v5590 = vsel %vm2689, %v4641, 0.0
    %v5591 = vsel %vm2690, %v5029, 0.0
    %v5592 = vsel %vm2691, %v3298, 0.0
    %v5593 = vsel %vm2692, %v3300, 0.0
    %v5594 = vsel %vm2693, %v3747, 0.0
    %v5595 = vsel %vm2694, %v3749, 0.0
    %v5596 = vsel %vm2695, %v4196, 0.0
    %v5597 = vsel %vm2696, %v4198, 0.0
    %v5598 = vsel %vm2697, %v4645, 0.0
    %v5599 = vsel %vm2698, %v4647, 0.0
    %v5600 = vsel %vm2699, %v5034, 0.0
    %v5601 = vsel %vm2700, %v3304, 0.0
    %v5602 = vsel %vm2701, %v3306, 0.0
    %v5603 = vsel %vm2702, %v3753, 0.0
    %v5604 = vsel %vm2703, %v3755, 0.0
    %v5605 = vsel %vm2704, %v4202, 0.0
    %v5606 = vsel %vm2705, %v4204, 0.0
    %v5607 = vsel %vm2706, %v4651, 0.0
    %v5608 = vsel %vm2707, %v4653, 0.0
    %v5609 = vsel %vm2708, %v5039, 0.0
    %v5610 = vsel %vm2709, %v3310, 0.0
    %v5611 = vsel %vm2710, %v3312, 0.0
    %v5612 = vsel %vm2711, %v3759, 0.0
    %v5613 = vsel %vm2712, %v3761, 0.0
    %v5614 = vsel %vm2713, %v4208, 0.0
    %v5615 = vsel %vm2714, %v4210, 0.0
    %v5616 = vsel %vm2715, %v4657, 0.0
    %v5617 = vsel %vm2716, %v4659, 0.0
    %v5618 = vsel %vm2717, %v5044, 0.0
    %v5619 = vsel %vm2718, %v3316, 0.0
    %v5620 = vsel %vm2719, %v3318, 0.0
    %v5621 = vsel %vm2720, %v3765, 0.0
    %v5622 = vsel %vm2721, %v3767, 0.0
    %v5623 = vsel %vm2722, %v4214, 0.0
    %v5624 = vsel %vm2723, %v4216, 0.0
    %v5625 = vsel %vm2724, %v4663, 0.0
    %v5626 = vsel %vm2725, %v4665, 0.0
    %v5627 = vsel %vm2726, %v5049, 0.0
    %5628 = vst [vmem:[#allocation2] sm:$0xff] %v5052
    %5629 = vst [vmem:[#allocation2 + $0x8] sm:$0xff] %v5053
    %5630 = vst [vmem:[#allocation2 + $0x10] sm:$0xff] %v5054
    %5631 = vst [vmem:[#allocation2 + $0x18] sm:$0xff] %v5055
    %5632 = vst [vmem:[#allocation2 + $0x20] sm:$0xff] %v5056
    %5633 = vst [vmem:[#allocation2 + $0x28] sm:$0xff] %v5057
    %5634 = vst [vmem:[#allocation2 + $0x30] sm:$0xff] %v5058
    %5635 = vst [vmem:[#allocation2 + $0x38] sm:$0xff] %v5059
    %5636 = vst [vmem:[#allocation2 + $0x40] sm:$0xff] %v5060
    %5637 = vst [vmem:[#allocation2 + $0x48] sm:$0xff] %v5061
    %5638 = vst [vmem:[#allocation2 + $0x50] sm:$0xff] %v5062
    %5639 = vst [vmem:[#allocation2 + $0x58] sm:$0xff] %v5063
    %5640 = vst [vmem:[#allocation2 + $0x60] sm:$0xff] %v5064
    %5641 = vst [vmem:[#allocation2 + $0x68] sm:$0xff] %v5065
    %5642 = vst [vmem:[#allocation2 + $0x70] sm:$0xff] %v5066
    %5643 = vst [vmem:[#allocation2 + $0x78] sm:$0xff] %v5067
    %5644 = vst [vmem:[#allocation2 + $0x80] sm:$0xff] %v5068
    %5645 = vst [vmem:[#allocation2 + $0x88] sm:$0xff] %v5069
    %5646 = vst [vmem:[#allocation2 + $0x90] sm:$0xff] %v5070
    %5647 = vst [vmem:[#allocation2 + $0x98] sm:$0xff] %v5071
    %5648 = vst [vmem:[#allocation2 + $0xa0] sm:$0xff] %v5072
    %5649 = vst [vmem:[#allocation2 + $0xa8] sm:$0xff] %v5073
    %5650 = vst [vmem:[#allocation2 + $0xb0] sm:$0xff] %v5074
    %5651 = vst [vmem:[#allocation2 + $0xb8] sm:$0xff] %v5075
    %5652 = vst [vmem:[#allocation2 + $0xc0] sm:$0xff] %v5076
    %5653 = vst [vmem:[#allocation2 + $0xc8] sm:$0xff] %v5077
    %5654 = vst [vmem:[#allocation2 + $0xd0] sm:$0xff] %v5078
    %5655 = vst [vmem:[#allocation2 + $0xd8] sm:$0xff] %v5079
    %5656 = vst [vmem:[#allocation2 + $0xe0] sm:$0xff] %v5080
    %5657 = vst [vmem:[#allocation2 + $0xe8] sm:$0xff] %v5081
    %5658 = vst [vmem:[#allocation2 + $0xf0] sm:$0xff] %v5082
    %5659 = vst [vmem:[#allocation2 + $0xf8] sm:$0xff] %v5083
    %5660 = vst [vmem:[#allocation2 + $0x100] sm:$0xff] %v5084
    %5661 = vst [vmem:[#allocation2 + $0x108] sm:$0xff] %v5085
    %5662 = vst [vmem:[#allocation2 + $0x110] sm:$0xff] %v5086
    %5663 = vst [vmem:[#allocation2 + $0x118] sm:$0xff] %v5087
    %5664 = vst [vmem:[#allocation2 + $0x120] sm:$0xff] %v5088
    %5665 = vst [vmem:[#allocation2 + $0x128] sm:$0xff] %v5089
    %5666 = vst [vmem:[#allocation2 + $0x130] sm:$0xff] %v5090
    %5667 = vst [vmem:[#allocation2 + $0x138] sm:$0xff] %v5091
    %5668 = vst [vmem:[#allocation2 + $0x140] sm:$0xff] %v5092
    %5669 = vst [vmem:[#allocation2 + $0x148] sm:$0xff] %v5093
    %5670 = vst [vmem:[#allocation2 + $0x150] sm:$0xff] %v5094
    %5671 = vst [vmem:[#allocation2 + $0x158] sm:$0xff] %v5095
    %5672 = vst [vmem:[#allocation2 + $0x160] sm:$0xff] %v5096
    %5673 = vst [vmem:[#allocation2 + $0x168] sm:$0xff] %v5097
    %5674 = vst [vmem:[#allocation2 + $0x170] sm:$0xff] %v5098
    %5675 = vst [vmem:[#allocation2 + $0x178] sm:$0xff] %v5099
    %5676 = vst [vmem:[#allocation2 + $0x180] sm:$0xff] %v5100
    %5677 = vst [vmem:[#allocation2 + $0x188] sm:$0xff] %v5101
    %5678 = vst [vmem:[#allocation2 + $0x190] sm:$0xff] %v5102
    %5679 = vst [vmem:[#allocation2 + $0x198] sm:$0xff] %v5103
    %5680 = vst [vmem:[#allocation2 + $0x1a0] sm:$0xff] %v5104
    %5681 = vst [vmem:[#allocation2 + $0x1a8] sm:$0xff] %v5105
    %5682 = vst [vmem:[#allocation2 + $0x1b0] sm:$0xff] %v5106
    %5683 = vst [vmem:[#allocation2 + $0x1b8] sm:$0xff] %v5107
    %5684 = vst [vmem:[#allocation2 + $0x1c0] sm:$0xff] %v5108
    %5685 = vst [vmem:[#allocation2 + $0x1c8] sm:$0xff] %v5109
    %5686 = vst [vmem:[#allocation2 + $0x1d0] sm:$0xff] %v5110
    %5687 = vst [vmem:[#allocation2 + $0x1d8] sm:$0xff] %v5111
    %5688 = vst [vmem:[#allocation2 + $0x1e0] sm:$0xff] %v5112
    %5689 = vst [vmem:[#allocation2 + $0x1e8] sm:$0xff] %v5113
    %5690 = vst [vmem:[#allocation2 + $0x1f0] sm:$0xff] %v5114
    %5691 = vst [vmem:[#allocation2 + $0x1f8] sm:$0xff] %v5115
    %5692 = vst [vmem:[#allocation2 + $0x200] sm:$0xff] %v5116
    %5693 = vst [vmem:[#allocation2 + $0x208] sm:$0xff] %v5117
    %5694 = vst [vmem:[#allocation2 + $0x210] sm:$0xff] %v5118
    %5695 = vst [vmem:[#allocation2 + $0x218] sm:$0xff] %v5119
    %5696 = vst [vmem:[#allocation2 + $0x220] sm:$0xff] %v5120
    %5697 = vst [vmem:[#allocation2 + $0x228] sm:$0xff] %v5121
    %5698 = vst [vmem:[#allocation2 + $0x230] sm:$0xff] %v5122
    %5699 = vst [vmem:[#allocation2 + $0x238] sm:$0xff] %v5123
    %5700 = vst [vmem:[#allocation2 + $0x240] sm:$0xff] %v5124
    %5701 = vst [vmem:[#allocation2 + $0x248] sm:$0xff] %v5125
    %5702 = vst [vmem:[#allocation2 + $0x250] sm:$0xff] %v5126
    %5703 = vst [vmem:[#allocation2 + $0x258] sm:$0xff] %v5127
    %5704 = vst [vmem:[#allocation2 + $0x260] sm:$0xff] %v5128
    %5705 = vst [vmem:[#allocation2 + $0x268] sm:$0xff] %v5129
    %5706 = vst [vmem:[#allocation2 + $0x270] sm:$0xff] %v5130
    %5707 = vst [vmem:[#allocation2 + $0x278] sm:$0xff] %v5131
    %5708 = vst [vmem:[#allocation2 + $0x280] sm:$0xff] %v5132
    %5709 = vst [vmem:[#allocation2 + $0x288] sm:$0xff] %v5133
    %5710 = vst [vmem:[#allocation2 + $0x290] sm:$0xff] %v5134
    %5711 = vst [vmem:[#allocation2 + $0x298] sm:$0xff] %v5135
    %5712 = vst [vmem:[#allocation2 + $0x2a0] sm:$0xff] %v5136
    %5713 = vst [vmem:[#allocation2 + $0x2a8] sm:$0xff] %v5137
    %5714 = vst [vmem:[#allocation2 + $0x2b0] sm:$0xff] %v5138
    %5715 = vst [vmem:[#allocation2 + $0x2b8] sm:$0xff] %v5139
    %5716 = vst [vmem:[#allocation2 + $0x2c0] sm:$0xff] %v5140
    %5717 = vst [vmem:[#allocation2 + $0x2c8] sm:$0xff] %v5141
    %5718 = vst [vmem:[#allocation2 + $0x2d0] sm:$0xff] %v5142
    %5719 = vst [vmem:[#allocation2 + $0x2d8] sm:$0xff] %v5143
    %5720 = vst [vmem:[#allocation2 + $0x2e0] sm:$0xff] %v5144
    %5721 = vst [vmem:[#allocation2 + $0x2e8] sm:$0xff] %v5145
    %5722 = vst [vmem:[#allocation2 + $0x2f0] sm:$0xff] %v5146
    %5723 = vst [vmem:[#allocation2 + $0x2f8] sm:$0xff] %v5147
    %5724 = vst [vmem:[#allocation2 + $0x300] sm:$0xff] %v5148
    %5725 = vst [vmem:[#allocation2 + $0x308] sm:$0xff] %v5149
    %5726 = vst [vmem:[#allocation2 + $0x310] sm:$0xff] %v5150
    %5727 = vst [vmem:[#allocation2 + $0x318] sm:$0xff] %v5151
    %5728 = vst [vmem:[#allocation2 + $0x320] sm:$0xff] %v5152
    %5729 = vst [vmem:[#allocation2 + $0x328] sm:$0xff] %v5153
    %5730 = vst [vmem:[#allocation2 + $0x330] sm:$0xff] %v5154
    %5731 = vst [vmem:[#allocation2 + $0x338] sm:$0xff] %v5155
    %5732 = vst [vmem:[#allocation2 + $0x340] sm:$0xff] %v5156
    %5733 = vst [vmem:[#allocation2 + $0x348] sm:$0xff] %v5157
    %5734 = vst [vmem:[#allocation2 + $0x350] sm:$0xff] %v5158
    %5735 = vst [vmem:[#allocation2 + $0x358] sm:$0xff] %v5159
    %5736 = vst [vmem:[#allocation2 + $0x360] sm:$0xff] %v5160
    %5737 = vst [vmem:[#allocation2 + $0x368] sm:$0xff] %v5161
    %5738 = vst [vmem:[#allocation2 + $0x370] sm:$0xff] %v5162
    %5739 = vst [vmem:[#allocation2 + $0x378] sm:$0xff] %v5163
    %5740 = vst [vmem:[#allocation2 + $0x380] sm:$0xff] %v5164
    %5741 = vst [vmem:[#allocation2 + $0x388] sm:$0xff] %v5165
    %5742 = vst [vmem:[#allocation2 + $0x390] sm:$0xff] %v5166
    %5743 = vst [vmem:[#allocation2 + $0x398] sm:$0xff] %v5167
    %5744 = vst [vmem:[#allocation2 + $0x3a0] sm:$0xff] %v5168
    %5745 = vst [vmem:[#allocation2 + $0x3a8] sm:$0xff] %v5169
    %5746 = vst [vmem:[#allocation2 + $0x3b0] sm:$0xff] %v5170
    %5747 = vst [vmem:[#allocation2 + $0x3b8] sm:$0xff] %v5171
    %5748 = vst [vmem:[#allocation2 + $0x3c0] sm:$0xff] %v5172
    %5749 = vst [vmem:[#allocation2 + $0x3c8] sm:$0xff] %v5173
    %5750 = vst [vmem:[#allocation2 + $0x3d0] sm:$0xff] %v5174
    %5751 = vst [vmem:[#allocation2 + $0x3d8] sm:$0xff] %v5175
    %5752 = vst [vmem:[#allocation2 + $0x3e0] sm:$0xff] %v5176
    %5753 = vst [vmem:[#allocation2 + $0x3e8] sm:$0xff] %v5177
    %5754 = vst [vmem:[#allocation2 + $0x3f0] sm:$0xff] %v5178
    %5755 = vst [vmem:[#allocation2 + $0x3f8] sm:$0xff] %v5179
    %5756 = vst [vmem:[#allocation2 + $0x400] sm:$0xff] %v5180
    %5757 = vst [vmem:[#allocation2 + $0x408] sm:$0xff] %v5181
    %5758 = vst [vmem:[#allocation2 + $0x410] sm:$0xff] %v5182
    %5759 = vst [vmem:[#allocation2 + $0x418] sm:$0xff] %v5183
    %5760 = vst [vmem:[#allocation2 + $0x420] sm:$0xff] %v5184
    %5761 = vst [vmem:[#allocation2 + $0x428] sm:$0xff] %v5185
    %5762 = vst [vmem:[#allocation2 + $0x430] sm:$0xff] %v5186
    %5763 = vst [vmem:[#allocation2 + $0x438] sm:$0xff] %v5187
    %5764 = vst [vmem:[#allocation2 + $0x440] sm:$0xff] %v5188
    %5765 = vst [vmem:[#allocation2 + $0x448] sm:$0xff] %v5189
    %5766 = vst [vmem:[#allocation2 + $0x450] sm:$0xff] %v5190
    %5767 = vst [vmem:[#allocation2 + $0x458] sm:$0xff] %v5191
    %5768 = vst [vmem:[#allocation2 + $0x460] sm:$0xff] %v5192
    %5769 = vst [vmem:[#allocation2 + $0x468] sm:$0xff] %v5193
    %5770 = vst [vmem:[#allocation2 + $0x470] sm:$0xff] %v5194
    %5771 = vst [vmem:[#allocation2 + $0x478] sm:$0xff] %v5195
    %5772 = vst [vmem:[#allocation2 + $0x480] sm:$0xff] %v5196
    %5773 = vst [vmem:[#allocation2 + $0x488] sm:$0xff] %v5197
    %5774 = vst [vmem:[#allocation2 + $0x490] sm:$0xff] %v5198
    %5775 = vst [vmem:[#allocation2 + $0x498] sm:$0xff] %v5199
    %5776 = vst [vmem:[#allocation2 + $0x4a0] sm:$0xff] %v5200
    %5777 = vst [vmem:[#allocation2 + $0x4a8] sm:$0xff] %v5201
    %5778 = vst [vmem:[#allocation2 + $0x4b0] sm:$0xff] %v5202
    %5779 = vst [vmem:[#allocation2 + $0x4b8] sm:$0xff] %v5203
    %5780 = vst [vmem:[#allocation2 + $0x4c0] sm:$0xff] %v5204
    %5781 = vst [vmem:[#allocation2 + $0x4c8] sm:$0xff] %v5205
    %5782 = vst [vmem:[#allocation2 + $0x4d0] sm:$0xff] %v5206
    %5783 = vst [vmem:[#allocation2 + $0x4d8] sm:$0xff] %v5207
    %5784 = vst [vmem:[#allocation2 + $0x4e0] sm:$0xff] %v5208
    %5785 = vst [vmem:[#allocation2 + $0x4e8] sm:$0xff] %v5209
    %5786 = vst [vmem:[#allocation2 + $0x4f0] sm:$0xff] %v5210
    %5787 = vst [vmem:[#allocation2 + $0x4f8] sm:$0xff] %v5211
    %5788 = vst [vmem:[#allocation2 + $0x500] sm:$0xff] %v5212
    %5789 = vst [vmem:[#allocation2 + $0x508] sm:$0xff] %v5213
    %5790 = vst [vmem:[#allocation2 + $0x510] sm:$0xff] %v5214
    %5791 = vst [vmem:[#allocation2 + $0x518] sm:$0xff] %v5215
    %5792 = vst [vmem:[#allocation2 + $0x520] sm:$0xff] %v5216
    %5793 = vst [vmem:[#allocation2 + $0x528] sm:$0xff] %v5217
    %5794 = vst [vmem:[#allocation2 + $0x530] sm:$0xff] %v5218
    %5795 = vst [vmem:[#allocation2 + $0x538] sm:$0xff] %v5219
    %5796 = vst [vmem:[#allocation2 + $0x540] sm:$0xff] %v5220
    %5797 = vst [vmem:[#allocation2 + $0x548] sm:$0xff] %v5221
    %5798 = vst [vmem:[#allocation2 + $0x550] sm:$0xff] %v5222
    %5799 = vst [vmem:[#allocation2 + $0x558] sm:$0xff] %v5223
    %5800 = vst [vmem:[#allocation2 + $0x560] sm:$0xff] %v5224
    %5801 = vst [vmem:[#allocation2 + $0x568] sm:$0xff] %v5225
    %5802 = vst [vmem:[#allocation2 + $0x570] sm:$0xff] %v5226
    %5803 = vst [vmem:[#allocation2 + $0x578] sm:$0xff] %v5227
    %5804 = vst [vmem:[#allocation2 + $0x580] sm:$0xff] %v5228
    %5805 = vst [vmem:[#allocation2 + $0x588] sm:$0xff] %v5229
    %5806 = vst [vmem:[#allocation2 + $0x590] sm:$0xff] %v5230
    %5807 = vst [vmem:[#allocation2 + $0x598] sm:$0xff] %v5231
    %5808 = vst [vmem:[#allocation2 + $0x5a0] sm:$0xff] %v5232
    %5809 = vst [vmem:[#allocation2 + $0x5a8] sm:$0xff] %v5233
    %5810 = vst [vmem:[#allocation2 + $0x5b0] sm:$0xff] %v5234
    %5811 = vst [vmem:[#allocation2 + $0x5b8] sm:$0xff] %v5235
    %5812 = vst [vmem:[#allocation2 + $0x5c0] sm:$0xff] %v5236
    %5813 = vst [vmem:[#allocation2 + $0x5c8] sm:$0xff] %v5237
    %5814 = vst [vmem:[#allocation2 + $0x5d0] sm:$0xff] %v5238
    %5815 = vst [vmem:[#allocation2 + $0x5d8] sm:$0xff] %v5239
    %5816 = vst [vmem:[#allocation2 + $0x5e0] sm:$0xff] %v5240
    %5817 = vst [vmem:[#allocation2 + $0x5e8] sm:$0xff] %v5241
    %5818 = vst [vmem:[#allocation2 + $0x5f0] sm:$0xff] %v5242
    %5819 = vst [vmem:[#allocation2 + $0x5f8] sm:$0xff] %v5243
    %5820 = vst [vmem:[#allocation2 + $0x600] sm:$0xff] %v5244
    %5821 = vst [vmem:[#allocation2 + $0x608] sm:$0xff] %v5245
    %5822 = vst [vmem:[#allocation2 + $0x610] sm:$0xff] %v5246
    %5823 = vst [vmem:[#allocation2 + $0x618] sm:$0xff] %v5247
    %5824 = vst [vmem:[#allocation2 + $0x620] sm:$0xff] %v5248
    %5825 = vst [vmem:[#allocation2 + $0x628] sm:$0xff] %v5249
    %5826 = vst [vmem:[#allocation2 + $0x630] sm:$0xff] %v5250
    %5827 = vst [vmem:[#allocation2 + $0x638] sm:$0xff] %v5251
    %5828 = vst [vmem:[#allocation2 + $0x640] sm:$0xff] %v5252
    %5829 = vst [vmem:[#allocation2 + $0x648] sm:$0xff] %v5253
    %5830 = vst [vmem:[#allocation2 + $0x650] sm:$0xff] %v5254
    %5831 = vst [vmem:[#allocation2 + $0x658] sm:$0xff] %v5255
    %5832 = vst [vmem:[#allocation2 + $0x660] sm:$0xff] %v5256
    %5833 = vst [vmem:[#allocation2 + $0x668] sm:$0xff] %v5257
    %5834 = vst [vmem:[#allocation2 + $0x670] sm:$0xff] %v5258
    %5835 = vst [vmem:[#allocation2 + $0x678] sm:$0xff] %v5259
    %5836 = vst [vmem:[#allocation2 + $0x680] sm:$0xff] %v5260
    %5837 = vst [vmem:[#allocation2 + $0x688] sm:$0xff] %v5261
    %5838 = vst [vmem:[#allocation2 + $0x690] sm:$0xff] %v5262
    %5839 = vst [vmem:[#allocation2 + $0x698] sm:$0xff] %v5263
    %5840 = vst [vmem:[#allocation2 + $0x6a0] sm:$0xff] %v5264
    %5841 = vst [vmem:[#allocation2 + $0x6a8] sm:$0xff] %v5265
    %5842 = vst [vmem:[#allocation2 + $0x6b0] sm:$0xff] %v5266
    %5843 = vst [vmem:[#allocation2 + $0x6b8] sm:$0xff] %v5267
    %5844 = vst [vmem:[#allocation2 + $0x6c0] sm:$0xff] %v5268
    %5845 = vst [vmem:[#allocation2 + $0x6c8] sm:$0xff] %v5269
    %5846 = vst [vmem:[#allocation2 + $0x6d0] sm:$0xff] %v5270
    %5847 = vst [vmem:[#allocation2 + $0x6d8] sm:$0xff] %v5271
    %5848 = vst [vmem:[#allocation2 + $0x6e0] sm:$0xff] %v5272
    %5849 = vst [vmem:[#allocation2 + $0x6e8] sm:$0xff] %v5273
    %5850 = vst [vmem:[#allocation2 + $0x6f0] sm:$0xff] %v5274
    %5851 = vst [vmem:[#allocation2 + $0x6f8] sm:$0xff] %v5275
    %5852 = vst [vmem:[#allocation2 + $0x700] sm:$0xff] %v5276
    %5853 = vst [vmem:[#allocation2 + $0x708] sm:$0xff] %v5277
    %5854 = vst [vmem:[#allocation2 + $0x710] sm:$0xff] %v5278
    %5855 = vst [vmem:[#allocation2 + $0x718] sm:$0xff] %v5279
    %5856 = vst [vmem:[#allocation2 + $0x720] sm:$0xff] %v5280
    %5857 = vst [vmem:[#allocation2 + $0x728] sm:$0xff] %v5281
    %5858 = vst [vmem:[#allocation2 + $0x730] sm:$0xff] %v5282
    %5859 = vst [vmem:[#allocation2 + $0x738] sm:$0xff] %v5283
    %5860 = vst [vmem:[#allocation2 + $0x740] sm:$0xff] %v5284
    %5861 = vst [vmem:[#allocation2 + $0x748] sm:$0xff] %v5285
    %5862 = vst [vmem:[#allocation2 + $0x750] sm:$0xff] %v5286
    %5863 = vst [vmem:[#allocation2 + $0x758] sm:$0xff] %v5287
    %5864 = vst [vmem:[#allocation2 + $0x760] sm:$0xff] %v5288
    %5865 = vst [vmem:[#allocation2 + $0x768] sm:$0xff] %v5289
    %5866 = vst [vmem:[#allocation2 + $0x770] sm:$0xff] %v5290
    %5867 = vst [vmem:[#allocation2 + $0x778] sm:$0xff] %v5291
    %5868 = vst [vmem:[#allocation2 + $0x780] sm:$0xff] %v5292
    %5869 = vst [vmem:[#allocation2 + $0x788] sm:$0xff] %v5293
    %5870 = vst [vmem:[#allocation2 + $0x790] sm:$0xff] %v5294
    %5871 = vst [vmem:[#allocation2 + $0x798] sm:$0xff] %v5295
    %5872 = vst [vmem:[#allocation2 + $0x7a0] sm:$0xff] %v5296
    %5873 = vst [vmem:[#allocation2 + $0x7a8] sm:$0xff] %v5297
    %5874 = vst [vmem:[#allocation2 + $0x7b0] sm:$0xff] %v5298
    %5875 = vst [vmem:[#allocation2 + $0x7b8] sm:$0xff] %v5299
    %5876 = vst [vmem:[#allocation2 + $0x7c0] sm:$0xff] %v5300
    %5877 = vst [vmem:[#allocation2 + $0x7c8] sm:$0xff] %v5301
    %5878 = vst [vmem:[#allocation2 + $0x7d0] sm:$0xff] %v5302
    %5879 = vst [vmem:[#allocation2 + $0x7d8] sm:$0xff] %v5303
    %5880 = vst [vmem:[#allocation2 + $0x7e0] sm:$0xff] %v5304
    %5881 = vst [vmem:[#allocation2 + $0x7e8] sm:$0xff] %v5305
    %5882 = vst [vmem:[#allocation2 + $0x7f0] sm:$0xff] %v5306
    %5883 = vst [vmem:[#allocation2 + $0x7f8] sm:$0xff] %v5307
    %5884 = vst [vmem:[#allocation2 + $0x800] sm:$0xff] %v5308
    %5885 = vst [vmem:[#allocation2 + $0x808] sm:$0xff] %v5309
    %5886 = vst [vmem:[#allocation2 + $0x810] sm:$0xff] %v5310
    %5887 = vst [vmem:[#allocation2 + $0x818] sm:$0xff] %v5311
    %5888 = vst [vmem:[#allocation2 + $0x820] sm:$0xff] %v5312
    %5889 = vst [vmem:[#allocation2 + $0x828] sm:$0xff] %v5313
    %5890 = vst [vmem:[#allocation2 + $0x830] sm:$0xff] %v5314
    %5891 = vst [vmem:[#allocation2 + $0x838] sm:$0xff] %v5315
    %5892 = vst [vmem:[#allocation2 + $0x840] sm:$0xff] %v5316
    %5893 = vst [vmem:[#allocation2 + $0x848] sm:$0xff] %v5317
    %5894 = vst [vmem:[#allocation2 + $0x850] sm:$0xff] %v5318
    %5895 = vst [vmem:[#allocation2 + $0x858] sm:$0xff] %v5319
    %5896 = vst [vmem:[#allocation2 + $0x860] sm:$0xff] %v5320
    %5897 = vst [vmem:[#allocation2 + $0x868] sm:$0xff] %v5321
    %5898 = vst [vmem:[#allocation2 + $0x870] sm:$0xff] %v5322
    %5899 = vst [vmem:[#allocation2 + $0x878] sm:$0xff] %v5323
    %5900 = vst [vmem:[#allocation2 + $0x880] sm:$0xff] %v5324
    %5901 = vst [vmem:[#allocation2 + $0x888] sm:$0xff] %v5325
    %5902 = vst [vmem:[#allocation2 + $0x890] sm:$0xff] %v5326
    %5903 = vst [vmem:[#allocation2 + $0x898] sm:$0xff] %v5327
    %5904 = vst [vmem:[#allocation2 + $0x8a0] sm:$0xff] %v5328
    %5905 = vst [vmem:[#allocation2 + $0x8a8] sm:$0xff] %v5329
    %5906 = vst [vmem:[#allocation2 + $0x8b0] sm:$0xff] %v5330
    %5907 = vst [vmem:[#allocation2 + $0x8b8] sm:$0xff] %v5331
    %5908 = vst [vmem:[#allocation2 + $0x8c0] sm:$0xff] %v5332
    %5909 = vst [vmem:[#allocation2 + $0x8c8] sm:$0xff] %v5333
    %5910 = vst [vmem:[#allocation2 + $0x8d0] sm:$0xff] %v5334
    %5911 = vst [vmem:[#allocation2 + $0x8d8] sm:$0xff] %v5335
    %5912 = vst [vmem:[#allocation2 + $0x8e0] sm:$0xff] %v5336
    %5913 = vst [vmem:[#allocation2 + $0x8e8] sm:$0xff] %v5337
    %5914 = vst [vmem:[#allocation2 + $0x8f0] sm:$0xff] %v5338
    %5915 = vst [vmem:[#allocation2 + $0x8f8] sm:$0xff] %v5339
    %5916 = vst [vmem:[#allocation2 + $0x900] sm:$0xff] %v5340
    %5917 = vst [vmem:[#allocation2 + $0x908] sm:$0xff] %v5341
    %5918 = vst [vmem:[#allocation2 + $0x910] sm:$0xff] %v5342
    %5919 = vst [vmem:[#allocation2 + $0x918] sm:$0xff] %v5343
    %5920 = vst [vmem:[#allocation2 + $0x920] sm:$0xff] %v5344
    %5921 = vst [vmem:[#allocation2 + $0x928] sm:$0xff] %v5345
    %5922 = vst [vmem:[#allocation2 + $0x930] sm:$0xff] %v5346
    %5923 = vst [vmem:[#allocation2 + $0x938] sm:$0xff] %v5347
    %5924 = vst [vmem:[#allocation2 + $0x940] sm:$0xff] %v5348
    %5925 = vst [vmem:[#allocation2 + $0x948] sm:$0xff] %v5349
    %5926 = vst [vmem:[#allocation2 + $0x950] sm:$0xff] %v5350
    %5927 = vst [vmem:[#allocation2 + $0x958] sm:$0xff] %v5351
    %5928 = vst [vmem:[#allocation2 + $0x960] sm:$0xff] %v5352
    %5929 = vst [vmem:[#allocation2 + $0x968] sm:$0xff] %v5353
    %5930 = vst [vmem:[#allocation2 + $0x970] sm:$0xff] %v5354
    %5931 = vst [vmem:[#allocation2 + $0x978] sm:$0xff] %v5355
    %5932 = vst [vmem:[#allocation2 + $0x980] sm:$0xff] %v5356
    %5933 = vst [vmem:[#allocation2 + $0x988] sm:$0xff] %v5357
    %5934 = vst [vmem:[#allocation2 + $0x990] sm:$0xff] %v5358
    %5935 = vst [vmem:[#allocation2 + $0x998] sm:$0xff] %v5359
    %5936 = vst [vmem:[#allocation2 + $0x9a0] sm:$0xff] %v5360
    %5937 = vst [vmem:[#allocation2 + $0x9a8] sm:$0xff] %v5361
    %5938 = vst [vmem:[#allocation2 + $0x9b0] sm:$0xff] %v5362
    %5939 = vst [vmem:[#allocation2 + $0x9b8] sm:$0xff] %v5363
    %5940 = vst [vmem:[#allocation2 + $0x9c0] sm:$0xff] %v5364
    %5941 = vst [vmem:[#allocation2 + $0x9c8] sm:$0xff] %v5365
    %5942 = vst [vmem:[#allocation2 + $0x9d0] sm:$0xff] %v5366
    %5943 = vst [vmem:[#allocation2 + $0x9d8] sm:$0xff] %v5367
    %5944 = vst [vmem:[#allocation2 + $0x9e0] sm:$0xff] %v5368
    %5945 = vst [vmem:[#allocation2 + $0x9e8] sm:$0xff] %v5369
    %5946 = vst [vmem:[#allocation2 + $0x9f0] sm:$0xff] %v5370
    %5947 = vst [vmem:[#allocation2 + $0x9f8] sm:$0xff] %v5371
    %5948 = vst [vmem:[#allocation2 + $0xa00] sm:$0xff] %v5372
    %5949 = vst [vmem:[#allocation2 + $0xa08] sm:$0xff] %v5373
    %5950 = vst [vmem:[#allocation2 + $0xa10] sm:$0xff] %v5374
    %5951 = vst [vmem:[#allocation2 + $0xa18] sm:$0xff] %v5375
    %5952 = vst [vmem:[#allocation2 + $0xa20] sm:$0xff] %v5376
    %5953 = vst [vmem:[#allocation2 + $0xa28] sm:$0xff] %v5377
    %5954 = vst [vmem:[#allocation2 + $0xa30] sm:$0xff] %v5378
    %5955 = vst [vmem:[#allocation2 + $0xa38] sm:$0xff] %v5379
    %5956 = vst [vmem:[#allocation2 + $0xa40] sm:$0xff] %v5380
    %5957 = vst [vmem:[#allocation2 + $0xa48] sm:$0xff] %v5381
    %5958 = vst [vmem:[#allocation2 + $0xa50] sm:$0xff] %v5382
    %5959 = vst [vmem:[#allocation2 + $0xa58] sm:$0xff] %v5383
    %5960 = vst [vmem:[#allocation2 + $0xa60] sm:$0xff] %v5384
    %5961 = vst [vmem:[#allocation2 + $0xa68] sm:$0xff] %v5385
    %5962 = vst [vmem:[#allocation2 + $0xa70] sm:$0xff] %v5386
    %5963 = vst [vmem:[#allocation2 + $0xa78] sm:$0xff] %v5387
    %5964 = vst [vmem:[#allocation2 + $0xa80] sm:$0xff] %v5388
    %5965 = vst [vmem:[#allocation2 + $0xa88] sm:$0xff] %v5389
    %5966 = vst [vmem:[#allocation2 + $0xa90] sm:$0xff] %v5390
    %5967 = vst [vmem:[#allocation2 + $0xa98] sm:$0xff] %v5391
    %5968 = vst [vmem:[#allocation2 + $0xaa0] sm:$0xff] %v5392
    %5969 = vst [vmem:[#allocation2 + $0xaa8] sm:$0xff] %v5393
    %5970 = vst [vmem:[#allocation2 + $0xab0] sm:$0xff] %v5394
    %5971 = vst [vmem:[#allocation2 + $0xab8] sm:$0xff] %v5395
    %5972 = vst [vmem:[#allocation2 + $0xac0] sm:$0xff] %v5396
    %5973 = vst [vmem:[#allocation2 + $0xac8] sm:$0xff] %v5397
    %5974 = vst [vmem:[#allocation2 + $0xad0] sm:$0xff] %v5398
    %5975 = vst [vmem:[#allocation2 + $0xad8] sm:$0xff] %v5399
    %5976 = vst [vmem:[#allocation2 + $0xae0] sm:$0xff] %v5400
    %5977 = vst [vmem:[#allocation2 + $0xae8] sm:$0xff] %v5401
    %5978 = vst [vmem:[#allocation2 + $0xaf0] sm:$0xff] %v5402
    %5979 = vst [vmem:[#allocation2 + $0xaf8] sm:$0xff] %v5403
    %5980 = vst [vmem:[#allocation2 + $0xb00] sm:$0xff] %v5404
    %5981 = vst [vmem:[#allocation2 + $0xb08] sm:$0xff] %v5405
    %5982 = vst [vmem:[#allocation2 + $0xb10] sm:$0xff] %v5406
    %5983 = vst [vmem:[#allocation2 + $0xb18] sm:$0xff] %v5407
    %5984 = vst [vmem:[#allocation2 + $0xb20] sm:$0xff] %v5408
    %5985 = vst [vmem:[#allocation2 + $0xb28] sm:$0xff] %v5409
    %5986 = vst [vmem:[#allocation2 + $0xb30] sm:$0xff] %v5410
    %5987 = vst [vmem:[#allocation2 + $0xb38] sm:$0xff] %v5411
    %5988 = vst [vmem:[#allocation2 + $0xb40] sm:$0xff] %v5412
    %5989 = vst [vmem:[#allocation2 + $0xb48] sm:$0xff] %v5413
    %5990 = vst [vmem:[#allocation2 + $0xb50] sm:$0xff] %v5414
    %5991 = vst [vmem:[#allocation2 + $0xb58] sm:$0xff] %v5415
    %5992 = vst [vmem:[#allocation2 + $0xb60] sm:$0xff] %v5416
    %5993 = vst [vmem:[#allocation2 + $0xb68] sm:$0xff] %v5417
    %5994 = vst [vmem:[#allocation2 + $0xb70] sm:$0xff] %v5418
    %5995 = vst [vmem:[#allocation2 + $0xb78] sm:$0xff] %v5419
    %5996 = vst [vmem:[#allocation2 + $0xb80] sm:$0xff] %v5420
    %5997 = vst [vmem:[#allocation2 + $0xb88] sm:$0xff] %v5421
    %5998 = vst [vmem:[#allocation2 + $0xb90] sm:$0xff] %v5422
    %5999 = vst [vmem:[#allocation2 + $0xb98] sm:$0xff] %v5423
    %6000 = vst [vmem:[#allocation2 + $0xba0] sm:$0xff] %v5424
    %6001 = vst [vmem:[#allocation2 + $0xba8] sm:$0xff] %v5425
    %6002 = vst [vmem:[#allocation2 + $0xbb0] sm:$0xff] %v5426
    %6003 = vst [vmem:[#allocation2 + $0xbb8] sm:$0xff] %v5427
    %6004 = vst [vmem:[#allocation2 + $0xbc0] sm:$0xff] %v5428
    %6005 = vst [vmem:[#allocation2 + $0xbc8] sm:$0xff] %v5429
    %6006 = vst [vmem:[#allocation2 + $0xbd0] sm:$0xff] %v5430
    %6007 = vst [vmem:[#allocation2 + $0xbd8] sm:$0xff] %v5431
    %6008 = vst [vmem:[#allocation2 + $0xbe0] sm:$0xff] %v5432
    %6009 = vst [vmem:[#allocation2 + $0xbe8] sm:$0xff] %v5433
    %6010 = vst [vmem:[#allocation2 + $0xbf0] sm:$0xff] %v5434
    %6011 = vst [vmem:[#allocation2 + $0xbf8] sm:$0xff] %v5435
    %6012 = vst [vmem:[#allocation2 + $0xc00] sm:$0xff] %v5436
    %6013 = vst [vmem:[#allocation2 + $0xc08] sm:$0xff] %v5437
    %6014 = vst [vmem:[#allocation2 + $0xc10] sm:$0xff] %v5438
    %6015 = vst [vmem:[#allocation2 + $0xc18] sm:$0xff] %v5439
    %6016 = vst [vmem:[#allocation2 + $0xc20] sm:$0xff] %v5440
    %6017 = vst [vmem:[#allocation2 + $0xc28] sm:$0xff] %v5441
    %6018 = vst [vmem:[#allocation2 + $0xc30] sm:$0xff] %v5442
    %6019 = vst [vmem:[#allocation2 + $0xc38] sm:$0xff] %v5443
    %6020 = vst [vmem:[#allocation2 + $0xc40] sm:$0xff] %v5444
    %6021 = vst [vmem:[#allocation2 + $0xc48] sm:$0xff] %v5445
    %6022 = vst [vmem:[#allocation2 + $0xc50] sm:$0xff] %v5446
    %6023 = vst [vmem:[#allocation2 + $0xc58] sm:$0xff] %v5447
    %6024 = vst [vmem:[#allocation2 + $0xc60] sm:$0xff] %v5448
    %6025 = vst [vmem:[#allocation2 + $0xc68] sm:$0xff] %v5449
    %6026 = vst [vmem:[#allocation2 + $0xc70] sm:$0xff] %v5450
    %6027 = vst [vmem:[#allocation2 + $0xc78] sm:$0xff] %v5451
    %6028 = vst [vmem:[#allocation2 + $0xc80] sm:$0xff] %v5452
    %6029 = vst [vmem:[#allocation2 + $0xc88] sm:$0xff] %v5453
    %6030 = vst [vmem:[#allocation2 + $0xc90] sm:$0xff] %v5454
    %6031 = vst [vmem:[#allocation2 + $0xc98] sm:$0xff] %v5455
    %6032 = vst [vmem:[#allocation2 + $0xca0] sm:$0xff] %v5456
    %6033 = vst [vmem:[#allocation2 + $0xca8] sm:$0xff] %v5457
    %6034 = vst [vmem:[#allocation2 + $0xcb0] sm:$0xff] %v5458
    %6035 = vst [vmem:[#allocation2 + $0xcb8] sm:$0xff] %v5459
    %6036 = vst [vmem:[#allocation2 + $0xcc0] sm:$0xff] %v5460
    %6037 = vst [vmem:[#allocation2 + $0xcc8] sm:$0xff] %v5461
    %6038 = vst [vmem:[#allocation2 + $0xcd0] sm:$0xff] %v5462
    %6039 = vst [vmem:[#allocation2 + $0xcd8] sm:$0xff] %v5463
    %6040 = vst [vmem:[#allocation2 + $0xce0] sm:$0xff] %v5464
    %6041 = vst [vmem:[#allocation2 + $0xce8] sm:$0xff] %v5465
    %6042 = vst [vmem:[#allocation2 + $0xcf0] sm:$0xff] %v5466
    %6043 = vst [vmem:[#allocation2 + $0xcf8] sm:$0xff] %v5467
    %6044 = vst [vmem:[#allocation2 + $0xd00] sm:$0xff] %v5468
    %6045 = vst [vmem:[#allocation2 + $0xd08] sm:$0xff] %v5469
    %6046 = vst [vmem:[#allocation2 + $0xd10] sm:$0xff] %v5470
    %6047 = vst [vmem:[#allocation2 + $0xd18] sm:$0xff] %v5471
    %6048 = vst [vmem:[#allocation2 + $0xd20] sm:$0xff] %v5472
    %6049 = vst [vmem:[#allocation2 + $0xd28] sm:$0xff] %v5473
    %6050 = vst [vmem:[#allocation2 + $0xd30] sm:$0xff] %v5474
    %6051 = vst [vmem:[#allocation2 + $0xd38] sm:$0xff] %v5475
    %6052 = vst [vmem:[#allocation2 + $0xd40] sm:$0xff] %v5476
    %6053 = vst [vmem:[#allocation2 + $0xd48] sm:$0xff] %v5477
    %6054 = vst [vmem:[#allocation2 + $0xd50] sm:$0xff] %v5478
    %6055 = vst [vmem:[#allocation2 + $0xd58] sm:$0xff] %v5479
    %6056 = vst [vmem:[#allocation2 + $0xd60] sm:$0xff] %v5480
    %6057 = vst [vmem:[#allocation2 + $0xd68] sm:$0xff] %v5481
    %6058 = vst [vmem:[#allocation2 + $0xd70] sm:$0xff] %v5482
    %6059 = vst [vmem:[#allocation2 + $0xd78] sm:$0xff] %v5483
    %6060 = vst [vmem:[#allocation2 + $0xd80] sm:$0xff] %v5484
    %6061 = vst [vmem:[#allocation2 + $0xd88] sm:$0xff] %v5485
    %6062 = vst [vmem:[#allocation2 + $0xd90] sm:$0xff] %v5486
    %6063 = vst [vmem:[#allocation2 + $0xd98] sm:$0xff] %v5487
    %6064 = vst [vmem:[#allocation2 + $0xda0] sm:$0xff] %v5488
    %6065 = vst [vmem:[#allocation2 + $0xda8] sm:$0xff] %v5489
    %6066 = vst [vmem:[#allocation2 + $0xdb0] sm:$0xff] %v5490
    %6067 = vst [vmem:[#allocation2 + $0xdb8] sm:$0xff] %v5491
    %6068 = vst [vmem:[#allocation2 + $0xdc0] sm:$0xff] %v5492
    %6069 = vst [vmem:[#allocation2 + $0xdc8] sm:$0xff] %v5493
    %6070 = vst [vmem:[#allocation2 + $0xdd0] sm:$0xff] %v5494
    %6071 = vst [vmem:[#allocation2 + $0xdd8] sm:$0xff] %v5495
    %6072 = vst [vmem:[#allocation2 + $0xde0] sm:$0xff] %v5496
    %6073 = vst [vmem:[#allocation2 + $0xde8] sm:$0xff] %v5497
    %6074 = vst [vmem:[#allocation2 + $0xdf0] sm:$0xff] %v5498
    %6075 = vst [vmem:[#allocation2 + $0xdf8] sm:$0xff] %v5499
    %6076 = vst [vmem:[#allocation2 + $0xe00] sm:$0xff] %v5500
    %6077 = vst [vmem:[#allocation2 + $0xe08] sm:$0xff] %v5501
    %6078 = vst [vmem:[#allocation2 + $0xe10] sm:$0xff] %v5502
    %6079 = vst [vmem:[#allocation2 + $0xe18] sm:$0xff] %v5503
    %6080 = vst [vmem:[#allocation2 + $0xe20] sm:$0xff] %v5504
    %6081 = vst [vmem:[#allocation2 + $0xe28] sm:$0xff] %v5505
    %6082 = vst [vmem:[#allocation2 + $0xe30] sm:$0xff] %v5506
    %6083 = vst [vmem:[#allocation2 + $0xe38] sm:$0xff] %v5507
    %6084 = vst [vmem:[#allocation2 + $0xe40] sm:$0xff] %v5508
    %6085 = vst [vmem:[#allocation2 + $0xe48] sm:$0xff] %v5509
    %6086 = vst [vmem:[#allocation2 + $0xe50] sm:$0xff] %v5510
    %6087 = vst [vmem:[#allocation2 + $0xe58] sm:$0xff] %v5511
    %6088 = vst [vmem:[#allocation2 + $0xe60] sm:$0xff] %v5512
    %6089 = vst [vmem:[#allocation2 + $0xe68] sm:$0xff] %v5513
    %6090 = vst [vmem:[#allocation2 + $0xe70] sm:$0xff] %v5514
    %6091 = vst [vmem:[#allocation2 + $0xe78] sm:$0xff] %v5515
    %6092 = vst [vmem:[#allocation2 + $0xe80] sm:$0xff] %v5516
    %6093 = vst [vmem:[#allocation2 + $0xe88] sm:$0xff] %v5517
    %6094 = vst [vmem:[#allocation2 + $0xe90] sm:$0xff] %v5518
    %6095 = vst [vmem:[#allocation2 + $0xe98] sm:$0xff] %v5519
    %6096 = vst [vmem:[#allocation2 + $0xea0] sm:$0xff] %v5520
    %6097 = vst [vmem:[#allocation2 + $0xea8] sm:$0xff] %v5521
    %6098 = vst [vmem:[#allocation2 + $0xeb0] sm:$0xff] %v5522
    %6099 = vst [vmem:[#allocation2 + $0xeb8] sm:$0xff] %v5523
    %6100 = vst [vmem:[#allocation2 + $0xec0] sm:$0xff] %v5524
    %6101 = vst [vmem:[#allocation2 + $0xec8] sm:$0xff] %v5525
    %6102 = vst [vmem:[#allocation2 + $0xed0] sm:$0xff] %v5526
    %6103 = vst [vmem:[#allocation2 + $0xed8] sm:$0xff] %v5527
    %6104 = vst [vmem:[#allocation2 + $0xee0] sm:$0xff] %v5528
    %6105 = vst [vmem:[#allocation2 + $0xee8] sm:$0xff] %v5529
    %6106 = vst [vmem:[#allocation2 + $0xef0] sm:$0xff] %v5530
    %6107 = vst [vmem:[#allocation2 + $0xef8] sm:$0xff] %v5531
    %6108 = vst [vmem:[#allocation2 + $0xf00] sm:$0xff] %v5532
    %6109 = vst [vmem:[#allocation2 + $0xf08] sm:$0xff] %v5533
    %6110 = vst [vmem:[#allocation2 + $0xf10] sm:$0xff] %v5534
    %6111 = vst [vmem:[#allocation2 + $0xf18] sm:$0xff] %v5535
    %6112 = vst [vmem:[#allocation2 + $0xf20] sm:$0xff] %v5536
    %6113 = vst [vmem:[#allocation2 + $0xf28] sm:$0xff] %v5537
    %6114 = vst [vmem:[#allocation2 + $0xf30] sm:$0xff] %v5538
    %6115 = vst [vmem:[#allocation2 + $0xf38] sm:$0xff] %v5539
    %6116 = vst [vmem:[#allocation2 + $0xf40] sm:$0xff] %v5540
    %6117 = vst [vmem:[#allocation2 + $0xf48] sm:$0xff] %v5541
    %6118 = vst [vmem:[#allocation2 + $0xf50] sm:$0xff] %v5542
    %6119 = vst [vmem:[#allocation2 + $0xf58] sm:$0xff] %v5543
    %6120 = vst [vmem:[#allocation2 + $0xf60] sm:$0xff] %v5544
    %6121 = vst [vmem:[#allocation2 + $0xf68] sm:$0xff] %v5545
    %6122 = vst [vmem:[#allocation2 + $0xf70] sm:$0xff] %v5546
    %6123 = vst [vmem:[#allocation2 + $0xf78] sm:$0xff] %v5547
    %6124 = vst [vmem:[#allocation2 + $0xf80] sm:$0xff] %v5548
    %6125 = vst [vmem:[#allocation2 + $0xf88] sm:$0xff] %v5549
    %6126 = vst [vmem:[#allocation2 + $0xf90] sm:$0xff] %v5550
    %6127 = vst [vmem:[#allocation2 + $0xf98] sm:$0xff] %v5551
    %6128 = vst [vmem:[#allocation2 + $0xfa0] sm:$0xff] %v5552
    %6129 = vst [vmem:[#allocation2 + $0xfa8] sm:$0xff] %v5553
    %6130 = vst [vmem:[#allocation2 + $0xfb0] sm:$0xff] %v5554
    %6131 = vst [vmem:[#allocation2 + $0xfb8] sm:$0xff] %v5555
    %6132 = vst [vmem:[#allocation2 + $0xfc0] sm:$0xff] %v5556
    %6133 = vst [vmem:[#allocation2 + $0xfc8] sm:$0xff] %v5557
    %6134 = vst [vmem:[#allocation2 + $0xfd0] sm:$0xff] %v5558
    %6135 = vst [vmem:[#allocation2 + $0xfd8] sm:$0xff] %v5559
    %6136 = vst [vmem:[#allocation2 + $0xfe0] sm:$0xff] %v5560
    %6137 = vst [vmem:[#allocation2 + $0xfe8] sm:$0xff] %v5561
    %6138 = vst [vmem:[#allocation2 + $0xff0] sm:$0xff] %v5562
    %6139 = vst [vmem:[#allocation2 + $0xff8] sm:$0xff] %v5563
    %6140 = vst [vmem:[#allocation2 + $0x1000] sm:$0xff] %v5564
    %6141 = vst [vmem:[#allocation2 + $0x1008] sm:$0xff] %v5565
    %6142 = vst [vmem:[#allocation2 + $0x1010] sm:$0xff] %v5566
    %6143 = vst [vmem:[#allocation2 + $0x1018] sm:$0xff] %v5567
    %6144 = vst [vmem:[#allocation2 + $0x1020] sm:$0xff] %v5568
    %6145 = vst [vmem:[#allocation2 + $0x1028] sm:$0xff] %v5569
    %6146 = vst [vmem:[#allocation2 + $0x1030] sm:$0xff] %v5570
    %6147 = vst [vmem:[#allocation2 + $0x1038] sm:$0xff] %v5571
    %6148 = vst [vmem:[#allocation2 + $0x1040] sm:$0xff] %v5572
    %6149 = vst [vmem:[#allocation2 + $0x1048] sm:$0xff] %v5573
    %6150 = vst [vmem:[#allocation2 + $0x1050] sm:$0xff] %v5574
    %6151 = vst [vmem:[#allocation2 + $0x1058] sm:$0xff] %v5575
    %6152 = vst [vmem:[#allocation2 + $0x1060] sm:$0xff] %v5576
    %6153 = vst [vmem:[#allocation2 + $0x1068] sm:$0xff] %v5577
    %6154 = vst [vmem:[#allocation2 + $0x1070] sm:$0xff] %v5578
    %6155 = vst [vmem:[#allocation2 + $0x1078] sm:$0xff] %v5579
    %6156 = vst [vmem:[#allocation2 + $0x1080] sm:$0xff] %v5580
    %6157 = vst [vmem:[#allocation2 + $0x1088] sm:$0xff] %v5581
    %6158 = vst [vmem:[#allocation2 + $0x1090] sm:$0xff] %v5582
    %6159 = vst [vmem:[#allocation2 + $0x1098] sm:$0xff] %v5583
    %6160 = vst [vmem:[#allocation2 + $0x10a0] sm:$0xff] %v5584
    %6161 = vst [vmem:[#allocation2 + $0x10a8] sm:$0xff] %v5585
    %6162 = vst [vmem:[#allocation2 + $0x10b0] sm:$0xff] %v5586
    %6163 = vst [vmem:[#allocation2 + $0x10b8] sm:$0xff] %v5587
    %6164 = vst [vmem:[#allocation2 + $0x10c0] sm:$0xff] %v5588
    %6165 = vst [vmem:[#allocation2 + $0x10c8] sm:$0xff] %v5589
    %6166 = vst [vmem:[#allocation2 + $0x10d0] sm:$0xff] %v5590
    %6167 = vst [vmem:[#allocation2 + $0x10d8] sm:$0xff] %v5591
    %6168 = vst [vmem:[#allocation2 + $0x10e0] sm:$0xff] %v5592
    %6169 = vst [vmem:[#allocation2 + $0x10e8] sm:$0xff] %v5593
    %6170 = vst [vmem:[#allocation2 + $0x10f0] sm:$0xff] %v5594
    %6171 = vst [vmem:[#allocation2 + $0x10f8] sm:$0xff] %v5595
    %6172 = vst [vmem:[#allocation2 + $0x1100] sm:$0xff] %v5596
    %6173 = vst [vmem:[#allocation2 + $0x1108] sm:$0xff] %v5597
    %6174 = vst [vmem:[#allocation2 + $0x1110] sm:$0xff] %v5598
    %6175 = vst [vmem:[#allocation2 + $0x1118] sm:$0xff] %v5599
    %6176 = vst [vmem:[#allocation2 + $0x1120] sm:$0xff] %v5600
    %6177 = vst [vmem:[#allocation2 + $0x1128] sm:$0xff] %v5601
    %6178 = vst [vmem:[#allocation2 + $0x1130] sm:$0xff] %v5602
    %6179 = vst [vmem:[#allocation2 + $0x1138] sm:$0xff] %v5603
    %6180 = vst [vmem:[#allocation2 + $0x1140] sm:$0xff] %v5604
    %6181 = vst [vmem:[#allocation2 + $0x1148] sm:$0xff] %v5605
    %6182 = vst [vmem:[#allocation2 + $0x1150] sm:$0xff] %v5606
    %6183 = vst [vmem:[#allocation2 + $0x1158] sm:$0xff] %v5607
    %6184 = vst [vmem:[#allocation2 + $0x1160] sm:$0xff] %v5608
    %6185 = vst [vmem:[#allocation2 + $0x1168] sm:$0xff] %v5609
    %6186 = vst [vmem:[#allocation2 + $0x1170] sm:$0xff] %v5610
    %6187 = vst [vmem:[#allocation2 + $0x1178] sm:$0xff] %v5611
    %6188 = vst [vmem:[#allocation2 + $0x1180] sm:$0xff] %v5612
    %6189 = vst [vmem:[#allocation2 + $0x1188] sm:$0xff] %v5613
    %6190 = vst [vmem:[#allocation2 + $0x1190] sm:$0xff] %v5614
    %6191 = vst [vmem:[#allocation2 + $0x1198] sm:$0xff] %v5615
    %6192 = vst [vmem:[#allocation2 + $0x11a0] sm:$0xff] %v5616
    %6193 = vst [vmem:[#allocation2 + $0x11a8] sm:$0xff] %v5617
    %6194 = vst [vmem:[#allocation2 + $0x11b0] sm:$0xff] %v5618
    %6195 = vst [vmem:[#allocation2 + $0x11b8] sm:$0xff] %v5619
    %6196 = vst [vmem:[#allocation2 + $0x11c0] sm:$0xff] %v5620
    %6197 = vst [vmem:[#allocation2 + $0x11c8] sm:$0xff] %v5621
    %6198 = vst [vmem:[#allocation2 + $0x11d0] sm:$0xff] %v5622
    %6199 = vst [vmem:[#allocation2 + $0x11d8] sm:$0xff] %v5623
    %6200 = vst [vmem:[#allocation2 + $0x11e0] sm:$0xff] %v5624
    %6201 = vst [vmem:[#allocation2 + $0x11e8] sm:$0xff] %v5625
    %6202 = vst [vmem:[#allocation2 + $0x11f0] sm:$0xff] %v5626
    %6203 = vst [vmem:[#allocation2 + $0x11f8] sm:$0xff] %v5627
    %v6204 = vld [vmem:[#allocation2 + $0x20] sm:$0xff]
    %v6205 = vld [vmem:[#allocation2 + $0x68] sm:$0xff]
    %v6206 = vld [vmem:[#allocation2 + $0xb0] sm:$0xff]
    %v6207 = vld [vmem:[#allocation2 + $0xf8] sm:$0xff]
    %v6208 = vld [vmem:[#allocation2 + $0x140] sm:$0xff]
    %v6209 = vld [vmem:[#allocation2 + $0x188] sm:$0xff]
    %v6210 = vld [vmem:[#allocation2 + $0x1d0] sm:$0xff]
    %v6211 = vld [vmem:[#allocation2 + $0x218] sm:$0xff]
    %v6212 = vld [vmem:[#allocation2 + $0x260] sm:$0xff]
    %v6213 = vld [vmem:[#allocation2 + $0x2a8] sm:$0xff]
    %v6214 = vld [vmem:[#allocation2 + $0x2f0] sm:$0xff]
    %v6215 = vld [vmem:[#allocation2 + $0x338] sm:$0xff]
    %v6216 = vld [vmem:[#allocation2 + $0x380] sm:$0xff]
    %v6217 = vld [vmem:[#allocation2 + $0x3c8] sm:$0xff]
    %v6218 = vld [vmem:[#allocation2 + $0x410] sm:$0xff]
    %v6219 = vld [vmem:[#allocation2 + $0x458] sm:$0xff]
    %v6220 = vld [vmem:[#allocation2 + $0x4a0] sm:$0xff]
    %v6221 = vld [vmem:[#allocation2 + $0x4e8] sm:$0xff]
    %v6222 = vld [vmem:[#allocation2 + $0x530] sm:$0xff]
    %v6223 = vld [vmem:[#allocation2 + $0x578] sm:$0xff]
    %v6224 = vld [vmem:[#allocation2 + $0x5c0] sm:$0xff]
    %v6225 = vld [vmem:[#allocation2 + $0x608] sm:$0xff]
    %v6226 = vld [vmem:[#allocation2 + $0x650] sm:$0xff]
    %v6227 = vld [vmem:[#allocation2 + $0x698] sm:$0xff]
    %v6228 = vld [vmem:[#allocation2 + $0x6e0] sm:$0xff]
    %v6229 = vld [vmem:[#allocation2 + $0x728] sm:$0xff]
    %v6230 = vld [vmem:[#allocation2 + $0x770] sm:$0xff]
    %v6231 = vld [vmem:[#allocation2 + $0x7b8] sm:$0xff]
    %v6232 = vld [vmem:[#allocation2 + $0x800] sm:$0xff]
    %v6233 = vld [vmem:[#allocation2 + $0x848] sm:$0xff]
    %v6234 = vld [vmem:[#allocation2 + $0x890] sm:$0xff]
    %v6235 = vld [vmem:[#allocation2 + $0x8d8] sm:$0xff]
    %v6236 = vld [vmem:[#allocation2 + $0x920] sm:$0xff]
    %v6237 = vld [vmem:[#allocation2 + $0x968] sm:$0xff]
    %v6238 = vld [vmem:[#allocation2 + $0x9b0] sm:$0xff]
    %v6239 = vld [vmem:[#allocation2 + $0x9f8] sm:$0xff]
    %v6240 = vld [vmem:[#allocation2 + $0xa40] sm:$0xff]
    %v6241 = vld [vmem:[#allocation2 + $0xa88] sm:$0xff]
    %v6242 = vld [vmem:[#allocation2 + $0xad0] sm:$0xff]
    %v6243 = vld [vmem:[#allocation2 + $0xb18] sm:$0xff]
    %v6244 = vld [vmem:[#allocation2 + $0xb60] sm:$0xff]
    %v6245 = vld [vmem:[#allocation2 + $0xba8] sm:$0xff]
    %v6246 = vld [vmem:[#allocation2 + $0xbf0] sm:$0xff]
    %v6247 = vld [vmem:[#allocation2 + $0xc38] sm:$0xff]
    %v6248 = vld [vmem:[#allocation2 + $0xc80] sm:$0xff]
    %v6249 = vld [vmem:[#allocation2 + $0xcc8] sm:$0xff]
    %v6250 = vld [vmem:[#allocation2 + $0xd10] sm:$0xff]
    %v6251 = vld [vmem:[#allocation2 + $0xd58] sm:$0xff]
    %v6252 = vld [vmem:[#allocation2 + $0xda0] sm:$0xff]
    %v6253 = vld [vmem:[#allocation2 + $0xde8] sm:$0xff]
    %v6254 = vld [vmem:[#allocation2 + $0xe30] sm:$0xff]
    %v6255 = vld [vmem:[#allocation2 + $0xe78] sm:$0xff]
    %v6256 = vld [vmem:[#allocation2 + $0xec0] sm:$0xff]
    %v6257 = vld [vmem:[#allocation2 + $0xf08] sm:$0xff]
    %v6258 = vld [vmem:[#allocation2 + $0xf50] sm:$0xff]
    %v6259 = vld [vmem:[#allocation2 + $0xf98] sm:$0xff]
    %v6260 = vld [vmem:[#allocation2 + $0xfe0] sm:$0xff]
    %v6261 = vld [vmem:[#allocation2 + $0x1028] sm:$0xff]
    %v6262 = vld [vmem:[#allocation2 + $0x1070] sm:$0xff]
    %v6263 = vld [vmem:[#allocation2 + $0x10b8] sm:$0xff]
    %v6264 = vld [vmem:[#allocation2 + $0x1100] sm:$0xff]
    %v6265 = vld [vmem:[#allocation2 + $0x1148] sm:$0xff]
    %v6266 = vld [vmem:[#allocation2 + $0x1190] sm:$0xff]
    %v6267 = vld [vmem:[#allocation2 + $0x11d8] sm:$0xff]
    %v6268 = vld [vmem:[#allocation2] sm:$0xff]
    %v6269 = vld [vmem:[#allocation2 + $0x48] sm:$0xff]
    %v6270 = vld [vmem:[#allocation2 + $0x90] sm:$0xff]
    %v6271 = vld [vmem:[#allocation2 + $0xd8] sm:$0xff]
    %v6272 = vld [vmem:[#allocation2 + $0x120] sm:$0xff]
    %v6273 = vld [vmem:[#allocation2 + $0x168] sm:$0xff]
    %v6274 = vld [vmem:[#allocation2 + $0x1b0] sm:$0xff]
    %v6275 = vld [vmem:[#allocation2 + $0x1f8] sm:$0xff]
    %v6276 = vld [vmem:[#allocation2 + $0x240] sm:$0xff]
    %v6277 = vld [vmem:[#allocation2 + $0x288] sm:$0xff]
    %v6278 = vld [vmem:[#allocation2 + $0x2d0] sm:$0xff]
    %v6279 = vld [vmem:[#allocation2 + $0x318] sm:$0xff]
    %v6280 = vld [vmem:[#allocation2 + $0x360] sm:$0xff]
    %v6281 = vld [vmem:[#allocation2 + $0x3a8] sm:$0xff]
    %v6282 = vld [vmem:[#allocation2 + $0x3f0] sm:$0xff]
    %v6283 = vld [vmem:[#allocation2 + $0x438] sm:$0xff]
    %v6284 = vld [vmem:[#allocation2 + $0x480] sm:$0xff]
    %v6285 = vld [vmem:[#allocation2 + $0x4c8] sm:$0xff]
    %v6286 = vld [vmem:[#allocation2 + $0x510] sm:$0xff]
    %v6287 = vld [vmem:[#allocation2 + $0x558] sm:$0xff]
    %v6288 = vld [vmem:[#allocation2 + $0x5a0] sm:$0xff]
    %v6289 = vld [vmem:[#allocation2 + $0x5e8] sm:$0xff]
    %v6290 = vld [vmem:[#allocation2 + $0x630] sm:$0xff]
    %v6291 = vld [vmem:[#allocation2 + $0x678] sm:$0xff]
    %v6292 = vld [vmem:[#allocation2 + $0x6c0] sm:$0xff]
    %v6293 = vld [vmem:[#allocation2 + $0x708] sm:$0xff]
    %v6294 = vld [vmem:[#allocation2 + $0x750] sm:$0xff]
    %v6295 = vld [vmem:[#allocation2 + $0x798] sm:$0xff]
    %v6296 = vld [vmem:[#allocation2 + $0x7e0] sm:$0xff]
    %v6297 = vld [vmem:[#allocation2 + $0x828] sm:$0xff]
    %v6298 = vld [vmem:[#allocation2 + $0x870] sm:$0xff]
    %v6299 = vld [vmem:[#allocation2 + $0x8b8] sm:$0xff]
    %v6300 = vld [vmem:[#allocation2 + $0x900] sm:$0xff]
    %v6301 = vld [vmem:[#allocation2 + $0x948] sm:$0xff]
    %v6302 = vld [vmem:[#allocation2 + $0x990] sm:$0xff]
    %v6303 = vld [vmem:[#allocation2 + $0x9d8] sm:$0xff]
    %v6304 = vld [vmem:[#allocation2 + $0xa20] sm:$0xff]
    %v6305 = vld [vmem:[#allocation2 + $0xa68] sm:$0xff]
    %v6306 = vld [vmem:[#allocation2 + $0xab0] sm:$0xff]
    %v6307 = vld [vmem:[#allocation2 + $0xaf8] sm:$0xff]
    %v6308 = vld [vmem:[#allocation2 + $0xb40] sm:$0xff]
    %v6309 = vld [vmem:[#allocation2 + $0xb88] sm:$0xff]
    %v6310 = vld [vmem:[#allocation2 + $0xbd0] sm:$0xff]
    %v6311 = vld [vmem:[#allocation2 + $0xc18] sm:$0xff]
    %v6312 = vld [vmem:[#allocation2 + $0xc60] sm:$0xff]
    %v6313 = vld [vmem:[#allocation2 + $0xca8] sm:$0xff]
    %v6314 = vld [vmem:[#allocation2 + $0xcf0] sm:$0xff]
    %v6315 = vld [vmem:[#allocation2 + $0xd38] sm:$0xff]
    %v6316 = vld [vmem:[#allocation2 + $0xd80] sm:$0xff]
    %v6317 = vld [vmem:[#allocation2 + $0xdc8] sm:$0xff]
    %v6318 = vld [vmem:[#allocation2 + $0xe10] sm:$0xff]
    %v6319 = vld [vmem:[#allocation2 + $0xe58] sm:$0xff]
    %v6320 = vld [vmem:[#allocation2 + $0xea0] sm:$0xff]
    %v6321 = vld [vmem:[#allocation2 + $0xee8] sm:$0xff]
    %v6322 = vld [vmem:[#allocation2 + $0xf30] sm:$0xff]
    %v6323 = vld [vmem:[#allocation2 + $0xf78] sm:$0xff]
    %v6324 = vld [vmem:[#allocation2 + $0xfc0] sm:$0xff]
    %v6325 = vld [vmem:[#allocation2 + $0x1008] sm:$0xff]
    %v6326 = vld [vmem:[#allocation2 + $0x1050] sm:$0xff]
    %v6327 = vld [vmem:[#allocation2 + $0x1098] sm:$0xff]
    %v6328 = vld [vmem:[#allocation2 + $0x10e0] sm:$0xff]
    %v6329 = vld [vmem:[#allocation2 + $0x1128] sm:$0xff]
    %v6330 = vld [vmem:[#allocation2 + $0x1170] sm:$0xff]
    %v6331 = vld [vmem:[#allocation2 + $0x11b8] sm:$0xff]
    %v6332 = vrot.slane %v6268, 7
    %v6333 = vrot.slane %v6269, 7
    %v6334 = vrot.slane %v6270, 7
    %v6335 = vrot.slane %v6271, 7
    %v6336 = vrot.slane %v6272, 7
    %v6337 = vrot.slane %v6273, 7
    %v6338 = vrot.slane %v6274, 7
    %v6339 = vrot.slane %v6275, 7
    %v6340 = vrot.slane %v6276, 7
    %v6341 = vrot.slane %v6277, 7
    %v6342 = vrot.slane %v6278, 7
    %v6343 = vrot.slane %v6279, 7
    %v6344 = vrot.slane %v6280, 7
    %v6345 = vrot.slane %v6281, 7
    %v6346 = vrot.slane %v6282, 7
    %v6347 = vrot.slane %v6283, 7
    %v6348 = vrot.slane %v6284, 7
    %v6349 = vrot.slane %v6285, 7
    %v6350 = vrot.slane %v6286, 7
    %v6351 = vrot.slane %v6287, 7
    %v6352 = vrot.slane %v6288, 7
    %v6353 = vrot.slane %v6289, 7
    %v6354 = vrot.slane %v6290, 7
    %v6355 = vrot.slane %v6291, 7
    %v6356 = vrot.slane %v6292, 7
    %v6357 = vrot.slane %v6293, 7
    %v6358 = vrot.slane %v6294, 7
    %v6359 = vrot.slane %v6295, 7
    %v6360 = vrot.slane %v6296, 7
    %v6361 = vrot.slane %v6297, 7
    %v6362 = vrot.slane %v6298, 7
    %v6363 = vrot.slane %v6299, 7
    %v6364 = vrot.slane %v6300, 7
    %v6365 = vrot.slane %v6301, 7
    %v6366 = vrot.slane %v6302, 7
    %v6367 = vrot.slane %v6303, 7
    %v6368 = vrot.slane %v6304, 7
    %v6369 = vrot.slane %v6305, 7
    %v6370 = vrot.slane %v6306, 7
    %v6371 = vrot.slane %v6307, 7
    %v6372 = vrot.slane %v6308, 7
    %v6373 = vrot.slane %v6309, 7
    %v6374 = vrot.slane %v6310, 7
    %v6375 = vrot.slane %v6311, 7
    %v6376 = vrot.slane %v6312, 7
    %v6377 = vrot.slane %v6313, 7
    %v6378 = vrot.slane %v6314, 7
    %v6379 = vrot.slane %v6315, 7
    %v6380 = vrot.slane %v6316, 7
    %v6381 = vrot.slane %v6317, 7
    %v6382 = vrot.slane %v6318, 7
    %v6383 = vrot.slane %v6319, 7
    %v6384 = vrot.slane %v6320, 7
    %v6385 = vrot.slane %v6321, 7
    %v6386 = vrot.slane %v6322, 7
    %v6387 = vrot.slane %v6323, 7
    %v6388 = vrot.slane %v6324, 7
    %v6389 = vrot.slane %v6325, 7
    %v6390 = vrot.slane %v6326, 7
    %v6391 = vrot.slane %v6327, 7
    %v6392 = vrot.slane %v6328, 7
    %v6393 = vrot.slane %v6329, 7
    %v6394 = vrot.slane %v6330, 7
    %v6395 = vrot.slane %v6331, 7
    %v6396 = vlaneseq
    %v6397 = vshrl.u32 %v6396, 7
    %vm6398 = vcmp.lt.s32.totalorder %v6397, 1
    %v6399 = vsel %vm6398, %v6394, %v6395
    %v6400 = vsel %vm6398, %v6393, %v6394
    %v6401 = vsel %vm6398, %v6392, %v6393
    %v6402 = vsel %vm6398, %v6391, %v6392
    %v6403 = vsel %vm6398, %v6390, %v6391
    %v6404 = vsel %vm6398, %v6389, %v6390
    %v6405 = vsel %vm6398, %v6388, %v6389
    %v6406 = vsel %vm6398, %v6387, %v6388
    %v6407 = vsel %vm6398, %v6386, %v6387
    %v6408 = vsel %vm6398, %v6385, %v6386
    %v6409 = vsel %vm6398, %v6384, %v6385
    %v6410 = vsel %vm6398, %v6383, %v6384
    %v6411 = vsel %vm6398, %v6382, %v6383
    %v6412 = vsel %vm6398, %v6381, %v6382
    %v6413 = vsel %vm6398, %v6380, %v6381
    %v6414 = vsel %vm6398, %v6379, %v6380
    %v6415 = vsel %vm6398, %v6378, %v6379
    %v6416 = vsel %vm6398, %v6377, %v6378
    %v6417 = vsel %vm6398, %v6376, %v6377
    %v6418 = vsel %vm6398, %v6375, %v6376
    %v6419 = vsel %vm6398, %v6374, %v6375
    %v6420 = vsel %vm6398, %v6373, %v6374
    %v6421 = vsel %vm6398, %v6372, %v6373
    %v6422 = vsel %vm6398, %v6371, %v6372
    %v6423 = vsel %vm6398, %v6370, %v6371
    %v6424 = vsel %vm6398, %v6369, %v6370
    %v6425 = vsel %vm6398, %v6368, %v6369
    %v6426 = vsel %vm6398, %v6367, %v6368
    %v6427 = vsel %vm6398, %v6366, %v6367
    %v6428 = vsel %vm6398, %v6365, %v6366
    %v6429 = vsel %vm6398, %v6364, %v6365
    %v6430 = vsel %vm6398, %v6363, %v6364
    %v6431 = vsel %vm6398, %v6362, %v6363
    %v6432 = vsel %vm6398, %v6361, %v6362
    %v6433 = vsel %vm6398, %v6360, %v6361
    %v6434 = vsel %vm6398, %v6359, %v6360
    %v6435 = vsel %vm6398, %v6358, %v6359
    %v6436 = vsel %vm6398, %v6357, %v6358
    %v6437 = vsel %vm6398, %v6356, %v6357
    %v6438 = vsel %vm6398, %v6355, %v6356
    %v6439 = vsel %vm6398, %v6354, %v6355
    %v6440 = vsel %vm6398, %v6353, %v6354
    %v6441 = vsel %vm6398, %v6352, %v6353
    %v6442 = vsel %vm6398, %v6351, %v6352
    %v6443 = vsel %vm6398, %v6350, %v6351
    %v6444 = vsel %vm6398, %v6349, %v6350
    %v6445 = vsel %vm6398, %v6348, %v6349
    %v6446 = vsel %vm6398, %v6347, %v6348
    %v6447 = vsel %vm6398, %v6346, %v6347
    %v6448 = vsel %vm6398, %v6345, %v6346
    %v6449 = vsel %vm6398, %v6344, %v6345
    %v6450 = vsel %vm6398, %v6343, %v6344
    %v6451 = vsel %vm6398, %v6342, %v6343
    %v6452 = vsel %vm6398, %v6341, %v6342
    %v6453 = vsel %vm6398, %v6340, %v6341
    %v6454 = vsel %vm6398, %v6339, %v6340
    %v6455 = vsel %vm6398, %v6338, %v6339
    %v6456 = vsel %vm6398, %v6337, %v6338
    %v6457 = vsel %vm6398, %v6336, %v6337
    %v6458 = vsel %vm6398, %v6335, %v6336
    %v6459 = vsel %vm6398, %v6334, %v6335
    %v6460 = vsel %vm6398, %v6333, %v6334
    %v6461 = vsel %vm6398, %v6332, %v6333
    %v6462 = vsel %vm6398, %v6395, %v6332
    %v6463 = vadd.f32 %v6204, %v6400
    %v6464 = vadd.f32 %v6205, %v6399
    %v6465 = vadd.f32 %v6206, %v6462
    %v6466 = vadd.f32 %v6207, %v6461
    %v6467 = vadd.f32 %v6208, %v6460
    %v6468 = vadd.f32 %v6209, %v6459
    %v6469 = vadd.f32 %v6210, %v6458
    %v6470 = vadd.f32 %v6211, %v6457
    %v6471 = vadd.f32 %v6212, %v6456
    %v6472 = vadd.f32 %v6213, %v6455
    %v6473 = vadd.f32 %v6214, %v6454
    %v6474 = vadd.f32 %v6215, %v6453
    %v6475 = vadd.f32 %v6216, %v6452
    %v6476 = vadd.f32 %v6217, %v6451
    %v6477 = vadd.f32 %v6218, %v6450
    %v6478 = vadd.f32 %v6219, %v6449
    %v6479 = vadd.f32 %v6220, %v6448
    %v6480 = vadd.f32 %v6221, %v6447
    %v6481 = vadd.f32 %v6222, %v6446
    %v6482 = vadd.f32 %v6223, %v6445
    %v6483 = vadd.f32 %v6224, %v6444
    %v6484 = vadd.f32 %v6225, %v6443
    %v6485 = vadd.f32 %v6226, %v6442
    %v6486 = vadd.f32 %v6227, %v6441
    %v6487 = vadd.f32 %v6228, %v6440
    %v6488 = vadd.f32 %v6229, %v6439
    %v6489 = vadd.f32 %v6230, %v6438
    %v6490 = vadd.f32 %v6231, %v6437
    %v6491 = vadd.f32 %v6232, %v6436
    %v6492 = vadd.f32 %v6233, %v6435
    %v6493 = vadd.f32 %v6234, %v6434
    %v6494 = vadd.f32 %v6235, %v6433
    %v6495 = vadd.f32 %v6236, %v6432
    %v6496 = vadd.f32 %v6237, %v6431
    %v6497 = vadd.f32 %v6238, %v6430
    %v6498 = vadd.f32 %v6239, %v6429
    %v6499 = vadd.f32 %v6240, %v6428
    %v6500 = vadd.f32 %v6241, %v6427
    %v6501 = vadd.f32 %v6242, %v6426
    %v6502 = vadd.f32 %v6243, %v6425
    %v6503 = vadd.f32 %v6244, %v6424
    %v6504 = vadd.f32 %v6245, %v6423
    %v6505 = vadd.f32 %v6246, %v6422
    %v6506 = vadd.f32 %v6247, %v6421
    %v6507 = vadd.f32 %v6248, %v6420
    %v6508 = vadd.f32 %v6249, %v6419
    %v6509 = vadd.f32 %v6250, %v6418
    %v6510 = vadd.f32 %v6251, %v6417
    %v6511 = vadd.f32 %v6252, %v6416
    %v6512 = vadd.f32 %v6253, %v6415
    %v6513 = vadd.f32 %v6254, %v6414
    %v6514 = vadd.f32 %v6255, %v6413
    %v6515 = vadd.f32 %v6256, %v6412
    %v6516 = vadd.f32 %v6257, %v6411
    %v6517 = vadd.f32 %v6258, %v6410
    %v6518 = vadd.f32 %v6259, %v6409
    %v6519 = vadd.f32 %v6260, %v6408
    %v6520 = vadd.f32 %v6261, %v6407
    %v6521 = vadd.f32 %v6262, %v6406
    %v6522 = vadd.f32 %v6263, %v6405
    %v6523 = vadd.f32 %v6264, %v6404
    %v6524 = vadd.f32 %v6265, %v6403
    %v6525 = vadd.f32 %v6266, %v6402
    %v6526 = vadd.f32 %v6267, %v6401
    %v6527 = vld [vmem:[#allocation2 + $0x8] sm:$0xff]
    %v6528 = vld [vmem:[#allocation2 + $0x50] sm:$0xff]
    %v6529 = vld [vmem:[#allocation2 + $0x98] sm:$0xff]
    %v6530 = vld [vmem:[#allocation2 + $0xe0] sm:$0xff]
    %v6531 = vld [vmem:[#allocation2 + $0x128] sm:$0xff]
    %v6532 = vld [vmem:[#allocation2 + $0x170] sm:$0xff]
    %v6533 = vld [vmem:[#allocation2 + $0x1b8] sm:$0xff]
    %v6534 = vld [vmem:[#allocation2 + $0x200] sm:$0xff]
    %v6535 = vld [vmem:[#allocation2 + $0x248] sm:$0xff]
    %v6536 = vld [vmem:[#allocation2 + $0x290] sm:$0xff]
    %v6537 = vld [vmem:[#allocation2 + $0x2d8] sm:$0xff]
    %v6538 = vld [vmem:[#allocation2 + $0x320] sm:$0xff]
    %v6539 = vld [vmem:[#allocation2 + $0x368] sm:$0xff]
    %v6540 = vld [vmem:[#allocation2 + $0x3b0] sm:$0xff]
    %v6541 = vld [vmem:[#allocation2 + $0x3f8] sm:$0xff]
    %v6542 = vld [vmem:[#allocation2 + $0x440] sm:$0xff]
    %v6543 = vld [vmem:[#allocation2 + $0x488] sm:$0xff]
    %v6544 = vld [vmem:[#allocation2 + $0x4d0] sm:$0xff]
    %v6545 = vld [vmem:[#allocation2 + $0x518] sm:$0xff]
    %v6546 = vld [vmem:[#allocation2 + $0x560] sm:$0xff]
    %v6547 = vld [vmem:[#allocation2 + $0x5a8] sm:$0xff]
    %v6548 = vld [vmem:[#allocation2 + $0x5f0] sm:$0xff]
    %v6549 = vld [vmem:[#allocation2 + $0x638] sm:$0xff]
    %v6550 = vld [vmem:[#allocation2 + $0x680] sm:$0xff]
    %v6551 = vld [vmem:[#allocation2 + $0x6c8] sm:$0xff]
    %v6552 = vld [vmem:[#allocation2 + $0x710] sm:$0xff]
    %v6553 = vld [vmem:[#allocation2 + $0x758] sm:$0xff]
    %v6554 = vld [vmem:[#allocation2 + $0x7a0] sm:$0xff]
    %v6555 = vld [vmem:[#allocation2 + $0x7e8] sm:$0xff]
    %v6556 = vld [vmem:[#allocation2 + $0x830] sm:$0xff]
    %v6557 = vld [vmem:[#allocation2 + $0x878] sm:$0xff]
    %v6558 = vld [vmem:[#allocation2 + $0x8c0] sm:$0xff]
    %v6559 = vld [vmem:[#allocation2 + $0x908] sm:$0xff]
    %v6560 = vld [vmem:[#allocation2 + $0x950] sm:$0xff]
    %v6561 = vld [vmem:[#allocation2 + $0x998] sm:$0xff]
    %v6562 = vld [vmem:[#allocation2 + $0x9e0] sm:$0xff]
    %v6563 = vld [vmem:[#allocation2 + $0xa28] sm:$0xff]
    %v6564 = vld [vmem:[#allocation2 + $0xa70] sm:$0xff]
    %v6565 = vld [vmem:[#allocation2 + $0xab8] sm:$0xff]
    %v6566 = vld [vmem:[#allocation2 + $0xb00] sm:$0xff]
    %v6567 = vld [vmem:[#allocation2 + $0xb48] sm:$0xff]
    %v6568 = vld [vmem:[#allocation2 + $0xb90] sm:$0xff]
    %v6569 = vld [vmem:[#allocation2 + $0xbd8] sm:$0xff]
    %v6570 = vld [vmem:[#allocation2 + $0xc20] sm:$0xff]
    %v6571 = vld [vmem:[#allocation2 + $0xc68] sm:$0xff]
    %v6572 = vld [vmem:[#allocation2 + $0xcb0] sm:$0xff]
    %v6573 = vld [vmem:[#allocation2 + $0xcf8] sm:$0xff]
    %v6574 = vld [vmem:[#allocation2 + $0xd40] sm:$0xff]
    %v6575 = vld [vmem:[#allocation2 + $0xd88] sm:$0xff]
    %v6576 = vld [vmem:[#allocation2 + $0xdd0] sm:$0xff]
    %v6577 = vld [vmem:[#allocation2 + $0xe18] sm:$0xff]
    %v6578 = vld [vmem:[#allocation2 + $0xe60] sm:$0xff]
    %v6579 = vld [vmem:[#allocation2 + $0xea8] sm:$0xff]
    %v6580 = vld [vmem:[#allocation2 + $0xef0] sm:$0xff]
    %v6581 = vld [vmem:[#allocation2 + $0xf38] sm:$0xff]
    %v6582 = vld [vmem:[#allocation2 + $0xf80] sm:$0xff]
    %v6583 = vld [vmem:[#allocation2 + $0xfc8] sm:$0xff]
    %v6584 = vld [vmem:[#allocation2 + $0x1010] sm:$0xff]
    %v6585 = vld [vmem:[#allocation2 + $0x1058] sm:$0xff]
    %v6586 = vld [vmem:[#allocation2 + $0x10a0] sm:$0xff]
    %v6587 = vld [vmem:[#allocation2 + $0x10e8] sm:$0xff]
    %v6588 = vld [vmem:[#allocation2 + $0x1130] sm:$0xff]
    %v6589 = vld [vmem:[#allocation2 + $0x1178] sm:$0xff]
    %v6590 = vld [vmem:[#allocation2 + $0x11c0] sm:$0xff]
    %v6591 = vadd.f32 %v6463, %v6589
    %v6592 = vadd.f32 %v6464, %v6590
    %v6593 = vadd.f32 %v6465, %v6527
    %v6594 = vadd.f32 %v6466, %v6528
    %v6595 = vadd.f32 %v6467, %v6529
    %v6596 = vadd.f32 %v6468, %v6530
    %v6597 = vadd.f32 %v6469, %v6531
    %v6598 = vadd.f32 %v6470, %v6532
    %v6599 = vadd.f32 %v6471, %v6533
    %v6600 = vadd.f32 %v6472, %v6534
    %v6601 = vadd.f32 %v6473, %v6535
    %v6602 = vadd.f32 %v6474, %v6536
    %v6603 = vadd.f32 %v6475, %v6537
    %v6604 = vadd.f32 %v6476, %v6538
    %v6605 = vadd.f32 %v6477, %v6539
    %v6606 = vadd.f32 %v6478, %v6540
    %v6607 = vadd.f32 %v6479, %v6541
    %v6608 = vadd.f32 %v6480, %v6542
    %v6609 = vadd.f32 %v6481, %v6543
    %v6610 = vadd.f32 %v6482, %v6544
    %v6611 = vadd.f32 %v6483, %v6545
    %v6612 = vadd.f32 %v6484, %v6546
    %v6613 = vadd.f32 %v6485, %v6547
    %v6614 = vadd.f32 %v6486, %v6548
    %v6615 = vadd.f32 %v6487, %v6549
    %v6616 = vadd.f32 %v6488, %v6550
    %v6617 = vadd.f32 %v6489, %v6551
    %v6618 = vadd.f32 %v6490, %v6552
    %v6619 = vadd.f32 %v6491, %v6553
    %v6620 = vadd.f32 %v6492, %v6554
    %v6621 = vadd.f32 %v6493, %v6555
    %v6622 = vadd.f32 %v6494, %v6556
    %v6623 = vadd.f32 %v6495, %v6557
    %v6624 = vadd.f32 %v6496, %v6558
    %v6625 = vadd.f32 %v6497, %v6559
    %v6626 = vadd.f32 %v6498, %v6560
    %v6627 = vadd.f32 %v6499, %v6561
    %v6628 = vadd.f32 %v6500, %v6562
    %v6629 = vadd.f32 %v6501, %v6563
    %v6630 = vadd.f32 %v6502, %v6564
    %v6631 = vadd.f32 %v6503, %v6565
    %v6632 = vadd.f32 %v6504, %v6566
    %v6633 = vadd.f32 %v6505, %v6567
    %v6634 = vadd.f32 %v6506, %v6568
    %v6635 = vadd.f32 %v6507, %v6569
    %v6636 = vadd.f32 %v6508, %v6570
    %v6637 = vadd.f32 %v6509, %v6571
    %v6638 = vadd.f32 %v6510, %v6572
    %v6639 = vadd.f32 %v6511, %v6573
    %v6640 = vadd.f32 %v6512, %v6574
    %v6641 = vadd.f32 %v6513, %v6575
    %v6642 = vadd.f32 %v6514, %v6576
    %v6643 = vadd.f32 %v6515, %v6577
    %v6644 = vadd.f32 %v6516, %v6578
    %v6645 = vadd.f32 %v6517, %v6579
    %v6646 = vadd.f32 %v6518, %v6580
    %v6647 = vadd.f32 %v6519, %v6581
    %v6648 = vadd.f32 %v6520, %v6582
    %v6649 = vadd.f32 %v6521, %v6583
    %v6650 = vadd.f32 %v6522, %v6584
    %v6651 = vadd.f32 %v6523, %v6585
    %v6652 = vadd.f32 %v6524, %v6586
    %v6653 = vadd.f32 %v6525, %v6587
    %v6654 = vadd.f32 %v6526, %v6588
    %v6655 = vld [vmem:[#allocation2 + $0x10] sm:$0xff]
    %v6656 = vld [vmem:[#allocation2 + $0x58] sm:$0xff]
    %v6657 = vld [vmem:[#allocation2 + $0xa0] sm:$0xff]
    %v6658 = vld [vmem:[#allocation2 + $0xe8] sm:$0xff]
    %v6659 = vld [vmem:[#allocation2 + $0x130] sm:$0xff]
    %v6660 = vld [vmem:[#allocation2 + $0x178] sm:$0xff]
    %v6661 = vld [vmem:[#allocation2 + $0x1c0] sm:$0xff]
    %v6662 = vld [vmem:[#allocation2 + $0x208] sm:$0xff]
    %v6663 = vld [vmem:[#allocation2 + $0x250] sm:$0xff]
    %v6664 = vld [vmem:[#allocation2 + $0x298] sm:$0xff]
    %v6665 = vld [vmem:[#allocation2 + $0x2e0] sm:$0xff]
    %v6666 = vld [vmem:[#allocation2 + $0x328] sm:$0xff]
    %v6667 = vld [vmem:[#allocation2 + $0x370] sm:$0xff]
    %v6668 = vld [vmem:[#allocation2 + $0x3b8] sm:$0xff]
    %v6669 = vld [vmem:[#allocation2 + $0x400] sm:$0xff]
    %v6670 = vld [vmem:[#allocation2 + $0x448] sm:$0xff]
    %v6671 = vld [vmem:[#allocation2 + $0x490] sm:$0xff]
    %v6672 = vld [vmem:[#allocation2 + $0x4d8] sm:$0xff]
    %v6673 = vld [vmem:[#allocation2 + $0x520] sm:$0xff]
    %v6674 = vld [vmem:[#allocation2 + $0x568] sm:$0xff]
    %v6675 = vld [vmem:[#allocation2 + $0x5b0] sm:$0xff]
    %v6676 = vld [vmem:[#allocation2 + $0x5f8] sm:$0xff]
    %v6677 = vld [vmem:[#allocation2 + $0x640] sm:$0xff]
    %v6678 = vld [vmem:[#allocation2 + $0x688] sm:$0xff]
    %v6679 = vld [vmem:[#allocation2 + $0x6d0] sm:$0xff]
    %v6680 = vld [vmem:[#allocation2 + $0x718] sm:$0xff]
    %v6681 = vld [vmem:[#allocation2 + $0x760] sm:$0xff]
    %v6682 = vld [vmem:[#allocation2 + $0x7a8] sm:$0xff]
    %v6683 = vld [vmem:[#allocation2 + $0x7f0] sm:$0xff]
    %v6684 = vld [vmem:[#allocation2 + $0x838] sm:$0xff]
    %v6685 = vld [vmem:[#allocation2 + $0x880] sm:$0xff]
    %v6686 = vld [vmem:[#allocation2 + $0x8c8] sm:$0xff]
    %v6687 = vld [vmem:[#allocation2 + $0x910] sm:$0xff]
    %v6688 = vld [vmem:[#allocation2 + $0x958] sm:$0xff]
    %v6689 = vld [vmem:[#allocation2 + $0x9a0] sm:$0xff]
    %v6690 = vld [vmem:[#allocation2 + $0x9e8] sm:$0xff]
    %v6691 = vld [vmem:[#allocation2 + $0xa30] sm:$0xff]
    %v6692 = vld [vmem:[#allocation2 + $0xa78] sm:$0xff]
    %v6693 = vld [vmem:[#allocation2 + $0xac0] sm:$0xff]
    %v6694 = vld [vmem:[#allocation2 + $0xb08] sm:$0xff]
    %v6695 = vld [vmem:[#allocation2 + $0xb50] sm:$0xff]
    %v6696 = vld [vmem:[#allocation2 + $0xb98] sm:$0xff]
    %v6697 = vld [vmem:[#allocation2 + $0xbe0] sm:$0xff]
    %v6698 = vld [vmem:[#allocation2 + $0xc28] sm:$0xff]
    %v6699 = vld [vmem:[#allocation2 + $0xc70] sm:$0xff]
    %v6700 = vld [vmem:[#allocation2 + $0xcb8] sm:$0xff]
    %v6701 = vld [vmem:[#allocation2 + $0xd00] sm:$0xff]
    %v6702 = vld [vmem:[#allocation2 + $0xd48] sm:$0xff]
    %v6703 = vld [vmem:[#allocation2 + $0xd90] sm:$0xff]
    %v6704 = vld [vmem:[#allocation2 + $0xdd8] sm:$0xff]
    %v6705 = vld [vmem:[#allocation2 + $0xe20] sm:$0xff]
    %v6706 = vld [vmem:[#allocation2 + $0xe68] sm:$0xff]
    %v6707 = vld [vmem:[#allocation2 + $0xeb0] sm:$0xff]
    %v6708 = vld [vmem:[#allocation2 + $0xef8] sm:$0xff]
    %v6709 = vld [vmem:[#allocation2 + $0xf40] sm:$0xff]
    %v6710 = vld [vmem:[#allocation2 + $0xf88] sm:$0xff]
    %v6711 = vld [vmem:[#allocation2 + $0xfd0] sm:$0xff]
    %v6712 = vld [vmem:[#allocation2 + $0x1018] sm:$0xff]
    %v6713 = vld [vmem:[#allocation2 + $0x1060] sm:$0xff]
    %v6714 = vld [vmem:[#allocation2 + $0x10a8] sm:$0xff]
    %v6715 = vld [vmem:[#allocation2 + $0x10f0] sm:$0xff]
    %v6716 = vld [vmem:[#allocation2 + $0x1138] sm:$0xff]
    %v6717 = vld [vmem:[#allocation2 + $0x1180] sm:$0xff]
    %v6718 = vld [vmem:[#allocation2 + $0x11c8] sm:$0xff]
    %v6719 = vrot.slane %v6655, 1
    %v6720 = vrot.slane %v6656, 1
    %v6721 = vrot.slane %v6657, 1
    %v6722 = vrot.slane %v6658, 1
    %v6723 = vrot.slane %v6659, 1
    %v6724 = vrot.slane %v6660, 1
    %v6725 = vrot.slane %v6661, 1
    %v6726 = vrot.slane %v6662, 1
    %v6727 = vrot.slane %v6663, 1
    %v6728 = vrot.slane %v6664, 1
    %v6729 = vrot.slane %v6665, 1
    %v6730 = vrot.slane %v6666, 1
    %v6731 = vrot.slane %v6667, 1
    %v6732 = vrot.slane %v6668, 1
    %v6733 = vrot.slane %v6669, 1
    %v6734 = vrot.slane %v6670, 1
    %v6735 = vrot.slane %v6671, 1
    %v6736 = vrot.slane %v6672, 1
    %v6737 = vrot.slane %v6673, 1
    %v6738 = vrot.slane %v6674, 1
    %v6739 = vrot.slane %v6675, 1
    %v6740 = vrot.slane %v6676, 1
    %v6741 = vrot.slane %v6677, 1
    %v6742 = vrot.slane %v6678, 1
    %v6743 = vrot.slane %v6679, 1
    %v6744 = vrot.slane %v6680, 1
    %v6745 = vrot.slane %v6681, 1
    %v6746 = vrot.slane %v6682, 1
    %v6747 = vrot.slane %v6683, 1
    %v6748 = vrot.slane %v6684, 1
    %v6749 = vrot.slane %v6685, 1
    %v6750 = vrot.slane %v6686, 1
    %v6751 = vrot.slane %v6687, 1
    %v6752 = vrot.slane %v6688, 1
    %v6753 = vrot.slane %v6689, 1
    %v6754 = vrot.slane %v6690, 1
    %v6755 = vrot.slane %v6691, 1
    %v6756 = vrot.slane %v6692, 1
    %v6757 = vrot.slane %v6693, 1
    %v6758 = vrot.slane %v6694, 1
    %v6759 = vrot.slane %v6695, 1
    %v6760 = vrot.slane %v6696, 1
    %v6761 = vrot.slane %v6697, 1
    %v6762 = vrot.slane %v6698, 1
    %v6763 = vrot.slane %v6699, 1
    %v6764 = vrot.slane %v6700, 1
    %v6765 = vrot.slane %v6701, 1
    %v6766 = vrot.slane %v6702, 1
    %v6767 = vrot.slane %v6703, 1
    %v6768 = vrot.slane %v6704, 1
    %v6769 = vrot.slane %v6705, 1
    %v6770 = vrot.slane %v6706, 1
    %v6771 = vrot.slane %v6707, 1
    %v6772 = vrot.slane %v6708, 1
    %v6773 = vrot.slane %v6709, 1
    %v6774 = vrot.slane %v6710, 1
    %v6775 = vrot.slane %v6711, 1
    %v6776 = vrot.slane %v6712, 1
    %v6777 = vrot.slane %v6713, 1
    %v6778 = vrot.slane %v6714, 1
    %v6779 = vrot.slane %v6715, 1
    %v6780 = vrot.slane %v6716, 1
    %v6781 = vrot.slane %v6717, 1
    %v6782 = vrot.slane %v6718, 1
    %vm6783 = vcmp.lt.s32.totalorder %v6397, 7
    %v6784 = vsel %vm6783, %v6781, %v6782
    %v6785 = vsel %vm6783, %v6780, %v6781
    %v6786 = vsel %vm6783, %v6779, %v6780
    %v6787 = vsel %vm6783, %v6778, %v6779
    %v6788 = vsel %vm6783, %v6777, %v6778
    %v6789 = vsel %vm6783, %v6776, %v6777
    %v6790 = vsel %vm6783, %v6775, %v6776
    %v6791 = vsel %vm6783, %v6774, %v6775
    %v6792 = vsel %vm6783, %v6773, %v6774
    %v6793 = vsel %vm6783, %v6772, %v6773
    %v6794 = vsel %vm6783, %v6771, %v6772
    %v6795 = vsel %vm6783, %v6770, %v6771
    %v6796 = vsel %vm6783, %v6769, %v6770
    %v6797 = vsel %vm6783, %v6768, %v6769
    %v6798 = vsel %vm6783, %v6767, %v6768
    %v6799 = vsel %vm6783, %v6766, %v6767
    %v6800 = vsel %vm6783, %v6765, %v6766
    %v6801 = vsel %vm6783, %v6764, %v6765
    %v6802 = vsel %vm6783, %v6763, %v6764
    %v6803 = vsel %vm6783, %v6762, %v6763
    %v6804 = vsel %vm6783, %v6761, %v6762
    %v6805 = vsel %vm6783, %v6760, %v6761
    %v6806 = vsel %vm6783, %v6759, %v6760
    %v6807 = vsel %vm6783, %v6758, %v6759
    %v6808 = vsel %vm6783, %v6757, %v6758
    %v6809 = vsel %vm6783, %v6756, %v6757
    %v6810 = vsel %vm6783, %v6755, %v6756
    %v6811 = vsel %vm6783, %v6754, %v6755
    %v6812 = vsel %vm6783, %v6753, %v6754
    %v6813 = vsel %vm6783, %v6752, %v6753
    %v6814 = vsel %vm6783, %v6751, %v6752
    %v6815 = vsel %vm6783, %v6750, %v6751
    %v6816 = vsel %vm6783, %v6749, %v6750
    %v6817 = vsel %vm6783, %v6748, %v6749
    %v6818 = vsel %vm6783, %v6747, %v6748
    %v6819 = vsel %vm6783, %v6746, %v6747
    %v6820 = vsel %vm6783, %v6745, %v6746
    %v6821 = vsel %vm6783, %v6744, %v6745
    %v6822 = vsel %vm6783, %v6743, %v6744
    %v6823 = vsel %vm6783, %v6742, %v6743
    %v6824 = vsel %vm6783, %v6741, %v6742
    %v6825 = vsel %vm6783, %v6740, %v6741
    %v6826 = vsel %vm6783, %v6739, %v6740
    %v6827 = vsel %vm6783, %v6738, %v6739
    %v6828 = vsel %vm6783, %v6737, %v6738
    %v6829 = vsel %vm6783, %v6736, %v6737
    %v6830 = vsel %vm6783, %v6735, %v6736
    %v6831 = vsel %vm6783, %v6734, %v6735
    %v6832 = vsel %vm6783, %v6733, %v6734
    %v6833 = vsel %vm6783, %v6732, %v6733
    %v6834 = vsel %vm6783, %v6731, %v6732
    %v6835 = vsel %vm6783, %v6730, %v6731
    %v6836 = vsel %vm6783, %v6729, %v6730
    %v6837 = vsel %vm6783, %v6728, %v6729
    %v6838 = vsel %vm6783, %v6727, %v6728
    %v6839 = vsel %vm6783, %v6726, %v6727
    %v6840 = vsel %vm6783, %v6725, %v6726
    %v6841 = vsel %vm6783, %v6724, %v6725
    %v6842 = vsel %vm6783, %v6723, %v6724
    %v6843 = vsel %vm6783, %v6722, %v6723
    %v6844 = vsel %vm6783, %v6721, %v6722
    %v6845 = vsel %vm6783, %v6720, %v6721
    %v6846 = vsel %vm6783, %v6719, %v6720
    %v6847 = vsel %vm6783, %v6782, %v6719
    %v6848 = vadd.f32 %v6591, %v6784
    %v6849 = vadd.f32 %v6592, %v6847
    %v6850 = vadd.f32 %v6593, %v6846
    %v6851 = vadd.f32 %v6594, %v6845
    %v6852 = vadd.f32 %v6595, %v6844
    %v6853 = vadd.f32 %v6596, %v6843
    %v6854 = vadd.f32 %v6597, %v6842
    %v6855 = vadd.f32 %v6598, %v6841
    %v6856 = vadd.f32 %v6599, %v6840
    %v6857 = vadd.f32 %v6600, %v6839
    %v6858 = vadd.f32 %v6601, %v6838
    %v6859 = vadd.f32 %v6602, %v6837
    %v6860 = vadd.f32 %v6603, %v6836
    %v6861 = vadd.f32 %v6604, %v6835
    %v6862 = vadd.f32 %v6605, %v6834
    %v6863 = vadd.f32 %v6606, %v6833
    %v6864 = vadd.f32 %v6607, %v6832
    %v6865 = vadd.f32 %v6608, %v6831
    %v6866 = vadd.f32 %v6609, %v6830
    %v6867 = vadd.f32 %v6610, %v6829
    %v6868 = vadd.f32 %v6611, %v6828
    %v6869 = vadd.f32 %v6612, %v6827
    %v6870 = vadd.f32 %v6613, %v6826
    %v6871 = vadd.f32 %v6614, %v6825
    %v6872 = vadd.f32 %v6615, %v6824
    %v6873 = vadd.f32 %v6616, %v6823
    %v6874 = vadd.f32 %v6617, %v6822
    %v6875 = vadd.f32 %v6618, %v6821
    %v6876 = vadd.f32 %v6619, %v6820
    %v6877 = vadd.f32 %v6620, %v6819
    %v6878 = vadd.f32 %v6621, %v6818
    %v6879 = vadd.f32 %v6622, %v6817
    %v6880 = vadd.f32 %v6623, %v6816
    %v6881 = vadd.f32 %v6624, %v6815
    %v6882 = vadd.f32 %v6625, %v6814
    %v6883 = vadd.f32 %v6626, %v6813
    %v6884 = vadd.f32 %v6627, %v6812
    %v6885 = vadd.f32 %v6628, %v6811
    %v6886 = vadd.f32 %v6629, %v6810
    %v6887 = vadd.f32 %v6630, %v6809
    %v6888 = vadd.f32 %v6631, %v6808
    %v6889 = vadd.f32 %v6632, %v6807
    %v6890 = vadd.f32 %v6633, %v6806
    %v6891 = vadd.f32 %v6634, %v6805
    %v6892 = vadd.f32 %v6635, %v6804
    %v6893 = vadd.f32 %v6636, %v6803
    %v6894 = vadd.f32 %v6637, %v6802
    %v6895 = vadd.f32 %v6638, %v6801
    %v6896 = vadd.f32 %v6639, %v6800
    %v6897 = vadd.f32 %v6640, %v6799
    %v6898 = vadd.f32 %v6641, %v6798
    %v6899 = vadd.f32 %v6642, %v6797
    %v6900 = vadd.f32 %v6643, %v6796
    %v6901 = vadd.f32 %v6644, %v6795
    %v6902 = vadd.f32 %v6645, %v6794
    %v6903 = vadd.f32 %v6646, %v6793
    %v6904 = vadd.f32 %v6647, %v6792
    %v6905 = vadd.f32 %v6648, %v6791
    %v6906 = vadd.f32 %v6649, %v6790
    %v6907 = vadd.f32 %v6650, %v6789
    %v6908 = vadd.f32 %v6651, %v6788
    %v6909 = vadd.f32 %v6652, %v6787
    %v6910 = vadd.f32 %v6653, %v6786
    %v6911 = vadd.f32 %v6654, %v6785
    %v6912 = vld [vmem:[#allocation2 + $0x18] sm:$0xff]
    %v6913 = vld [vmem:[#allocation2 + $0x60] sm:$0xff]
    %v6914 = vld [vmem:[#allocation2 + $0xa8] sm:$0xff]
    %v6915 = vld [vmem:[#allocation2 + $0xf0] sm:$0xff]
    %v6916 = vld [vmem:[#allocation2 + $0x138] sm:$0xff]
    %v6917 = vld [vmem:[#allocation2 + $0x180] sm:$0xff]
    %v6918 = vld [vmem:[#allocation2 + $0x1c8] sm:$0xff]
    %v6919 = vld [vmem:[#allocation2 + $0x210] sm:$0xff]
    %v6920 = vld [vmem:[#allocation2 + $0x258] sm:$0xff]
    %v6921 = vld [vmem:[#allocation2 + $0x2a0] sm:$0xff]
    %v6922 = vld [vmem:[#allocation2 + $0x2e8] sm:$0xff]
    %v6923 = vld [vmem:[#allocation2 + $0x330] sm:$0xff]
    %v6924 = vld [vmem:[#allocation2 + $0x378] sm:$0xff]
    %v6925 = vld [vmem:[#allocation2 + $0x3c0] sm:$0xff]
    %v6926 = vld [vmem:[#allocation2 + $0x408] sm:$0xff]
    %v6927 = vld [vmem:[#allocation2 + $0x450] sm:$0xff]
    %v6928 = vld [vmem:[#allocation2 + $0x498] sm:$0xff]
    %v6929 = vld [vmem:[#allocation2 + $0x4e0] sm:$0xff]
    %v6930 = vld [vmem:[#allocation2 + $0x528] sm:$0xff]
    %v6931 = vld [vmem:[#allocation2 + $0x570] sm:$0xff]
    %v6932 = vld [vmem:[#allocation2 + $0x5b8] sm:$0xff]
    %v6933 = vld [vmem:[#allocation2 + $0x600] sm:$0xff]
    %v6934 = vld [vmem:[#allocation2 + $0x648] sm:$0xff]
    %v6935 = vld [vmem:[#allocation2 + $0x690] sm:$0xff]
    %v6936 = vld [vmem:[#allocation2 + $0x6d8] sm:$0xff]
    %v6937 = vld [vmem:[#allocation2 + $0x720] sm:$0xff]
    %v6938 = vld [vmem:[#allocation2 + $0x768] sm:$0xff]
    %v6939 = vld [vmem:[#allocation2 + $0x7b0] sm:$0xff]
    %v6940 = vld [vmem:[#allocation2 + $0x7f8] sm:$0xff]
    %v6941 = vld [vmem:[#allocation2 + $0x840] sm:$0xff]
    %v6942 = vld [vmem:[#allocation2 + $0x888] sm:$0xff]
    %v6943 = vld [vmem:[#allocation2 + $0x8d0] sm:$0xff]
    %v6944 = vld [vmem:[#allocation2 + $0x918] sm:$0xff]
    %v6945 = vld [vmem:[#allocation2 + $0x960] sm:$0xff]
    %v6946 = vld [vmem:[#allocation2 + $0x9a8] sm:$0xff]
    %v6947 = vld [vmem:[#allocation2 + $0x9f0] sm:$0xff]
    %v6948 = vld [vmem:[#allocation2 + $0xa38] sm:$0xff]
    %v6949 = vld [vmem:[#allocation2 + $0xa80] sm:$0xff]
    %v6950 = vld [vmem:[#allocation2 + $0xac8] sm:$0xff]
    %v6951 = vld [vmem:[#allocation2 + $0xb10] sm:$0xff]
    %v6952 = vld [vmem:[#allocation2 + $0xb58] sm:$0xff]
    %v6953 = vld [vmem:[#allocation2 + $0xba0] sm:$0xff]
    %v6954 = vld [vmem:[#allocation2 + $0xbe8] sm:$0xff]
    %v6955 = vld [vmem:[#allocation2 + $0xc30] sm:$0xff]
    %v6956 = vld [vmem:[#allocation2 + $0xc78] sm:$0xff]
    %v6957 = vld [vmem:[#allocation2 + $0xcc0] sm:$0xff]
    %v6958 = vld [vmem:[#allocation2 + $0xd08] sm:$0xff]
    %v6959 = vld [vmem:[#allocation2 + $0xd50] sm:$0xff]
    %v6960 = vld [vmem:[#allocation2 + $0xd98] sm:$0xff]
    %v6961 = vld [vmem:[#allocation2 + $0xde0] sm:$0xff]
    %v6962 = vld [vmem:[#allocation2 + $0xe28] sm:$0xff]
    %v6963 = vld [vmem:[#allocation2 + $0xe70] sm:$0xff]
    %v6964 = vld [vmem:[#allocation2 + $0xeb8] sm:$0xff]
    %v6965 = vld [vmem:[#allocation2 + $0xf00] sm:$0xff]
    %v6966 = vld [vmem:[#allocation2 + $0xf48] sm:$0xff]
    %v6967 = vld [vmem:[#allocation2 + $0xf90] sm:$0xff]
    %v6968 = vld [vmem:[#allocation2 + $0xfd8] sm:$0xff]
    %v6969 = vld [vmem:[#allocation2 + $0x1020] sm:$0xff]
    %v6970 = vld [vmem:[#allocation2 + $0x1068] sm:$0xff]
    %v6971 = vld [vmem:[#allocation2 + $0x10b0] sm:$0xff]
    %v6972 = vld [vmem:[#allocation2 + $0x10f8] sm:$0xff]
    %v6973 = vld [vmem:[#allocation2 + $0x1140] sm:$0xff]
    %v6974 = vld [vmem:[#allocation2 + $0x1188] sm:$0xff]
    %v6975 = vld [vmem:[#allocation2 + $0x11d0] sm:$0xff]
    %v6976 = vrot.slane %v6912, 7
    %v6977 = vrot.slane %v6913, 7
    %v6978 = vrot.slane %v6914, 7
    %v6979 = vrot.slane %v6915, 7
    %v6980 = vrot.slane %v6916, 7
    %v6981 = vrot.slane %v6917, 7
    %v6982 = vrot.slane %v6918, 7
    %v6983 = vrot.slane %v6919, 7
    %v6984 = vrot.slane %v6920, 7
    %v6985 = vrot.slane %v6921, 7
    %v6986 = vrot.slane %v6922, 7
    %v6987 = vrot.slane %v6923, 7
    %v6988 = vrot.slane %v6924, 7
    %v6989 = vrot.slane %v6925, 7
    %v6990 = vrot.slane %v6926, 7
    %v6991 = vrot.slane %v6927, 7
    %v6992 = vrot.slane %v6928, 7
    %v6993 = vrot.slane %v6929, 7
    %v6994 = vrot.slane %v6930, 7
    %v6995 = vrot.slane %v6931, 7
    %v6996 = vrot.slane %v6932, 7
    %v6997 = vrot.slane %v6933, 7
    %v6998 = vrot.slane %v6934, 7
    %v6999 = vrot.slane %v6935, 7
    %v7000 = vrot.slane %v6936, 7
    %v7001 = vrot.slane %v6937, 7
    %v7002 = vrot.slane %v6938, 7
    %v7003 = vrot.slane %v6939, 7
    %v7004 = vrot.slane %v6940, 7
    %v7005 = vrot.slane %v6941, 7
    %v7006 = vrot.slane %v6942, 7
    %v7007 = vrot.slane %v6943, 7
    %v7008 = vrot.slane %v6944, 7
    %v7009 = vrot.slane %v6945, 7
    %v7010 = vrot.slane %v6946, 7
    %v7011 = vrot.slane %v6947, 7
    %v7012 = vrot.slane %v6948, 7
    %v7013 = vrot.slane %v6949, 7
    %v7014 = vrot.slane %v6950, 7
    %v7015 = vrot.slane %v6951, 7
    %v7016 = vrot.slane %v6952, 7
    %v7017 = vrot.slane %v6953, 7
    %v7018 = vrot.slane %v6954, 7
    %v7019 = vrot.slane %v6955, 7
    %v7020 = vrot.slane %v6956, 7
    %v7021 = vrot.slane %v6957, 7
    %v7022 = vrot.slane %v6958, 7
    %v7023 = vrot.slane %v6959, 7
    %v7024 = vrot.slane %v6960, 7
    %v7025 = vrot.slane %v6961, 7
    %v7026 = vrot.slane %v6962, 7
    %v7027 = vrot.slane %v6963, 7
    %v7028 = vrot.slane %v6964, 7
    %v7029 = vrot.slane %v6965, 7
    %v7030 = vrot.slane %v6966, 7
    %v7031 = vrot.slane %v6967, 7
    %v7032 = vrot.slane %v6968, 7
    %v7033 = vrot.slane %v6969, 7
    %v7034 = vrot.slane %v6970, 7
    %v7035 = vrot.slane %v6971, 7
    %v7036 = vrot.slane %v6972, 7
    %v7037 = vrot.slane %v6973, 7
    %v7038 = vrot.slane %v6974, 7
    %v7039 = vrot.slane %v6975, 7
    %v7040 = vsel %vm6398, %v7038, %v7039
    %v7041 = vsel %vm6398, %v7037, %v7038
    %v7042 = vsel %vm6398, %v7036, %v7037
    %v7043 = vsel %vm6398, %v7035, %v7036
    %v7044 = vsel %vm6398, %v7034, %v7035
    %v7045 = vsel %vm6398, %v7033, %v7034
    %v7046 = vsel %vm6398, %v7032, %v7033
    %v7047 = vsel %vm6398, %v7031, %v7032
    %v7048 = vsel %vm6398, %v7030, %v7031
    %v7049 = vsel %vm6398, %v7029, %v7030
    %v7050 = vsel %vm6398, %v7028, %v7029
    %v7051 = vsel %vm6398, %v7027, %v7028
    %v7052 = vsel %vm6398, %v7026, %v7027
    %v7053 = vsel %vm6398, %v7025, %v7026
    %v7054 = vsel %vm6398, %v7024, %v7025
    %v7055 = vsel %vm6398, %v7023, %v7024
    %v7056 = vsel %vm6398, %v7022, %v7023
    %v7057 = vsel %vm6398, %v7021, %v7022
    %v7058 = vsel %vm6398, %v7020, %v7021
    %v7059 = vsel %vm6398, %v7019, %v7020
    %v7060 = vsel %vm6398, %v7018, %v7019
    %v7061 = vsel %vm6398, %v7017, %v7018
    %v7062 = vsel %vm6398, %v7016, %v7017
    %v7063 = vsel %vm6398, %v7015, %v7016
    %v7064 = vsel %vm6398, %v7014, %v7015
    %v7065 = vsel %vm6398, %v7013, %v7014
    %v7066 = vsel %vm6398, %v7012, %v7013
    %v7067 = vsel %vm6398, %v7011, %v7012
    %v7068 = vsel %vm6398, %v7010, %v7011
    %v7069 = vsel %vm6398, %v7009, %v7010
    %v7070 = vsel %vm6398, %v7008, %v7009
    %v7071 = vsel %vm6398, %v7007, %v7008
    %v7072 = vsel %vm6398, %v7006, %v7007
    %v7073 = vsel %vm6398, %v7005, %v7006
    %v7074 = vsel %vm6398, %v7004, %v7005
    %v7075 = vsel %vm6398, %v7003, %v7004
    %v7076 = vsel %vm6398, %v7002, %v7003
    %v7077 = vsel %vm6398, %v7001, %v7002
    %v7078 = vsel %vm6398, %v7000, %v7001
    %v7079 = vsel %vm6398, %v6999, %v7000
    %v7080 = vsel %vm6398, %v6998, %v6999
    %v7081 = vsel %vm6398, %v6997, %v6998
    %v7082 = vsel %vm6398, %v6996, %v6997
    %v7083 = vsel %vm6398, %v6995, %v6996
    %v7084 = vsel %vm6398, %v6994, %v6995
    %v7085 = vsel %vm6398, %v6993, %v6994
    %v7086 = vsel %vm6398, %v6992, %v6993
    %v7087 = vsel %vm6398, %v6991, %v6992
    %v7088 = vsel %vm6398, %v6990, %v6991
    %v7089 = vsel %vm6398, %v6989, %v6990
    %v7090 = vsel %vm6398, %v6988, %v6989
    %v7091 = vsel %vm6398, %v6987, %v6988
    %v7092 = vsel %vm6398, %v6986, %v6987
    %v7093 = vsel %vm6398, %v6985, %v6986
    %v7094 = vsel %vm6398, %v6984, %v6985
    %v7095 = vsel %vm6398, %v6983, %v6984
    %v7096 = vsel %vm6398, %v6982, %v6983
    %v7097 = vsel %vm6398, %v6981, %v6982
    %v7098 = vsel %vm6398, %v6980, %v6981
    %v7099 = vsel %vm6398, %v6979, %v6980
    %v7100 = vsel %vm6398, %v6978, %v6979
    %v7101 = vsel %vm6398, %v6977, %v6978
    %v7102 = vsel %vm6398, %v6976, %v6977
    %v7103 = vsel %vm6398, %v7039, %v6976
    %v7104 = vadd.f32 %v6848, %v7103
    %v7105 = vadd.f32 %v6849, %v7102
    %v7106 = vadd.f32 %v6850, %v7101
    %v7107 = vadd.f32 %v6851, %v7100
    %v7108 = vadd.f32 %v6852, %v7099
    %v7109 = vadd.f32 %v6853, %v7098
    %v7110 = vadd.f32 %v6854, %v7097
    %v7111 = vadd.f32 %v6855, %v7096
    %v7112 = vadd.f32 %v6856, %v7095
    %v7113 = vadd.f32 %v6857, %v7094
    %v7114 = vadd.f32 %v6858, %v7093
    %v7115 = vadd.f32 %v6859, %v7092
    %v7116 = vadd.f32 %v6860, %v7091
    %v7117 = vadd.f32 %v6861, %v7090
    %v7118 = vadd.f32 %v6862, %v7089
    %v7119 = vadd.f32 %v6863, %v7088
    %v7120 = vadd.f32 %v6864, %v7087
    %v7121 = vadd.f32 %v6865, %v7086
    %v7122 = vadd.f32 %v6866, %v7085
    %v7123 = vadd.f32 %v6867, %v7084
    %v7124 = vadd.f32 %v6868, %v7083
    %v7125 = vadd.f32 %v6869, %v7082
    %v7126 = vadd.f32 %v6870, %v7081
    %v7127 = vadd.f32 %v6871, %v7080
    %v7128 = vadd.f32 %v6872, %v7079
    %v7129 = vadd.f32 %v6873, %v7078
    %v7130 = vadd.f32 %v6874, %v7077
    %v7131 = vadd.f32 %v6875, %v7076
    %v7132 = vadd.f32 %v6876, %v7075
    %v7133 = vadd.f32 %v6877, %v7074
    %v7134 = vadd.f32 %v6878, %v7073
    %v7135 = vadd.f32 %v6879, %v7072
    %v7136 = vadd.f32 %v6880, %v7071
    %v7137 = vadd.f32 %v6881, %v7070
    %v7138 = vadd.f32 %v6882, %v7069
    %v7139 = vadd.f32 %v6883, %v7068
    %v7140 = vadd.f32 %v6884, %v7067
    %v7141 = vadd.f32 %v6885, %v7066
    %v7142 = vadd.f32 %v6886, %v7065
    %v7143 = vadd.f32 %v6887, %v7064
    %v7144 = vadd.f32 %v6888, %v7063
    %v7145 = vadd.f32 %v6889, %v7062
    %v7146 = vadd.f32 %v6890, %v7061
    %v7147 = vadd.f32 %v6891, %v7060
    %v7148 = vadd.f32 %v6892, %v7059
    %v7149 = vadd.f32 %v6893, %v7058
    %v7150 = vadd.f32 %v6894, %v7057
    %v7151 = vadd.f32 %v6895, %v7056
    %v7152 = vadd.f32 %v6896, %v7055
    %v7153 = vadd.f32 %v6897, %v7054
    %v7154 = vadd.f32 %v6898, %v7053
    %v7155 = vadd.f32 %v6899, %v7052
    %v7156 = vadd.f32 %v6900, %v7051
    %v7157 = vadd.f32 %v6901, %v7050
    %v7158 = vadd.f32 %v6902, %v7049
    %v7159 = vadd.f32 %v6903, %v7048
    %v7160 = vadd.f32 %v6904, %v7047
    %v7161 = vadd.f32 %v6905, %v7046
    %v7162 = vadd.f32 %v6906, %v7045
    %v7163 = vadd.f32 %v6907, %v7044
    %v7164 = vadd.f32 %v6908, %v7043
    %v7165 = vadd.f32 %v6909, %v7042
    %v7166 = vadd.f32 %v6910, %v7041
    %v7167 = vadd.f32 %v6911, %v7040
    %v7168 = vld [vmem:[#allocation2 + $0x28] sm:$0xff]
    %v7169 = vld [vmem:[#allocation2 + $0x70] sm:$0xff]
    %v7170 = vld [vmem:[#allocation2 + $0xb8] sm:$0xff]
    %v7171 = vld [vmem:[#allocation2 + $0x100] sm:$0xff]
    %v7172 = vld [vmem:[#allocation2 + $0x148] sm:$0xff]
    %v7173 = vld [vmem:[#allocation2 + $0x190] sm:$0xff]
    %v7174 = vld [vmem:[#allocation2 + $0x1d8] sm:$0xff]
    %v7175 = vld [vmem:[#allocation2 + $0x220] sm:$0xff]
    %v7176 = vld [vmem:[#allocation2 + $0x268] sm:$0xff]
    %v7177 = vld [vmem:[#allocation2 + $0x2b0] sm:$0xff]
    %v7178 = vld [vmem:[#allocation2 + $0x2f8] sm:$0xff]
    %v7179 = vld [vmem:[#allocation2 + $0x340] sm:$0xff]
    %v7180 = vld [vmem:[#allocation2 + $0x388] sm:$0xff]
    %v7181 = vld [vmem:[#allocation2 + $0x3d0] sm:$0xff]
    %v7182 = vld [vmem:[#allocation2 + $0x418] sm:$0xff]
    %v7183 = vld [vmem:[#allocation2 + $0x460] sm:$0xff]
    %v7184 = vld [vmem:[#allocation2 + $0x4a8] sm:$0xff]
    %v7185 = vld [vmem:[#allocation2 + $0x4f0] sm:$0xff]
    %v7186 = vld [vmem:[#allocation2 + $0x538] sm:$0xff]
    %v7187 = vld [vmem:[#allocation2 + $0x580] sm:$0xff]
    %v7188 = vld [vmem:[#allocation2 + $0x5c8] sm:$0xff]
    %v7189 = vld [vmem:[#allocation2 + $0x610] sm:$0xff]
    %v7190 = vld [vmem:[#allocation2 + $0x658] sm:$0xff]
    %v7191 = vld [vmem:[#allocation2 + $0x6a0] sm:$0xff]
    %v7192 = vld [vmem:[#allocation2 + $0x6e8] sm:$0xff]
    %v7193 = vld [vmem:[#allocation2 + $0x730] sm:$0xff]
    %v7194 = vld [vmem:[#allocation2 + $0x778] sm:$0xff]
    %v7195 = vld [vmem:[#allocation2 + $0x7c0] sm:$0xff]
    %v7196 = vld [vmem:[#allocation2 + $0x808] sm:$0xff]
    %v7197 = vld [vmem:[#allocation2 + $0x850] sm:$0xff]
    %v7198 = vld [vmem:[#allocation2 + $0x898] sm:$0xff]
    %v7199 = vld [vmem:[#allocation2 + $0x8e0] sm:$0xff]
    %v7200 = vld [vmem:[#allocation2 + $0x928] sm:$0xff]
    %v7201 = vld [vmem:[#allocation2 + $0x970] sm:$0xff]
    %v7202 = vld [vmem:[#allocation2 + $0x9b8] sm:$0xff]
    %v7203 = vld [vmem:[#allocation2 + $0xa00] sm:$0xff]
    %v7204 = vld [vmem:[#allocation2 + $0xa48] sm:$0xff]
    %v7205 = vld [vmem:[#allocation2 + $0xa90] sm:$0xff]
    %v7206 = vld [vmem:[#allocation2 + $0xad8] sm:$0xff]
    %v7207 = vld [vmem:[#allocation2 + $0xb20] sm:$0xff]
    %v7208 = vld [vmem:[#allocation2 + $0xb68] sm:$0xff]
    %v7209 = vld [vmem:[#allocation2 + $0xbb0] sm:$0xff]
    %v7210 = vld [vmem:[#allocation2 + $0xbf8] sm:$0xff]
    %v7211 = vld [vmem:[#allocation2 + $0xc40] sm:$0xff]
    %v7212 = vld [vmem:[#allocation2 + $0xc88] sm:$0xff]
    %v7213 = vld [vmem:[#allocation2 + $0xcd0] sm:$0xff]
    %v7214 = vld [vmem:[#allocation2 + $0xd18] sm:$0xff]
    %v7215 = vld [vmem:[#allocation2 + $0xd60] sm:$0xff]
    %v7216 = vld [vmem:[#allocation2 + $0xda8] sm:$0xff]
    %v7217 = vld [vmem:[#allocation2 + $0xdf0] sm:$0xff]
    %v7218 = vld [vmem:[#allocation2 + $0xe38] sm:$0xff]
    %v7219 = vld [vmem:[#allocation2 + $0xe80] sm:$0xff]
    %v7220 = vld [vmem:[#allocation2 + $0xec8] sm:$0xff]
    %v7221 = vld [vmem:[#allocation2 + $0xf10] sm:$0xff]
    %v7222 = vld [vmem:[#allocation2 + $0xf58] sm:$0xff]
    %v7223 = vld [vmem:[#allocation2 + $0xfa0] sm:$0xff]
    %v7224 = vld [vmem:[#allocation2 + $0xfe8] sm:$0xff]
    %v7225 = vld [vmem:[#allocation2 + $0x1030] sm:$0xff]
    %v7226 = vld [vmem:[#allocation2 + $0x1078] sm:$0xff]
    %v7227 = vld [vmem:[#allocation2 + $0x10c0] sm:$0xff]
    %v7228 = vld [vmem:[#allocation2 + $0x1108] sm:$0xff]
    %v7229 = vld [vmem:[#allocation2 + $0x1150] sm:$0xff]
    %v7230 = vld [vmem:[#allocation2 + $0x1198] sm:$0xff]
    %v7231 = vld [vmem:[#allocation2 + $0x11e0] sm:$0xff]
    %v7232 = vrot.slane %v7168, 1
    %v7233 = vrot.slane %v7169, 1
    %v7234 = vrot.slane %v7170, 1
    %v7235 = vrot.slane %v7171, 1
    %v7236 = vrot.slane %v7172, 1
    %v7237 = vrot.slane %v7173, 1
    %v7238 = vrot.slane %v7174, 1
    %v7239 = vrot.slane %v7175, 1
    %v7240 = vrot.slane %v7176, 1
    %v7241 = vrot.slane %v7177, 1
    %v7242 = vrot.slane %v7178, 1
    %v7243 = vrot.slane %v7179, 1
    %v7244 = vrot.slane %v7180, 1
    %v7245 = vrot.slane %v7181, 1
    %v7246 = vrot.slane %v7182, 1
    %v7247 = vrot.slane %v7183, 1
    %v7248 = vrot.slane %v7184, 1
    %v7249 = vrot.slane %v7185, 1
    %v7250 = vrot.slane %v7186, 1
    %v7251 = vrot.slane %v7187, 1
    %v7252 = vrot.slane %v7188, 1
    %v7253 = vrot.slane %v7189, 1
    %v7254 = vrot.slane %v7190, 1
    %v7255 = vrot.slane %v7191, 1
    %v7256 = vrot.slane %v7192, 1
    %v7257 = vrot.slane %v7193, 1
    %v7258 = vrot.slane %v7194, 1
    %v7259 = vrot.slane %v7195, 1
    %v7260 = vrot.slane %v7196, 1
    %v7261 = vrot.slane %v7197, 1
    %v7262 = vrot.slane %v7198, 1
    %v7263 = vrot.slane %v7199, 1
    %v7264 = vrot.slane %v7200, 1
    %v7265 = vrot.slane %v7201, 1
    %v7266 = vrot.slane %v7202, 1
    %v7267 = vrot.slane %v7203, 1
    %v7268 = vrot.slane %v7204, 1
    %v7269 = vrot.slane %v7205, 1
    %v7270 = vrot.slane %v7206, 1
    %v7271 = vrot.slane %v7207, 1
    %v7272 = vrot.slane %v7208, 1
    %v7273 = vrot.slane %v7209, 1
    %v7274 = vrot.slane %v7210, 1
    %v7275 = vrot.slane %v7211, 1
    %v7276 = vrot.slane %v7212, 1
    %v7277 = vrot.slane %v7213, 1
    %v7278 = vrot.slane %v7214, 1
    %v7279 = vrot.slane %v7215, 1
    %v7280 = vrot.slane %v7216, 1
    %v7281 = vrot.slane %v7217, 1
    %v7282 = vrot.slane %v7218, 1
    %v7283 = vrot.slane %v7219, 1
    %v7284 = vrot.slane %v7220, 1
    %v7285 = vrot.slane %v7221, 1
    %v7286 = vrot.slane %v7222, 1
    %v7287 = vrot.slane %v7223, 1
    %v7288 = vrot.slane %v7224, 1
    %v7289 = vrot.slane %v7225, 1
    %v7290 = vrot.slane %v7226, 1
    %v7291 = vrot.slane %v7227, 1
    %v7292 = vrot.slane %v7228, 1
    %v7293 = vrot.slane %v7229, 1
    %v7294 = vrot.slane %v7230, 1
    %v7295 = vrot.slane %v7231, 1
    %v7296 = vsel %vm6783, %v7294, %v7295
    %v7297 = vsel %vm6783, %v7293, %v7294
    %v7298 = vsel %vm6783, %v7292, %v7293
    %v7299 = vsel %vm6783, %v7291, %v7292
    %v7300 = vsel %vm6783, %v7290, %v7291
    %v7301 = vsel %vm6783, %v7289, %v7290
    %v7302 = vsel %vm6783, %v7288, %v7289
    %v7303 = vsel %vm6783, %v7287, %v7288
    %v7304 = vsel %vm6783, %v7286, %v7287
    %v7305 = vsel %vm6783, %v7285, %v7286
    %v7306 = vsel %vm6783, %v7284, %v7285
    %v7307 = vsel %vm6783, %v7283, %v7284
    %v7308 = vsel %vm6783, %v7282, %v7283
    %v7309 = vsel %vm6783, %v7281, %v7282
    %v7310 = vsel %vm6783, %v7280, %v7281
    %v7311 = vsel %vm6783, %v7279, %v7280
    %v7312 = vsel %vm6783, %v7278, %v7279
    %v7313 = vsel %vm6783, %v7277, %v7278
    %v7314 = vsel %vm6783, %v7276, %v7277
    %v7315 = vsel %vm6783, %v7275, %v7276
    %v7316 = vsel %vm6783, %v7274, %v7275
    %v7317 = vsel %vm6783, %v7273, %v7274
    %v7318 = vsel %vm6783, %v7272, %v7273
    %v7319 = vsel %vm6783, %v7271, %v7272
    %v7320 = vsel %vm6783, %v7270, %v7271
    %v7321 = vsel %vm6783, %v7269, %v7270
    %v7322 = vsel %vm6783, %v7268, %v7269
    %v7323 = vsel %vm6783, %v7267, %v7268
    %v7324 = vsel %vm6783, %v7266, %v7267
    %v7325 = vsel %vm6783, %v7265, %v7266
    %v7326 = vsel %vm6783, %v7264, %v7265
    %v7327 = vsel %vm6783, %v7263, %v7264
    %v7328 = vsel %vm6783, %v7262, %v7263
    %v7329 = vsel %vm6783, %v7261, %v7262
    %v7330 = vsel %vm6783, %v7260, %v7261
    %v7331 = vsel %vm6783, %v7259, %v7260
    %v7332 = vsel %vm6783, %v7258, %v7259
    %v7333 = vsel %vm6783, %v7257, %v7258
    %v7334 = vsel %vm6783, %v7256, %v7257
    %v7335 = vsel %vm6783, %v7255, %v7256
    %v7336 = vsel %vm6783, %v7254, %v7255
    %v7337 = vsel %vm6783, %v7253, %v7254
    %v7338 = vsel %vm6783, %v7252, %v7253
    %v7339 = vsel %vm6783, %v7251, %v7252
    %v7340 = vsel %vm6783, %v7250, %v7251
    %v7341 = vsel %vm6783, %v7249, %v7250
    %v7342 = vsel %vm6783, %v7248, %v7249
    %v7343 = vsel %vm6783, %v7247, %v7248
    %v7344 = vsel %vm6783, %v7246, %v7247
    %v7345 = vsel %vm6783, %v7245, %v7246
    %v7346 = vsel %vm6783, %v7244, %v7245
    %v7347 = vsel %vm6783, %v7243, %v7244
    %v7348 = vsel %vm6783, %v7242, %v7243
    %v7349 = vsel %vm6783, %v7241, %v7242
    %v7350 = vsel %vm6783, %v7240, %v7241
    %v7351 = vsel %vm6783, %v7239, %v7240
    %v7352 = vsel %vm6783, %v7238, %v7239
    %v7353 = vsel %vm6783, %v7237, %v7238
    %v7354 = vsel %vm6783, %v7236, %v7237
    %v7355 = vsel %vm6783, %v7235, %v7236
    %v7356 = vsel %vm6783, %v7234, %v7235
    %v7357 = vsel %vm6783, %v7233, %v7234
    %v7358 = vsel %vm6783, %v7232, %v7233
    %v7359 = vsel %vm6783, %v7295, %v7232
    %v7360 = vadd.f32 %v7104, %v7358
    %v7361 = vadd.f32 %v7105, %v7357
    %v7362 = vadd.f32 %v7106, %v7356
    %v7363 = vadd.f32 %v7107, %v7355
    %v7364 = vadd.f32 %v7108, %v7354
    %v7365 = vadd.f32 %v7109, %v7353
    %v7366 = vadd.f32 %v7110, %v7352
    %v7367 = vadd.f32 %v7111, %v7351
    %v7368 = vadd.f32 %v7112, %v7350
    %v7369 = vadd.f32 %v7113, %v7349
    %v7370 = vadd.f32 %v7114, %v7348
    %v7371 = vadd.f32 %v7115, %v7347
    %v7372 = vadd.f32 %v7116, %v7346
    %v7373 = vadd.f32 %v7117, %v7345
    %v7374 = vadd.f32 %v7118, %v7344
    %v7375 = vadd.f32 %v7119, %v7343
    %v7376 = vadd.f32 %v7120, %v7342
    %v7377 = vadd.f32 %v7121, %v7341
    %v7378 = vadd.f32 %v7122, %v7340
    %v7379 = vadd.f32 %v7123, %v7339
    %v7380 = vadd.f32 %v7124, %v7338
    %v7381 = vadd.f32 %v7125, %v7337
    %v7382 = vadd.f32 %v7126, %v7336
    %v7383 = vadd.f32 %v7127, %v7335
    %v7384 = vadd.f32 %v7128, %v7334
    %v7385 = vadd.f32 %v7129, %v7333
    %v7386 = vadd.f32 %v7130, %v7332
    %v7387 = vadd.f32 %v7131, %v7331
    %v7388 = vadd.f32 %v7132, %v7330
    %v7389 = vadd.f32 %v7133, %v7329
    %v7390 = vadd.f32 %v7134, %v7328
    %v7391 = vadd.f32 %v7135, %v7327
    %v7392 = vadd.f32 %v7136, %v7326
    %v7393 = vadd.f32 %v7137, %v7325
    %v7394 = vadd.f32 %v7138, %v7324
    %v7395 = vadd.f32 %v7139, %v7323
    %v7396 = vadd.f32 %v7140, %v7322
    %v7397 = vadd.f32 %v7141, %v7321
    %v7398 = vadd.f32 %v7142, %v7320
    %v7399 = vadd.f32 %v7143, %v7319
    %v7400 = vadd.f32 %v7144, %v7318
    %v7401 = vadd.f32 %v7145, %v7317
    %v7402 = vadd.f32 %v7146, %v7316
    %v7403 = vadd.f32 %v7147, %v7315
    %v7404 = vadd.f32 %v7148, %v7314
    %v7405 = vadd.f32 %v7149, %v7313
    %v7406 = vadd.f32 %v7150, %v7312
    %v7407 = vadd.f32 %v7151, %v7311
    %v7408 = vadd.f32 %v7152, %v7310
    %v7409 = vadd.f32 %v7153, %v7309
    %v7410 = vadd.f32 %v7154, %v7308
    %v7411 = vadd.f32 %v7155, %v7307
    %v7412 = vadd.f32 %v7156, %v7306
    %v7413 = vadd.f32 %v7157, %v7305
    %v7414 = vadd.f32 %v7158, %v7304
    %v7415 = vadd.f32 %v7159, %v7303
    %v7416 = vadd.f32 %v7160, %v7302
    %v7417 = vadd.f32 %v7161, %v7301
    %v7418 = vadd.f32 %v7162, %v7300
    %v7419 = vadd.f32 %v7163, %v7299
    %v7420 = vadd.f32 %v7164, %v7298
    %v7421 = vadd.f32 %v7165, %v7297
    %v7422 = vadd.f32 %v7166, %v7296
    %v7423 = vadd.f32 %v7167, %v7359
    %v7424 = vld [vmem:[#allocation2 + $0x30] sm:$0xff]
    %v7425 = vld [vmem:[#allocation2 + $0x78] sm:$0xff]
    %v7426 = vld [vmem:[#allocation2 + $0xc0] sm:$0xff]
    %v7427 = vld [vmem:[#allocation2 + $0x108] sm:$0xff]
    %v7428 = vld [vmem:[#allocation2 + $0x150] sm:$0xff]
    %v7429 = vld [vmem:[#allocation2 + $0x198] sm:$0xff]
    %v7430 = vld [vmem:[#allocation2 + $0x1e0] sm:$0xff]
    %v7431 = vld [vmem:[#allocation2 + $0x228] sm:$0xff]
    %v7432 = vld [vmem:[#allocation2 + $0x270] sm:$0xff]
    %v7433 = vld [vmem:[#allocation2 + $0x2b8] sm:$0xff]
    %v7434 = vld [vmem:[#allocation2 + $0x300] sm:$0xff]
    %v7435 = vld [vmem:[#allocation2 + $0x348] sm:$0xff]
    %v7436 = vld [vmem:[#allocation2 + $0x390] sm:$0xff]
    %v7437 = vld [vmem:[#allocation2 + $0x3d8] sm:$0xff]
    %v7438 = vld [vmem:[#allocation2 + $0x420] sm:$0xff]
    %v7439 = vld [vmem:[#allocation2 + $0x468] sm:$0xff]
    %v7440 = vld [vmem:[#allocation2 + $0x4b0] sm:$0xff]
    %v7441 = vld [vmem:[#allocation2 + $0x4f8] sm:$0xff]
    %v7442 = vld [vmem:[#allocation2 + $0x540] sm:$0xff]
    %v7443 = vld [vmem:[#allocation2 + $0x588] sm:$0xff]
    %v7444 = vld [vmem:[#allocation2 + $0x5d0] sm:$0xff]
    %v7445 = vld [vmem:[#allocation2 + $0x618] sm:$0xff]
    %v7446 = vld [vmem:[#allocation2 + $0x660] sm:$0xff]
    %v7447 = vld [vmem:[#allocation2 + $0x6a8] sm:$0xff]
    %v7448 = vld [vmem:[#allocation2 + $0x6f0] sm:$0xff]
    %v7449 = vld [vmem:[#allocation2 + $0x738] sm:$0xff]
    %v7450 = vld [vmem:[#allocation2 + $0x780] sm:$0xff]
    %v7451 = vld [vmem:[#allocation2 + $0x7c8] sm:$0xff]
    %v7452 = vld [vmem:[#allocation2 + $0x810] sm:$0xff]
    %v7453 = vld [vmem:[#allocation2 + $0x858] sm:$0xff]
    %v7454 = vld [vmem:[#allocation2 + $0x8a0] sm:$0xff]
    %v7455 = vld [vmem:[#allocation2 + $0x8e8] sm:$0xff]
    %v7456 = vld [vmem:[#allocation2 + $0x930] sm:$0xff]
    %v7457 = vld [vmem:[#allocation2 + $0x978] sm:$0xff]
    %v7458 = vld [vmem:[#allocation2 + $0x9c0] sm:$0xff]
    %v7459 = vld [vmem:[#allocation2 + $0xa08] sm:$0xff]
    %v7460 = vld [vmem:[#allocation2 + $0xa50] sm:$0xff]
    %v7461 = vld [vmem:[#allocation2 + $0xa98] sm:$0xff]
    %v7462 = vld [vmem:[#allocation2 + $0xae0] sm:$0xff]
    %v7463 = vld [vmem:[#allocation2 + $0xb28] sm:$0xff]
    %v7464 = vld [vmem:[#allocation2 + $0xb70] sm:$0xff]
    %v7465 = vld [vmem:[#allocation2 + $0xbb8] sm:$0xff]
    %v7466 = vld [vmem:[#allocation2 + $0xc00] sm:$0xff]
    %v7467 = vld [vmem:[#allocation2 + $0xc48] sm:$0xff]
    %v7468 = vld [vmem:[#allocation2 + $0xc90] sm:$0xff]
    %v7469 = vld [vmem:[#allocation2 + $0xcd8] sm:$0xff]
    %v7470 = vld [vmem:[#allocation2 + $0xd20] sm:$0xff]
    %v7471 = vld [vmem:[#allocation2 + $0xd68] sm:$0xff]
    %v7472 = vld [vmem:[#allocation2 + $0xdb0] sm:$0xff]
    %v7473 = vld [vmem:[#allocation2 + $0xdf8] sm:$0xff]
    %v7474 = vld [vmem:[#allocation2 + $0xe40] sm:$0xff]
    %v7475 = vld [vmem:[#allocation2 + $0xe88] sm:$0xff]
    %v7476 = vld [vmem:[#allocation2 + $0xed0] sm:$0xff]
    %v7477 = vld [vmem:[#allocation2 + $0xf18] sm:$0xff]
    %v7478 = vld [vmem:[#allocation2 + $0xf60] sm:$0xff]
    %v7479 = vld [vmem:[#allocation2 + $0xfa8] sm:$0xff]
    %v7480 = vld [vmem:[#allocation2 + $0xff0] sm:$0xff]
    %v7481 = vld [vmem:[#allocation2 + $0x1038] sm:$0xff]
    %v7482 = vld [vmem:[#allocation2 + $0x1080] sm:$0xff]
    %v7483 = vld [vmem:[#allocation2 + $0x10c8] sm:$0xff]
    %v7484 = vld [vmem:[#allocation2 + $0x1110] sm:$0xff]
    %v7485 = vld [vmem:[#allocation2 + $0x1158] sm:$0xff]
    %v7486 = vld [vmem:[#allocation2 + $0x11a0] sm:$0xff]
    %v7487 = vld [vmem:[#allocation2 + $0x11e8] sm:$0xff]
    %v7488 = vrot.slane %v7424, 7
    %v7489 = vrot.slane %v7425, 7
    %v7490 = vrot.slane %v7426, 7
    %v7491 = vrot.slane %v7427, 7
    %v7492 = vrot.slane %v7428, 7
    %v7493 = vrot.slane %v7429, 7
    %v7494 = vrot.slane %v7430, 7
    %v7495 = vrot.slane %v7431, 7
    %v7496 = vrot.slane %v7432, 7
    %v7497 = vrot.slane %v7433, 7
    %v7498 = vrot.slane %v7434, 7
    %v7499 = vrot.slane %v7435, 7
    %v7500 = vrot.slane %v7436, 7
    %v7501 = vrot.slane %v7437, 7
    %v7502 = vrot.slane %v7438, 7
    %v7503 = vrot.slane %v7439, 7
    %v7504 = vrot.slane %v7440, 7
    %v7505 = vrot.slane %v7441, 7
    %v7506 = vrot.slane %v7442, 7
    %v7507 = vrot.slane %v7443, 7
    %v7508 = vrot.slane %v7444, 7
    %v7509 = vrot.slane %v7445, 7
    %v7510 = vrot.slane %v7446, 7
    %v7511 = vrot.slane %v7447, 7
    %v7512 = vrot.slane %v7448, 7
    %v7513 = vrot.slane %v7449, 7
    %v7514 = vrot.slane %v7450, 7
    %v7515 = vrot.slane %v7451, 7
    %v7516 = vrot.slane %v7452, 7
    %v7517 = vrot.slane %v7453, 7
    %v7518 = vrot.slane %v7454, 7
    %v7519 = vrot.slane %v7455, 7
    %v7520 = vrot.slane %v7456, 7
    %v7521 = vrot.slane %v7457, 7
    %v7522 = vrot.slane %v7458, 7
    %v7523 = vrot.slane %v7459, 7
    %v7524 = vrot.slane %v7460, 7
    %v7525 = vrot.slane %v7461, 7
    %v7526 = vrot.slane %v7462, 7
    %v7527 = vrot.slane %v7463, 7
    %v7528 = vrot.slane %v7464, 7
    %v7529 = vrot.slane %v7465, 7
    %v7530 = vrot.slane %v7466, 7
    %v7531 = vrot.slane %v7467, 7
    %v7532 = vrot.slane %v7468, 7
    %v7533 = vrot.slane %v7469, 7
    %v7534 = vrot.slane %v7470, 7
    %v7535 = vrot.slane %v7471, 7
    %v7536 = vrot.slane %v7472, 7
    %v7537 = vrot.slane %v7473, 7
    %v7538 = vrot.slane %v7474, 7
    %v7539 = vrot.slane %v7475, 7
    %v7540 = vrot.slane %v7476, 7
    %v7541 = vrot.slane %v7477, 7
    %v7542 = vrot.slane %v7478, 7
    %v7543 = vrot.slane %v7479, 7
    %v7544 = vrot.slane %v7480, 7
    %v7545 = vrot.slane %v7481, 7
    %v7546 = vrot.slane %v7482, 7
    %v7547 = vrot.slane %v7483, 7
    %v7548 = vrot.slane %v7484, 7
    %v7549 = vrot.slane %v7485, 7
    %v7550 = vrot.slane %v7486, 7
    %v7551 = vrot.slane %v7487, 7
    %v7552 = vsel %vm6398, %v7550, %v7551
    %v7553 = vsel %vm6398, %v7549, %v7550
    %v7554 = vsel %vm6398, %v7548, %v7549
    %v7555 = vsel %vm6398, %v7547, %v7548
    %v7556 = vsel %vm6398, %v7546, %v7547
    %v7557 = vsel %vm6398, %v7545, %v7546
    %v7558 = vsel %vm6398, %v7544, %v7545
    %v7559 = vsel %vm6398, %v7543, %v7544
    %v7560 = vsel %vm6398, %v7542, %v7543
    %v7561 = vsel %vm6398, %v7541, %v7542
    %v7562 = vsel %vm6398, %v7540, %v7541
    %v7563 = vsel %vm6398, %v7539, %v7540
    %v7564 = vsel %vm6398, %v7538, %v7539
    %v7565 = vsel %vm6398, %v7537, %v7538
    %v7566 = vsel %vm6398, %v7536, %v7537
    %v7567 = vsel %vm6398, %v7535, %v7536
    %v7568 = vsel %vm6398, %v7534, %v7535
    %v7569 = vsel %vm6398, %v7533, %v7534
    %v7570 = vsel %vm6398, %v7532, %v7533
    %v7571 = vsel %vm6398, %v7531, %v7532
    %v7572 = vsel %vm6398, %v7530, %v7531
    %v7573 = vsel %vm6398, %v7529, %v7530
    %v7574 = vsel %vm6398, %v7528, %v7529
    %v7575 = vsel %vm6398, %v7527, %v7528
    %v7576 = vsel %vm6398, %v7526, %v7527
    %v7577 = vsel %vm6398, %v7525, %v7526
    %v7578 = vsel %vm6398, %v7524, %v7525
    %v7579 = vsel %vm6398, %v7523, %v7524
    %v7580 = vsel %vm6398, %v7522, %v7523
    %v7581 = vsel %vm6398, %v7521, %v7522
    %v7582 = vsel %vm6398, %v7520, %v7521
    %v7583 = vsel %vm6398, %v7519, %v7520
    %v7584 = vsel %vm6398, %v7518, %v7519
    %v7585 = vsel %vm6398, %v7517, %v7518
    %v7586 = vsel %vm6398, %v7516, %v7517
    %v7587 = vsel %vm6398, %v7515, %v7516
    %v7588 = vsel %vm6398, %v7514, %v7515
    %v7589 = vsel %vm6398, %v7513, %v7514
    %v7590 = vsel %vm6398, %v7512, %v7513
    %v7591 = vsel %vm6398, %v7511, %v7512
    %v7592 = vsel %vm6398, %v7510, %v7511
    %v7593 = vsel %vm6398, %v7509, %v7510
    %v7594 = vsel %vm6398, %v7508, %v7509
    %v7595 = vsel %vm6398, %v7507, %v7508
    %v7596 = vsel %vm6398, %v7506, %v7507
    %v7597 = vsel %vm6398, %v7505, %v7506
    %v7598 = vsel %vm6398, %v7504, %v7505
    %v7599 = vsel %vm6398, %v7503, %v7504
    %v7600 = vsel %vm6398, %v7502, %v7503
    %v7601 = vsel %vm6398, %v7501, %v7502
    %v7602 = vsel %vm6398, %v7500, %v7501
    %v7603 = vsel %vm6398, %v7499, %v7500
    %v7604 = vsel %vm6398, %v7498, %v7499
    %v7605 = vsel %vm6398, %v7497, %v7498
    %v7606 = vsel %vm6398, %v7496, %v7497
    %v7607 = vsel %vm6398, %v7495, %v7496
    %v7608 = vsel %vm6398, %v7494, %v7495
    %v7609 = vsel %vm6398, %v7493, %v7494
    %v7610 = vsel %vm6398, %v7492, %v7493
    %v7611 = vsel %vm6398, %v7491, %v7492
    %v7612 = vsel %vm6398, %v7490, %v7491
    %v7613 = vsel %vm6398, %v7489, %v7490
    %v7614 = vsel %vm6398, %v7488, %v7489
    %v7615 = vsel %vm6398, %v7551, %v7488
    %v7616 = vadd.f32 %v7360, %v7613
    %v7617 = vadd.f32 %v7361, %v7612
    %v7618 = vadd.f32 %v7362, %v7611
    %v7619 = vadd.f32 %v7363, %v7610
    %v7620 = vadd.f32 %v7364, %v7609
    %v7621 = vadd.f32 %v7365, %v7608
    %v7622 = vadd.f32 %v7366, %v7607
    %v7623 = vadd.f32 %v7367, %v7606
    %v7624 = vadd.f32 %v7368, %v7605
    %v7625 = vadd.f32 %v7369, %v7604
    %v7626 = vadd.f32 %v7370, %v7603
    %v7627 = vadd.f32 %v7371, %v7602
    %v7628 = vadd.f32 %v7372, %v7601
    %v7629 = vadd.f32 %v7373, %v7600
    %v7630 = vadd.f32 %v7374, %v7599
    %v7631 = vadd.f32 %v7375, %v7598
    %v7632 = vadd.f32 %v7376, %v7597
    %v7633 = vadd.f32 %v7377, %v7596
    %v7634 = vadd.f32 %v7378, %v7595
    %v7635 = vadd.f32 %v7379, %v7594
    %v7636 = vadd.f32 %v7380, %v7593
    %v7637 = vadd.f32 %v7381, %v7592
    %v7638 = vadd.f32 %v7382, %v7591
    %v7639 = vadd.f32 %v7383, %v7590
    %v7640 = vadd.f32 %v7384, %v7589
    %v7641 = vadd.f32 %v7385, %v7588
    %v7642 = vadd.f32 %v7386, %v7587
    %v7643 = vadd.f32 %v7387, %v7586
    %v7644 = vadd.f32 %v7388, %v7585
    %v7645 = vadd.f32 %v7389, %v7584
    %v7646 = vadd.f32 %v7390, %v7583
    %v7647 = vadd.f32 %v7391, %v7582
    %v7648 = vadd.f32 %v7392, %v7581
    %v7649 = vadd.f32 %v7393, %v7580
    %v7650 = vadd.f32 %v7394, %v7579
    %v7651 = vadd.f32 %v7395, %v7578
    %v7652 = vadd.f32 %v7396, %v7577
    %v7653 = vadd.f32 %v7397, %v7576
    %v7654 = vadd.f32 %v7398, %v7575
    %v7655 = vadd.f32 %v7399, %v7574
    %v7656 = vadd.f32 %v7400, %v7573
    %v7657 = vadd.f32 %v7401, %v7572
    %v7658 = vadd.f32 %v7402, %v7571
    %v7659 = vadd.f32 %v7403, %v7570
    %v7660 = vadd.f32 %v7404, %v7569
    %v7661 = vadd.f32 %v7405, %v7568
    %v7662 = vadd.f32 %v7406, %v7567
    %v7663 = vadd.f32 %v7407, %v7566
    %v7664 = vadd.f32 %v7408, %v7565
    %v7665 = vadd.f32 %v7409, %v7564
    %v7666 = vadd.f32 %v7410, %v7563
    %v7667 = vadd.f32 %v7411, %v7562
    %v7668 = vadd.f32 %v7412, %v7561
    %v7669 = vadd.f32 %v7413, %v7560
    %v7670 = vadd.f32 %v7414, %v7559
    %v7671 = vadd.f32 %v7415, %v7558
    %v7672 = vadd.f32 %v7416, %v7557
    %v7673 = vadd.f32 %v7417, %v7556
    %v7674 = vadd.f32 %v7418, %v7555
    %v7675 = vadd.f32 %v7419, %v7554
    %v7676 = vadd.f32 %v7420, %v7553
    %v7677 = vadd.f32 %v7421, %v7552
    %v7678 = vadd.f32 %v7422, %v7615
    %v7679 = vadd.f32 %v7423, %v7614
    %v7680 = vld [vmem:[#allocation2 + $0x38] sm:$0xff]
    %v7681 = vld [vmem:[#allocation2 + $0x80] sm:$0xff]
    %v7682 = vld [vmem:[#allocation2 + $0xc8] sm:$0xff]
    %v7683 = vld [vmem:[#allocation2 + $0x110] sm:$0xff]
    %v7684 = vld [vmem:[#allocation2 + $0x158] sm:$0xff]
    %v7685 = vld [vmem:[#allocation2 + $0x1a0] sm:$0xff]
    %v7686 = vld [vmem:[#allocation2 + $0x1e8] sm:$0xff]
    %v7687 = vld [vmem:[#allocation2 + $0x230] sm:$0xff]
    %v7688 = vld [vmem:[#allocation2 + $0x278] sm:$0xff]
    %v7689 = vld [vmem:[#allocation2 + $0x2c0] sm:$0xff]
    %v7690 = vld [vmem:[#allocation2 + $0x308] sm:$0xff]
    %v7691 = vld [vmem:[#allocation2 + $0x350] sm:$0xff]
    %v7692 = vld [vmem:[#allocation2 + $0x398] sm:$0xff]
    %v7693 = vld [vmem:[#allocation2 + $0x3e0] sm:$0xff]
    %v7694 = vld [vmem:[#allocation2 + $0x428] sm:$0xff]
    %v7695 = vld [vmem:[#allocation2 + $0x470] sm:$0xff]
    %v7696 = vld [vmem:[#allocation2 + $0x4b8] sm:$0xff]
    %v7697 = vld [vmem:[#allocation2 + $0x500] sm:$0xff]
    %v7698 = vld [vmem:[#allocation2 + $0x548] sm:$0xff]
    %v7699 = vld [vmem:[#allocation2 + $0x590] sm:$0xff]
    %v7700 = vld [vmem:[#allocation2 + $0x5d8] sm:$0xff]
    %v7701 = vld [vmem:[#allocation2 + $0x620] sm:$0xff]
    %v7702 = vld [vmem:[#allocation2 + $0x668] sm:$0xff]
    %v7703 = vld [vmem:[#allocation2 + $0x6b0] sm:$0xff]
    %v7704 = vld [vmem:[#allocation2 + $0x6f8] sm:$0xff]
    %v7705 = vld [vmem:[#allocation2 + $0x740] sm:$0xff]
    %v7706 = vld [vmem:[#allocation2 + $0x788] sm:$0xff]
    %v7707 = vld [vmem:[#allocation2 + $0x7d0] sm:$0xff]
    %v7708 = vld [vmem:[#allocation2 + $0x818] sm:$0xff]
    %v7709 = vld [vmem:[#allocation2 + $0x860] sm:$0xff]
    %v7710 = vld [vmem:[#allocation2 + $0x8a8] sm:$0xff]
    %v7711 = vld [vmem:[#allocation2 + $0x8f0] sm:$0xff]
    %v7712 = vld [vmem:[#allocation2 + $0x938] sm:$0xff]
    %v7713 = vld [vmem:[#allocation2 + $0x980] sm:$0xff]
    %v7714 = vld [vmem:[#allocation2 + $0x9c8] sm:$0xff]
    %v7715 = vld [vmem:[#allocation2 + $0xa10] sm:$0xff]
    %v7716 = vld [vmem:[#allocation2 + $0xa58] sm:$0xff]
    %v7717 = vld [vmem:[#allocation2 + $0xaa0] sm:$0xff]
    %v7718 = vld [vmem:[#allocation2 + $0xae8] sm:$0xff]
    %v7719 = vld [vmem:[#allocation2 + $0xb30] sm:$0xff]
    %v7720 = vld [vmem:[#allocation2 + $0xb78] sm:$0xff]
    %v7721 = vld [vmem:[#allocation2 + $0xbc0] sm:$0xff]
    %v7722 = vld [vmem:[#allocation2 + $0xc08] sm:$0xff]
    %v7723 = vld [vmem:[#allocation2 + $0xc50] sm:$0xff]
    %v7724 = vld [vmem:[#allocation2 + $0xc98] sm:$0xff]
    %v7725 = vld [vmem:[#allocation2 + $0xce0] sm:$0xff]
    %v7726 = vld [vmem:[#allocation2 + $0xd28] sm:$0xff]
    %v7727 = vld [vmem:[#allocation2 + $0xd70] sm:$0xff]
    %v7728 = vld [vmem:[#allocation2 + $0xdb8] sm:$0xff]
    %v7729 = vld [vmem:[#allocation2 + $0xe00] sm:$0xff]
    %v7730 = vld [vmem:[#allocation2 + $0xe48] sm:$0xff]
    %v7731 = vld [vmem:[#allocation2 + $0xe90] sm:$0xff]
    %v7732 = vld [vmem:[#allocation2 + $0xed8] sm:$0xff]
    %v7733 = vld [vmem:[#allocation2 + $0xf20] sm:$0xff]
    %v7734 = vld [vmem:[#allocation2 + $0xf68] sm:$0xff]
    %v7735 = vld [vmem:[#allocation2 + $0xfb0] sm:$0xff]
    %v7736 = vld [vmem:[#allocation2 + $0xff8] sm:$0xff]
    %v7737 = vld [vmem:[#allocation2 + $0x1040] sm:$0xff]
    %v7738 = vld [vmem:[#allocation2 + $0x1088] sm:$0xff]
    %v7739 = vld [vmem:[#allocation2 + $0x10d0] sm:$0xff]
    %v7740 = vld [vmem:[#allocation2 + $0x1118] sm:$0xff]
    %v7741 = vld [vmem:[#allocation2 + $0x1160] sm:$0xff]
    %v7742 = vld [vmem:[#allocation2 + $0x11a8] sm:$0xff]
    %v7743 = vld [vmem:[#allocation2 + $0x11f0] sm:$0xff]
    %v7744 = vadd.f32 %v7616, %v7682
    %v7745 = vadd.f32 %v7617, %v7683
    %v7746 = vadd.f32 %v7618, %v7684
    %v7747 = vadd.f32 %v7619, %v7685
    %v7748 = vadd.f32 %v7620, %v7686
    %v7749 = vadd.f32 %v7621, %v7687
    %v7750 = vadd.f32 %v7622, %v7688
    %v7751 = vadd.f32 %v7623, %v7689
    %v7752 = vadd.f32 %v7624, %v7690
    %v7753 = vadd.f32 %v7625, %v7691
    %v7754 = vadd.f32 %v7626, %v7692
    %v7755 = vadd.f32 %v7627, %v7693
    %v7756 = vadd.f32 %v7628, %v7694
    %v7757 = vadd.f32 %v7629, %v7695
    %v7758 = vadd.f32 %v7630, %v7696
    %v7759 = vadd.f32 %v7631, %v7697
    %v7760 = vadd.f32 %v7632, %v7698
    %v7761 = vadd.f32 %v7633, %v7699
    %v7762 = vadd.f32 %v7634, %v7700
    %v7763 = vadd.f32 %v7635, %v7701
    %v7764 = vadd.f32 %v7636, %v7702
    %v7765 = vadd.f32 %v7637, %v7703
    %v7766 = vadd.f32 %v7638, %v7704
    %v7767 = vadd.f32 %v7639, %v7705
    %v7768 = vadd.f32 %v7640, %v7706
    %v7769 = vadd.f32 %v7641, %v7707
    %v7770 = vadd.f32 %v7642, %v7708
    %v7771 = vadd.f32 %v7643, %v7709
    %v7772 = vadd.f32 %v7644, %v7710
    %v7773 = vadd.f32 %v7645, %v7711
    %v7774 = vadd.f32 %v7646, %v7712
    %v7775 = vadd.f32 %v7647, %v7713
    %v7776 = vadd.f32 %v7648, %v7714
    %v7777 = vadd.f32 %v7649, %v7715
    %v7778 = vadd.f32 %v7650, %v7716
    %v7779 = vadd.f32 %v7651, %v7717
    %v7780 = vadd.f32 %v7652, %v7718
    %v7781 = vadd.f32 %v7653, %v7719
    %v7782 = vadd.f32 %v7654, %v7720
    %v7783 = vadd.f32 %v7655, %v7721
    %v7784 = vadd.f32 %v7656, %v7722
    %v7785 = vadd.f32 %v7657, %v7723
    %v7786 = vadd.f32 %v7658, %v7724
    %v7787 = vadd.f32 %v7659, %v7725
    %v7788 = vadd.f32 %v7660, %v7726
    %v7789 = vadd.f32 %v7661, %v7727
    %v7790 = vadd.f32 %v7662, %v7728
    %v7791 = vadd.f32 %v7663, %v7729
    %v7792 = vadd.f32 %v7664, %v7730
    %v7793 = vadd.f32 %v7665, %v7731
    %v7794 = vadd.f32 %v7666, %v7732
    %v7795 = vadd.f32 %v7667, %v7733
    %v7796 = vadd.f32 %v7668, %v7734
    %v7797 = vadd.f32 %v7669, %v7735
    %v7798 = vadd.f32 %v7670, %v7736
    %v7799 = vadd.f32 %v7671, %v7737
    %v7800 = vadd.f32 %v7672, %v7738
    %v7801 = vadd.f32 %v7673, %v7739
    %v7802 = vadd.f32 %v7674, %v7740
    %v7803 = vadd.f32 %v7675, %v7741
    %v7804 = vadd.f32 %v7676, %v7742
    %v7805 = vadd.f32 %v7677, %v7743
    %v7806 = vadd.f32 %v7678, %v7680
    %v7807 = vadd.f32 %v7679, %v7681
    %v7808 = vld [vmem:[#allocation2 + $0x40] sm:$0xff]
    %v7809 = vld [vmem:[#allocation2 + $0x88] sm:$0xff]
    %v7810 = vld [vmem:[#allocation2 + $0xd0] sm:$0xff]
    %v7811 = vld [vmem:[#allocation2 + $0x118] sm:$0xff]
    %v7812 = vld [vmem:[#allocation2 + $0x160] sm:$0xff]
    %v7813 = vld [vmem:[#allocation2 + $0x1a8] sm:$0xff]
    %v7814 = vld [vmem:[#allocation2 + $0x1f0] sm:$0xff]
    %v7815 = vld [vmem:[#allocation2 + $0x238] sm:$0xff]
    %v7816 = vld [vmem:[#allocation2 + $0x280] sm:$0xff]
    %v7817 = vld [vmem:[#allocation2 + $0x2c8] sm:$0xff]
    %v7818 = vld [vmem:[#allocation2 + $0x310] sm:$0xff]
    %v7819 = vld [vmem:[#allocation2 + $0x358] sm:$0xff]
    %v7820 = vld [vmem:[#allocation2 + $0x3a0] sm:$0xff]
    %v7821 = vld [vmem:[#allocation2 + $0x3e8] sm:$0xff]
    %v7822 = vld [vmem:[#allocation2 + $0x430] sm:$0xff]
    %v7823 = vld [vmem:[#allocation2 + $0x478] sm:$0xff]
    %v7824 = vld [vmem:[#allocation2 + $0x4c0] sm:$0xff]
    %v7825 = vld [vmem:[#allocation2 + $0x508] sm:$0xff]
    %v7826 = vld [vmem:[#allocation2 + $0x550] sm:$0xff]
    %v7827 = vld [vmem:[#allocation2 + $0x598] sm:$0xff]
    %v7828 = vld [vmem:[#allocation2 + $0x5e0] sm:$0xff]
    %v7829 = vld [vmem:[#allocation2 + $0x628] sm:$0xff]
    %v7830 = vld [vmem:[#allocation2 + $0x670] sm:$0xff]
    %v7831 = vld [vmem:[#allocation2 + $0x6b8] sm:$0xff]
    %v7832 = vld [vmem:[#allocation2 + $0x700] sm:$0xff]
    %v7833 = vld [vmem:[#allocation2 + $0x748] sm:$0xff]
    %v7834 = vld [vmem:[#allocation2 + $0x790] sm:$0xff]
    %v7835 = vld [vmem:[#allocation2 + $0x7d8] sm:$0xff]
    %v7836 = vld [vmem:[#allocation2 + $0x820] sm:$0xff]
    %v7837 = vld [vmem:[#allocation2 + $0x868] sm:$0xff]
    %v7838 = vld [vmem:[#allocation2 + $0x8b0] sm:$0xff]
    %v7839 = vld [vmem:[#allocation2 + $0x8f8] sm:$0xff]
    %v7840 = vld [vmem:[#allocation2 + $0x940] sm:$0xff]
    %v7841 = vld [vmem:[#allocation2 + $0x988] sm:$0xff]
    %v7842 = vld [vmem:[#allocation2 + $0x9d0] sm:$0xff]
    %v7843 = vld [vmem:[#allocation2 + $0xa18] sm:$0xff]
    %v7844 = vld [vmem:[#allocation2 + $0xa60] sm:$0xff]
    %v7845 = vld [vmem:[#allocation2 + $0xaa8] sm:$0xff]
    %v7846 = vld [vmem:[#allocation2 + $0xaf0] sm:$0xff]
    %v7847 = vld [vmem:[#allocation2 + $0xb38] sm:$0xff]
    %v7848 = vld [vmem:[#allocation2 + $0xb80] sm:$0xff]
    %v7849 = vld [vmem:[#allocation2 + $0xbc8] sm:$0xff]
    %v7850 = vld [vmem:[#allocation2 + $0xc10] sm:$0xff]
    %v7851 = vld [vmem:[#allocation2 + $0xc58] sm:$0xff]
    %v7852 = vld [vmem:[#allocation2 + $0xca0] sm:$0xff]
    %v7853 = vld [vmem:[#allocation2 + $0xce8] sm:$0xff]
    %v7854 = vld [vmem:[#allocation2 + $0xd30] sm:$0xff]
    %v7855 = vld [vmem:[#allocation2 + $0xd78] sm:$0xff]
    %v7856 = vld [vmem:[#allocation2 + $0xdc0] sm:$0xff]
    %v7857 = vld [vmem:[#allocation2 + $0xe08] sm:$0xff]
    %v7858 = vld [vmem:[#allocation2 + $0xe50] sm:$0xff]
    %v7859 = vld [vmem:[#allocation2 + $0xe98] sm:$0xff]
    %v7860 = vld [vmem:[#allocation2 + $0xee0] sm:$0xff]
    %v7861 = vld [vmem:[#allocation2 + $0xf28] sm:$0xff]
    %v7862 = vld [vmem:[#allocation2 + $0xf70] sm:$0xff]
    %v7863 = vld [vmem:[#allocation2 + $0xfb8] sm:$0xff]
    %v7864 = vld [vmem:[#allocation2 + $0x1000] sm:$0xff]
    %v7865 = vld [vmem:[#allocation2 + $0x1048] sm:$0xff]
    %v7866 = vld [vmem:[#allocation2 + $0x1090] sm:$0xff]
    %v7867 = vld [vmem:[#allocation2 + $0x10d8] sm:$0xff]
    %v7868 = vld [vmem:[#allocation2 + $0x1120] sm:$0xff]
    %v7869 = vld [vmem:[#allocation2 + $0x1168] sm:$0xff]
    %v7870 = vld [vmem:[#allocation2 + $0x11b0] sm:$0xff]
    %v7871 = vld [vmem:[#allocation2 + $0x11f8] sm:$0xff]
    %v7872 = vrot.slane %v7808, 1
    %v7873 = vrot.slane %v7809, 1
    %v7874 = vrot.slane %v7810, 1
    %v7875 = vrot.slane %v7811, 1
    %v7876 = vrot.slane %v7812, 1
    %v7877 = vrot.slane %v7813, 1
    %v7878 = vrot.slane %v7814, 1
    %v7879 = vrot.slane %v7815, 1
    %v7880 = vrot.slane %v7816, 1
    %v7881 = vrot.slane %v7817, 1
    %v7882 = vrot.slane %v7818, 1
    %v7883 = vrot.slane %v7819, 1
    %v7884 = vrot.slane %v7820, 1
    %v7885 = vrot.slane %v7821, 1
    %v7886 = vrot.slane %v7822, 1
    %v7887 = vrot.slane %v7823, 1
    %v7888 = vrot.slane %v7824, 1
    %v7889 = vrot.slane %v7825, 1
    %v7890 = vrot.slane %v7826, 1
    %v7891 = vrot.slane %v7827, 1
    %v7892 = vrot.slane %v7828, 1
    %v7893 = vrot.slane %v7829, 1
    %v7894 = vrot.slane %v7830, 1
    %v7895 = vrot.slane %v7831, 1
    %v7896 = vrot.slane %v7832, 1
    %v7897 = vrot.slane %v7833, 1
    %v7898 = vrot.slane %v7834, 1
    %v7899 = vrot.slane %v7835, 1
    %v7900 = vrot.slane %v7836, 1
    %v7901 = vrot.slane %v7837, 1
    %v7902 = vrot.slane %v7838, 1
    %v7903 = vrot.slane %v7839, 1
    %v7904 = vrot.slane %v7840, 1
    %v7905 = vrot.slane %v7841, 1
    %v7906 = vrot.slane %v7842, 1
    %v7907 = vrot.slane %v7843, 1
    %v7908 = vrot.slane %v7844, 1
    %v7909 = vrot.slane %v7845, 1
    %v7910 = vrot.slane %v7846, 1
    %v7911 = vrot.slane %v7847, 1
    %v7912 = vrot.slane %v7848, 1
    %v7913 = vrot.slane %v7849, 1
    %v7914 = vrot.slane %v7850, 1
    %v7915 = vrot.slane %v7851, 1
    %v7916 = vrot.slane %v7852, 1
    %v7917 = vrot.slane %v7853, 1
    %v7918 = vrot.slane %v7854, 1
    %v7919 = vrot.slane %v7855, 1
    %v7920 = vrot.slane %v7856, 1
    %v7921 = vrot.slane %v7857, 1
    %v7922 = vrot.slane %v7858, 1
    %v7923 = vrot.slane %v7859, 1
    %v7924 = vrot.slane %v7860, 1
    %v7925 = vrot.slane %v7861, 1
    %v7926 = vrot.slane %v7862, 1
    %v7927 = vrot.slane %v7863, 1
    %v7928 = vrot.slane %v7864, 1
    %v7929 = vrot.slane %v7865, 1
    %v7930 = vrot.slane %v7866, 1
    %v7931 = vrot.slane %v7867, 1
    %v7932 = vrot.slane %v7868, 1
    %v7933 = vrot.slane %v7869, 1
    %v7934 = vrot.slane %v7870, 1
    %v7935 = vrot.slane %v7871, 1
    %v7936 = vsel %vm6783, %v7934, %v7935
    %v7937 = vsel %vm6783, %v7933, %v7934
    %v7938 = vsel %vm6783, %v7932, %v7933
    %v7939 = vsel %vm6783, %v7931, %v7932
    %v7940 = vsel %vm6783, %v7930, %v7931
    %v7941 = vsel %vm6783, %v7929, %v7930
    %v7942 = vsel %vm6783, %v7928, %v7929
    %v7943 = vsel %vm6783, %v7927, %v7928
    %v7944 = vsel %vm6783, %v7926, %v7927
    %v7945 = vsel %vm6783, %v7925, %v7926
    %v7946 = vsel %vm6783, %v7924, %v7925
    %v7947 = vsel %vm6783, %v7923, %v7924
    %v7948 = vsel %vm6783, %v7922, %v7923
    %v7949 = vsel %vm6783, %v7921, %v7922
    %v7950 = vsel %vm6783, %v7920, %v7921
    %v7951 = vsel %vm6783, %v7919, %v7920
    %v7952 = vsel %vm6783, %v7918, %v7919
    %v7953 = vsel %vm6783, %v7917, %v7918
    %v7954 = vsel %vm6783, %v7916, %v7917
    %v7955 = vsel %vm6783, %v7915, %v7916
    %v7956 = vsel %vm6783, %v7914, %v7915
    %v7957 = vsel %vm6783, %v7913, %v7914
    %v7958 = vsel %vm6783, %v7912, %v7913
    %v7959 = vsel %vm6783, %v7911, %v7912
    %v7960 = vsel %vm6783, %v7910, %v7911
    %v7961 = vsel %vm6783, %v7909, %v7910
    %v7962 = vsel %vm6783, %v7908, %v7909
    %v7963 = vsel %vm6783, %v7907, %v7908
    %v7964 = vsel %vm6783, %v7906, %v7907
    %v7965 = vsel %vm6783, %v7905, %v7906
    %v7966 = vsel %vm6783, %v7904, %v7905
    %v7967 = vsel %vm6783, %v7903, %v7904
    %v7968 = vsel %vm6783, %v7902, %v7903
    %v7969 = vsel %vm6783, %v7901, %v7902
    %v7970 = vsel %vm6783, %v7900, %v7901
    %v7971 = vsel %vm6783, %v7899, %v7900
    %v7972 = vsel %vm6783, %v7898, %v7899
    %v7973 = vsel %vm6783, %v7897, %v7898
    %v7974 = vsel %vm6783, %v7896, %v7897
    %v7975 = vsel %vm6783, %v7895, %v7896
    %v7976 = vsel %vm6783, %v7894, %v7895
    %v7977 = vsel %vm6783, %v7893, %v7894
    %v7978 = vsel %vm6783, %v7892, %v7893
    %v7979 = vsel %vm6783, %v7891, %v7892
    %v7980 = vsel %vm6783, %v7890, %v7891
    %v7981 = vsel %vm6783, %v7889, %v7890
    %v7982 = vsel %vm6783, %v7888, %v7889
    %v7983 = vsel %vm6783, %v7887, %v7888
    %v7984 = vsel %vm6783, %v7886, %v7887
    %v7985 = vsel %vm6783, %v7885, %v7886
    %v7986 = vsel %vm6783, %v7884, %v7885
    %v7987 = vsel %vm6783, %v7883, %v7884
    %v7988 = vsel %vm6783, %v7882, %v7883
    %v7989 = vsel %vm6783, %v7881, %v7882
    %v7990 = vsel %vm6783, %v7880, %v7881
    %v7991 = vsel %vm6783, %v7879, %v7880
    %v7992 = vsel %vm6783, %v7878, %v7879
    %v7993 = vsel %vm6783, %v7877, %v7878
    %v7994 = vsel %vm6783, %v7876, %v7877
    %v7995 = vsel %vm6783, %v7875, %v7876
    %v7996 = vsel %vm6783, %v7874, %v7875
    %v7997 = vsel %vm6783, %v7873, %v7874
    %v7998 = vsel %vm6783, %v7872, %v7873
    %v7999 = vsel %vm6783, %v7935, %v7872
    %v8000 = vadd.f32 %v7744, %v7996
    %v8001 = vadd.f32 %v7745, %v7995
    %v8002 = vadd.f32 %v7746, %v7994
    %v8003 = vadd.f32 %v7747, %v7993
    %v8004 = vadd.f32 %v7748, %v7992
    %v8005 = vadd.f32 %v7749, %v7991
    %v8006 = vadd.f32 %v7750, %v7990
    %v8007 = vadd.f32 %v7751, %v7989
    %v8008 = vadd.f32 %v7752, %v7988
    %v8009 = vadd.f32 %v7753, %v7987
    %v8010 = vadd.f32 %v7754, %v7986
    %v8011 = vadd.f32 %v7755, %v7985
    %v8012 = vadd.f32 %v7756, %v7984
    %v8013 = vadd.f32 %v7757, %v7983
    %v8014 = vadd.f32 %v7758, %v7982
    %v8015 = vadd.f32 %v7759, %v7981
    %v8016 = vadd.f32 %v7760, %v7980
    %v8017 = vadd.f32 %v7761, %v7979
    %v8018 = vadd.f32 %v7762, %v7978
    %v8019 = vadd.f32 %v7763, %v7977
    %v8020 = vadd.f32 %v7764, %v7976
    %v8021 = vadd.f32 %v7765, %v7975
    %v8022 = vadd.f32 %v7766, %v7974
    %v8023 = vadd.f32 %v7767, %v7973
    %v8024 = vadd.f32 %v7768, %v7972
    %v8025 = vadd.f32 %v7769, %v7971
    %v8026 = vadd.f32 %v7770, %v7970
    %v8027 = vadd.f32 %v7771, %v7969
    %v8028 = vadd.f32 %v7772, %v7968
    %v8029 = vadd.f32 %v7773, %v7967
    %v8030 = vadd.f32 %v7774, %v7966
    %v8031 = vadd.f32 %v7775, %v7965
    %v8032 = vadd.f32 %v7776, %v7964
    %v8033 = vadd.f32 %v7777, %v7963
    %v8034 = vadd.f32 %v7778, %v7962
    %v8035 = vadd.f32 %v7779, %v7961
    %v8036 = vadd.f32 %v7780, %v7960
    %v8037 = vadd.f32 %v7781, %v7959
    %v8038 = vadd.f32 %v7782, %v7958
    %v8039 = vadd.f32 %v7783, %v7957
    %v8040 = vadd.f32 %v7784, %v7956
    %v8041 = vadd.f32 %v7785, %v7955
    %v8042 = vadd.f32 %v7786, %v7954
    %v8043 = vadd.f32 %v7787, %v7953
    %v8044 = vadd.f32 %v7788, %v7952
    %v8045 = vadd.f32 %v7789, %v7951
    %v8046 = vadd.f32 %v7790, %v7950
    %v8047 = vadd.f32 %v7791, %v7949
    %v8048 = vadd.f32 %v7792, %v7948
    %v8049 = vadd.f32 %v7793, %v7947
    %v8050 = vadd.f32 %v7794, %v7946
    %v8051 = vadd.f32 %v7795, %v7945
    %v8052 = vadd.f32 %v7796, %v7944
    %v8053 = vadd.f32 %v7797, %v7943
    %v8054 = vadd.f32 %v7798, %v7942
    %v8055 = vadd.f32 %v7799, %v7941
    %v8056 = vadd.f32 %v7800, %v7940
    %v8057 = vadd.f32 %v7801, %v7939
    %v8058 = vadd.f32 %v7802, %v7938
    %v8059 = vadd.f32 %v7803, %v7937
    %v8060 = vadd.f32 %v7804, %v7936
    %v8061 = vadd.f32 %v7805, %v7999
    %v8062 = vadd.f32 %v7806, %v7998
    %v8063 = vadd.f32 %v7807, %v7997
    %v8064 = vld [vmem:[%s0] sm:$0xff]
    %v8065 = vld [vmem:[%s0 + $0x8] sm:$0xff]
    %v8066 = vld [vmem:[%s0 + $0x10] sm:$0xff]
    %v8067 = vld [vmem:[%s0 + $0x18] sm:$0xff]
    %v8068 = vld [vmem:[%s0 + $0x20] sm:$0xff]
    %v8069 = vld [vmem:[%s0 + $0x28] sm:$0xff]
    %v8070 = vld [vmem:[%s0 + $0x30] sm:$0xff]
    %v8071 = vld [vmem:[%s0 + $0x38] sm:$0xff]
    %v8072 = vld [vmem:[%s0 + $0x40] sm:$0xff]
    %v8073 = vld [vmem:[%s0 + $0x48] sm:$0xff]
    %v8074 = vld [vmem:[%s0 + $0x50] sm:$0xff]
    %v8075 = vld [vmem:[%s0 + $0x58] sm:$0xff]
    %v8076 = vld [vmem:[%s0 + $0x60] sm:$0xff]
    %v8077 = vld [vmem:[%s0 + $0x68] sm:$0xff]
    %v8078 = vld [vmem:[%s0 + $0x70] sm:$0xff]
    %v8079 = vld [vmem:[%s0 + $0x78] sm:$0xff]
    %v8080 = vld [vmem:[%s0 + $0x80] sm:$0xff]
    %v8081 = vld [vmem:[%s0 + $0x88] sm:$0xff]
    %v8082 = vld [vmem:[%s0 + $0x90] sm:$0xff]
    %v8083 = vld [vmem:[%s0 + $0x98] sm:$0xff]
    %v8084 = vld [vmem:[%s0 + $0xa0] sm:$0xff]
    %v8085 = vld [vmem:[%s0 + $0xa8] sm:$0xff]
    %v8086 = vld [vmem:[%s0 + $0xb0] sm:$0xff]
    %v8087 = vld [vmem:[%s0 + $0xb8] sm:$0xff]
    %v8088 = vld [vmem:[%s0 + $0xc0] sm:$0xff]
    %v8089 = vld [vmem:[%s0 + $0xc8] sm:$0xff]
    %v8090 = vld [vmem:[%s0 + $0xd0] sm:$0xff]
    %v8091 = vld [vmem:[%s0 + $0xd8] sm:$0xff]
    %v8092 = vld [vmem:[%s0 + $0xe0] sm:$0xff]
    %v8093 = vld [vmem:[%s0 + $0xe8] sm:$0xff]
    %v8094 = vld [vmem:[%s0 + $0xf0] sm:$0xff]
    %v8095 = vld [vmem:[%s0 + $0xf8] sm:$0xff]
    %v8096 = vld [vmem:[%s0 + $0x100] sm:$0xff]
    %v8097 = vld [vmem:[%s0 + $0x108] sm:$0xff]
    %v8098 = vld [vmem:[%s0 + $0x110] sm:$0xff]
    %v8099 = vld [vmem:[%s0 + $0x118] sm:$0xff]
    %v8100 = vld [vmem:[%s0 + $0x120] sm:$0xff]
    %v8101 = vld [vmem:[%s0 + $0x128] sm:$0xff]
    %v8102 = vld [vmem:[%s0 + $0x130] sm:$0xff]
    %v8103 = vld [vmem:[%s0 + $0x138] sm:$0xff]
    %v8104 = vld [vmem:[%s0 + $0x140] sm:$0xff]
    %v8105 = vld [vmem:[%s0 + $0x148] sm:$0xff]
    %v8106 = vld [vmem:[%s0 + $0x150] sm:$0xff]
    %v8107 = vld [vmem:[%s0 + $0x158] sm:$0xff]
    %v8108 = vld [vmem:[%s0 + $0x160] sm:$0xff]
    %v8109 = vld [vmem:[%s0 + $0x168] sm:$0xff]
    %v8110 = vld [vmem:[%s0 + $0x170] sm:$0xff]
    %v8111 = vld [vmem:[%s0 + $0x178] sm:$0xff]
    %v8112 = vld [vmem:[%s0 + $0x180] sm:$0xff]
    %v8113 = vld [vmem:[%s0 + $0x188] sm:$0xff]
    %v8114 = vld [vmem:[%s0 + $0x190] sm:$0xff]
    %v8115 = vld [vmem:[%s0 + $0x198] sm:$0xff]
    %v8116 = vld [vmem:[%s0 + $0x1a0] sm:$0xff]
    %v8117 = vld [vmem:[%s0 + $0x1a8] sm:$0xff]
    %v8118 = vld [vmem:[%s0 + $0x1b0] sm:$0xff]
    %v8119 = vld [vmem:[%s0 + $0x1b8] sm:$0xff]
    %v8120 = vld [vmem:[%s0 + $0x1c0] sm:$0xff]
    %v8121 = vld [vmem:[%s0 + $0x1c8] sm:$0xff]
    %v8122 = vld [vmem:[%s0 + $0x1d0] sm:$0xff]
    %v8123 = vld [vmem:[%s0 + $0x1d8] sm:$0xff]
    %v8124 = vld [vmem:[%s0 + $0x1e0] sm:$0xff]
    %v8125 = vld [vmem:[%s0 + $0x1e8] sm:$0xff]
    %v8126 = vld [vmem:[%s0 + $0x1f0] sm:$0xff]
    %v8127 = vld [vmem:[%s0 + $0x1f8] sm:$0xff]
    %v8128 = vadd.f32 %v8000, %v8064
    %v8129 = vadd.f32 %v8001, %v8065
    %v8130 = vadd.f32 %v8002, %v8066
    %v8131 = vadd.f32 %v8003, %v8067
    %v8132 = vadd.f32 %v8004, %v8068
    %v8133 = vadd.f32 %v8005, %v8069
    %v8134 = vadd.f32 %v8006, %v8070
    %v8135 = vadd.f32 %v8007, %v8071
    %v8136 = vadd.f32 %v8008, %v8072
    %v8137 = vadd.f32 %v8009, %v8073
    %v8138 = vadd.f32 %v8010, %v8074
    %v8139 = vadd.f32 %v8011, %v8075
    %v8140 = vadd.f32 %v8012, %v8076
    %v8141 = vadd.f32 %v8013, %v8077
    %v8142 = vadd.f32 %v8014, %v8078
    %v8143 = vadd.f32 %v8015, %v8079
    %v8144 = vadd.f32 %v8016, %v8080
    %v8145 = vadd.f32 %v8017, %v8081
    %v8146 = vadd.f32 %v8018, %v8082
    %v8147 = vadd.f32 %v8019, %v8083
    %v8148 = vadd.f32 %v8020, %v8084
    %v8149 = vadd.f32 %v8021, %v8085
    %v8150 = vadd.f32 %v8022, %v8086
    %v8151 = vadd.f32 %v8023, %v8087
    %v8152 = vadd.f32 %v8024, %v8088
    %v8153 = vadd.f32 %v8025, %v8089
    %v8154 = vadd.f32 %v8026, %v8090
    %v8155 = vadd.f32 %v8027, %v8091
    %v8156 = vadd.f32 %v8028, %v8092
    %v8157 = vadd.f32 %v8029, %v8093
    %v8158 = vadd.f32 %v8030, %v8094
    %v8159 = vadd.f32 %v8031, %v8095
    %v8160 = vadd.f32 %v8032, %v8096
    %v8161 = vadd.f32 %v8033, %v8097
    %v8162 = vadd.f32 %v8034, %v8098
    %v8163 = vadd.f32 %v8035, %v8099
    %v8164 = vadd.f32 %v8036, %v8100
    %v8165 = vadd.f32 %v8037, %v8101
    %v8166 = vadd.f32 %v8038, %v8102
    %v8167 = vadd.f32 %v8039, %v8103
    %v8168 = vadd.f32 %v8040, %v8104
    %v8169 = vadd.f32 %v8041, %v8105
    %v8170 = vadd.f32 %v8042, %v8106
    %v8171 = vadd.f32 %v8043, %v8107
    %v8172 = vadd.f32 %v8044, %v8108
    %v8173 = vadd.f32 %v8045, %v8109
    %v8174 = vadd.f32 %v8046, %v8110
    %v8175 = vadd.f32 %v8047, %v8111
    %v8176 = vadd.f32 %v8048, %v8112
    %v8177 = vadd.f32 %v8049, %v8113
    %v8178 = vadd.f32 %v8050, %v8114
    %v8179 = vadd.f32 %v8051, %v8115
    %v8180 = vadd.f32 %v8052, %v8116
    %v8181 = vadd.f32 %v8053, %v8117
    %v8182 = vadd.f32 %v8054, %v8118
    %v8183 = vadd.f32 %v8055, %v8119
    %v8184 = vadd.f32 %v8056, %v8120
    %v8185 = vadd.f32 %v8057, %v8121
    %v8186 = vadd.f32 %v8058, %v8122
    %v8187 = vadd.f32 %v8059, %v8123
    %v8188 = vadd.f32 %v8060, %v8124
    %v8189 = vadd.f32 %v8061, %v8125
    %v8190 = vadd.f32 %v8062, %v8126
    %v8191 = vadd.f32 %v8063, %v8127
    %8192 = vst [vmem:[#allocation3] sm:$0xff] %v8128
    %8193 = vst [vmem:[#allocation3 + $0x8] sm:$0xff] %v8129
    %8194 = vst [vmem:[#allocation3 + $0x10] sm:$0xff] %v8130
    %8195 = vst [vmem:[#allocation3 + $0x18] sm:$0xff] %v8131
    %8196 = vst [vmem:[#allocation3 + $0x20] sm:$0xff] %v8132
    %8197 = vst [vmem:[#allocation3 + $0x28] sm:$0xff] %v8133
    %8198 = vst [vmem:[#allocation3 + $0x30] sm:$0xff] %v8134
    %8199 = vst [vmem:[#allocation3 + $0x38] sm:$0xff] %v8135
    %8200 = vst [vmem:[#allocation3 + $0x40] sm:$0xff] %v8136
    %8201 = vst [vmem:[#allocation3 + $0x48] sm:$0xff] %v8137
    %8202 = vst [vmem:[#allocation3 + $0x50] sm:$0xff] %v8138
    %8203 = vst [vmem:[#allocation3 + $0x58] sm:$0xff] %v8139
    %8204 = vst [vmem:[#allocation3 + $0x60] sm:$0xff] %v8140
    %8205 = vst [vmem:[#allocation3 + $0x68] sm:$0xff] %v8141
    %8206 = vst [vmem:[#allocation3 + $0x70] sm:$0xff] %v8142
    %8207 = vst [vmem:[#allocation3 + $0x78] sm:$0xff] %v8143
    %8208 = vst [vmem:[#allocation3 + $0x80] sm:$0xff] %v8144
    %8209 = vst [vmem:[#allocation3 + $0x88] sm:$0xff] %v8145
    %8210 = vst [vmem:[#allocation3 + $0x90] sm:$0xff] %v8146
    %8211 = vst [vmem:[#allocation3 + $0x98] sm:$0xff] %v8147
    %8212 = vst [vmem:[#allocation3 + $0xa0] sm:$0xff] %v8148
    %8213 = vst [vmem:[#allocation3 + $0xa8] sm:$0xff] %v8149
    %8214 = vst [vmem:[#allocation3 + $0xb0] sm:$0xff] %v8150
    %8215 = vst [vmem:[#allocation3 + $0xb8] sm:$0xff] %v8151
    %8216 = vst [vmem:[#allocation3 + $0xc0] sm:$0xff] %v8152
    %8217 = vst [vmem:[#allocation3 + $0xc8] sm:$0xff] %v8153
    %8218 = vst [vmem:[#allocation3 + $0xd0] sm:$0xff] %v8154
    %8219 = vst [vmem:[#allocation3 + $0xd8] sm:$0xff] %v8155
    %8220 = vst [vmem:[#allocation3 + $0xe0] sm:$0xff] %v8156
    %8221 = vst [vmem:[#allocation3 + $0xe8] sm:$0xff] %v8157
    %8222 = vst [vmem:[#allocation3 + $0xf0] sm:$0xff] %v8158
    %8223 = vst [vmem:[#allocation3 + $0xf8] sm:$0xff] %v8159
    %8224 = vst [vmem:[#allocation3 + $0x100] sm:$0xff] %v8160
    %8225 = vst [vmem:[#allocation3 + $0x108] sm:$0xff] %v8161
    %8226 = vst [vmem:[#allocation3 + $0x110] sm:$0xff] %v8162
    %8227 = vst [vmem:[#allocation3 + $0x118] sm:$0xff] %v8163
    %8228 = vst [vmem:[#allocation3 + $0x120] sm:$0xff] %v8164
    %8229 = vst [vmem:[#allocation3 + $0x128] sm:$0xff] %v8165
    %8230 = vst [vmem:[#allocation3 + $0x130] sm:$0xff] %v8166
    %8231 = vst [vmem:[#allocation3 + $0x138] sm:$0xff] %v8167
    %8232 = vst [vmem:[#allocation3 + $0x140] sm:$0xff] %v8168
    %8233 = vst [vmem:[#allocation3 + $0x148] sm:$0xff] %v8169
    %8234 = vst [vmem:[#allocation3 + $0x150] sm:$0xff] %v8170
    %8235 = vst [vmem:[#allocation3 + $0x158] sm:$0xff] %v8171
    %8236 = vst [vmem:[#allocation3 + $0x160] sm:$0xff] %v8172
    %8237 = vst [vmem:[#allocation3 + $0x168] sm:$0xff] %v8173
    %8238 = vst [vmem:[#allocation3 + $0x170] sm:$0xff] %v8174
    %8239 = vst [vmem:[#allocation3 + $0x178] sm:$0xff] %v8175
    %8240 = vst [vmem:[#allocation3 + $0x180] sm:$0xff] %v8176
    %8241 = vst [vmem:[#allocation3 + $0x188] sm:$0xff] %v8177
    %8242 = vst [vmem:[#allocation3 + $0x190] sm:$0xff] %v8178
    %8243 = vst [vmem:[#allocation3 + $0x198] sm:$0xff] %v8179
    %8244 = vst [vmem:[#allocation3 + $0x1a0] sm:$0xff] %v8180
    %8245 = vst [vmem:[#allocation3 + $0x1a8] sm:$0xff] %v8181
    %8246 = vst [vmem:[#allocation3 + $0x1b0] sm:$0xff] %v8182
    %8247 = vst [vmem:[#allocation3 + $0x1b8] sm:$0xff] %v8183
    %8248 = vst [vmem:[#allocation3 + $0x1c0] sm:$0xff] %v8184
    %8249 = vst [vmem:[#allocation3 + $0x1c8] sm:$0xff] %v8185
    %8250 = vst [vmem:[#allocation3 + $0x1d0] sm:$0xff] %v8186
    %8251 = vst [vmem:[#allocation3 + $0x1d8] sm:$0xff] %v8187
    %8252 = vst [vmem:[#allocation3 + $0x1e0] sm:$0xff] %v8188
    %8253 = vst [vmem:[#allocation3 + $0x1e8] sm:$0xff] %v8189
    %8254 = vst [vmem:[#allocation3 + $0x1f0] sm:$0xff] %v8190
    %8255 = vst [vmem:[#allocation3 + $0x1f8] sm:$0xff] %v8191
    // Predicated region
    $region34: #{dense_layer_forward.1} parent=1 // pred_check
      _
    $region35: #{dense_layer_forward.1} parent=1 // pred_check_branch
      %8257 = sbr.rel (0) target = $region37
    $region36: #{dense_layer_forward.1} parent=1 // pred_region
      %s8259 = ssub.s32 8192, 8192
      %8260 = vsyncadd [#allocation4], %s8259
      %s8261 = sshll.u32 [#allocation3], 4
      %s8262 = int_to_ptr.vmem [resolvable:$true] %s8261
      %8267 = dma.vmem_to_hbm [thread:$0]  %s8262, 8192, %s8, [#allocation4], 128, 128, 8
    $region37: #{dense_layer_forward.1} parent=1 // pred_fallthru
      _
    // Predicated region
    $region38: #{dense_layer_forward.1} parent=1 // pred_check
      _
    $region39: #{dense_layer_forward.1} parent=1 // pred_check_branch
      %8269 = sbr.rel (0) target = $region41
    $region40: #{dense_layer_forward.1} parent=1 // pred_region
      %8270 = dma.done [#allocation4], 8192
    $region41: #{dense_layer_forward.1} parent=1 // pred_fallthru
      _
    %8271 = vsyncpa [#allocation4], 1

</llo_original>
